<compile_context>
chip_gen: v6e
topology: v6e:2x2x1
jax: 0.10.0
libtpu: 0.0.40
codegen_flags: <defaults>
</compile_context>

<pallas_src>
import jax
import jax.numpy as jnp
from jax.experimental import pallas as pl
from jax.experimental.pallas import tpu as pltpu

KSIZE = 6
POOL = 4
LANES = 128
# (input_width, output_width) per conv layer; all spatial maps are square.
CONV_DIMS = ((100, 95), (95, 90), (90, 85), (85, 80), (20, 15), (15, 10))
H_IN = W_IN = 100
H_POOL_IN = 80        # conv4 output size
H_POOLED = 20         # after MaxPool2d(4, 4)
H_FINAL = 10          # conv6 output size
F_IN = H_FINAL * H_FINAL   # 100
F_H = 25
F_OUT = 5
WBIG_LANES = 256           # holds the 10 * 25 = 250 (row-block i, unit o) columns


def _p1_cnn_kernel(x_ref, t_ref, rsel_ref, csel_ref, wbig_ref, dmask_ref,
                   sel_ref, w2_ref, out_ref):
    def conv_relu(inp, layer, h_out):
        # cross-correlation as 6 accumulated Toeplitz matmuls (kernel rows);
        # conv bias rides in via the constant-1 lane 127 of `inp`.
        acc = jnp.dot(inp[0:h_out, :], t_ref[6 * layer],
                      preferred_element_type=jnp.float32)
        for kh in range(1, KSIZE):
            acc = acc + jnp.dot(inp[kh:kh + h_out, :], t_ref[6 * layer + kh],
                                preferred_element_type=jnp.float32)
        return jnp.maximum(acc, 0.0)

    x = x_ref[...]                        # (104, 128), lane 127 == 1.0
    y = conv_relu(x, 0, 95)
    y = conv_relu(y, 1, 90)
    y = conv_relu(y, 2, 85)
    y = conv_relu(y, 3, 80)               # (80, 128), valid (80, 80)

    # MaxPool2d(kernel=4, stride=4): selection matmuls + elementwise max.
    rowmax = jnp.dot(rsel_ref[0], y, preferred_element_type=jnp.float32)
    for a in range(1, POOL):
        rowmax = jnp.maximum(
            rowmax, jnp.dot(rsel_ref[a], y, preferred_element_type=jnp.float32))
    pooled = jnp.dot(rowmax, csel_ref[0], preferred_element_type=jnp.float32)
    for b in range(1, POOL):
        pooled = jnp.maximum(
            pooled, jnp.dot(rowmax, csel_ref[b], preferred_element_type=jnp.float32))
    # pooled: (20, 128), valid (20, 20), lane 127 == 1.0

    y = conv_relu(pooled, 4, 15)
    g = conv_relu(y, 5, 10)               # (10, 128), valid (10, 10)

    # flatten + linear1 (bias-free) folded into one matmul + diag-block extract.
    gm = jnp.dot(g, wbig_ref[...], preferred_element_type=jnp.float32)   # (10, 256)
    s = jnp.sum(gm * dmask_ref[...], axis=0, keepdims=True)              # (1, 256)
    h1 = jnp.maximum(
        jnp.dot(s, sel_ref[...], preferred_element_type=jnp.float32), 0.0)   # (1,128)
    h2 = jnp.maximum(
        jnp.dot(h1, w2_ref[...], preferred_element_type=jnp.float32), 0.0)   # (1,128)

    # softmax over the 5 valid lanes (padded lanes masked out).
    lane = jax.lax.broadcasted_iota(jnp.int32, (1, LANES), 1)
    logits = jnp.where(lane < F_OUT, h2, -1e30)
    m = jnp.max(logits, axis=-1, keepdims=True)
    e = jnp.exp(logits - m)
    out_ref[...] = e / jnp.sum(e, axis=-1, keepdims=True)


def _toeplitz_with_bias(w, b, w_in, w_out):
    """(6, 128, 128) Toeplitz stack for one 1-channel 6x6 conv layer.

    T[kh][r, c] = w[kh, r-c] for 0 <= r-c < 6, r < w_in, c < w_out; the conv
    bias and the constant-1 lane propagation are folded into T[0] row 127.
    """
    w = w.reshape(KSIZE, KSIZE).astype(jnp.float32)
    r = jnp.arange(LANES)[:, None]
    c = jnp.arange(LANES)[None, :]
    diff = r - c
    valid = (diff >= 0) & (diff < KSIZE) & (r < w_in) & (c < w_out)
    t = jnp.where(valid[None, :, :], w[:, jnp.clip(diff, 0, KSIZE - 1)], 0.0)
    t = t.at[0, LANES - 1, :w_out].set(b)        # add bias to every valid column
    t = t.at[0, LANES - 1, LANES - 1].set(1.0)   # keep the constant-1 lane alive
    return t


def p1_cnn_forward(x, params):
    # image, padded lane-dense, with a constant-1 lane carrying the biases
    x2d = x.reshape(H_IN, W_IN).astype(jnp.float32)
    x_pad = jnp.zeros((104, LANES), jnp.float32)
    x_pad = x_pad.at[:H_IN, :W_IN].set(x2d)
    x_pad = x_pad.at[:, LANES - 1].set(1.0)

    toep = jnp.concatenate(
        [_toeplitz_with_bias(params[f"conv{l + 1}_w"],
                             params[f"conv{l + 1}_b"][0], w_in, w_out)
         for l, (w_in, w_out) in enumerate(CONV_DIMS)], axis=0)   # (36, 128, 128)

    # MaxPool selection matrices: rows (a-offset) then columns (b-offset).
    a_idx = jnp.arange(POOL)[:, None, None]
    i_idx = jnp.arange(H_POOLED)[None, :, None]
    r_idx = jnp.arange(H_POOL_IN)[None, None, :]
    rsel = (r_idx == POOL * i_idx + a_idx).astype(jnp.float32)    # (4, 20, 80)

    b_idx = jnp.arange(POOL)[:, None, None]
    rr = jnp.arange(LANES)[None, :, None]
    jj = jnp.arange(LANES)[None, None, :]
    csel = ((rr == POOL * jj + b_idx) & (jj < H_POOLED)).astype(jnp.float32)
    csel = csel.at[:, LANES - 1, LANES - 1].set(1.0)              # (4, 128, 128)

    # flatten + linear1 fold: Wbig[j, 25*i + o] = W1[o, 10*i + j]
    w1 = params["w1"].astype(jnp.float32)                          # (25, 100)
    w1_cube = jnp.transpose(w1.reshape(F_H, H_FINAL, H_FINAL), (2, 1, 0))  # (j,i,o)
    wbig = jnp.zeros((LANES, WBIG_LANES), jnp.float32)
    wbig = wbig.at[:H_FINAL, :H_FINAL * F_H].set(
        w1_cube.reshape(H_FINAL, H_FINAL * F_H))

    di = jnp.arange(H_FINAL)[:, None]
    dc = jnp.arange(WBIG_LANES)[None, :]
    dmask = ((dc >= F_H * di) & (dc < F_H * di + F_H)).astype(jnp.float32)  # (10,256)

    sc = jnp.arange(WBIG_LANES)[:, None]
    so = jnp.arange(LANES)[None, :]
    sel = ((sc < H_FINAL * F_H) & (so < F_H)
           & (sc % F_H == so)).astype(jnp.float32)                 # (256, 128)

    w2 = params["w2"].astype(jnp.float32)                          # (5, 25)
    w2p = jnp.zeros((LANES, LANES), jnp.float32).at[:F_H, :F_OUT].set(w2.T)

    vmem = pl.BlockSpec(memory_space=pltpu.MemorySpace.VMEM)
    out = pl.pallas_call(
        _p1_cnn_kernel,
        out_shape=jax.ShapeDtypeStruct((1, LANES), jnp.float32),
        in_specs=[vmem] * 8,
        out_specs=vmem,
    )(x_pad, toep, rsel, csel, wbig, dmask, sel, w2p)
    return out[0, :F_OUT]


if __name__ == "__main__":
    key = jax.random.PRNGKey(0)
    keys = jax.random.split(key, 16)

    # input implied by the module (Linear(100,25) after the conv/pool pipeline)
    x = jax.random.normal(keys[0], (1, 1, H_IN, W_IN), dtype=jnp.float32)

    params = {}
    for l in range(6):
        params[f"conv{l + 1}_w"] = jax.random.normal(
            keys[1 + 2 * l], (1, 1, KSIZE, KSIZE), jnp.float32) / float(KSIZE)
        params[f"conv{l + 1}_b"] = jax.random.normal(
            keys[2 + 2 * l], (1,), jnp.float32) * 0.1
    params["w1"] = jax.random.normal(keys[13], (F_H, F_IN), jnp.float32) / jnp.sqrt(F_IN)
    params["w2"] = jax.random.normal(keys[14], (F_OUT, F_H), jnp.float32) / jnp.sqrt(F_H)

    y = jax.jit(p1_cnn_forward)(x, params)
    y = jax.block_until_ready(y)

    assert y.shape == (F_OUT,)
    assert bool(jnp.isfinite(y).all())
    assert abs(float(y.sum()) - 1.0) < 1e-3  # softmax sanity
    print("KERNEL_OK")
</pallas_src>

<mosaic_0001>
module attributes {stable_mosaic.version = 11 : i64} {
  func.func @_p1_cnn_kernel(%arg0: memref<104x128xf32, #tpu.memory_space<vmem>>, %arg1: memref<36x128x128xf32, #tpu.memory_space<vmem>>, %arg2: memref<4x20x80xf32, #tpu.memory_space<vmem>>, %arg3: memref<4x128x128xf32, #tpu.memory_space<vmem>>, %arg4: memref<128x256xf32, #tpu.memory_space<vmem>>, %arg5: memref<10x256xf32, #tpu.memory_space<vmem>>, %arg6: memref<256x128xf32, #tpu.memory_space<vmem>>, %arg7: memref<128x128xf32, #tpu.memory_space<vmem>>, %arg8: memref<1x128xf32, #tpu.memory_space<vmem>>) attributes {dimension_semantics = [], scalar_prefetch = 0 : i64, scratch_operands = 0 : i64, tpu.core_type = #tpu.core_type<tc>} {
    %c0 = arith.constant 0 : index
    %c0_0 = arith.constant 0 : index
    %0 = vector.load %arg0[%c0, %c0_0] : memref<104x128xf32, #tpu.memory_space<vmem>>, vector<104x128xf32>
    %1 = vector.extract_strided_slice %0 {offsets = [0, 0], sizes = [95, 128], strides = [1, 1]} : vector<104x128xf32> to vector<95x128xf32>
    %c0_1 = arith.constant 0 : index
    %c0_2 = arith.constant 0 : index
    %c0_3 = arith.constant 0 : index
    %2 = vector.load %arg1[%c0_1, %c0_2, %c0_3] : memref<36x128x128xf32, #tpu.memory_space<vmem>>, vector<1x128x128xf32>
    %3 = vector.shape_cast %2 : vector<1x128x128xf32> to vector<128x128xf32>
    %cst = arith.constant dense<0.000000e+00> : vector<95x128xf32>
    %4 = tpu.matmul %1, %3, %cst {dimension_numbers = #tpu.dot_dimension_numbers<[1], [0], [0], [1], [0, 0, 1, 1], [], []>} : vector<95x128xf32>, vector<128x128xf32>, vector<95x128xf32> -> vector<95x128xf32>
    %5 = vector.extract_strided_slice %0 {offsets = [1, 0], sizes = [95, 128], strides = [1, 1]} : vector<104x128xf32> to vector<95x128xf32>
    %c1 = arith.constant 1 : index
    %c0_4 = arith.constant 0 : index
    %c0_5 = arith.constant 0 : index
    %6 = vector.load %arg1[%c1, %c0_4, %c0_5] : memref<36x128x128xf32, #tpu.memory_space<vmem>>, vector<1x128x128xf32>
    %7 = vector.shape_cast %6 : vector<1x128x128xf32> to vector<128x128xf32>
    %cst_6 = arith.constant dense<0.000000e+00> : vector<95x128xf32>
    %8 = tpu.matmul %5, %7, %cst_6 {dimension_numbers = #tpu.dot_dimension_numbers<[1], [0], [0], [1], [0, 0, 1, 1], [], []>} : vector<95x128xf32>, vector<128x128xf32>, vector<95x128xf32> -> vector<95x128xf32>
    %9 = arith.addf %4, %8 : vector<95x128xf32>
    %10 = vector.extract_strided_slice %0 {offsets = [2, 0], sizes = [95, 128], strides = [1, 1]} : vector<104x128xf32> to vector<95x128xf32>
    %c2 = arith.constant 2 : index
    %c0_7 = arith.constant 0 : index
    %c0_8 = arith.constant 0 : index
    %11 = vector.load %arg1[%c2, %c0_7, %c0_8] : memref<36x128x128xf32, #tpu.memory_space<vmem>>, vector<1x128x128xf32>
    %12 = vector.shape_cast %11 : vector<1x128x128xf32> to vector<128x128xf32>
    %cst_9 = arith.constant dense<0.000000e+00> : vector<95x128xf32>
    %13 = tpu.matmul %10, %12, %cst_9 {dimension_numbers = #tpu.dot_dimension_numbers<[1], [0], [0], [1], [0, 0, 1, 1], [], []>} : vector<95x128xf32>, vector<128x128xf32>, vector<95x128xf32> -> vector<95x128xf32>
    %14 = arith.addf %9, %13 : vector<95x128xf32>
    %15 = vector.extract_strided_slice %0 {offsets = [3, 0], sizes = [95, 128], strides = [1, 1]} : vector<104x128xf32> to vector<95x128xf32>
    %c3 = arith.constant 3 : index
    %c0_10 = arith.constant 0 : index
    %c0_11 = arith.constant 0 : index
    %16 = vector.load %arg1[%c3, %c0_10, %c0_11] : memref<36x128x128xf32, #tpu.memory_space<vmem>>, vector<1x128x128xf32>
    %17 = vector.shape_cast %16 : vector<1x128x128xf32> to vector<128x128xf32>
    %cst_12 = arith.constant dense<0.000000e+00> : vector<95x128xf32>
    %18 = tpu.matmul %15, %17, %cst_12 {dimension_numbers = #tpu.dot_dimension_numbers<[1], [0], [0], [1], [0, 0, 1, 1], [], []>} : vector<95x128xf32>, vector<128x128xf32>, vector<95x128xf32> -> vector<95x128xf32>
    %19 = arith.addf %14, %18 : vector<95x128xf32>
    %20 = vector.extract_strided_slice %0 {offsets = [4, 0], sizes = [95, 128], strides = [1, 1]} : vector<104x128xf32> to vector<95x128xf32>
    %c4 = arith.constant 4 : index
    %c0_13 = arith.constant 0 : index
    %c0_14 = arith.constant 0 : index
    %21 = vector.load %arg1[%c4, %c0_13, %c0_14] : memref<36x128x128xf32, #tpu.memory_space<vmem>>, vector<1x128x128xf32>
    %22 = vector.shape_cast %21 : vector<1x128x128xf32> to vector<128x128xf32>
    %cst_15 = arith.constant dense<0.000000e+00> : vector<95x128xf32>
    %23 = tpu.matmul %20, %22, %cst_15 {dimension_numbers = #tpu.dot_dimension_numbers<[1], [0], [0], [1], [0, 0, 1, 1], [], []>} : vector<95x128xf32>, vector<128x128xf32>, vector<95x128xf32> -> vector<95x128xf32>
    %24 = arith.addf %19, %23 : vector<95x128xf32>
    %25 = vector.extract_strided_slice %0 {offsets = [5, 0], sizes = [95, 128], strides = [1, 1]} : vector<104x128xf32> to vector<95x128xf32>
    %c5 = arith.constant 5 : index
    %c0_16 = arith.constant 0 : index
    %c0_17 = arith.constant 0 : index
    %26 = vector.load %arg1[%c5, %c0_16, %c0_17] : memref<36x128x128xf32, #tpu.memory_space<vmem>>, vector<1x128x128xf32>
    %27 = vector.shape_cast %26 : vector<1x128x128xf32> to vector<128x128xf32>
    %cst_18 = arith.constant dense<0.000000e+00> : vector<95x128xf32>
    %28 = tpu.matmul %25, %27, %cst_18 {dimension_numbers = #tpu.dot_dimension_numbers<[1], [0], [0], [1], [0, 0, 1, 1], [], []>} : vector<95x128xf32>, vector<128x128xf32>, vector<95x128xf32> -> vector<95x128xf32>
    %29 = arith.addf %24, %28 : vector<95x128xf32>
    %cst_19 = arith.constant 0.000000e+00 : f32
    %30 = vector.broadcast %cst_19 : f32 to vector<95x128xf32>
    %31 = arith.maximumf %29, %30 : vector<95x128xf32>
    %32 = vector.extract_strided_slice %31 {offsets = [0, 0], sizes = [90, 128], strides = [1, 1]} : vector<95x128xf32> to vector<90x128xf32>
    %c6 = arith.constant 6 : index
    %c0_20 = arith.constant 0 : index
    %c0_21 = arith.constant 0 : index
    %33 = vector.load %arg1[%c6, %c0_20, %c0_21] : memref<36x128x128xf32, #tpu.memory_space<vmem>>, vector<1x128x128xf32>
    %34 = vector.shape_cast %33 : vector<1x128x128xf32> to vector<128x128xf32>
    %cst_22 = arith.constant dense<0.000000e+00> : vector<90x128xf32>
    %35 = tpu.matmul %32, %34, %cst_22 {dimension_numbers = #tpu.dot_dimension_numbers<[1], [0], [0], [1], [0, 0, 1, 1], [], []>} : vector<90x128xf32>, vector<128x128xf32>, vector<90x128xf32> -> vector<90x128xf32>
    %36 = vector.extract_strided_slice %31 {offsets = [1, 0], sizes = [90, 128], strides = [1, 1]} : vector<95x128xf32> to vector<90x128xf32>
    %c7 = arith.constant 7 : index
    %c0_23 = arith.constant 0 : index
    %c0_24 = arith.constant 0 : index
    %37 = vector.load %arg1[%c7, %c0_23, %c0_24] : memref<36x128x128xf32, #tpu.memory_space<vmem>>, vector<1x128x128xf32>
    %38 = vector.shape_cast %37 : vector<1x128x128xf32> to vector<128x128xf32>
    %cst_25 = arith.constant dense<0.000000e+00> : vector<90x128xf32>
    %39 = tpu.matmul %36, %38, %cst_25 {dimension_numbers = #tpu.dot_dimension_numbers<[1], [0], [0], [1], [0, 0, 1, 1], [], []>} : vector<90x128xf32>, vector<128x128xf32>, vector<90x128xf32> -> vector<90x128xf32>
    %40 = arith.addf %35, %39 : vector<90x128xf32>
    %41 = vector.extract_strided_slice %31 {offsets = [2, 0], sizes = [90, 128], strides = [1, 1]} : vector<95x128xf32> to vector<90x128xf32>
    %c8 = arith.constant 8 : index
    %c0_26 = arith.constant 0 : index
    %c0_27 = arith.constant 0 : index
    %42 = vector.load %arg1[%c8, %c0_26, %c0_27] : memref<36x128x128xf32, #tpu.memory_space<vmem>>, vector<1x128x128xf32>
    %43 = vector.shape_cast %42 : vector<1x128x128xf32> to vector<128x128xf32>
    %cst_28 = arith.constant dense<0.000000e+00> : vector<90x128xf32>
    %44 = tpu.matmul %41, %43, %cst_28 {dimension_numbers = #tpu.dot_dimension_numbers<[1], [0], [0], [1], [0, 0, 1, 1], [], []>} : vector<90x128xf32>, vector<128x128xf32>, vector<90x128xf32> -> vector<90x128xf32>
    %45 = arith.addf %40, %44 : vector<90x128xf32>
    %46 = vector.extract_strided_slice %31 {offsets = [3, 0], sizes = [90, 128], strides = [1, 1]} : vector<95x128xf32> to vector<90x128xf32>
    %c9 = arith.constant 9 : index
    %c0_29 = arith.constant 0 : index
    %c0_30 = arith.constant 0 : index
    %47 = vector.load %arg1[%c9, %c0_29, %c0_30] : memref<36x128x128xf32, #tpu.memory_space<vmem>>, vector<1x128x128xf32>
    %48 = vector.shape_cast %47 : vector<1x128x128xf32> to vector<128x128xf32>
    %cst_31 = arith.constant dense<0.000000e+00> : vector<90x128xf32>
    %49 = tpu.matmul %46, %48, %cst_31 {dimension_numbers = #tpu.dot_dimension_numbers<[1], [0], [0], [1], [0, 0, 1, 1], [], []>} : vector<90x128xf32>, vector<128x128xf32>, vector<90x128xf32> -> vector<90x128xf32>
    %50 = arith.addf %45, %49 : vector<90x128xf32>
    %51 = vector.extract_strided_slice %31 {offsets = [4, 0], sizes = [90, 128], strides = [1, 1]} : vector<95x128xf32> to vector<90x128xf32>
    %c10 = arith.constant 10 : index
    %c0_32 = arith.constant 0 : index
    %c0_33 = arith.constant 0 : index
    %52 = vector.load %arg1[%c10, %c0_32, %c0_33] : memref<36x128x128xf32, #tpu.memory_space<vmem>>, vector<1x128x128xf32>
    %53 = vector.shape_cast %52 : vector<1x128x128xf32> to vector<128x128xf32>
    %cst_34 = arith.constant dense<0.000000e+00> : vector<90x128xf32>
    %54 = tpu.matmul %51, %53, %cst_34 {dimension_numbers = #tpu.dot_dimension_numbers<[1], [0], [0], [1], [0, 0, 1, 1], [], []>} : vector<90x128xf32>, vector<128x128xf32>, vector<90x128xf32> -> vector<90x128xf32>
    %55 = arith.addf %50, %54 : vector<90x128xf32>
    %56 = vector.extract_strided_slice %31 {offsets = [5, 0], sizes = [90, 128], strides = [1, 1]} : vector<95x128xf32> to vector<90x128xf32>
    %c11 = arith.constant 11 : index
    %c0_35 = arith.constant 0 : index
    %c0_36 = arith.constant 0 : index
    %57 = vector.load %arg1[%c11, %c0_35, %c0_36] : memref<36x128x128xf32, #tpu.memory_space<vmem>>, vector<1x128x128xf32>
    %58 = vector.shape_cast %57 : vector<1x128x128xf32> to vector<128x128xf32>
    %cst_37 = arith.constant dense<0.000000e+00> : vector<90x128xf32>
    %59 = tpu.matmul %56, %58, %cst_37 {dimension_numbers = #tpu.dot_dimension_numbers<[1], [0], [0], [1], [0, 0, 1, 1], [], []>} : vector<90x128xf32>, vector<128x128xf32>, vector<90x128xf32> -> vector<90x128xf32>
    %60 = arith.addf %55, %59 : vector<90x128xf32>
    %cst_38 = arith.constant 0.000000e+00 : f32
    %61 = vector.broadcast %cst_38 : f32 to vector<90x128xf32>
    %62 = arith.maximumf %60, %61 : vector<90x128xf32>
    %63 = vector.extract_strided_slice %62 {offsets = [0, 0], sizes = [85, 128], strides = [1, 1]} : vector<90x128xf32> to vector<85x128xf32>
    %c12 = arith.constant 12 : index
    %c0_39 = arith.constant 0 : index
    %c0_40 = arith.constant 0 : index
    %64 = vector.load %arg1[%c12, %c0_39, %c0_40] : memref<36x128x128xf32, #tpu.memory_space<vmem>>, vector<1x128x128xf32>
    %65 = vector.shape_cast %64 : vector<1x128x128xf32> to vector<128x128xf32>
    %cst_41 = arith.constant dense<0.000000e+00> : vector<85x128xf32>
    %66 = tpu.matmul %63, %65, %cst_41 {dimension_numbers = #tpu.dot_dimension_numbers<[1], [0], [0], [1], [0, 0, 1, 1], [], []>} : vector<85x128xf32>, vector<128x128xf32>, vector<85x128xf32> -> vector<85x128xf32>
    %67 = vector.extract_strided_slice %62 {offsets = [1, 0], sizes = [85, 128], strides = [1, 1]} : vector<90x128xf32> to vector<85x128xf32>
    %c13 = arith.constant 13 : index
    %c0_42 = arith.constant 0 : index
    %c0_43 = arith.constant 0 : index
    %68 = vector.load %arg1[%c13, %c0_42, %c0_43] : memref<36x128x128xf32, #tpu.memory_space<vmem>>, vector<1x128x128xf32>
    %69 = vector.shape_cast %68 : vector<1x128x128xf32> to vector<128x128xf32>
    %cst_44 = arith.constant dense<0.000000e+00> : vector<85x128xf32>
    %70 = tpu.matmul %67, %69, %cst_44 {dimension_numbers = #tpu.dot_dimension_numbers<[1], [0], [0], [1], [0, 0, 1, 1], [], []>} : vector<85x128xf32>, vector<128x128xf32>, vector<85x128xf32> -> vector<85x128xf32>
    %71 = arith.addf %66, %70 : vector<85x128xf32>
    %72 = vector.extract_strided_slice %62 {offsets = [2, 0], sizes = [85, 128], strides = [1, 1]} : vector<90x128xf32> to vector<85x128xf32>
    %c14 = arith.constant 14 : index
    %c0_45 = arith.constant 0 : index
    %c0_46 = arith.constant 0 : index
    %73 = vector.load %arg1[%c14, %c0_45, %c0_46] : memref<36x128x128xf32, #tpu.memory_space<vmem>>, vector<1x128x128xf32>
    %74 = vector.shape_cast %73 : vector<1x128x128xf32> to vector<128x128xf32>
    %cst_47 = arith.constant dense<0.000000e+00> : vector<85x128xf32>
    %75 = tpu.matmul %72, %74, %cst_47 {dimension_numbers = #tpu.dot_dimension_numbers<[1], [0], [0], [1], [0, 0, 1, 1], [], []>} : vector<85x128xf32>, vector<128x128xf32>, vector<85x128xf32> -> vector<85x128xf32>
    %76 = arith.addf %71, %75 : vector<85x128xf32>
    %77 = vector.extract_strided_slice %62 {offsets = [3, 0], sizes = [85, 128], strides = [1, 1]} : vector<90x128xf32> to vector<85x128xf32>
    %c15 = arith.constant 15 : index
    %c0_48 = arith.constant 0 : index
    %c0_49 = arith.constant 0 : index
    %78 = vector.load %arg1[%c15, %c0_48, %c0_49] : memref<36x128x128xf32, #tpu.memory_space<vmem>>, vector<1x128x128xf32>
    %79 = vector.shape_cast %78 : vector<1x128x128xf32> to vector<128x128xf32>
    %cst_50 = arith.constant dense<0.000000e+00> : vector<85x128xf32>
    %80 = tpu.matmul %77, %79, %cst_50 {dimension_numbers = #tpu.dot_dimension_numbers<[1], [0], [0], [1], [0, 0, 1, 1], [], []>} : vector<85x128xf32>, vector<128x128xf32>, vector<85x128xf32> -> vector<85x128xf32>
    %81 = arith.addf %76, %80 : vector<85x128xf32>
    %82 = vector.extract_strided_slice %62 {offsets = [4, 0], sizes = [85, 128], strides = [1, 1]} : vector<90x128xf32> to vector<85x128xf32>
    %c16 = arith.constant 16 : index
    %c0_51 = arith.constant 0 : index
    %c0_52 = arith.constant 0 : index
    %83 = vector.load %arg1[%c16, %c0_51, %c0_52] : memref<36x128x128xf32, #tpu.memory_space<vmem>>, vector<1x128x128xf32>
    %84 = vector.shape_cast %83 : vector<1x128x128xf32> to vector<128x128xf32>
    %cst_53 = arith.constant dense<0.000000e+00> : vector<85x128xf32>
    %85 = tpu.matmul %82, %84, %cst_53 {dimension_numbers = #tpu.dot_dimension_numbers<[1], [0], [0], [1], [0, 0, 1, 1], [], []>} : vector<85x128xf32>, vector<128x128xf32>, vector<85x128xf32> -> vector<85x128xf32>
    %86 = arith.addf %81, %85 : vector<85x128xf32>
    %87 = vector.extract_strided_slice %62 {offsets = [5, 0], sizes = [85, 128], strides = [1, 1]} : vector<90x128xf32> to vector<85x128xf32>
    %c17 = arith.constant 17 : index
    %c0_54 = arith.constant 0 : index
    %c0_55 = arith.constant 0 : index
    %88 = vector.load %arg1[%c17, %c0_54, %c0_55] : memref<36x128x128xf32, #tpu.memory_space<vmem>>, vector<1x128x128xf32>
    %89 = vector.shape_cast %88 : vector<1x128x128xf32> to vector<128x128xf32>
    %cst_56 = arith.constant dense<0.000000e+00> : vector<85x128xf32>
    %90 = tpu.matmul %87, %89, %cst_56 {dimension_numbers = #tpu.dot_dimension_numbers<[1], [0], [0], [1], [0, 0, 1, 1], [], []>} : vector<85x128xf32>, vector<128x128xf32>, vector<85x128xf32> -> vector<85x128xf32>
    %91 = arith.addf %86, %90 : vector<85x128xf32>
    %cst_57 = arith.constant 0.000000e+00 : f32
    %92 = vector.broadcast %cst_57 : f32 to vector<85x128xf32>
    %93 = arith.maximumf %91, %92 : vector<85x128xf32>
    %94 = vector.extract_strided_slice %93 {offsets = [0, 0], sizes = [80, 128], strides = [1, 1]} : vector<85x128xf32> to vector<80x128xf32>
    %c18 = arith.constant 18 : index
    %c0_58 = arith.constant 0 : index
    %c0_59 = arith.constant 0 : index
    %95 = vector.load %arg1[%c18, %c0_58, %c0_59] : memref<36x128x128xf32, #tpu.memory_space<vmem>>, vector<1x128x128xf32>
    %96 = vector.shape_cast %95 : vector<1x128x128xf32> to vector<128x128xf32>
    %cst_60 = arith.constant dense<0.000000e+00> : vector<80x128xf32>
    %97 = tpu.matmul %94, %96, %cst_60 {dimension_numbers = #tpu.dot_dimension_numbers<[1], [0], [0], [1], [0, 0, 1, 1], [], []>} : vector<80x128xf32>, vector<128x128xf32>, vector<80x128xf32> -> vector<80x128xf32>
    %98 = vector.extract_strided_slice %93 {offsets = [1, 0], sizes = [80, 128], strides = [1, 1]} : vector<85x128xf32> to vector<80x128xf32>
    %c19 = arith.constant 19 : index
    %c0_61 = arith.constant 0 : index
    %c0_62 = arith.constant 0 : index
    %99 = vector.load %arg1[%c19, %c0_61, %c0_62] : memref<36x128x128xf32, #tpu.memory_space<vmem>>, vector<1x128x128xf32>
    %100 = vector.shape_cast %99 : vector<1x128x128xf32> to vector<128x128xf32>
    %cst_63 = arith.constant dense<0.000000e+00> : vector<80x128xf32>
    %101 = tpu.matmul %98, %100, %cst_63 {dimension_numbers = #tpu.dot_dimension_numbers<[1], [0], [0], [1], [0, 0, 1, 1], [], []>} : vector<80x128xf32>, vector<128x128xf32>, vector<80x128xf32> -> vector<80x128xf32>
    %102 = arith.addf %97, %101 : vector<80x128xf32>
    %103 = vector.extract_strided_slice %93 {offsets = [2, 0], sizes = [80, 128], strides = [1, 1]} : vector<85x128xf32> to vector<80x128xf32>
    %c20 = arith.constant 20 : index
    %c0_64 = arith.constant 0 : index
    %c0_65 = arith.constant 0 : index
    %104 = vector.load %arg1[%c20, %c0_64, %c0_65] : memref<36x128x128xf32, #tpu.memory_space<vmem>>, vector<1x128x128xf32>
    %105 = vector.shape_cast %104 : vector<1x128x128xf32> to vector<128x128xf32>
    %cst_66 = arith.constant dense<0.000000e+00> : vector<80x128xf32>
    %106 = tpu.matmul %103, %105, %cst_66 {dimension_numbers = #tpu.dot_dimension_numbers<[1], [0], [0], [1], [0, 0, 1, 1], [], []>} : vector<80x128xf32>, vector<128x128xf32>, vector<80x128xf32> -> vector<80x128xf32>
    %107 = arith.addf %102, %106 : vector<80x128xf32>
    %108 = vector.extract_strided_slice %93 {offsets = [3, 0], sizes = [80, 128], strides = [1, 1]} : vector<85x128xf32> to vector<80x128xf32>
    %c21 = arith.constant 21 : index
    %c0_67 = arith.constant 0 : index
    %c0_68 = arith.constant 0 : index
    %109 = vector.load %arg1[%c21, %c0_67, %c0_68] : memref<36x128x128xf32, #tpu.memory_space<vmem>>, vector<1x128x128xf32>
    %110 = vector.shape_cast %109 : vector<1x128x128xf32> to vector<128x128xf32>
    %cst_69 = arith.constant dense<0.000000e+00> : vector<80x128xf32>
    %111 = tpu.matmul %108, %110, %cst_69 {dimension_numbers = #tpu.dot_dimension_numbers<[1], [0], [0], [1], [0, 0, 1, 1], [], []>} : vector<80x128xf32>, vector<128x128xf32>, vector<80x128xf32> -> vector<80x128xf32>
    %112 = arith.addf %107, %111 : vector<80x128xf32>
    %113 = vector.extract_strided_slice %93 {offsets = [4, 0], sizes = [80, 128], strides = [1, 1]} : vector<85x128xf32> to vector<80x128xf32>
    %c22 = arith.constant 22 : index
    %c0_70 = arith.constant 0 : index
    %c0_71 = arith.constant 0 : index
    %114 = vector.load %arg1[%c22, %c0_70, %c0_71] : memref<36x128x128xf32, #tpu.memory_space<vmem>>, vector<1x128x128xf32>
    %115 = vector.shape_cast %114 : vector<1x128x128xf32> to vector<128x128xf32>
    %cst_72 = arith.constant dense<0.000000e+00> : vector<80x128xf32>
    %116 = tpu.matmul %113, %115, %cst_72 {dimension_numbers = #tpu.dot_dimension_numbers<[1], [0], [0], [1], [0, 0, 1, 1], [], []>} : vector<80x128xf32>, vector<128x128xf32>, vector<80x128xf32> -> vector<80x128xf32>
    %117 = arith.addf %112, %116 : vector<80x128xf32>
    %118 = vector.extract_strided_slice %93 {offsets = [5, 0], sizes = [80, 128], strides = [1, 1]} : vector<85x128xf32> to vector<80x128xf32>
    %c23 = arith.constant 23 : index
    %c0_73 = arith.constant 0 : index
    %c0_74 = arith.constant 0 : index
    %119 = vector.load %arg1[%c23, %c0_73, %c0_74] : memref<36x128x128xf32, #tpu.memory_space<vmem>>, vector<1x128x128xf32>
    %120 = vector.shape_cast %119 : vector<1x128x128xf32> to vector<128x128xf32>
    %cst_75 = arith.constant dense<0.000000e+00> : vector<80x128xf32>
    %121 = tpu.matmul %118, %120, %cst_75 {dimension_numbers = #tpu.dot_dimension_numbers<[1], [0], [0], [1], [0, 0, 1, 1], [], []>} : vector<80x128xf32>, vector<128x128xf32>, vector<80x128xf32> -> vector<80x128xf32>
    %122 = arith.addf %117, %121 : vector<80x128xf32>
    %cst_76 = arith.constant 0.000000e+00 : f32
    %123 = vector.broadcast %cst_76 : f32 to vector<80x128xf32>
    %124 = arith.maximumf %122, %123 : vector<80x128xf32>
    %c0_77 = arith.constant 0 : index
    %c0_78 = arith.constant 0 : index
    %c0_79 = arith.constant 0 : index
    %125 = vector.load %arg2[%c0_77, %c0_78, %c0_79] : memref<4x20x80xf32, #tpu.memory_space<vmem>>, vector<1x20x80xf32>
    %126 = vector.shape_cast %125 : vector<1x20x80xf32> to vector<20x80xf32>
    %cst_80 = arith.constant dense<0.000000e+00> : vector<20x128xf32>
    %127 = tpu.matmul %126, %124, %cst_80 {dimension_numbers = #tpu.dot_dimension_numbers<[1], [0], [0], [1], [0, 0, 1, 1], [], []>} : vector<20x80xf32>, vector<80x128xf32>, vector<20x128xf32> -> vector<20x128xf32>
    %c1_81 = arith.constant 1 : index
    %c0_82 = arith.constant 0 : index
    %c0_83 = arith.constant 0 : index
    %128 = vector.load %arg2[%c1_81, %c0_82, %c0_83] : memref<4x20x80xf32, #tpu.memory_space<vmem>>, vector<1x20x80xf32>
    %129 = vector.shape_cast %128 : vector<1x20x80xf32> to vector<20x80xf32>
    %cst_84 = arith.constant dense<0.000000e+00> : vector<20x128xf32>
    %130 = tpu.matmul %129, %124, %cst_84 {dimension_numbers = #tpu.dot_dimension_numbers<[1], [0], [0], [1], [0, 0, 1, 1], [], []>} : vector<20x80xf32>, vector<80x128xf32>, vector<20x128xf32> -> vector<20x128xf32>
    %131 = arith.maximumf %127, %130 : vector<20x128xf32>
    %c2_85 = arith.constant 2 : index
    %c0_86 = arith.constant 0 : index
    %c0_87 = arith.constant 0 : index
    %132 = vector.load %arg2[%c2_85, %c0_86, %c0_87] : memref<4x20x80xf32, #tpu.memory_space<vmem>>, vector<1x20x80xf32>
    %133 = vector.shape_cast %132 : vector<1x20x80xf32> to vector<20x80xf32>
    %cst_88 = arith.constant dense<0.000000e+00> : vector<20x128xf32>
    %134 = tpu.matmul %133, %124, %cst_88 {dimension_numbers = #tpu.dot_dimension_numbers<[1], [0], [0], [1], [0, 0, 1, 1], [], []>} : vector<20x80xf32>, vector<80x128xf32>, vector<20x128xf32> -> vector<20x128xf32>
    %135 = arith.maximumf %131, %134 : vector<20x128xf32>
    %c3_89 = arith.constant 3 : index
    %c0_90 = arith.constant 0 : index
    %c0_91 = arith.constant 0 : index
    %136 = vector.load %arg2[%c3_89, %c0_90, %c0_91] : memref<4x20x80xf32, #tpu.memory_space<vmem>>, vector<1x20x80xf32>
    %137 = vector.shape_cast %136 : vector<1x20x80xf32> to vector<20x80xf32>
    %cst_92 = arith.constant dense<0.000000e+00> : vector<20x128xf32>
    %138 = tpu.matmul %137, %124, %cst_92 {dimension_numbers = #tpu.dot_dimension_numbers<[1], [0], [0], [1], [0, 0, 1, 1], [], []>} : vector<20x80xf32>, vector<80x128xf32>, vector<20x128xf32> -> vector<20x128xf32>
    %139 = arith.maximumf %135, %138 : vector<20x128xf32>
    %c0_93 = arith.constant 0 : index
    %c0_94 = arith.constant 0 : index
    %c0_95 = arith.constant 0 : index
    %140 = vector.load %arg3[%c0_93, %c0_94, %c0_95] : memref<4x128x128xf32, #tpu.memory_space<vmem>>, vector<1x128x128xf32>
    %141 = vector.shape_cast %140 : vector<1x128x128xf32> to vector<128x128xf32>
    %cst_96 = arith.constant dense<0.000000e+00> : vector<20x128xf32>
    %142 = tpu.matmul %139, %141, %cst_96 {dimension_numbers = #tpu.dot_dimension_numbers<[1], [0], [0], [1], [0, 0, 1, 1], [], []>} : vector<20x128xf32>, vector<128x128xf32>, vector<20x128xf32> -> vector<20x128xf32>
    %c1_97 = arith.constant 1 : index
    %c0_98 = arith.constant 0 : index
    %c0_99 = arith.constant 0 : index
    %143 = vector.load %arg3[%c1_97, %c0_98, %c0_99] : memref<4x128x128xf32, #tpu.memory_space<vmem>>, vector<1x128x128xf32>
    %144 = vector.shape_cast %143 : vector<1x128x128xf32> to vector<128x128xf32>
    %cst_100 = arith.constant dense<0.000000e+00> : vector<20x128xf32>
    %145 = tpu.matmul %139, %144, %cst_100 {dimension_numbers = #tpu.dot_dimension_numbers<[1], [0], [0], [1], [0, 0, 1, 1], [], []>} : vector<20x128xf32>, vector<128x128xf32>, vector<20x128xf32> -> vector<20x128xf32>
    %146 = arith.maximumf %142, %145 : vector<20x128xf32>
    %c2_101 = arith.constant 2 : index
    %c0_102 = arith.constant 0 : index
    %c0_103 = arith.constant 0 : index
    %147 = vector.load %arg3[%c2_101, %c0_102, %c0_103] : memref<4x128x128xf32, #tpu.memory_space<vmem>>, vector<1x128x128xf32>
    %148 = vector.shape_cast %147 : vector<1x128x128xf32> to vector<128x128xf32>
    %cst_104 = arith.constant dense<0.000000e+00> : vector<20x128xf32>
    %149 = tpu.matmul %139, %148, %cst_104 {dimension_numbers = #tpu.dot_dimension_numbers<[1], [0], [0], [1], [0, 0, 1, 1], [], []>} : vector<20x128xf32>, vector<128x128xf32>, vector<20x128xf32> -> vector<20x128xf32>
    %150 = arith.maximumf %146, %149 : vector<20x128xf32>
    %c3_105 = arith.constant 3 : index
    %c0_106 = arith.constant 0 : index
    %c0_107 = arith.constant 0 : index
    %151 = vector.load %arg3[%c3_105, %c0_106, %c0_107] : memref<4x128x128xf32, #tpu.memory_space<vmem>>, vector<1x128x128xf32>
    %152 = vector.shape_cast %151 : vector<1x128x128xf32> to vector<128x128xf32>
    %cst_108 = arith.constant dense<0.000000e+00> : vector<20x128xf32>
    %153 = tpu.matmul %139, %152, %cst_108 {dimension_numbers = #tpu.dot_dimension_numbers<[1], [0], [0], [1], [0, 0, 1, 1], [], []>} : vector<20x128xf32>, vector<128x128xf32>, vector<20x128xf32> -> vector<20x128xf32>
    %154 = arith.maximumf %150, %153 : vector<20x128xf32>
    %155 = vector.extract_strided_slice %154 {offsets = [0, 0], sizes = [15, 128], strides = [1, 1]} : vector<20x128xf32> to vector<15x128xf32>
    %c24 = arith.constant 24 : index
    %c0_109 = arith.constant 0 : index
    %c0_110 = arith.constant 0 : index
    %156 = vector.load %arg1[%c24, %c0_109, %c0_110] : memref<36x128x128xf32, #tpu.memory_space<vmem>>, vector<1x128x128xf32>
    %157 = vector.shape_cast %156 : vector<1x128x128xf32> to vector<128x128xf32>
    %cst_111 = arith.constant dense<0.000000e+00> : vector<15x128xf32>
    %158 = tpu.matmul %155, %157, %cst_111 {dimension_numbers = #tpu.dot_dimension_numbers<[1], [0], [0], [1], [0, 0, 1, 1], [], []>} : vector<15x128xf32>, vector<128x128xf32>, vector<15x128xf32> -> vector<15x128xf32>
    %159 = vector.extract_strided_slice %154 {offsets = [1, 0], sizes = [15, 128], strides = [1, 1]} : vector<20x128xf32> to vector<15x128xf32>
    %c25 = arith.constant 25 : index
    %c0_112 = arith.constant 0 : index
    %c0_113 = arith.constant 0 : index
    %160 = vector.load %arg1[%c25, %c0_112, %c0_113] : memref<36x128x128xf32, #tpu.memory_space<vmem>>, vector<1x128x128xf32>
    %161 = vector.shape_cast %160 : vector<1x128x128xf32> to vector<128x128xf32>
    %cst_114 = arith.constant dense<0.000000e+00> : vector<15x128xf32>
    %162 = tpu.matmul %159, %161, %cst_114 {dimension_numbers = #tpu.dot_dimension_numbers<[1], [0], [0], [1], [0, 0, 1, 1], [], []>} : vector<15x128xf32>, vector<128x128xf32>, vector<15x128xf32> -> vector<15x128xf32>
    %163 = arith.addf %158, %162 : vector<15x128xf32>
    %164 = vector.extract_strided_slice %154 {offsets = [2, 0], sizes = [15, 128], strides = [1, 1]} : vector<20x128xf32> to vector<15x128xf32>
    %c26 = arith.constant 26 : index
    %c0_115 = arith.constant 0 : index
    %c0_116 = arith.constant 0 : index
    %165 = vector.load %arg1[%c26, %c0_115, %c0_116] : memref<36x128x128xf32, #tpu.memory_space<vmem>>, vector<1x128x128xf32>
    %166 = vector.shape_cast %165 : vector<1x128x128xf32> to vector<128x128xf32>
    %cst_117 = arith.constant dense<0.000000e+00> : vector<15x128xf32>
    %167 = tpu.matmul %164, %166, %cst_117 {dimension_numbers = #tpu.dot_dimension_numbers<[1], [0], [0], [1], [0, 0, 1, 1], [], []>} : vector<15x128xf32>, vector<128x128xf32>, vector<15x128xf32> -> vector<15x128xf32>
    %168 = arith.addf %163, %167 : vector<15x128xf32>
    %169 = vector.extract_strided_slice %154 {offsets = [3, 0], sizes = [15, 128], strides = [1, 1]} : vector<20x128xf32> to vector<15x128xf32>
    %c27 = arith.constant 27 : index
    %c0_118 = arith.constant 0 : index
    %c0_119 = arith.constant 0 : index
    %170 = vector.load %arg1[%c27, %c0_118, %c0_119] : memref<36x128x128xf32, #tpu.memory_space<vmem>>, vector<1x128x128xf32>
    %171 = vector.shape_cast %170 : vector<1x128x128xf32> to vector<128x128xf32>
    %cst_120 = arith.constant dense<0.000000e+00> : vector<15x128xf32>
    %172 = tpu.matmul %169, %171, %cst_120 {dimension_numbers = #tpu.dot_dimension_numbers<[1], [0], [0], [1], [0, 0, 1, 1], [], []>} : vector<15x128xf32>, vector<128x128xf32>, vector<15x128xf32> -> vector<15x128xf32>
    %173 = arith.addf %168, %172 : vector<15x128xf32>
    %174 = vector.extract_strided_slice %154 {offsets = [4, 0], sizes = [15, 128], strides = [1, 1]} : vector<20x128xf32> to vector<15x128xf32>
    %c28 = arith.constant 28 : index
    %c0_121 = arith.constant 0 : index
    %c0_122 = arith.constant 0 : index
    %175 = vector.load %arg1[%c28, %c0_121, %c0_122] : memref<36x128x128xf32, #tpu.memory_space<vmem>>, vector<1x128x128xf32>
    %176 = vector.shape_cast %175 : vector<1x128x128xf32> to vector<128x128xf32>
    %cst_123 = arith.constant dense<0.000000e+00> : vector<15x128xf32>
    %177 = tpu.matmul %174, %176, %cst_123 {dimension_numbers = #tpu.dot_dimension_numbers<[1], [0], [0], [1], [0, 0, 1, 1], [], []>} : vector<15x128xf32>, vector<128x128xf32>, vector<15x128xf32> -> vector<15x128xf32>
    %178 = arith.addf %173, %177 : vector<15x128xf32>
    %179 = vector.extract_strided_slice %154 {offsets = [5, 0], sizes = [15, 128], strides = [1, 1]} : vector<20x128xf32> to vector<15x128xf32>
    %c29 = arith.constant 29 : index
    %c0_124 = arith.constant 0 : index
    %c0_125 = arith.constant 0 : index
    %180 = vector.load %arg1[%c29, %c0_124, %c0_125] : memref<36x128x128xf32, #tpu.memory_space<vmem>>, vector<1x128x128xf32>
    %181 = vector.shape_cast %180 : vector<1x128x128xf32> to vector<128x128xf32>
    %cst_126 = arith.constant dense<0.000000e+00> : vector<15x128xf32>
    %182 = tpu.matmul %179, %181, %cst_126 {dimension_numbers = #tpu.dot_dimension_numbers<[1], [0], [0], [1], [0, 0, 1, 1], [], []>} : vector<15x128xf32>, vector<128x128xf32>, vector<15x128xf32> -> vector<15x128xf32>
    %183 = arith.addf %178, %182 : vector<15x128xf32>
    %cst_127 = arith.constant 0.000000e+00 : f32
    %184 = vector.broadcast %cst_127 : f32 to vector<15x128xf32>
    %185 = arith.maximumf %183, %184 : vector<15x128xf32>
    %186 = vector.extract_strided_slice %185 {offsets = [0, 0], sizes = [10, 128], strides = [1, 1]} : vector<15x128xf32> to vector<10x128xf32>
    %c30 = arith.constant 30 : index
    %c0_128 = arith.constant 0 : index
    %c0_129 = arith.constant 0 : index
    %187 = vector.load %arg1[%c30, %c0_128, %c0_129] : memref<36x128x128xf32, #tpu.memory_space<vmem>>, vector<1x128x128xf32>
    %188 = vector.shape_cast %187 : vector<1x128x128xf32> to vector<128x128xf32>
    %cst_130 = arith.constant dense<0.000000e+00> : vector<10x128xf32>
    %189 = tpu.matmul %186, %188, %cst_130 {dimension_numbers = #tpu.dot_dimension_numbers<[1], [0], [0], [1], [0, 0, 1, 1], [], []>} : vector<10x128xf32>, vector<128x128xf32>, vector<10x128xf32> -> vector<10x128xf32>
    %190 = vector.extract_strided_slice %185 {offsets = [1, 0], sizes = [10, 128], strides = [1, 1]} : vector<15x128xf32> to vector<10x128xf32>
    %c31 = arith.constant 31 : index
    %c0_131 = arith.constant 0 : index
    %c0_132 = arith.constant 0 : index
    %191 = vector.load %arg1[%c31, %c0_131, %c0_132] : memref<36x128x128xf32, #tpu.memory_space<vmem>>, vector<1x128x128xf32>
    %192 = vector.shape_cast %191 : vector<1x128x128xf32> to vector<128x128xf32>
    %cst_133 = arith.constant dense<0.000000e+00> : vector<10x128xf32>
    %193 = tpu.matmul %190, %192, %cst_133 {dimension_numbers = #tpu.dot_dimension_numbers<[1], [0], [0], [1], [0, 0, 1, 1], [], []>} : vector<10x128xf32>, vector<128x128xf32>, vector<10x128xf32> -> vector<10x128xf32>
    %194 = arith.addf %189, %193 : vector<10x128xf32>
    %195 = vector.extract_strided_slice %185 {offsets = [2, 0], sizes = [10, 128], strides = [1, 1]} : vector<15x128xf32> to vector<10x128xf32>
    %c32 = arith.constant 32 : index
    %c0_134 = arith.constant 0 : index
    %c0_135 = arith.constant 0 : index
    %196 = vector.load %arg1[%c32, %c0_134, %c0_135] : memref<36x128x128xf32, #tpu.memory_space<vmem>>, vector<1x128x128xf32>
    %197 = vector.shape_cast %196 : vector<1x128x128xf32> to vector<128x128xf32>
    %cst_136 = arith.constant dense<0.000000e+00> : vector<10x128xf32>
    %198 = tpu.matmul %195, %197, %cst_136 {dimension_numbers = #tpu.dot_dimension_numbers<[1], [0], [0], [1], [0, 0, 1, 1], [], []>} : vector<10x128xf32>, vector<128x128xf32>, vector<10x128xf32> -> vector<10x128xf32>
    %199 = arith.addf %194, %198 : vector<10x128xf32>
    %200 = vector.extract_strided_slice %185 {offsets = [3, 0], sizes = [10, 128], strides = [1, 1]} : vector<15x128xf32> to vector<10x128xf32>
    %c33 = arith.constant 33 : index
    %c0_137 = arith.constant 0 : index
    %c0_138 = arith.constant 0 : index
    %201 = vector.load %arg1[%c33, %c0_137, %c0_138] : memref<36x128x128xf32, #tpu.memory_space<vmem>>, vector<1x128x128xf32>
    %202 = vector.shape_cast %201 : vector<1x128x128xf32> to vector<128x128xf32>
    %cst_139 = arith.constant dense<0.000000e+00> : vector<10x128xf32>
    %203 = tpu.matmul %200, %202, %cst_139 {dimension_numbers = #tpu.dot_dimension_numbers<[1], [0], [0], [1], [0, 0, 1, 1], [], []>} : vector<10x128xf32>, vector<128x128xf32>, vector<10x128xf32> -> vector<10x128xf32>
    %204 = arith.addf %199, %203 : vector<10x128xf32>
    %205 = vector.extract_strided_slice %185 {offsets = [4, 0], sizes = [10, 128], strides = [1, 1]} : vector<15x128xf32> to vector<10x128xf32>
    %c34 = arith.constant 34 : index
    %c0_140 = arith.constant 0 : index
    %c0_141 = arith.constant 0 : index
    %206 = vector.load %arg1[%c34, %c0_140, %c0_141] : memref<36x128x128xf32, #tpu.memory_space<vmem>>, vector<1x128x128xf32>
    %207 = vector.shape_cast %206 : vector<1x128x128xf32> to vector<128x128xf32>
    %cst_142 = arith.constant dense<0.000000e+00> : vector<10x128xf32>
    %208 = tpu.matmul %205, %207, %cst_142 {dimension_numbers = #tpu.dot_dimension_numbers<[1], [0], [0], [1], [0, 0, 1, 1], [], []>} : vector<10x128xf32>, vector<128x128xf32>, vector<10x128xf32> -> vector<10x128xf32>
    %209 = arith.addf %204, %208 : vector<10x128xf32>
    %210 = vector.extract_strided_slice %185 {offsets = [5, 0], sizes = [10, 128], strides = [1, 1]} : vector<15x128xf32> to vector<10x128xf32>
    %c35 = arith.constant 35 : index
    %c0_143 = arith.constant 0 : index
    %c0_144 = arith.constant 0 : index
    %211 = vector.load %arg1[%c35, %c0_143, %c0_144] : memref<36x128x128xf32, #tpu.memory_space<vmem>>, vector<1x128x128xf32>
    %212 = vector.shape_cast %211 : vector<1x128x128xf32> to vector<128x128xf32>
    %cst_145 = arith.constant dense<0.000000e+00> : vector<10x128xf32>
    %213 = tpu.matmul %210, %212, %cst_145 {dimension_numbers = #tpu.dot_dimension_numbers<[1], [0], [0], [1], [0, 0, 1, 1], [], []>} : vector<10x128xf32>, vector<128x128xf32>, vector<10x128xf32> -> vector<10x128xf32>
    %214 = arith.addf %209, %213 : vector<10x128xf32>
    %cst_146 = arith.constant 0.000000e+00 : f32
    %215 = vector.broadcast %cst_146 : f32 to vector<10x128xf32>
    %216 = arith.maximumf %214, %215 : vector<10x128xf32>
    %c0_147 = arith.constant 0 : index
    %c0_148 = arith.constant 0 : index
    %217 = vector.load %arg4[%c0_147, %c0_148] : memref<128x256xf32, #tpu.memory_space<vmem>>, vector<128x256xf32>
    %cst_149 = arith.constant dense<0.000000e+00> : vector<10x256xf32>
    %218 = tpu.matmul %216, %217, %cst_149 {dimension_numbers = #tpu.dot_dimension_numbers<[1], [0], [0], [1], [0, 0, 1, 1], [], []>} : vector<10x128xf32>, vector<128x256xf32>, vector<10x256xf32> -> vector<10x256xf32>
    %c0_150 = arith.constant 0 : index
    %c0_151 = arith.constant 0 : index
    %219 = vector.load %arg5[%c0_150, %c0_151] : memref<10x256xf32, #tpu.memory_space<vmem>>, vector<10x256xf32>
    %220 = arith.mulf %218, %219 : vector<10x256xf32>
    %cst_152 = arith.constant dense<0.000000e+00> : vector<256xf32>
    %221 = vector.multi_reduction <add>, %220, %cst_152 [0] : vector<10x256xf32> to vector<256xf32>
    %222 = vector.shape_cast %221 : vector<256xf32> to vector<1x256xf32>
    %c0_153 = arith.constant 0 : index
    %c0_154 = arith.constant 0 : index
    %223 = vector.load %arg6[%c0_153, %c0_154] : memref<256x128xf32, #tpu.memory_space<vmem>>, vector<256x128xf32>
    %cst_155 = arith.constant dense<0.000000e+00> : vector<1x128xf32>
    %224 = tpu.matmul %222, %223, %cst_155 {dimension_numbers = #tpu.dot_dimension_numbers<[1], [0], [0], [1], [0, 0, 1, 1], [], []>} : vector<1x256xf32>, vector<256x128xf32>, vector<1x128xf32> -> vector<1x128xf32>
    %cst_156 = arith.constant 0.000000e+00 : f32
    %225 = vector.broadcast %cst_156 : f32 to vector<1x128xf32>
    %226 = arith.maximumf %224, %225 : vector<1x128xf32>
    %c0_157 = arith.constant 0 : index
    %c0_158 = arith.constant 0 : index
    %227 = vector.load %arg7[%c0_157, %c0_158] : memref<128x128xf32, #tpu.memory_space<vmem>>, vector<128x128xf32>
    %cst_159 = arith.constant dense<0.000000e+00> : vector<1x128xf32>
    %228 = tpu.matmul %226, %227, %cst_159 {dimension_numbers = #tpu.dot_dimension_numbers<[1], [0], [0], [1], [0, 0, 1, 1], [], []>} : vector<1x128xf32>, vector<128x128xf32>, vector<1x128xf32> -> vector<1x128xf32>
    %cst_160 = arith.constant 0.000000e+00 : f32
    %229 = vector.broadcast %cst_160 : f32 to vector<1x128xf32>
    %230 = arith.maximumf %228, %229 : vector<1x128xf32>
    %231 = tpu.iota {dimensions = array<i32: 1>} : vector<1x128xi32>
    %c5_i32 = arith.constant 5 : i32
    %232 = vector.broadcast %c5_i32 : i32 to vector<1x128xi32>
    %233 = arith.cmpi slt, %231, %232 : vector<1x128xi32>
    %cst_161 = arith.constant -1.000000e+30 : f32
    %234 = vector.broadcast %cst_161 : f32 to vector<1x128xf32>
    %235 = arith.select %233, %230, %234 : vector<1x128xi1>, vector<1x128xf32>
    %cst_162 = arith.constant dense<0xFF800000> : vector<1xf32>
    %236 = vector.multi_reduction <maximumf>, %235, %cst_162 [1] : vector<1x128xf32> to vector<1xf32>
    %237 = vector.shape_cast %236 : vector<1xf32> to vector<1x1xf32>
    %238 = vector.broadcast %237 : vector<1x1xf32> to vector<1x128xf32>
    %239 = arith.subf %235, %238 : vector<1x128xf32>
    %240 = math.exp %239 : vector<1x128xf32>
    %cst_163 = arith.constant dense<0.000000e+00> : vector<1xf32>
    %241 = vector.multi_reduction <add>, %240, %cst_163 [1] : vector<1x128xf32> to vector<1xf32>
    %242 = vector.shape_cast %241 : vector<1xf32> to vector<1x1xf32>
    %243 = vector.broadcast %242 : vector<1x1xf32> to vector<1x128xf32>
    %244 = arith.divf %240, %243 : vector<1x128xf32>
    %c0_164 = arith.constant 0 : index
    %c0_165 = arith.constant 0 : index
    %245 = vector.load %arg8[%c0_164, %c0_165] : memref<1x128xf32, #tpu.memory_space<vmem>>, vector<1x128xf32>
    tpu.vector_store %arg8[%c0_164, %c0_165], %244 {strides = array<i32>} : memref<1x128xf32, #tpu.memory_space<vmem>>, vector<1x128xf32>,
    return
  }
}

</mosaic_0001>

<llo_original>
// kernel: p1_cnn_forward.1
$region0: #{p1_cnn_forward.1}
  #allocation0 [shape = 'u32[]', space=smem, size = 0x4, offset = 0x4, fixed_abs, tag = 'smem constant byte address 0x4 - core index']
  #allocation1 [shape = 'u32[144,128]{1,0:T(1,128)}', space=vmem, size = 0x12000, scoped, tag = 'internal scratch']
  %s0 = inlined_call_operand.vmem [shape: f32[104,128], index: 0, kind: input, shape index: {}]
  %s1 = inlined_call_operand.vmem [shape: f32[36,128,128], index: 1, kind: input, shape index: {}]
  %s2 = inlined_call_operand.vmem [shape: f32[4,20,80], index: 2, kind: input, shape index: {}]
  %s3 = inlined_call_operand.vmem [shape: f32[4,128,128], index: 3, kind: input, shape index: {}]
  %s4 = inlined_call_operand.vmem [shape: f32[128,256], index: 4, kind: input, shape index: {}]
  %s5 = inlined_call_operand.vmem [shape: f32[10,256], index: 5, kind: input, shape index: {}]
  %s6 = inlined_call_operand.vmem [shape: f32[256,128], index: 6, kind: input, shape index: {}]
  %s7 = inlined_call_operand.vmem [shape: f32[128,128], index: 7, kind: input, shape index: {}]
  %s8 = inlined_call_operand.vmem [shape: f32[1,128], index: 8, kind: output, shape index: {}]
  %s9 = sld [smem:[#allocation0]]
  $region42: #{p1_cnn_forward.1} parent=0
    _
  %s11 = ssub.s32 1, %s9
  %s12 = scalar_select 0, %s11, %s9
  // Predicated region
  $region2: #{p1_cnn_forward.1} parent=0 // pred_check
    _
  $region3: #{p1_cnn_forward.1} parent=0 // pred_check_branch
    %14 = sbr.rel (0) target = $region5
  $region4: #{p1_cnn_forward.1} parent=0 // pred_region
    _
  $region5: #{p1_cnn_forward.1} parent=0 // pred_fallthru
    _
  // Predicated region
  $region6: #{p1_cnn_forward.1} parent=0 // pred_check
    _
  $region7: #{p1_cnn_forward.1} parent=0 // pred_check_branch
    %16 = sbr.rel (0) target = $region9
  $region8: #{p1_cnn_forward.1} parent=0 // pred_region
    _
  $region9: #{p1_cnn_forward.1} parent=0 // pred_fallthru
    _
  // Predicated region
  $region10: #{p1_cnn_forward.1} parent=0 // pred_check
    _
  $region11: #{p1_cnn_forward.1} parent=0 // pred_check_branch
    %18 = sbr.rel (0) target = $region13
  $region12: #{p1_cnn_forward.1} parent=0 // pred_region
    _
  $region13: #{p1_cnn_forward.1} parent=0 // pred_fallthru
    _
  // Predicated region
  $region14: #{p1_cnn_forward.1} parent=0 // pred_check
    _
  $region15: #{p1_cnn_forward.1} parent=0 // pred_check_branch
    %20 = sbr.rel (0) target = $region17
  $region16: #{p1_cnn_forward.1} parent=0 // pred_region
    _
  $region17: #{p1_cnn_forward.1} parent=0 // pred_fallthru
    _
  // Predicated region
  $region18: #{p1_cnn_forward.1} parent=0 // pred_check
    _
  $region19: #{p1_cnn_forward.1} parent=0 // pred_check_branch
    %22 = sbr.rel (0) target = $region21
  $region20: #{p1_cnn_forward.1} parent=0 // pred_region
    _
  $region21: #{p1_cnn_forward.1} parent=0 // pred_fallthru
    _
  // Predicated region
  $region22: #{p1_cnn_forward.1} parent=0 // pred_check
    _
  $region23: #{p1_cnn_forward.1} parent=0 // pred_check_branch
    %24 = sbr.rel (0) target = $region25
  $region24: #{p1_cnn_forward.1} parent=0 // pred_region
    _
  $region25: #{p1_cnn_forward.1} parent=0 // pred_fallthru
    _
  // Predicated region
  $region26: #{p1_cnn_forward.1} parent=0 // pred_check
    _
  $region27: #{p1_cnn_forward.1} parent=0 // pred_check_branch
    %26 = sbr.rel (0) target = $region29
  $region28: #{p1_cnn_forward.1} parent=0 // pred_region
    _
  $region29: #{p1_cnn_forward.1} parent=0 // pred_fallthru
    _
  // Predicated region
  $region30: #{p1_cnn_forward.1} parent=0 // pred_check
    _
  $region31: #{p1_cnn_forward.1} parent=0 // pred_check_branch
    %28 = sbr.rel (0) target = $region33
  $region32: #{p1_cnn_forward.1} parent=0 // pred_region
    _
  $region33: #{p1_cnn_forward.1} parent=0 // pred_fallthru
    _
  %v29 = vld [vmem:[%s0] sm:$0xff]
  %v30 = vld [vmem:[%s0 + $0x8] sm:$0xff]
  %v31 = vld [vmem:[%s0 + $0x10] sm:$0xff]
  %v32 = vld [vmem:[%s0 + $0x18] sm:$0xff]
  %v33 = vld [vmem:[%s0 + $0x20] sm:$0xff]
  %v34 = vld [vmem:[%s0 + $0x28] sm:$0xff]
  %v35 = vld [vmem:[%s0 + $0x30] sm:$0xff]
  %v36 = vld [vmem:[%s0 + $0x38] sm:$0xff]
  %v37 = vld [vmem:[%s0 + $0x40] sm:$0xff]
  %v38 = vld [vmem:[%s0 + $0x48] sm:$0xff]
  %v39 = vld [vmem:[%s0 + $0x50] sm:$0xff]
  %v40 = vld [vmem:[%s0 + $0x58] sm:$0xff]
  %v41 = vld [vmem:[%s0 + $0x60] sm:$0xff]
  %v42 = vld [vmem:[%s1] sm:$0xff]
  %v43 = vld [vmem:[%s1 + $0x8] sm:$0xff]
  %v44 = vld [vmem:[%s1 + $0x10] sm:$0xff]
  %v45 = vld [vmem:[%s1 + $0x18] sm:$0xff]
  %v46 = vld [vmem:[%s1 + $0x20] sm:$0xff]
  %v47 = vld [vmem:[%s1 + $0x28] sm:$0xff]
  %v48 = vld [vmem:[%s1 + $0x30] sm:$0xff]
  %v49 = vld [vmem:[%s1 + $0x38] sm:$0xff]
  %v50 = vld [vmem:[%s1 + $0x40] sm:$0xff]
  %v51 = vld [vmem:[%s1 + $0x48] sm:$0xff]
  %v52 = vld [vmem:[%s1 + $0x50] sm:$0xff]
  %v53 = vld [vmem:[%s1 + $0x58] sm:$0xff]
  %v54 = vld [vmem:[%s1 + $0x60] sm:$0xff]
  %v55 = vld [vmem:[%s1 + $0x68] sm:$0xff]
  %v56 = vld [vmem:[%s1 + $0x70] sm:$0xff]
  %v57 = vld [vmem:[%s1 + $0x78] sm:$0xff]
  %s58 = scalar_lea.vmem %s1, 128
  %v59 = vld [vmem:[%s58] sm:$0xff]
  %v60 = vld [vmem:[%s58 + $0x8] sm:$0xff]
  %v61 = vld [vmem:[%s58 + $0x10] sm:$0xff]
  %v62 = vld [vmem:[%s58 + $0x18] sm:$0xff]
  %v63 = vld [vmem:[%s58 + $0x20] sm:$0xff]
  %v64 = vld [vmem:[%s58 + $0x28] sm:$0xff]
  %v65 = vld [vmem:[%s58 + $0x30] sm:$0xff]
  %v66 = vld [vmem:[%s58 + $0x38] sm:$0xff]
  %v67 = vld [vmem:[%s58 + $0x40] sm:$0xff]
  %v68 = vld [vmem:[%s58 + $0x48] sm:$0xff]
  %v69 = vld [vmem:[%s58 + $0x50] sm:$0xff]
  %v70 = vld [vmem:[%s58 + $0x58] sm:$0xff]
  %v71 = vld [vmem:[%s58 + $0x60] sm:$0xff]
  %v72 = vld [vmem:[%s58 + $0x68] sm:$0xff]
  %v73 = vld [vmem:[%s58 + $0x70] sm:$0xff]
  %v74 = vld [vmem:[%s58 + $0x78] sm:$0xff]
  %vm87 = vcmask 1046528
  %v88 = vrot.slane %v29, 1
  %v89 = vrot.slane %v30, 1
  %v90 = vsel %vm87, %v88, %v89
  %v91 = vrot.slane %v31, 1
  %v92 = vsel %vm87, %v89, %v91
  %v93 = vrot.slane %v32, 1
  %v94 = vsel %vm87, %v91, %v93
  %v95 = vrot.slane %v33, 1
  %v96 = vsel %vm87, %v93, %v95
  %v97 = vrot.slane %v34, 1
  %v98 = vsel %vm87, %v95, %v97
  %v99 = vrot.slane %v35, 1
  %v100 = vsel %vm87, %v97, %v99
  %v101 = vrot.slane %v36, 1
  %v102 = vsel %vm87, %v99, %v101
  %v103 = vrot.slane %v37, 1
  %v104 = vsel %vm87, %v101, %v103
  %v105 = vrot.slane %v38, 1
  %v106 = vsel %vm87, %v103, %v105
  %v107 = vrot.slane %v39, 1
  %v108 = vsel %vm87, %v105, %v107
  %v109 = vrot.slane %v40, 1
  %v110 = vsel %vm87, %v107, %v109
  %123 = vmatprep.subr.mxu0 0.0
  %124 = vmatpush1.msra.mxu0 %v74
  %125 = vmatprep.subr.mxu0 0.0
  %126 = vmatpush1.msra.mxu0 %v73
  %127 = vmatprep.subr.mxu0 0.0
  %128 = vmatpush1.msra.mxu0 %v72
  %129 = vmatprep.subr.mxu0 0.0
  %130 = vmatpush1.msra.mxu0 %v71
  %131 = vmatprep.subr.mxu0 0.0
  %132 = vmatpush1.msra.mxu0 %v70
  %133 = vmatprep.subr.mxu0 0.0
  %134 = vmatpush1.msra.mxu0 %v69
  %135 = vmatprep.subr.mxu0 0.0
  %136 = vmatpush1.msra.mxu0 %v68
  %137 = vmatprep.subr.mxu0 0.0
  %138 = vmatpush1.msra.mxu0 %v67
  %139 = vmatprep.subr.mxu0 0.0
  %140 = vmatpush1.msra.mxu0 %v66
  %141 = vmatprep.subr.mxu0 0.0
  %142 = vmatpush1.msra.mxu0 %v65
  %143 = vmatprep.subr.mxu0 0.0
  %144 = vmatpush1.msra.mxu0 %v64
  %145 = vmatprep.subr.mxu0 0.0
  %146 = vmatpush1.msra.mxu0 %v63
  %147 = vmatprep.subr.mxu0 0.0
  %148 = vmatpush1.msra.mxu0 %v62
  %149 = vmatprep.subr.mxu0 0.0
  %150 = vmatpush1.msra.mxu0 %v61
  %151 = vmatprep.subr.mxu0 0.0
  %152 = vmatpush1.msra.mxu0 %v60
  %153 = vmatprep.subr.mxu0 0.0
  %154 = vmatpush1.msra.mxu0 %v59
  %155 = vmatprep.subr.mxu0 0.0
  %156 = vmatpush2.msra.mxu0 0.0
  %157 = vmatprep.subr.mxu0 0.0
  %158 = vmatpush2.msra.mxu0 0.0
  %159 = vmatprep.subr.mxu0 0.0
  %160 = vmatpush2.msra.mxu0 0.0
  %161 = vmatprep.subr.mxu0 0.0
  %162 = vmatpush2.msra.mxu0 0.0
  %163 = vmatprep.subr.mxu0 0.0
  %164 = vmatpush2.msra.mxu0 0.0
  %165 = vmatprep.subr.mxu0 0.0
  %166 = vmatpush2.msra.mxu0 0.0
  %167 = vmatprep.subr.mxu0 0.0
  %168 = vmatpush2.msra.mxu0 0.0
  %169 = vmatprep.subr.mxu0 0.0
  %170 = vmatpush2.msra.mxu0 0.0
  %171 = vmatprep.subr.mxu0 0.0
  %172 = vmatpush2.msra.mxu0 0.0
  %173 = vmatprep.subr.mxu0 0.0
  %174 = vmatpush2.msra.mxu0 0.0
  %175 = vmatprep.subr.mxu0 0.0
  %176 = vmatpush2.msra.mxu0 0.0
  %177 = vmatprep.subr.mxu0 0.0
  %178 = vmatpush2.msra.mxu0 0.0
  %179 = vmatprep.subr.mxu0 0.0
  %180 = vmatpush2.msra.mxu0 0.0
  %181 = vmatprep.subr.mxu0 0.0
  %182 = vmatpush2.msra.mxu0 0.0
  %183 = vmatprep.subr.mxu0 0.0
  %184 = vmatpush2.msra.mxu0 0.0
  %185 = vmatprep.subr.mxu0 0.0
  %186 = vmatpush2.msra.mxu0 0.0
  %187 = vmatprep.mubr.f32.mxu0 0.0
  %188 = vmatmul.mubr.f32.gmra.mxu0 %v90
  %v189 = vpop.f32.mrf.mxu0
  %v190 = vadd.f32 0.0, %v189
  %v191 = vpop.f32.mrf.mxu0
  %192 = vmatprep.mubr.f32.mxu0 0.0
  %193 = vmatmul.mubr.f32.gmra.mxu0 %v92
  %v194 = vpop.f32.mrf.mxu0
  %v195 = vadd.f32 0.0, %v194
  %v196 = vpop.f32.mrf.mxu0
  %197 = vmatprep.mubr.f32.mxu0 0.0
  %198 = vmatmul.mubr.f32.gmra.mxu0 %v94
  %v199 = vpop.f32.mrf.mxu0
  %v200 = vadd.f32 0.0, %v199
  %v201 = vpop.f32.mrf.mxu0
  %202 = vmatprep.mubr.f32.mxu0 0.0
  %203 = vmatmul.mubr.f32.gmra.mxu0 %v96
  %v204 = vpop.f32.mrf.mxu0
  %v205 = vadd.f32 0.0, %v204
  %v206 = vpop.f32.mrf.mxu0
  %207 = vmatprep.mubr.f32.mxu0 0.0
  %208 = vmatmul.mubr.f32.gmra.mxu0 %v98
  %v209 = vpop.f32.mrf.mxu0
  %v210 = vadd.f32 0.0, %v209
  %v211 = vpop.f32.mrf.mxu0
  %212 = vmatprep.mubr.f32.mxu0 0.0
  %213 = vmatmul.mubr.f32.gmra.mxu0 %v100
  %v214 = vpop.f32.mrf.mxu0
  %v215 = vadd.f32 0.0, %v214
  %v216 = vpop.f32.mrf.mxu0
  %217 = vmatprep.mubr.f32.mxu0 0.0
  %218 = vmatmul.mubr.f32.gmra.mxu0 %v102
  %v219 = vpop.f32.mrf.mxu0
  %v220 = vadd.f32 0.0, %v219
  %v221 = vpop.f32.mrf.mxu0
  %222 = vmatprep.mubr.f32.mxu0 0.0
  %223 = vmatmul.mubr.f32.gmra.mxu0 %v104
  %v224 = vpop.f32.mrf.mxu0
  %v225 = vadd.f32 0.0, %v224
  %v226 = vpop.f32.mrf.mxu0
  %227 = vmatprep.mubr.f32.mxu0 0.0
  %228 = vmatmul.mubr.f32.gmra.mxu0 %v106
  %v229 = vpop.f32.mrf.mxu0
  %v230 = vadd.f32 0.0, %v229
  %v231 = vpop.f32.mrf.mxu0
  %232 = vmatprep.mubr.f32.mxu0 0.0
  %233 = vmatmul.mubr.f32.gmra.mxu0 %v108
  %v234 = vpop.f32.mrf.mxu0
  %v235 = vadd.f32 0.0, %v234
  %v236 = vpop.f32.mrf.mxu0
  %237 = vmatprep.mubr.f32.mxu0 0.0
  %238 = vmatmul.mubr.f32.gmra.mxu0 %v110
  %v239 = vpop.f32.mrf.mxu0
  %v240 = vadd.f32 0.0, %v239
  %v241 = vpop.f32.mrf.mxu0
  %242 = vmatprep.mubr.f32.mxu0 0.0
  %243 = vmatmul.mubr.f32.gmra.mxu0 %v109
  %v244 = vpop.f32.mrf.mxu0
  %v245 = vadd.f32 0.0, %v244
  %v246 = vpop.f32.mrf.mxu0
  %247 = vdwg.mxu0
  %248 = vmatprep.subr.mxu0 0.0
  %249 = vmatpush1.msra.mxu0 %v57
  %250 = vmatprep.subr.mxu0 0.0
  %251 = vmatpush1.msra.mxu0 %v56
  %252 = vmatprep.subr.mxu0 0.0
  %253 = vmatpush1.msra.mxu0 %v55
  %254 = vmatprep.subr.mxu0 0.0
  %255 = vmatpush1.msra.mxu0 %v54
  %256 = vmatprep.subr.mxu0 0.0
  %257 = vmatpush1.msra.mxu0 %v53
  %258 = vmatprep.subr.mxu0 0.0
  %259 = vmatpush1.msra.mxu0 %v52
  %260 = vmatprep.subr.mxu0 0.0
  %261 = vmatpush1.msra.mxu0 %v51
  %262 = vmatprep.subr.mxu0 0.0
  %263 = vmatpush1.msra.mxu0 %v50
  %264 = vmatprep.subr.mxu0 0.0
  %265 = vmatpush1.msra.mxu0 %v49
  %266 = vmatprep.subr.mxu0 0.0
  %267 = vmatpush1.msra.mxu0 %v48
  %268 = vmatprep.subr.mxu0 0.0
  %269 = vmatpush1.msra.mxu0 %v47
  %270 = vmatprep.subr.mxu0 0.0
  %271 = vmatpush1.msra.mxu0 %v46
  %272 = vmatprep.subr.mxu0 0.0
  %273 = vmatpush1.msra.mxu0 %v45
  %274 = vmatprep.subr.mxu0 0.0
  %275 = vmatpush1.msra.mxu0 %v44
  %276 = vmatprep.subr.mxu0 0.0
  %277 = vmatpush1.msra.mxu0 %v43
  %278 = vmatprep.subr.mxu0 0.0
  %279 = vmatpush1.msra.mxu0 %v42
  %280 = vmatprep.subr.mxu0 0.0
  %281 = vmatpush2.msra.mxu0 0.0
  %282 = vmatprep.subr.mxu0 0.0
  %283 = vmatpush2.msra.mxu0 0.0
  %284 = vmatprep.subr.mxu0 0.0
  %285 = vmatpush2.msra.mxu0 0.0
  %286 = vmatprep.subr.mxu0 0.0
  %287 = vmatpush2.msra.mxu0 0.0
  %288 = vmatprep.subr.mxu0 0.0
  %289 = vmatpush2.msra.mxu0 0.0
  %290 = vmatprep.subr.mxu0 0.0
  %291 = vmatpush2.msra.mxu0 0.0
  %292 = vmatprep.subr.mxu0 0.0
  %293 = vmatpush2.msra.mxu0 0.0
  %294 = vmatprep.subr.mxu0 0.0
  %295 = vmatpush2.msra.mxu0 0.0
  %296 = vmatprep.subr.mxu0 0.0
  %297 = vmatpush2.msra.mxu0 0.0
  %298 = vmatprep.subr.mxu0 0.0
  %299 = vmatpush2.msra.mxu0 0.0
  %300 = vmatprep.subr.mxu0 0.0
  %301 = vmatpush2.msra.mxu0 0.0
  %302 = vmatprep.subr.mxu0 0.0
  %303 = vmatpush2.msra.mxu0 0.0
  %304 = vmatprep.subr.mxu0 0.0
  %305 = vmatpush2.msra.mxu0 0.0
  %306 = vmatprep.subr.mxu0 0.0
  %307 = vmatpush2.msra.mxu0 0.0
  %308 = vmatprep.subr.mxu0 0.0
  %309 = vmatpush2.msra.mxu0 0.0
  %310 = vmatprep.subr.mxu0 0.0
  %311 = vmatpush2.msra.mxu0 0.0
  %312 = vmatprep.mubr.f32.mxu0 0.0
  %313 = vmatmul.mubr.f32.gmra.mxu0 %v29
  %v314 = vpop.f32.mrf.mxu0
  %v315 = vadd.f32 %v190, %v314
  %v316 = vpop.f32.mrf.mxu0
  %317 = vmatprep.mubr.f32.mxu0 0.0
  %318 = vmatmul.mubr.f32.gmra.mxu0 %v30
  %v319 = vpop.f32.mrf.mxu0
  %v320 = vadd.f32 %v195, %v319
  %v321 = vpop.f32.mrf.mxu0
  %322 = vmatprep.mubr.f32.mxu0 0.0
  %323 = vmatmul.mubr.f32.gmra.mxu0 %v31
  %v324 = vpop.f32.mrf.mxu0
  %v325 = vadd.f32 %v200, %v324
  %v326 = vpop.f32.mrf.mxu0
  %327 = vmatprep.mubr.f32.mxu0 0.0
  %328 = vmatmul.mubr.f32.gmra.mxu0 %v32
  %v329 = vpop.f32.mrf.mxu0
  %v330 = vadd.f32 %v205, %v329
  %v331 = vpop.f32.mrf.mxu0
  %332 = vmatprep.mubr.f32.mxu0 0.0
  %333 = vmatmul.mubr.f32.gmra.mxu0 %v33
  %v334 = vpop.f32.mrf.mxu0
  %v335 = vadd.f32 %v210, %v334
  %v336 = vpop.f32.mrf.mxu0
  %337 = vmatprep.mubr.f32.mxu0 0.0
  %338 = vmatmul.mubr.f32.gmra.mxu0 %v34
  %v339 = vpop.f32.mrf.mxu0
  %v340 = vadd.f32 %v215, %v339
  %v341 = vpop.f32.mrf.mxu0
  %342 = vmatprep.mubr.f32.mxu0 0.0
  %343 = vmatmul.mubr.f32.gmra.mxu0 %v35
  %v344 = vpop.f32.mrf.mxu0
  %v345 = vadd.f32 %v220, %v344
  %v346 = vpop.f32.mrf.mxu0
  %347 = vmatprep.mubr.f32.mxu0 0.0
  %348 = vmatmul.mubr.f32.gmra.mxu0 %v36
  %v349 = vpop.f32.mrf.mxu0
  %v350 = vadd.f32 %v225, %v349
  %v351 = vpop.f32.mrf.mxu0
  %352 = vmatprep.mubr.f32.mxu0 0.0
  %353 = vmatmul.mubr.f32.gmra.mxu0 %v37
  %v354 = vpop.f32.mrf.mxu0
  %v355 = vadd.f32 %v230, %v354
  %v356 = vpop.f32.mrf.mxu0
  %357 = vmatprep.mubr.f32.mxu0 0.0
  %358 = vmatmul.mubr.f32.gmra.mxu0 %v38
  %v359 = vpop.f32.mrf.mxu0
  %v360 = vadd.f32 %v235, %v359
  %v361 = vpop.f32.mrf.mxu0
  %362 = vmatprep.mubr.f32.mxu0 0.0
  %363 = vmatmul.mubr.f32.gmra.mxu0 %v39
  %v364 = vpop.f32.mrf.mxu0
  %v365 = vadd.f32 %v240, %v364
  %v366 = vpop.f32.mrf.mxu0
  %367 = vmatprep.mubr.f32.mxu0 0.0
  %368 = vmatmul.mubr.f32.gmra.mxu0 %v40
  %v369 = vpop.f32.mrf.mxu0
  %v370 = vadd.f32 %v245, %v369
  %v371 = vpop.f32.mrf.mxu0
  %372 = vdwg.mxu0
  %s373 = scalar_lea.vmem %s1, 256
  %v374 = vld [vmem:[%s373] sm:$0xff]
  %v375 = vld [vmem:[%s373 + $0x8] sm:$0xff]
  %v376 = vld [vmem:[%s373 + $0x10] sm:$0xff]
  %v377 = vld [vmem:[%s373 + $0x18] sm:$0xff]
  %v378 = vld [vmem:[%s373 + $0x20] sm:$0xff]
  %v379 = vld [vmem:[%s373 + $0x28] sm:$0xff]
  %v380 = vld [vmem:[%s373 + $0x30] sm:$0xff]
  %v381 = vld [vmem:[%s373 + $0x38] sm:$0xff]
  %v382 = vld [vmem:[%s373 + $0x40] sm:$0xff]
  %v383 = vld [vmem:[%s373 + $0x48] sm:$0xff]
  %v384 = vld [vmem:[%s373 + $0x50] sm:$0xff]
  %v385 = vld [vmem:[%s373 + $0x58] sm:$0xff]
  %v386 = vld [vmem:[%s373 + $0x60] sm:$0xff]
  %v387 = vld [vmem:[%s373 + $0x68] sm:$0xff]
  %v388 = vld [vmem:[%s373 + $0x70] sm:$0xff]
  %v389 = vld [vmem:[%s373 + $0x78] sm:$0xff]
  %vm391 = vcmask 1045504
  %v392 = vrot.slane %v29, 2
  %v393 = vrot.slane %v30, 2
  %v394 = vsel %vm391, %v392, %v393
  %v395 = vrot.slane %v31, 2
  %v396 = vsel %vm391, %v393, %v395
  %v397 = vrot.slane %v32, 2
  %v398 = vsel %vm391, %v395, %v397
  %v399 = vrot.slane %v33, 2
  %v400 = vsel %vm391, %v397, %v399
  %v401 = vrot.slane %v34, 2
  %v402 = vsel %vm391, %v399, %v401
  %v403 = vrot.slane %v35, 2
  %v404 = vsel %vm391, %v401, %v403
  %v405 = vrot.slane %v36, 2
  %v406 = vsel %vm391, %v403, %v405
  %v407 = vrot.slane %v37, 2
  %v408 = vsel %vm391, %v405, %v407
  %v409 = vrot.slane %v38, 2
  %v410 = vsel %vm391, %v407, %v409
  %v411 = vrot.slane %v39, 2
  %v412 = vsel %vm391, %v409, %v411
  %v413 = vrot.slane %v40, 2
  %v414 = vsel %vm391, %v411, %v413
  %v415 = vrot.slane %v41, 2
  %v416 = vsel %vm391, %v413, %v415
  %429 = vmatprep.subr.mxu0 0.0
  %430 = vmatpush1.msra.mxu0 %v389
  %431 = vmatprep.subr.mxu0 0.0
  %432 = vmatpush1.msra.mxu0 %v388
  %433 = vmatprep.subr.mxu0 0.0
  %434 = vmatpush1.msra.mxu0 %v387
  %435 = vmatprep.subr.mxu0 0.0
  %436 = vmatpush1.msra.mxu0 %v386
  %437 = vmatprep.subr.mxu0 0.0
  %438 = vmatpush1.msra.mxu0 %v385
  %439 = vmatprep.subr.mxu0 0.0
  %440 = vmatpush1.msra.mxu0 %v384
  %441 = vmatprep.subr.mxu0 0.0
  %442 = vmatpush1.msra.mxu0 %v383
  %443 = vmatprep.subr.mxu0 0.0
  %444 = vmatpush1.msra.mxu0 %v382
  %445 = vmatprep.subr.mxu0 0.0
  %446 = vmatpush1.msra.mxu0 %v381
  %447 = vmatprep.subr.mxu0 0.0
  %448 = vmatpush1.msra.mxu0 %v380
  %449 = vmatprep.subr.mxu0 0.0
  %450 = vmatpush1.msra.mxu0 %v379
  %451 = vmatprep.subr.mxu0 0.0
  %452 = vmatpush1.msra.mxu0 %v378
  %453 = vmatprep.subr.mxu0 0.0
  %454 = vmatpush1.msra.mxu0 %v377
  %455 = vmatprep.subr.mxu0 0.0
  %456 = vmatpush1.msra.mxu0 %v376
  %457 = vmatprep.subr.mxu0 0.0
  %458 = vmatpush1.msra.mxu0 %v375
  %459 = vmatprep.subr.mxu0 0.0
  %460 = vmatpush1.msra.mxu0 %v374
  %461 = vmatprep.subr.mxu0 0.0
  %462 = vmatpush2.msra.mxu0 0.0
  %463 = vmatprep.subr.mxu0 0.0
  %464 = vmatpush2.msra.mxu0 0.0
  %465 = vmatprep.subr.mxu0 0.0
  %466 = vmatpush2.msra.mxu0 0.0
  %467 = vmatprep.subr.mxu0 0.0
  %468 = vmatpush2.msra.mxu0 0.0
  %469 = vmatprep.subr.mxu0 0.0
  %470 = vmatpush2.msra.mxu0 0.0
  %471 = vmatprep.subr.mxu0 0.0
  %472 = vmatpush2.msra.mxu0 0.0
  %473 = vmatprep.subr.mxu0 0.0
  %474 = vmatpush2.msra.mxu0 0.0
  %475 = vmatprep.subr.mxu0 0.0
  %476 = vmatpush2.msra.mxu0 0.0
  %477 = vmatprep.subr.mxu0 0.0
  %478 = vmatpush2.msra.mxu0 0.0
  %479 = vmatprep.subr.mxu0 0.0
  %480 = vmatpush2.msra.mxu0 0.0
  %481 = vmatprep.subr.mxu0 0.0
  %482 = vmatpush2.msra.mxu0 0.0
  %483 = vmatprep.subr.mxu0 0.0
  %484 = vmatpush2.msra.mxu0 0.0
  %485 = vmatprep.subr.mxu0 0.0
  %486 = vmatpush2.msra.mxu0 0.0
  %487 = vmatprep.subr.mxu0 0.0
  %488 = vmatpush2.msra.mxu0 0.0
  %489 = vmatprep.subr.mxu0 0.0
  %490 = vmatpush2.msra.mxu0 0.0
  %491 = vmatprep.subr.mxu0 0.0
  %492 = vmatpush2.msra.mxu0 0.0
  %493 = vmatprep.mubr.f32.mxu0 0.0
  %494 = vmatmul.mubr.f32.gmra.mxu0 %v394
  %v495 = vpop.f32.mrf.mxu0
  %v496 = vadd.f32 0.0, %v495
  %v497 = vpop.f32.mrf.mxu0
  %498 = vmatprep.mubr.f32.mxu0 0.0
  %499 = vmatmul.mubr.f32.gmra.mxu0 %v396
  %v500 = vpop.f32.mrf.mxu0
  %v501 = vadd.f32 0.0, %v500
  %v502 = vpop.f32.mrf.mxu0
  %503 = vmatprep.mubr.f32.mxu0 0.0
  %504 = vmatmul.mubr.f32.gmra.mxu0 %v398
  %v505 = vpop.f32.mrf.mxu0
  %v506 = vadd.f32 0.0, %v505
  %v507 = vpop.f32.mrf.mxu0
  %508 = vmatprep.mubr.f32.mxu0 0.0
  %509 = vmatmul.mubr.f32.gmra.mxu0 %v400
  %v510 = vpop.f32.mrf.mxu0
  %v511 = vadd.f32 0.0, %v510
  %v512 = vpop.f32.mrf.mxu0
  %513 = vmatprep.mubr.f32.mxu0 0.0
  %514 = vmatmul.mubr.f32.gmra.mxu0 %v402
  %v515 = vpop.f32.mrf.mxu0
  %v516 = vadd.f32 0.0, %v515
  %v517 = vpop.f32.mrf.mxu0
  %518 = vmatprep.mubr.f32.mxu0 0.0
  %519 = vmatmul.mubr.f32.gmra.mxu0 %v404
  %v520 = vpop.f32.mrf.mxu0
  %v521 = vadd.f32 0.0, %v520
  %v522 = vpop.f32.mrf.mxu0
  %523 = vmatprep.mubr.f32.mxu0 0.0
  %524 = vmatmul.mubr.f32.gmra.mxu0 %v406
  %v525 = vpop.f32.mrf.mxu0
  %v526 = vadd.f32 0.0, %v525
  %v527 = vpop.f32.mrf.mxu0
  %528 = vmatprep.mubr.f32.mxu0 0.0
  %529 = vmatmul.mubr.f32.gmra.mxu0 %v408
  %v530 = vpop.f32.mrf.mxu0
  %v531 = vadd.f32 0.0, %v530
  %v532 = vpop.f32.mrf.mxu0
  %533 = vmatprep.mubr.f32.mxu0 0.0
  %534 = vmatmul.mubr.f32.gmra.mxu0 %v410
  %v535 = vpop.f32.mrf.mxu0
  %v536 = vadd.f32 0.0, %v535
  %v537 = vpop.f32.mrf.mxu0
  %538 = vmatprep.mubr.f32.mxu0 0.0
  %539 = vmatmul.mubr.f32.gmra.mxu0 %v412
  %v540 = vpop.f32.mrf.mxu0
  %v541 = vadd.f32 0.0, %v540
  %v542 = vpop.f32.mrf.mxu0
  %543 = vmatprep.mubr.f32.mxu0 0.0
  %544 = vmatmul.mubr.f32.gmra.mxu0 %v414
  %v545 = vpop.f32.mrf.mxu0
  %v546 = vadd.f32 0.0, %v545
  %v547 = vpop.f32.mrf.mxu0
  %548 = vmatprep.mubr.f32.mxu0 0.0
  %549 = vmatmul.mubr.f32.gmra.mxu0 %v416
  %v550 = vpop.f32.mrf.mxu0
  %v551 = vadd.f32 0.0, %v550
  %v552 = vpop.f32.mrf.mxu0
  %553 = vdwg.mxu0
  %v554 = vadd.f32 %v315, %v496
  %v555 = vadd.f32 %v320, %v501
  %v556 = vadd.f32 %v325, %v506
  %v557 = vadd.f32 %v330, %v511
  %v558 = vadd.f32 %v335, %v516
  %v559 = vadd.f32 %v340, %v521
  %v560 = vadd.f32 %v345, %v526
  %v561 = vadd.f32 %v350, %v531
  %v562 = vadd.f32 %v355, %v536
  %v563 = vadd.f32 %v360, %v541
  %v564 = vadd.f32 %v365, %v546
  %v565 = vadd.f32 %v370, %v551
  %s566 = scalar_lea.vmem %s1, 384
  %v567 = vld [vmem:[%s566] sm:$0xff]
  %v568 = vld [vmem:[%s566 + $0x8] sm:$0xff]
  %v569 = vld [vmem:[%s566 + $0x10] sm:$0xff]
  %v570 = vld [vmem:[%s566 + $0x18] sm:$0xff]
  %v571 = vld [vmem:[%s566 + $0x20] sm:$0xff]
  %v572 = vld [vmem:[%s566 + $0x28] sm:$0xff]
  %v573 = vld [vmem:[%s566 + $0x30] sm:$0xff]
  %v574 = vld [vmem:[%s566 + $0x38] sm:$0xff]
  %v575 = vld [vmem:[%s566 + $0x40] sm:$0xff]
  %v576 = vld [vmem:[%s566 + $0x48] sm:$0xff]
  %v577 = vld [vmem:[%s566 + $0x50] sm:$0xff]
  %v578 = vld [vmem:[%s566 + $0x58] sm:$0xff]
  %v579 = vld [vmem:[%s566 + $0x60] sm:$0xff]
  %v580 = vld [vmem:[%s566 + $0x68] sm:$0xff]
  %v581 = vld [vmem:[%s566 + $0x70] sm:$0xff]
  %v582 = vld [vmem:[%s566 + $0x78] sm:$0xff]
  %vm583 = vcmask 1044480
  %v584 = vrot.slane %v29, 3
  %v585 = vrot.slane %v30, 3
  %v586 = vsel %vm583, %v584, %v585
  %v587 = vrot.slane %v31, 3
  %v588 = vsel %vm583, %v585, %v587
  %v589 = vrot.slane %v32, 3
  %v590 = vsel %vm583, %v587, %v589
  %v591 = vrot.slane %v33, 3
  %v592 = vsel %vm583, %v589, %v591
  %v593 = vrot.slane %v34, 3
  %v594 = vsel %vm583, %v591, %v593
  %v595 = vrot.slane %v35, 3
  %v596 = vsel %vm583, %v593, %v595
  %v597 = vrot.slane %v36, 3
  %v598 = vsel %vm583, %v595, %v597
  %v599 = vrot.slane %v37, 3
  %v600 = vsel %vm583, %v597, %v599
  %v601 = vrot.slane %v38, 3
  %v602 = vsel %vm583, %v599, %v601
  %v603 = vrot.slane %v39, 3
  %v604 = vsel %vm583, %v601, %v603
  %v605 = vrot.slane %v40, 3
  %v606 = vsel %vm583, %v603, %v605
  %v607 = vrot.slane %v41, 3
  %v608 = vsel %vm583, %v605, %v607
  %621 = vmatprep.subr.mxu0 0.0
  %622 = vmatpush1.msra.mxu0 %v582
  %623 = vmatprep.subr.mxu0 0.0
  %624 = vmatpush1.msra.mxu0 %v581
  %625 = vmatprep.subr.mxu0 0.0
  %626 = vmatpush1.msra.mxu0 %v580
  %627 = vmatprep.subr.mxu0 0.0
  %628 = vmatpush1.msra.mxu0 %v579
  %629 = vmatprep.subr.mxu0 0.0
  %630 = vmatpush1.msra.mxu0 %v578
  %631 = vmatprep.subr.mxu0 0.0
  %632 = vmatpush1.msra.mxu0 %v577
  %633 = vmatprep.subr.mxu0 0.0
  %634 = vmatpush1.msra.mxu0 %v576
  %635 = vmatprep.subr.mxu0 0.0
  %636 = vmatpush1.msra.mxu0 %v575
  %637 = vmatprep.subr.mxu0 0.0
  %638 = vmatpush1.msra.mxu0 %v574
  %639 = vmatprep.subr.mxu0 0.0
  %640 = vmatpush1.msra.mxu0 %v573
  %641 = vmatprep.subr.mxu0 0.0
  %642 = vmatpush1.msra.mxu0 %v572
  %643 = vmatprep.subr.mxu0 0.0
  %644 = vmatpush1.msra.mxu0 %v571
  %645 = vmatprep.subr.mxu0 0.0
  %646 = vmatpush1.msra.mxu0 %v570
  %647 = vmatprep.subr.mxu0 0.0
  %648 = vmatpush1.msra.mxu0 %v569
  %649 = vmatprep.subr.mxu0 0.0
  %650 = vmatpush1.msra.mxu0 %v568
  %651 = vmatprep.subr.mxu0 0.0
  %652 = vmatpush1.msra.mxu0 %v567
  %653 = vmatprep.subr.mxu0 0.0
  %654 = vmatpush2.msra.mxu0 0.0
  %655 = vmatprep.subr.mxu0 0.0
  %656 = vmatpush2.msra.mxu0 0.0
  %657 = vmatprep.subr.mxu0 0.0
  %658 = vmatpush2.msra.mxu0 0.0
  %659 = vmatprep.subr.mxu0 0.0
  %660 = vmatpush2.msra.mxu0 0.0
  %661 = vmatprep.subr.mxu0 0.0
  %662 = vmatpush2.msra.mxu0 0.0
  %663 = vmatprep.subr.mxu0 0.0
  %664 = vmatpush2.msra.mxu0 0.0
  %665 = vmatprep.subr.mxu0 0.0
  %666 = vmatpush2.msra.mxu0 0.0
  %667 = vmatprep.subr.mxu0 0.0
  %668 = vmatpush2.msra.mxu0 0.0
  %669 = vmatprep.subr.mxu0 0.0
  %670 = vmatpush2.msra.mxu0 0.0
  %671 = vmatprep.subr.mxu0 0.0
  %672 = vmatpush2.msra.mxu0 0.0
  %673 = vmatprep.subr.mxu0 0.0
  %674 = vmatpush2.msra.mxu0 0.0
  %675 = vmatprep.subr.mxu0 0.0
  %676 = vmatpush2.msra.mxu0 0.0
  %677 = vmatprep.subr.mxu0 0.0
  %678 = vmatpush2.msra.mxu0 0.0
  %679 = vmatprep.subr.mxu0 0.0
  %680 = vmatpush2.msra.mxu0 0.0
  %681 = vmatprep.subr.mxu0 0.0
  %682 = vmatpush2.msra.mxu0 0.0
  %683 = vmatprep.subr.mxu0 0.0
  %684 = vmatpush2.msra.mxu0 0.0
  %685 = vmatprep.mubr.f32.mxu0 0.0
  %686 = vmatmul.mubr.f32.gmra.mxu0 %v586
  %v687 = vpop.f32.mrf.mxu0
  %v688 = vadd.f32 0.0, %v687
  %v689 = vpop.f32.mrf.mxu0
  %690 = vmatprep.mubr.f32.mxu0 0.0
  %691 = vmatmul.mubr.f32.gmra.mxu0 %v588
  %v692 = vpop.f32.mrf.mxu0
  %v693 = vadd.f32 0.0, %v692
  %v694 = vpop.f32.mrf.mxu0
  %695 = vmatprep.mubr.f32.mxu0 0.0
  %696 = vmatmul.mubr.f32.gmra.mxu0 %v590
  %v697 = vpop.f32.mrf.mxu0
  %v698 = vadd.f32 0.0, %v697
  %v699 = vpop.f32.mrf.mxu0
  %700 = vmatprep.mubr.f32.mxu0 0.0
  %701 = vmatmul.mubr.f32.gmra.mxu0 %v592
  %v702 = vpop.f32.mrf.mxu0
  %v703 = vadd.f32 0.0, %v702
  %v704 = vpop.f32.mrf.mxu0
  %705 = vmatprep.mubr.f32.mxu0 0.0
  %706 = vmatmul.mubr.f32.gmra.mxu0 %v594
  %v707 = vpop.f32.mrf.mxu0
  %v708 = vadd.f32 0.0, %v707
  %v709 = vpop.f32.mrf.mxu0
  %710 = vmatprep.mubr.f32.mxu0 0.0
  %711 = vmatmul.mubr.f32.gmra.mxu0 %v596
  %v712 = vpop.f32.mrf.mxu0
  %v713 = vadd.f32 0.0, %v712
  %v714 = vpop.f32.mrf.mxu0
  %715 = vmatprep.mubr.f32.mxu0 0.0
  %716 = vmatmul.mubr.f32.gmra.mxu0 %v598
  %v717 = vpop.f32.mrf.mxu0
  %v718 = vadd.f32 0.0, %v717
  %v719 = vpop.f32.mrf.mxu0
  %720 = vmatprep.mubr.f32.mxu0 0.0
  %721 = vmatmul.mubr.f32.gmra.mxu0 %v600
  %v722 = vpop.f32.mrf.mxu0
  %v723 = vadd.f32 0.0, %v722
  %v724 = vpop.f32.mrf.mxu0
  %725 = vmatprep.mubr.f32.mxu0 0.0
  %726 = vmatmul.mubr.f32.gmra.mxu0 %v602
  %v727 = vpop.f32.mrf.mxu0
  %v728 = vadd.f32 0.0, %v727
  %v729 = vpop.f32.mrf.mxu0
  %730 = vmatprep.mubr.f32.mxu0 0.0
  %731 = vmatmul.mubr.f32.gmra.mxu0 %v604
  %v732 = vpop.f32.mrf.mxu0
  %v733 = vadd.f32 0.0, %v732
  %v734 = vpop.f32.mrf.mxu0
  %735 = vmatprep.mubr.f32.mxu0 0.0
  %736 = vmatmul.mubr.f32.gmra.mxu0 %v606
  %v737 = vpop.f32.mrf.mxu0
  %v738 = vadd.f32 0.0, %v737
  %v739 = vpop.f32.mrf.mxu0
  %740 = vmatprep.mubr.f32.mxu0 0.0
  %741 = vmatmul.mubr.f32.gmra.mxu0 %v608
  %v742 = vpop.f32.mrf.mxu0
  %v743 = vadd.f32 0.0, %v742
  %v744 = vpop.f32.mrf.mxu0
  %745 = vdwg.mxu0
  %v746 = vadd.f32 %v554, %v688
  %v747 = vadd.f32 %v555, %v693
  %v748 = vadd.f32 %v556, %v698
  %v749 = vadd.f32 %v557, %v703
  %v750 = vadd.f32 %v558, %v708
  %v751 = vadd.f32 %v559, %v713
  %v752 = vadd.f32 %v560, %v718
  %v753 = vadd.f32 %v561, %v723
  %v754 = vadd.f32 %v562, %v728
  %v755 = vadd.f32 %v563, %v733
  %v756 = vadd.f32 %v564, %v738
  %v757 = vadd.f32 %v565, %v743
  %s758 = scalar_lea.vmem %s1, 512
  %v759 = vld [vmem:[%s758] sm:$0xff]
  %v760 = vld [vmem:[%s758 + $0x8] sm:$0xff]
  %v761 = vld [vmem:[%s758 + $0x10] sm:$0xff]
  %v762 = vld [vmem:[%s758 + $0x18] sm:$0xff]
  %v763 = vld [vmem:[%s758 + $0x20] sm:$0xff]
  %v764 = vld [vmem:[%s758 + $0x28] sm:$0xff]
  %v765 = vld [vmem:[%s758 + $0x30] sm:$0xff]
  %v766 = vld [vmem:[%s758 + $0x38] sm:$0xff]
  %v767 = vld [vmem:[%s758 + $0x40] sm:$0xff]
  %v768 = vld [vmem:[%s758 + $0x48] sm:$0xff]
  %v769 = vld [vmem:[%s758 + $0x50] sm:$0xff]
  %v770 = vld [vmem:[%s758 + $0x58] sm:$0xff]
  %v771 = vld [vmem:[%s758 + $0x60] sm:$0xff]
  %v772 = vld [vmem:[%s758 + $0x68] sm:$0xff]
  %v773 = vld [vmem:[%s758 + $0x70] sm:$0xff]
  %v774 = vld [vmem:[%s758 + $0x78] sm:$0xff]
  %vm775 = vcmask 1043456
  %v776 = vrot.slane %v29, 4
  %v777 = vrot.slane %v30, 4
  %v778 = vsel %vm775, %v776, %v777
  %v779 = vrot.slane %v31, 4
  %v780 = vsel %vm775, %v777, %v779
  %v781 = vrot.slane %v32, 4
  %v782 = vsel %vm775, %v779, %v781
  %v783 = vrot.slane %v33, 4
  %v784 = vsel %vm775, %v781, %v783
  %v785 = vrot.slane %v34, 4
  %v786 = vsel %vm775, %v783, %v785
  %v787 = vrot.slane %v35, 4
  %v788 = vsel %vm775, %v785, %v787
  %v789 = vrot.slane %v36, 4
  %v790 = vsel %vm775, %v787, %v789
  %v791 = vrot.slane %v37, 4
  %v792 = vsel %vm775, %v789, %v791
  %v793 = vrot.slane %v38, 4
  %v794 = vsel %vm775, %v791, %v793
  %v795 = vrot.slane %v39, 4
  %v796 = vsel %vm775, %v793, %v795
  %v797 = vrot.slane %v40, 4
  %v798 = vsel %vm775, %v795, %v797
  %v799 = vrot.slane %v41, 4
  %v800 = vsel %vm775, %v797, %v799
  %813 = vmatprep.subr.mxu0 0.0
  %814 = vmatpush1.msra.mxu0 %v774
  %815 = vmatprep.subr.mxu0 0.0
  %816 = vmatpush1.msra.mxu0 %v773
  %817 = vmatprep.subr.mxu0 0.0
  %818 = vmatpush1.msra.mxu0 %v772
  %819 = vmatprep.subr.mxu0 0.0
  %820 = vmatpush1.msra.mxu0 %v771
  %821 = vmatprep.subr.mxu0 0.0
  %822 = vmatpush1.msra.mxu0 %v770
  %823 = vmatprep.subr.mxu0 0.0
  %824 = vmatpush1.msra.mxu0 %v769
  %825 = vmatprep.subr.mxu0 0.0
  %826 = vmatpush1.msra.mxu0 %v768
  %827 = vmatprep.subr.mxu0 0.0
  %828 = vmatpush1.msra.mxu0 %v767
  %829 = vmatprep.subr.mxu0 0.0
  %830 = vmatpush1.msra.mxu0 %v766
  %831 = vmatprep.subr.mxu0 0.0
  %832 = vmatpush1.msra.mxu0 %v765
  %833 = vmatprep.subr.mxu0 0.0
  %834 = vmatpush1.msra.mxu0 %v764
  %835 = vmatprep.subr.mxu0 0.0
  %836 = vmatpush1.msra.mxu0 %v763
  %837 = vmatprep.subr.mxu0 0.0
  %838 = vmatpush1.msra.mxu0 %v762
  %839 = vmatprep.subr.mxu0 0.0
  %840 = vmatpush1.msra.mxu0 %v761
  %841 = vmatprep.subr.mxu0 0.0
  %842 = vmatpush1.msra.mxu0 %v760
  %843 = vmatprep.subr.mxu0 0.0
  %844 = vmatpush1.msra.mxu0 %v759
  %845 = vmatprep.subr.mxu0 0.0
  %846 = vmatpush2.msra.mxu0 0.0
  %847 = vmatprep.subr.mxu0 0.0
  %848 = vmatpush2.msra.mxu0 0.0
  %849 = vmatprep.subr.mxu0 0.0
  %850 = vmatpush2.msra.mxu0 0.0
  %851 = vmatprep.subr.mxu0 0.0
  %852 = vmatpush2.msra.mxu0 0.0
  %853 = vmatprep.subr.mxu0 0.0
  %854 = vmatpush2.msra.mxu0 0.0
  %855 = vmatprep.subr.mxu0 0.0
  %856 = vmatpush2.msra.mxu0 0.0
  %857 = vmatprep.subr.mxu0 0.0
  %858 = vmatpush2.msra.mxu0 0.0
  %859 = vmatprep.subr.mxu0 0.0
  %860 = vmatpush2.msra.mxu0 0.0
  %861 = vmatprep.subr.mxu0 0.0
  %862 = vmatpush2.msra.mxu0 0.0
  %863 = vmatprep.subr.mxu0 0.0
  %864 = vmatpush2.msra.mxu0 0.0
  %865 = vmatprep.subr.mxu0 0.0
  %866 = vmatpush2.msra.mxu0 0.0
  %867 = vmatprep.subr.mxu0 0.0
  %868 = vmatpush2.msra.mxu0 0.0
  %869 = vmatprep.subr.mxu0 0.0
  %870 = vmatpush2.msra.mxu0 0.0
  %871 = vmatprep.subr.mxu0 0.0
  %872 = vmatpush2.msra.mxu0 0.0
  %873 = vmatprep.subr.mxu0 0.0
  %874 = vmatpush2.msra.mxu0 0.0
  %875 = vmatprep.subr.mxu0 0.0
  %876 = vmatpush2.msra.mxu0 0.0
  %877 = vmatprep.mubr.f32.mxu0 0.0
  %878 = vmatmul.mubr.f32.gmra.mxu0 %v778
  %v879 = vpop.f32.mrf.mxu0
  %v880 = vadd.f32 0.0, %v879
  %v881 = vpop.f32.mrf.mxu0
  %882 = vmatprep.mubr.f32.mxu0 0.0
  %883 = vmatmul.mubr.f32.gmra.mxu0 %v780
  %v884 = vpop.f32.mrf.mxu0
  %v885 = vadd.f32 0.0, %v884
  %v886 = vpop.f32.mrf.mxu0
  %887 = vmatprep.mubr.f32.mxu0 0.0
  %888 = vmatmul.mubr.f32.gmra.mxu0 %v782
  %v889 = vpop.f32.mrf.mxu0
  %v890 = vadd.f32 0.0, %v889
  %v891 = vpop.f32.mrf.mxu0
  %892 = vmatprep.mubr.f32.mxu0 0.0
  %893 = vmatmul.mubr.f32.gmra.mxu0 %v784
  %v894 = vpop.f32.mrf.mxu0
  %v895 = vadd.f32 0.0, %v894
  %v896 = vpop.f32.mrf.mxu0
  %897 = vmatprep.mubr.f32.mxu0 0.0
  %898 = vmatmul.mubr.f32.gmra.mxu0 %v786
  %v899 = vpop.f32.mrf.mxu0
  %v900 = vadd.f32 0.0, %v899
  %v901 = vpop.f32.mrf.mxu0
  %902 = vmatprep.mubr.f32.mxu0 0.0
  %903 = vmatmul.mubr.f32.gmra.mxu0 %v788
  %v904 = vpop.f32.mrf.mxu0
  %v905 = vadd.f32 0.0, %v904
  %v906 = vpop.f32.mrf.mxu0
  %907 = vmatprep.mubr.f32.mxu0 0.0
  %908 = vmatmul.mubr.f32.gmra.mxu0 %v790
  %v909 = vpop.f32.mrf.mxu0
  %v910 = vadd.f32 0.0, %v909
  %v911 = vpop.f32.mrf.mxu0
  %912 = vmatprep.mubr.f32.mxu0 0.0
  %913 = vmatmul.mubr.f32.gmra.mxu0 %v792
  %v914 = vpop.f32.mrf.mxu0
  %v915 = vadd.f32 0.0, %v914
  %v916 = vpop.f32.mrf.mxu0
  %917 = vmatprep.mubr.f32.mxu0 0.0
  %918 = vmatmul.mubr.f32.gmra.mxu0 %v794
  %v919 = vpop.f32.mrf.mxu0
  %v920 = vadd.f32 0.0, %v919
  %v921 = vpop.f32.mrf.mxu0
  %922 = vmatprep.mubr.f32.mxu0 0.0
  %923 = vmatmul.mubr.f32.gmra.mxu0 %v796
  %v924 = vpop.f32.mrf.mxu0
  %v925 = vadd.f32 0.0, %v924
  %v926 = vpop.f32.mrf.mxu0
  %927 = vmatprep.mubr.f32.mxu0 0.0
  %928 = vmatmul.mubr.f32.gmra.mxu0 %v798
  %v929 = vpop.f32.mrf.mxu0
  %v930 = vadd.f32 0.0, %v929
  %v931 = vpop.f32.mrf.mxu0
  %932 = vmatprep.mubr.f32.mxu0 0.0
  %933 = vmatmul.mubr.f32.gmra.mxu0 %v800
  %v934 = vpop.f32.mrf.mxu0
  %v935 = vadd.f32 0.0, %v934
  %v936 = vpop.f32.mrf.mxu0
  %937 = vdwg.mxu0
  %v938 = vadd.f32 %v746, %v880
  %v939 = vadd.f32 %v747, %v885
  %v940 = vadd.f32 %v748, %v890
  %v941 = vadd.f32 %v749, %v895
  %v942 = vadd.f32 %v750, %v900
  %v943 = vadd.f32 %v751, %v905
  %v944 = vadd.f32 %v752, %v910
  %v945 = vadd.f32 %v753, %v915
  %v946 = vadd.f32 %v754, %v920
  %v947 = vadd.f32 %v755, %v925
  %v948 = vadd.f32 %v756, %v930
  %v949 = vadd.f32 %v757, %v935
  %s950 = scalar_lea.vmem %s1, 640
  %v951 = vld [vmem:[%s950] sm:$0xff]
  %v952 = vld [vmem:[%s950 + $0x8] sm:$0xff]
  %v953 = vld [vmem:[%s950 + $0x10] sm:$0xff]
  %v954 = vld [vmem:[%s950 + $0x18] sm:$0xff]
  %v955 = vld [vmem:[%s950 + $0x20] sm:$0xff]
  %v956 = vld [vmem:[%s950 + $0x28] sm:$0xff]
  %v957 = vld [vmem:[%s950 + $0x30] sm:$0xff]
  %v958 = vld [vmem:[%s950 + $0x38] sm:$0xff]
  %v959 = vld [vmem:[%s950 + $0x40] sm:$0xff]
  %v960 = vld [vmem:[%s950 + $0x48] sm:$0xff]
  %v961 = vld [vmem:[%s950 + $0x50] sm:$0xff]
  %v962 = vld [vmem:[%s950 + $0x58] sm:$0xff]
  %v963 = vld [vmem:[%s950 + $0x60] sm:$0xff]
  %v964 = vld [vmem:[%s950 + $0x68] sm:$0xff]
  %v965 = vld [vmem:[%s950 + $0x70] sm:$0xff]
  %v966 = vld [vmem:[%s950 + $0x78] sm:$0xff]
  %vm967 = vcmask 1042432
  %v968 = vrot.slane %v29, 5
  %v969 = vrot.slane %v30, 5
  %v970 = vsel %vm967, %v968, %v969
  %v971 = vrot.slane %v31, 5
  %v972 = vsel %vm967, %v969, %v971
  %v973 = vrot.slane %v32, 5
  %v974 = vsel %vm967, %v971, %v973
  %v975 = vrot.slane %v33, 5
  %v976 = vsel %vm967, %v973, %v975
  %v977 = vrot.slane %v34, 5
  %v978 = vsel %vm967, %v975, %v977
  %v979 = vrot.slane %v35, 5
  %v980 = vsel %vm967, %v977, %v979
  %v981 = vrot.slane %v36, 5
  %v982 = vsel %vm967, %v979, %v981
  %v983 = vrot.slane %v37, 5
  %v984 = vsel %vm967, %v981, %v983
  %v985 = vrot.slane %v38, 5
  %v986 = vsel %vm967, %v983, %v985
  %v987 = vrot.slane %v39, 5
  %v988 = vsel %vm967, %v985, %v987
  %v989 = vrot.slane %v40, 5
  %v990 = vsel %vm967, %v987, %v989
  %v991 = vrot.slane %v41, 5
  %v992 = vsel %vm967, %v989, %v991
  %1005 = vmatprep.subr.mxu0 0.0
  %1006 = vmatpush1.msra.mxu0 %v966
  %1007 = vmatprep.subr.mxu0 0.0
  %1008 = vmatpush1.msra.mxu0 %v965
  %1009 = vmatprep.subr.mxu0 0.0
  %1010 = vmatpush1.msra.mxu0 %v964
  %1011 = vmatprep.subr.mxu0 0.0
  %1012 = vmatpush1.msra.mxu0 %v963
  %1013 = vmatprep.subr.mxu0 0.0
  %1014 = vmatpush1.msra.mxu0 %v962
  %1015 = vmatprep.subr.mxu0 0.0
  %1016 = vmatpush1.msra.mxu0 %v961
  %1017 = vmatprep.subr.mxu0 0.0
  %1018 = vmatpush1.msra.mxu0 %v960
  %1019 = vmatprep.subr.mxu0 0.0
  %1020 = vmatpush1.msra.mxu0 %v959
  %1021 = vmatprep.subr.mxu0 0.0
  %1022 = vmatpush1.msra.mxu0 %v958
  %1023 = vmatprep.subr.mxu0 0.0
  %1024 = vmatpush1.msra.mxu0 %v957
  %1025 = vmatprep.subr.mxu0 0.0
  %1026 = vmatpush1.msra.mxu0 %v956
  %1027 = vmatprep.subr.mxu0 0.0
  %1028 = vmatpush1.msra.mxu0 %v955
  %1029 = vmatprep.subr.mxu0 0.0
  %1030 = vmatpush1.msra.mxu0 %v954
  %1031 = vmatprep.subr.mxu0 0.0
  %1032 = vmatpush1.msra.mxu0 %v953
  %1033 = vmatprep.subr.mxu0 0.0
  %1034 = vmatpush1.msra.mxu0 %v952
  %1035 = vmatprep.subr.mxu0 0.0
  %1036 = vmatpush1.msra.mxu0 %v951
  %1037 = vmatprep.subr.mxu0 0.0
  %1038 = vmatpush2.msra.mxu0 0.0
  %1039 = vmatprep.subr.mxu0 0.0
  %1040 = vmatpush2.msra.mxu0 0.0
  %1041 = vmatprep.subr.mxu0 0.0
  %1042 = vmatpush2.msra.mxu0 0.0
  %1043 = vmatprep.subr.mxu0 0.0
  %1044 = vmatpush2.msra.mxu0 0.0
  %1045 = vmatprep.subr.mxu0 0.0
  %1046 = vmatpush2.msra.mxu0 0.0
  %1047 = vmatprep.subr.mxu0 0.0
  %1048 = vmatpush2.msra.mxu0 0.0
  %1049 = vmatprep.subr.mxu0 0.0
  %1050 = vmatpush2.msra.mxu0 0.0
  %1051 = vmatprep.subr.mxu0 0.0
  %1052 = vmatpush2.msra.mxu0 0.0
  %1053 = vmatprep.subr.mxu0 0.0
  %1054 = vmatpush2.msra.mxu0 0.0
  %1055 = vmatprep.subr.mxu0 0.0
  %1056 = vmatpush2.msra.mxu0 0.0
  %1057 = vmatprep.subr.mxu0 0.0
  %1058 = vmatpush2.msra.mxu0 0.0
  %1059 = vmatprep.subr.mxu0 0.0
  %1060 = vmatpush2.msra.mxu0 0.0
  %1061 = vmatprep.subr.mxu0 0.0
  %1062 = vmatpush2.msra.mxu0 0.0
  %1063 = vmatprep.subr.mxu0 0.0
  %1064 = vmatpush2.msra.mxu0 0.0
  %1065 = vmatprep.subr.mxu0 0.0
  %1066 = vmatpush2.msra.mxu0 0.0
  %1067 = vmatprep.subr.mxu0 0.0
  %1068 = vmatpush2.msra.mxu0 0.0
  %1069 = vmatprep.mubr.f32.mxu0 0.0
  %1070 = vmatmul.mubr.f32.gmra.mxu0 %v970
  %v1071 = vpop.f32.mrf.mxu0
  %v1072 = vadd.f32 0.0, %v1071
  %v1073 = vpop.f32.mrf.mxu0
  %1074 = vmatprep.mubr.f32.mxu0 0.0
  %1075 = vmatmul.mubr.f32.gmra.mxu0 %v972
  %v1076 = vpop.f32.mrf.mxu0
  %v1077 = vadd.f32 0.0, %v1076
  %v1078 = vpop.f32.mrf.mxu0
  %1079 = vmatprep.mubr.f32.mxu0 0.0
  %1080 = vmatmul.mubr.f32.gmra.mxu0 %v974
  %v1081 = vpop.f32.mrf.mxu0
  %v1082 = vadd.f32 0.0, %v1081
  %v1083 = vpop.f32.mrf.mxu0
  %1084 = vmatprep.mubr.f32.mxu0 0.0
  %1085 = vmatmul.mubr.f32.gmra.mxu0 %v976
  %v1086 = vpop.f32.mrf.mxu0
  %v1087 = vadd.f32 0.0, %v1086
  %v1088 = vpop.f32.mrf.mxu0
  %1089 = vmatprep.mubr.f32.mxu0 0.0
  %1090 = vmatmul.mubr.f32.gmra.mxu0 %v978
  %v1091 = vpop.f32.mrf.mxu0
  %v1092 = vadd.f32 0.0, %v1091
  %v1093 = vpop.f32.mrf.mxu0
  %1094 = vmatprep.mubr.f32.mxu0 0.0
  %1095 = vmatmul.mubr.f32.gmra.mxu0 %v980
  %v1096 = vpop.f32.mrf.mxu0
  %v1097 = vadd.f32 0.0, %v1096
  %v1098 = vpop.f32.mrf.mxu0
  %1099 = vmatprep.mubr.f32.mxu0 0.0
  %1100 = vmatmul.mubr.f32.gmra.mxu0 %v982
  %v1101 = vpop.f32.mrf.mxu0
  %v1102 = vadd.f32 0.0, %v1101
  %v1103 = vpop.f32.mrf.mxu0
  %1104 = vmatprep.mubr.f32.mxu0 0.0
  %1105 = vmatmul.mubr.f32.gmra.mxu0 %v984
  %v1106 = vpop.f32.mrf.mxu0
  %v1107 = vadd.f32 0.0, %v1106
  %v1108 = vpop.f32.mrf.mxu0
  %1109 = vmatprep.mubr.f32.mxu0 0.0
  %1110 = vmatmul.mubr.f32.gmra.mxu0 %v986
  %v1111 = vpop.f32.mrf.mxu0
  %v1112 = vadd.f32 0.0, %v1111
  %v1113 = vpop.f32.mrf.mxu0
  %1114 = vmatprep.mubr.f32.mxu0 0.0
  %1115 = vmatmul.mubr.f32.gmra.mxu0 %v988
  %v1116 = vpop.f32.mrf.mxu0
  %v1117 = vadd.f32 0.0, %v1116
  %v1118 = vpop.f32.mrf.mxu0
  %1119 = vmatprep.mubr.f32.mxu0 0.0
  %1120 = vmatmul.mubr.f32.gmra.mxu0 %v990
  %v1121 = vpop.f32.mrf.mxu0
  %v1122 = vadd.f32 0.0, %v1121
  %v1123 = vpop.f32.mrf.mxu0
  %1124 = vmatprep.mubr.f32.mxu0 0.0
  %1125 = vmatmul.mubr.f32.gmra.mxu0 %v992
  %v1126 = vpop.f32.mrf.mxu0
  %v1127 = vadd.f32 0.0, %v1126
  %v1128 = vpop.f32.mrf.mxu0
  %1129 = vdwg.mxu0
  %v1130 = vadd.f32 %v938, %v1072
  %v1131 = vadd.f32 %v939, %v1077
  %v1132 = vadd.f32 %v940, %v1082
  %v1133 = vadd.f32 %v941, %v1087
  %v1134 = vadd.f32 %v942, %v1092
  %v1135 = vadd.f32 %v943, %v1097
  %v1136 = vadd.f32 %v944, %v1102
  %v1137 = vadd.f32 %v945, %v1107
  %v1138 = vadd.f32 %v946, %v1112
  %v1139 = vadd.f32 %v947, %v1117
  %v1140 = vadd.f32 %v948, %v1122
  %v1141 = vadd.f32 %v949, %v1127
  %v1142 = vmax.f32 %v1130, 0.0
  %v1143 = vmax.f32 %v1131, 0.0
  %v1144 = vmax.f32 %v1132, 0.0
  %v1145 = vmax.f32 %v1133, 0.0
  %v1146 = vmax.f32 %v1134, 0.0
  %v1147 = vmax.f32 %v1135, 0.0
  %v1148 = vmax.f32 %v1136, 0.0
  %v1149 = vmax.f32 %v1137, 0.0
  %v1150 = vmax.f32 %v1138, 0.0
  %v1151 = vmax.f32 %v1139, 0.0
  %v1152 = vmax.f32 %v1140, 0.0
  %v1153 = vmax.f32 %v1141, 0.0
  %s1154 = scalar_lea.vmem %s1, 768
  %v1155 = vld [vmem:[%s1154] sm:$0xff]
  %v1156 = vld [vmem:[%s1154 + $0x8] sm:$0xff]
  %v1157 = vld [vmem:[%s1154 + $0x10] sm:$0xff]
  %v1158 = vld [vmem:[%s1154 + $0x18] sm:$0xff]
  %v1159 = vld [vmem:[%s1154 + $0x20] sm:$0xff]
  %v1160 = vld [vmem:[%s1154 + $0x28] sm:$0xff]
  %v1161 = vld [vmem:[%s1154 + $0x30] sm:$0xff]
  %v1162 = vld [vmem:[%s1154 + $0x38] sm:$0xff]
  %v1163 = vld [vmem:[%s1154 + $0x40] sm:$0xff]
  %v1164 = vld [vmem:[%s1154 + $0x48] sm:$0xff]
  %v1165 = vld [vmem:[%s1154 + $0x50] sm:$0xff]
  %v1166 = vld [vmem:[%s1154 + $0x58] sm:$0xff]
  %v1167 = vld [vmem:[%s1154 + $0x60] sm:$0xff]
  %v1168 = vld [vmem:[%s1154 + $0x68] sm:$0xff]
  %v1169 = vld [vmem:[%s1154 + $0x70] sm:$0xff]
  %v1170 = vld [vmem:[%s1154 + $0x78] sm:$0xff]
  %s1171 = scalar_lea.vmem %s1, 896
  %v1172 = vld [vmem:[%s1171] sm:$0xff]
  %v1173 = vld [vmem:[%s1171 + $0x8] sm:$0xff]
  %v1174 = vld [vmem:[%s1171 + $0x10] sm:$0xff]
  %v1175 = vld [vmem:[%s1171 + $0x18] sm:$0xff]
  %v1176 = vld [vmem:[%s1171 + $0x20] sm:$0xff]
  %v1177 = vld [vmem:[%s1171 + $0x28] sm:$0xff]
  %v1178 = vld [vmem:[%s1171 + $0x30] sm:$0xff]
  %v1179 = vld [vmem:[%s1171 + $0x38] sm:$0xff]
  %v1180 = vld [vmem:[%s1171 + $0x40] sm:$0xff]
  %v1181 = vld [vmem:[%s1171 + $0x48] sm:$0xff]
  %v1182 = vld [vmem:[%s1171 + $0x50] sm:$0xff]
  %v1183 = vld [vmem:[%s1171 + $0x58] sm:$0xff]
  %v1184 = vld [vmem:[%s1171 + $0x60] sm:$0xff]
  %v1185 = vld [vmem:[%s1171 + $0x68] sm:$0xff]
  %v1186 = vld [vmem:[%s1171 + $0x70] sm:$0xff]
  %v1187 = vld [vmem:[%s1171 + $0x78] sm:$0xff]
  %v1200 = vrot.slane %v1142, 1
  %v1201 = vrot.slane %v1143, 1
  %v1202 = vsel %vm87, %v1200, %v1201
  %v1203 = vrot.slane %v1144, 1
  %v1204 = vsel %vm87, %v1201, %v1203
  %v1205 = vrot.slane %v1145, 1
  %v1206 = vsel %vm87, %v1203, %v1205
  %v1207 = vrot.slane %v1146, 1
  %v1208 = vsel %vm87, %v1205, %v1207
  %v1209 = vrot.slane %v1147, 1
  %v1210 = vsel %vm87, %v1207, %v1209
  %v1211 = vrot.slane %v1148, 1
  %v1212 = vsel %vm87, %v1209, %v1211
  %v1213 = vrot.slane %v1149, 1
  %v1214 = vsel %vm87, %v1211, %v1213
  %v1215 = vrot.slane %v1150, 1
  %v1216 = vsel %vm87, %v1213, %v1215
  %v1217 = vrot.slane %v1151, 1
  %v1218 = vsel %vm87, %v1215, %v1217
  %v1219 = vrot.slane %v1152, 1
  %v1220 = vsel %vm87, %v1217, %v1219
  %v1221 = vrot.slane %v1153, 1
  %v1222 = vsel %vm87, %v1219, %v1221
  %1235 = vmatprep.subr.mxu0 0.0
  %1236 = vmatpush1.msra.mxu0 %v1187
  %1237 = vmatprep.subr.mxu0 0.0
  %1238 = vmatpush1.msra.mxu0 %v1186
  %1239 = vmatprep.subr.mxu0 0.0
  %1240 = vmatpush1.msra.mxu0 %v1185
  %1241 = vmatprep.subr.mxu0 0.0
  %1242 = vmatpush1.msra.mxu0 %v1184
  %1243 = vmatprep.subr.mxu0 0.0
  %1244 = vmatpush1.msra.mxu0 %v1183
  %1245 = vmatprep.subr.mxu0 0.0
  %1246 = vmatpush1.msra.mxu0 %v1182
  %1247 = vmatprep.subr.mxu0 0.0
  %1248 = vmatpush1.msra.mxu0 %v1181
  %1249 = vmatprep.subr.mxu0 0.0
  %1250 = vmatpush1.msra.mxu0 %v1180
  %1251 = vmatprep.subr.mxu0 0.0
  %1252 = vmatpush1.msra.mxu0 %v1179
  %1253 = vmatprep.subr.mxu0 0.0
  %1254 = vmatpush1.msra.mxu0 %v1178
  %1255 = vmatprep.subr.mxu0 0.0
  %1256 = vmatpush1.msra.mxu0 %v1177
  %1257 = vmatprep.subr.mxu0 0.0
  %1258 = vmatpush1.msra.mxu0 %v1176
  %1259 = vmatprep.subr.mxu0 0.0
  %1260 = vmatpush1.msra.mxu0 %v1175
  %1261 = vmatprep.subr.mxu0 0.0
  %1262 = vmatpush1.msra.mxu0 %v1174
  %1263 = vmatprep.subr.mxu0 0.0
  %1264 = vmatpush1.msra.mxu0 %v1173
  %1265 = vmatprep.subr.mxu0 0.0
  %1266 = vmatpush1.msra.mxu0 %v1172
  %1267 = vmatprep.subr.mxu0 0.0
  %1268 = vmatpush2.msra.mxu0 0.0
  %1269 = vmatprep.subr.mxu0 0.0
  %1270 = vmatpush2.msra.mxu0 0.0
  %1271 = vmatprep.subr.mxu0 0.0
  %1272 = vmatpush2.msra.mxu0 0.0
  %1273 = vmatprep.subr.mxu0 0.0
  %1274 = vmatpush2.msra.mxu0 0.0
  %1275 = vmatprep.subr.mxu0 0.0
  %1276 = vmatpush2.msra.mxu0 0.0
  %1277 = vmatprep.subr.mxu0 0.0
  %1278 = vmatpush2.msra.mxu0 0.0
  %1279 = vmatprep.subr.mxu0 0.0
  %1280 = vmatpush2.msra.mxu0 0.0
  %1281 = vmatprep.subr.mxu0 0.0
  %1282 = vmatpush2.msra.mxu0 0.0
  %1283 = vmatprep.subr.mxu0 0.0
  %1284 = vmatpush2.msra.mxu0 0.0
  %1285 = vmatprep.subr.mxu0 0.0
  %1286 = vmatpush2.msra.mxu0 0.0
  %1287 = vmatprep.subr.mxu0 0.0
  %1288 = vmatpush2.msra.mxu0 0.0
  %1289 = vmatprep.subr.mxu0 0.0
  %1290 = vmatpush2.msra.mxu0 0.0
  %1291 = vmatprep.subr.mxu0 0.0
  %1292 = vmatpush2.msra.mxu0 0.0
  %1293 = vmatprep.subr.mxu0 0.0
  %1294 = vmatpush2.msra.mxu0 0.0
  %1295 = vmatprep.subr.mxu0 0.0
  %1296 = vmatpush2.msra.mxu0 0.0
  %1297 = vmatprep.subr.mxu0 0.0
  %1298 = vmatpush2.msra.mxu0 0.0
  %1299 = vmatprep.mubr.f32.mxu0 0.0
  %1300 = vmatmul.mubr.f32.gmra.mxu0 %v1202
  %v1301 = vpop.f32.mrf.mxu0
  %v1302 = vadd.f32 0.0, %v1301
  %v1303 = vpop.f32.mrf.mxu0
  %1304 = vmatprep.mubr.f32.mxu0 0.0
  %1305 = vmatmul.mubr.f32.gmra.mxu0 %v1204
  %v1306 = vpop.f32.mrf.mxu0
  %v1307 = vadd.f32 0.0, %v1306
  %v1308 = vpop.f32.mrf.mxu0
  %1309 = vmatprep.mubr.f32.mxu0 0.0
  %1310 = vmatmul.mubr.f32.gmra.mxu0 %v1206
  %v1311 = vpop.f32.mrf.mxu0
  %v1312 = vadd.f32 0.0, %v1311
  %v1313 = vpop.f32.mrf.mxu0
  %1314 = vmatprep.mubr.f32.mxu0 0.0
  %1315 = vmatmul.mubr.f32.gmra.mxu0 %v1208
  %v1316 = vpop.f32.mrf.mxu0
  %v1317 = vadd.f32 0.0, %v1316
  %v1318 = vpop.f32.mrf.mxu0
  %1319 = vmatprep.mubr.f32.mxu0 0.0
  %1320 = vmatmul.mubr.f32.gmra.mxu0 %v1210
  %v1321 = vpop.f32.mrf.mxu0
  %v1322 = vadd.f32 0.0, %v1321
  %v1323 = vpop.f32.mrf.mxu0
  %1324 = vmatprep.mubr.f32.mxu0 0.0
  %1325 = vmatmul.mubr.f32.gmra.mxu0 %v1212
  %v1326 = vpop.f32.mrf.mxu0
  %v1327 = vadd.f32 0.0, %v1326
  %v1328 = vpop.f32.mrf.mxu0
  %1329 = vmatprep.mubr.f32.mxu0 0.0
  %1330 = vmatmul.mubr.f32.gmra.mxu0 %v1214
  %v1331 = vpop.f32.mrf.mxu0
  %v1332 = vadd.f32 0.0, %v1331
  %v1333 = vpop.f32.mrf.mxu0
  %1334 = vmatprep.mubr.f32.mxu0 0.0
  %1335 = vmatmul.mubr.f32.gmra.mxu0 %v1216
  %v1336 = vpop.f32.mrf.mxu0
  %v1337 = vadd.f32 0.0, %v1336
  %v1338 = vpop.f32.mrf.mxu0
  %1339 = vmatprep.mubr.f32.mxu0 0.0
  %1340 = vmatmul.mubr.f32.gmra.mxu0 %v1218
  %v1341 = vpop.f32.mrf.mxu0
  %v1342 = vadd.f32 0.0, %v1341
  %v1343 = vpop.f32.mrf.mxu0
  %1344 = vmatprep.mubr.f32.mxu0 0.0
  %1345 = vmatmul.mubr.f32.gmra.mxu0 %v1220
  %v1346 = vpop.f32.mrf.mxu0
  %v1347 = vadd.f32 0.0, %v1346
  %v1348 = vpop.f32.mrf.mxu0
  %1349 = vmatprep.mubr.f32.mxu0 0.0
  %1350 = vmatmul.mubr.f32.gmra.mxu0 %v1222
  %v1351 = vpop.f32.mrf.mxu0
  %v1352 = vadd.f32 0.0, %v1351
  %v1353 = vpop.f32.mrf.mxu0
  %1354 = vmatprep.mubr.f32.mxu0 0.0
  %1355 = vmatmul.mubr.f32.gmra.mxu0 %v1221
  %v1356 = vpop.f32.mrf.mxu0
  %v1357 = vadd.f32 0.0, %v1356
  %v1358 = vpop.f32.mrf.mxu0
  %1359 = vdwg.mxu0
  %1360 = vmatprep.subr.mxu0 0.0
  %1361 = vmatpush1.msra.mxu0 %v1170
  %1362 = vmatprep.subr.mxu0 0.0
  %1363 = vmatpush1.msra.mxu0 %v1169
  %1364 = vmatprep.subr.mxu0 0.0
  %1365 = vmatpush1.msra.mxu0 %v1168
  %1366 = vmatprep.subr.mxu0 0.0
  %1367 = vmatpush1.msra.mxu0 %v1167
  %1368 = vmatprep.subr.mxu0 0.0
  %1369 = vmatpush1.msra.mxu0 %v1166
  %1370 = vmatprep.subr.mxu0 0.0
  %1371 = vmatpush1.msra.mxu0 %v1165
  %1372 = vmatprep.subr.mxu0 0.0
  %1373 = vmatpush1.msra.mxu0 %v1164
  %1374 = vmatprep.subr.mxu0 0.0
  %1375 = vmatpush1.msra.mxu0 %v1163
  %1376 = vmatprep.subr.mxu0 0.0
  %1377 = vmatpush1.msra.mxu0 %v1162
  %1378 = vmatprep.subr.mxu0 0.0
  %1379 = vmatpush1.msra.mxu0 %v1161
  %1380 = vmatprep.subr.mxu0 0.0
  %1381 = vmatpush1.msra.mxu0 %v1160
  %1382 = vmatprep.subr.mxu0 0.0
  %1383 = vmatpush1.msra.mxu0 %v1159
  %1384 = vmatprep.subr.mxu0 0.0
  %1385 = vmatpush1.msra.mxu0 %v1158
  %1386 = vmatprep.subr.mxu0 0.0
  %1387 = vmatpush1.msra.mxu0 %v1157
  %1388 = vmatprep.subr.mxu0 0.0
  %1389 = vmatpush1.msra.mxu0 %v1156
  %1390 = vmatprep.subr.mxu0 0.0
  %1391 = vmatpush1.msra.mxu0 %v1155
  %1392 = vmatprep.subr.mxu0 0.0
  %1393 = vmatpush2.msra.mxu0 0.0
  %1394 = vmatprep.subr.mxu0 0.0
  %1395 = vmatpush2.msra.mxu0 0.0
  %1396 = vmatprep.subr.mxu0 0.0
  %1397 = vmatpush2.msra.mxu0 0.0
  %1398 = vmatprep.subr.mxu0 0.0
  %1399 = vmatpush2.msra.mxu0 0.0
  %1400 = vmatprep.subr.mxu0 0.0
  %1401 = vmatpush2.msra.mxu0 0.0
  %1402 = vmatprep.subr.mxu0 0.0
  %1403 = vmatpush2.msra.mxu0 0.0
  %1404 = vmatprep.subr.mxu0 0.0
  %1405 = vmatpush2.msra.mxu0 0.0
  %1406 = vmatprep.subr.mxu0 0.0
  %1407 = vmatpush2.msra.mxu0 0.0
  %1408 = vmatprep.subr.mxu0 0.0
  %1409 = vmatpush2.msra.mxu0 0.0
  %1410 = vmatprep.subr.mxu0 0.0
  %1411 = vmatpush2.msra.mxu0 0.0
  %1412 = vmatprep.subr.mxu0 0.0
  %1413 = vmatpush2.msra.mxu0 0.0
  %1414 = vmatprep.subr.mxu0 0.0
  %1415 = vmatpush2.msra.mxu0 0.0
  %1416 = vmatprep.subr.mxu0 0.0
  %1417 = vmatpush2.msra.mxu0 0.0
  %1418 = vmatprep.subr.mxu0 0.0
  %1419 = vmatpush2.msra.mxu0 0.0
  %1420 = vmatprep.subr.mxu0 0.0
  %1421 = vmatpush2.msra.mxu0 0.0
  %1422 = vmatprep.subr.mxu0 0.0
  %1423 = vmatpush2.msra.mxu0 0.0
  %1424 = vmatprep.mubr.f32.mxu0 0.0
  %1425 = vmatmul.mubr.f32.gmra.mxu0 %v1142
  %v1426 = vpop.f32.mrf.mxu0
  %v1427 = vadd.f32 %v1302, %v1426
  %v1428 = vpop.f32.mrf.mxu0
  %1429 = vmatprep.mubr.f32.mxu0 0.0
  %1430 = vmatmul.mubr.f32.gmra.mxu0 %v1143
  %v1431 = vpop.f32.mrf.mxu0
  %v1432 = vadd.f32 %v1307, %v1431
  %v1433 = vpop.f32.mrf.mxu0
  %1434 = vmatprep.mubr.f32.mxu0 0.0
  %1435 = vmatmul.mubr.f32.gmra.mxu0 %v1144
  %v1436 = vpop.f32.mrf.mxu0
  %v1437 = vadd.f32 %v1312, %v1436
  %v1438 = vpop.f32.mrf.mxu0
  %1439 = vmatprep.mubr.f32.mxu0 0.0
  %1440 = vmatmul.mubr.f32.gmra.mxu0 %v1145
  %v1441 = vpop.f32.mrf.mxu0
  %v1442 = vadd.f32 %v1317, %v1441
  %v1443 = vpop.f32.mrf.mxu0
  %1444 = vmatprep.mubr.f32.mxu0 0.0
  %1445 = vmatmul.mubr.f32.gmra.mxu0 %v1146
  %v1446 = vpop.f32.mrf.mxu0
  %v1447 = vadd.f32 %v1322, %v1446
  %v1448 = vpop.f32.mrf.mxu0
  %1449 = vmatprep.mubr.f32.mxu0 0.0
  %1450 = vmatmul.mubr.f32.gmra.mxu0 %v1147
  %v1451 = vpop.f32.mrf.mxu0
  %v1452 = vadd.f32 %v1327, %v1451
  %v1453 = vpop.f32.mrf.mxu0
  %1454 = vmatprep.mubr.f32.mxu0 0.0
  %1455 = vmatmul.mubr.f32.gmra.mxu0 %v1148
  %v1456 = vpop.f32.mrf.mxu0
  %v1457 = vadd.f32 %v1332, %v1456
  %v1458 = vpop.f32.mrf.mxu0
  %1459 = vmatprep.mubr.f32.mxu0 0.0
  %1460 = vmatmul.mubr.f32.gmra.mxu0 %v1149
  %v1461 = vpop.f32.mrf.mxu0
  %v1462 = vadd.f32 %v1337, %v1461
  %v1463 = vpop.f32.mrf.mxu0
  %1464 = vmatprep.mubr.f32.mxu0 0.0
  %1465 = vmatmul.mubr.f32.gmra.mxu0 %v1150
  %v1466 = vpop.f32.mrf.mxu0
  %v1467 = vadd.f32 %v1342, %v1466
  %v1468 = vpop.f32.mrf.mxu0
  %1469 = vmatprep.mubr.f32.mxu0 0.0
  %1470 = vmatmul.mubr.f32.gmra.mxu0 %v1151
  %v1471 = vpop.f32.mrf.mxu0
  %v1472 = vadd.f32 %v1347, %v1471
  %v1473 = vpop.f32.mrf.mxu0
  %1474 = vmatprep.mubr.f32.mxu0 0.0
  %1475 = vmatmul.mubr.f32.gmra.mxu0 %v1152
  %v1476 = vpop.f32.mrf.mxu0
  %v1477 = vadd.f32 %v1352, %v1476
  %v1478 = vpop.f32.mrf.mxu0
  %1479 = vmatprep.mubr.f32.mxu0 0.0
  %1480 = vmatmul.mubr.f32.gmra.mxu0 %v1153
  %v1481 = vpop.f32.mrf.mxu0
  %v1482 = vadd.f32 %v1357, %v1481
  %v1483 = vpop.f32.mrf.mxu0
  %1484 = vdwg.mxu0
  %s1485 = scalar_lea.vmem %s1, 1024
  %v1486 = vld [vmem:[%s1485] sm:$0xff]
  %v1487 = vld [vmem:[%s1485 + $0x8] sm:$0xff]
  %v1488 = vld [vmem:[%s1485 + $0x10] sm:$0xff]
  %v1489 = vld [vmem:[%s1485 + $0x18] sm:$0xff]
  %v1490 = vld [vmem:[%s1485 + $0x20] sm:$0xff]
  %v1491 = vld [vmem:[%s1485 + $0x28] sm:$0xff]
  %v1492 = vld [vmem:[%s1485 + $0x30] sm:$0xff]
  %v1493 = vld [vmem:[%s1485 + $0x38] sm:$0xff]
  %v1494 = vld [vmem:[%s1485 + $0x40] sm:$0xff]
  %v1495 = vld [vmem:[%s1485 + $0x48] sm:$0xff]
  %v1496 = vld [vmem:[%s1485 + $0x50] sm:$0xff]
  %v1497 = vld [vmem:[%s1485 + $0x58] sm:$0xff]
  %v1498 = vld [vmem:[%s1485 + $0x60] sm:$0xff]
  %v1499 = vld [vmem:[%s1485 + $0x68] sm:$0xff]
  %v1500 = vld [vmem:[%s1485 + $0x70] sm:$0xff]
  %v1501 = vld [vmem:[%s1485 + $0x78] sm:$0xff]
  %v1502 = vrot.slane %v1142, 2
  %v1503 = vrot.slane %v1143, 2
  %v1504 = vsel %vm391, %v1502, %v1503
  %v1505 = vrot.slane %v1144, 2
  %v1506 = vsel %vm391, %v1503, %v1505
  %v1507 = vrot.slane %v1145, 2
  %v1508 = vsel %vm391, %v1505, %v1507
  %v1509 = vrot.slane %v1146, 2
  %v1510 = vsel %vm391, %v1507, %v1509
  %v1511 = vrot.slane %v1147, 2
  %v1512 = vsel %vm391, %v1509, %v1511
  %v1513 = vrot.slane %v1148, 2
  %v1514 = vsel %vm391, %v1511, %v1513
  %v1515 = vrot.slane %v1149, 2
  %v1516 = vsel %vm391, %v1513, %v1515
  %v1517 = vrot.slane %v1150, 2
  %v1518 = vsel %vm391, %v1515, %v1517
  %v1519 = vrot.slane %v1151, 2
  %v1520 = vsel %vm391, %v1517, %v1519
  %v1521 = vrot.slane %v1152, 2
  %v1522 = vsel %vm391, %v1519, %v1521
  %v1523 = vrot.slane %v1153, 2
  %v1524 = vsel %vm391, %v1521, %v1523
  %1537 = vmatprep.subr.mxu0 0.0
  %1538 = vmatpush1.msra.mxu0 %v1501
  %1539 = vmatprep.subr.mxu0 0.0
  %1540 = vmatpush1.msra.mxu0 %v1500
  %1541 = vmatprep.subr.mxu0 0.0
  %1542 = vmatpush1.msra.mxu0 %v1499
  %1543 = vmatprep.subr.mxu0 0.0
  %1544 = vmatpush1.msra.mxu0 %v1498
  %1545 = vmatprep.subr.mxu0 0.0
  %1546 = vmatpush1.msra.mxu0 %v1497
  %1547 = vmatprep.subr.mxu0 0.0
  %1548 = vmatpush1.msra.mxu0 %v1496
  %1549 = vmatprep.subr.mxu0 0.0
  %1550 = vmatpush1.msra.mxu0 %v1495
  %1551 = vmatprep.subr.mxu0 0.0
  %1552 = vmatpush1.msra.mxu0 %v1494
  %1553 = vmatprep.subr.mxu0 0.0
  %1554 = vmatpush1.msra.mxu0 %v1493
  %1555 = vmatprep.subr.mxu0 0.0
  %1556 = vmatpush1.msra.mxu0 %v1492
  %1557 = vmatprep.subr.mxu0 0.0
  %1558 = vmatpush1.msra.mxu0 %v1491
  %1559 = vmatprep.subr.mxu0 0.0
  %1560 = vmatpush1.msra.mxu0 %v1490
  %1561 = vmatprep.subr.mxu0 0.0
  %1562 = vmatpush1.msra.mxu0 %v1489
  %1563 = vmatprep.subr.mxu0 0.0
  %1564 = vmatpush1.msra.mxu0 %v1488
  %1565 = vmatprep.subr.mxu0 0.0
  %1566 = vmatpush1.msra.mxu0 %v1487
  %1567 = vmatprep.subr.mxu0 0.0
  %1568 = vmatpush1.msra.mxu0 %v1486
  %1569 = vmatprep.subr.mxu0 0.0
  %1570 = vmatpush2.msra.mxu0 0.0
  %1571 = vmatprep.subr.mxu0 0.0
  %1572 = vmatpush2.msra.mxu0 0.0
  %1573 = vmatprep.subr.mxu0 0.0
  %1574 = vmatpush2.msra.mxu0 0.0
  %1575 = vmatprep.subr.mxu0 0.0
  %1576 = vmatpush2.msra.mxu0 0.0
  %1577 = vmatprep.subr.mxu0 0.0
  %1578 = vmatpush2.msra.mxu0 0.0
  %1579 = vmatprep.subr.mxu0 0.0
  %1580 = vmatpush2.msra.mxu0 0.0
  %1581 = vmatprep.subr.mxu0 0.0
  %1582 = vmatpush2.msra.mxu0 0.0
  %1583 = vmatprep.subr.mxu0 0.0
  %1584 = vmatpush2.msra.mxu0 0.0
  %1585 = vmatprep.subr.mxu0 0.0
  %1586 = vmatpush2.msra.mxu0 0.0
  %1587 = vmatprep.subr.mxu0 0.0
  %1588 = vmatpush2.msra.mxu0 0.0
  %1589 = vmatprep.subr.mxu0 0.0
  %1590 = vmatpush2.msra.mxu0 0.0
  %1591 = vmatprep.subr.mxu0 0.0
  %1592 = vmatpush2.msra.mxu0 0.0
  %1593 = vmatprep.subr.mxu0 0.0
  %1594 = vmatpush2.msra.mxu0 0.0
  %1595 = vmatprep.subr.mxu0 0.0
  %1596 = vmatpush2.msra.mxu0 0.0
  %1597 = vmatprep.subr.mxu0 0.0
  %1598 = vmatpush2.msra.mxu0 0.0
  %1599 = vmatprep.subr.mxu0 0.0
  %1600 = vmatpush2.msra.mxu0 0.0
  %1601 = vmatprep.mubr.f32.mxu0 0.0
  %1602 = vmatmul.mubr.f32.gmra.mxu0 %v1504
  %v1603 = vpop.f32.mrf.mxu0
  %v1604 = vadd.f32 0.0, %v1603
  %v1605 = vpop.f32.mrf.mxu0
  %1606 = vmatprep.mubr.f32.mxu0 0.0
  %1607 = vmatmul.mubr.f32.gmra.mxu0 %v1506
  %v1608 = vpop.f32.mrf.mxu0
  %v1609 = vadd.f32 0.0, %v1608
  %v1610 = vpop.f32.mrf.mxu0
  %1611 = vmatprep.mubr.f32.mxu0 0.0
  %1612 = vmatmul.mubr.f32.gmra.mxu0 %v1508
  %v1613 = vpop.f32.mrf.mxu0
  %v1614 = vadd.f32 0.0, %v1613
  %v1615 = vpop.f32.mrf.mxu0
  %1616 = vmatprep.mubr.f32.mxu0 0.0
  %1617 = vmatmul.mubr.f32.gmra.mxu0 %v1510
  %v1618 = vpop.f32.mrf.mxu0
  %v1619 = vadd.f32 0.0, %v1618
  %v1620 = vpop.f32.mrf.mxu0
  %1621 = vmatprep.mubr.f32.mxu0 0.0
  %1622 = vmatmul.mubr.f32.gmra.mxu0 %v1512
  %v1623 = vpop.f32.mrf.mxu0
  %v1624 = vadd.f32 0.0, %v1623
  %v1625 = vpop.f32.mrf.mxu0
  %1626 = vmatprep.mubr.f32.mxu0 0.0
  %1627 = vmatmul.mubr.f32.gmra.mxu0 %v1514
  %v1628 = vpop.f32.mrf.mxu0
  %v1629 = vadd.f32 0.0, %v1628
  %v1630 = vpop.f32.mrf.mxu0
  %1631 = vmatprep.mubr.f32.mxu0 0.0
  %1632 = vmatmul.mubr.f32.gmra.mxu0 %v1516
  %v1633 = vpop.f32.mrf.mxu0
  %v1634 = vadd.f32 0.0, %v1633
  %v1635 = vpop.f32.mrf.mxu0
  %1636 = vmatprep.mubr.f32.mxu0 0.0
  %1637 = vmatmul.mubr.f32.gmra.mxu0 %v1518
  %v1638 = vpop.f32.mrf.mxu0
  %v1639 = vadd.f32 0.0, %v1638
  %v1640 = vpop.f32.mrf.mxu0
  %1641 = vmatprep.mubr.f32.mxu0 0.0
  %1642 = vmatmul.mubr.f32.gmra.mxu0 %v1520
  %v1643 = vpop.f32.mrf.mxu0
  %v1644 = vadd.f32 0.0, %v1643
  %v1645 = vpop.f32.mrf.mxu0
  %1646 = vmatprep.mubr.f32.mxu0 0.0
  %1647 = vmatmul.mubr.f32.gmra.mxu0 %v1522
  %v1648 = vpop.f32.mrf.mxu0
  %v1649 = vadd.f32 0.0, %v1648
  %v1650 = vpop.f32.mrf.mxu0
  %1651 = vmatprep.mubr.f32.mxu0 0.0
  %1652 = vmatmul.mubr.f32.gmra.mxu0 %v1524
  %v1653 = vpop.f32.mrf.mxu0
  %v1654 = vadd.f32 0.0, %v1653
  %v1655 = vpop.f32.mrf.mxu0
  %1656 = vmatprep.mubr.f32.mxu0 0.0
  %1657 = vmatmul.mubr.f32.gmra.mxu0 %v1523
  %v1658 = vpop.f32.mrf.mxu0
  %v1659 = vadd.f32 0.0, %v1658
  %v1660 = vpop.f32.mrf.mxu0
  %1661 = vdwg.mxu0
  %v1662 = vadd.f32 %v1427, %v1604
  %v1663 = vadd.f32 %v1432, %v1609
  %v1664 = vadd.f32 %v1437, %v1614
  %v1665 = vadd.f32 %v1442, %v1619
  %v1666 = vadd.f32 %v1447, %v1624
  %v1667 = vadd.f32 %v1452, %v1629
  %v1668 = vadd.f32 %v1457, %v1634
  %v1669 = vadd.f32 %v1462, %v1639
  %v1670 = vadd.f32 %v1467, %v1644
  %v1671 = vadd.f32 %v1472, %v1649
  %v1672 = vadd.f32 %v1477, %v1654
  %v1673 = vadd.f32 %v1482, %v1659
  %s1674 = scalar_lea.vmem %s1, 1152
  %v1675 = vld [vmem:[%s1674] sm:$0xff]
  %v1676 = vld [vmem:[%s1674 + $0x8] sm:$0xff]
  %v1677 = vld [vmem:[%s1674 + $0x10] sm:$0xff]
  %v1678 = vld [vmem:[%s1674 + $0x18] sm:$0xff]
  %v1679 = vld [vmem:[%s1674 + $0x20] sm:$0xff]
  %v1680 = vld [vmem:[%s1674 + $0x28] sm:$0xff]
  %v1681 = vld [vmem:[%s1674 + $0x30] sm:$0xff]
  %v1682 = vld [vmem:[%s1674 + $0x38] sm:$0xff]
  %v1683 = vld [vmem:[%s1674 + $0x40] sm:$0xff]
  %v1684 = vld [vmem:[%s1674 + $0x48] sm:$0xff]
  %v1685 = vld [vmem:[%s1674 + $0x50] sm:$0xff]
  %v1686 = vld [vmem:[%s1674 + $0x58] sm:$0xff]
  %v1687 = vld [vmem:[%s1674 + $0x60] sm:$0xff]
  %v1688 = vld [vmem:[%s1674 + $0x68] sm:$0xff]
  %v1689 = vld [vmem:[%s1674 + $0x70] sm:$0xff]
  %v1690 = vld [vmem:[%s1674 + $0x78] sm:$0xff]
  %v1691 = vrot.slane %v1142, 3
  %v1692 = vrot.slane %v1143, 3
  %v1693 = vsel %vm583, %v1691, %v1692
  %v1694 = vrot.slane %v1144, 3
  %v1695 = vsel %vm583, %v1692, %v1694
  %v1696 = vrot.slane %v1145, 3
  %v1697 = vsel %vm583, %v1694, %v1696
  %v1698 = vrot.slane %v1146, 3
  %v1699 = vsel %vm583, %v1696, %v1698
  %v1700 = vrot.slane %v1147, 3
  %v1701 = vsel %vm583, %v1698, %v1700
  %v1702 = vrot.slane %v1148, 3
  %v1703 = vsel %vm583, %v1700, %v1702
  %v1704 = vrot.slane %v1149, 3
  %v1705 = vsel %vm583, %v1702, %v1704
  %v1706 = vrot.slane %v1150, 3
  %v1707 = vsel %vm583, %v1704, %v1706
  %v1708 = vrot.slane %v1151, 3
  %v1709 = vsel %vm583, %v1706, %v1708
  %v1710 = vrot.slane %v1152, 3
  %v1711 = vsel %vm583, %v1708, %v1710
  %v1712 = vrot.slane %v1153, 3
  %v1713 = vsel %vm583, %v1710, %v1712
  %1726 = vmatprep.subr.mxu0 0.0
  %1727 = vmatpush1.msra.mxu0 %v1690
  %1728 = vmatprep.subr.mxu0 0.0
  %1729 = vmatpush1.msra.mxu0 %v1689
  %1730 = vmatprep.subr.mxu0 0.0
  %1731 = vmatpush1.msra.mxu0 %v1688
  %1732 = vmatprep.subr.mxu0 0.0
  %1733 = vmatpush1.msra.mxu0 %v1687
  %1734 = vmatprep.subr.mxu0 0.0
  %1735 = vmatpush1.msra.mxu0 %v1686
  %1736 = vmatprep.subr.mxu0 0.0
  %1737 = vmatpush1.msra.mxu0 %v1685
  %1738 = vmatprep.subr.mxu0 0.0
  %1739 = vmatpush1.msra.mxu0 %v1684
  %1740 = vmatprep.subr.mxu0 0.0
  %1741 = vmatpush1.msra.mxu0 %v1683
  %1742 = vmatprep.subr.mxu0 0.0
  %1743 = vmatpush1.msra.mxu0 %v1682
  %1744 = vmatprep.subr.mxu0 0.0
  %1745 = vmatpush1.msra.mxu0 %v1681
  %1746 = vmatprep.subr.mxu0 0.0
  %1747 = vmatpush1.msra.mxu0 %v1680
  %1748 = vmatprep.subr.mxu0 0.0
  %1749 = vmatpush1.msra.mxu0 %v1679
  %1750 = vmatprep.subr.mxu0 0.0
  %1751 = vmatpush1.msra.mxu0 %v1678
  %1752 = vmatprep.subr.mxu0 0.0
  %1753 = vmatpush1.msra.mxu0 %v1677
  %1754 = vmatprep.subr.mxu0 0.0
  %1755 = vmatpush1.msra.mxu0 %v1676
  %1756 = vmatprep.subr.mxu0 0.0
  %1757 = vmatpush1.msra.mxu0 %v1675
  %1758 = vmatprep.subr.mxu0 0.0
  %1759 = vmatpush2.msra.mxu0 0.0
  %1760 = vmatprep.subr.mxu0 0.0
  %1761 = vmatpush2.msra.mxu0 0.0
  %1762 = vmatprep.subr.mxu0 0.0
  %1763 = vmatpush2.msra.mxu0 0.0
  %1764 = vmatprep.subr.mxu0 0.0
  %1765 = vmatpush2.msra.mxu0 0.0
  %1766 = vmatprep.subr.mxu0 0.0
  %1767 = vmatpush2.msra.mxu0 0.0
  %1768 = vmatprep.subr.mxu0 0.0
  %1769 = vmatpush2.msra.mxu0 0.0
  %1770 = vmatprep.subr.mxu0 0.0
  %1771 = vmatpush2.msra.mxu0 0.0
  %1772 = vmatprep.subr.mxu0 0.0
  %1773 = vmatpush2.msra.mxu0 0.0
  %1774 = vmatprep.subr.mxu0 0.0
  %1775 = vmatpush2.msra.mxu0 0.0
  %1776 = vmatprep.subr.mxu0 0.0
  %1777 = vmatpush2.msra.mxu0 0.0
  %1778 = vmatprep.subr.mxu0 0.0
  %1779 = vmatpush2.msra.mxu0 0.0
  %1780 = vmatprep.subr.mxu0 0.0
  %1781 = vmatpush2.msra.mxu0 0.0
  %1782 = vmatprep.subr.mxu0 0.0
  %1783 = vmatpush2.msra.mxu0 0.0
  %1784 = vmatprep.subr.mxu0 0.0
  %1785 = vmatpush2.msra.mxu0 0.0
  %1786 = vmatprep.subr.mxu0 0.0
  %1787 = vmatpush2.msra.mxu0 0.0
  %1788 = vmatprep.subr.mxu0 0.0
  %1789 = vmatpush2.msra.mxu0 0.0
  %1790 = vmatprep.mubr.f32.mxu0 0.0
  %1791 = vmatmul.mubr.f32.gmra.mxu0 %v1693
  %v1792 = vpop.f32.mrf.mxu0
  %v1793 = vadd.f32 0.0, %v1792
  %v1794 = vpop.f32.mrf.mxu0
  %1795 = vmatprep.mubr.f32.mxu0 0.0
  %1796 = vmatmul.mubr.f32.gmra.mxu0 %v1695
  %v1797 = vpop.f32.mrf.mxu0
  %v1798 = vadd.f32 0.0, %v1797
  %v1799 = vpop.f32.mrf.mxu0
  %1800 = vmatprep.mubr.f32.mxu0 0.0
  %1801 = vmatmul.mubr.f32.gmra.mxu0 %v1697
  %v1802 = vpop.f32.mrf.mxu0
  %v1803 = vadd.f32 0.0, %v1802
  %v1804 = vpop.f32.mrf.mxu0
  %1805 = vmatprep.mubr.f32.mxu0 0.0
  %1806 = vmatmul.mubr.f32.gmra.mxu0 %v1699
  %v1807 = vpop.f32.mrf.mxu0
  %v1808 = vadd.f32 0.0, %v1807
  %v1809 = vpop.f32.mrf.mxu0
  %1810 = vmatprep.mubr.f32.mxu0 0.0
  %1811 = vmatmul.mubr.f32.gmra.mxu0 %v1701
  %v1812 = vpop.f32.mrf.mxu0
  %v1813 = vadd.f32 0.0, %v1812
  %v1814 = vpop.f32.mrf.mxu0
  %1815 = vmatprep.mubr.f32.mxu0 0.0
  %1816 = vmatmul.mubr.f32.gmra.mxu0 %v1703
  %v1817 = vpop.f32.mrf.mxu0
  %v1818 = vadd.f32 0.0, %v1817
  %v1819 = vpop.f32.mrf.mxu0
  %1820 = vmatprep.mubr.f32.mxu0 0.0
  %1821 = vmatmul.mubr.f32.gmra.mxu0 %v1705
  %v1822 = vpop.f32.mrf.mxu0
  %v1823 = vadd.f32 0.0, %v1822
  %v1824 = vpop.f32.mrf.mxu0
  %1825 = vmatprep.mubr.f32.mxu0 0.0
  %1826 = vmatmul.mubr.f32.gmra.mxu0 %v1707
  %v1827 = vpop.f32.mrf.mxu0
  %v1828 = vadd.f32 0.0, %v1827
  %v1829 = vpop.f32.mrf.mxu0
  %1830 = vmatprep.mubr.f32.mxu0 0.0
  %1831 = vmatmul.mubr.f32.gmra.mxu0 %v1709
  %v1832 = vpop.f32.mrf.mxu0
  %v1833 = vadd.f32 0.0, %v1832
  %v1834 = vpop.f32.mrf.mxu0
  %1835 = vmatprep.mubr.f32.mxu0 0.0
  %1836 = vmatmul.mubr.f32.gmra.mxu0 %v1711
  %v1837 = vpop.f32.mrf.mxu0
  %v1838 = vadd.f32 0.0, %v1837
  %v1839 = vpop.f32.mrf.mxu0
  %1840 = vmatprep.mubr.f32.mxu0 0.0
  %1841 = vmatmul.mubr.f32.gmra.mxu0 %v1713
  %v1842 = vpop.f32.mrf.mxu0
  %v1843 = vadd.f32 0.0, %v1842
  %v1844 = vpop.f32.mrf.mxu0
  %1845 = vmatprep.mubr.f32.mxu0 0.0
  %1846 = vmatmul.mubr.f32.gmra.mxu0 %v1712
  %v1847 = vpop.f32.mrf.mxu0
  %v1848 = vadd.f32 0.0, %v1847
  %v1849 = vpop.f32.mrf.mxu0
  %1850 = vdwg.mxu0
  %v1851 = vadd.f32 %v1662, %v1793
  %v1852 = vadd.f32 %v1663, %v1798
  %v1853 = vadd.f32 %v1664, %v1803
  %v1854 = vadd.f32 %v1665, %v1808
  %v1855 = vadd.f32 %v1666, %v1813
  %v1856 = vadd.f32 %v1667, %v1818
  %v1857 = vadd.f32 %v1668, %v1823
  %v1858 = vadd.f32 %v1669, %v1828
  %v1859 = vadd.f32 %v1670, %v1833
  %v1860 = vadd.f32 %v1671, %v1838
  %v1861 = vadd.f32 %v1672, %v1843
  %v1862 = vadd.f32 %v1673, %v1848
  %s1863 = scalar_lea.vmem %s1, 1280
  %v1864 = vld [vmem:[%s1863] sm:$0xff]
  %v1865 = vld [vmem:[%s1863 + $0x8] sm:$0xff]
  %v1866 = vld [vmem:[%s1863 + $0x10] sm:$0xff]
  %v1867 = vld [vmem:[%s1863 + $0x18] sm:$0xff]
  %v1868 = vld [vmem:[%s1863 + $0x20] sm:$0xff]
  %v1869 = vld [vmem:[%s1863 + $0x28] sm:$0xff]
  %v1870 = vld [vmem:[%s1863 + $0x30] sm:$0xff]
  %v1871 = vld [vmem:[%s1863 + $0x38] sm:$0xff]
  %v1872 = vld [vmem:[%s1863 + $0x40] sm:$0xff]
  %v1873 = vld [vmem:[%s1863 + $0x48] sm:$0xff]
  %v1874 = vld [vmem:[%s1863 + $0x50] sm:$0xff]
  %v1875 = vld [vmem:[%s1863 + $0x58] sm:$0xff]
  %v1876 = vld [vmem:[%s1863 + $0x60] sm:$0xff]
  %v1877 = vld [vmem:[%s1863 + $0x68] sm:$0xff]
  %v1878 = vld [vmem:[%s1863 + $0x70] sm:$0xff]
  %v1879 = vld [vmem:[%s1863 + $0x78] sm:$0xff]
  %v1880 = vrot.slane %v1142, 4
  %v1881 = vrot.slane %v1143, 4
  %v1882 = vsel %vm775, %v1880, %v1881
  %v1883 = vrot.slane %v1144, 4
  %v1884 = vsel %vm775, %v1881, %v1883
  %v1885 = vrot.slane %v1145, 4
  %v1886 = vsel %vm775, %v1883, %v1885
  %v1887 = vrot.slane %v1146, 4
  %v1888 = vsel %vm775, %v1885, %v1887
  %v1889 = vrot.slane %v1147, 4
  %v1890 = vsel %vm775, %v1887, %v1889
  %v1891 = vrot.slane %v1148, 4
  %v1892 = vsel %vm775, %v1889, %v1891
  %v1893 = vrot.slane %v1149, 4
  %v1894 = vsel %vm775, %v1891, %v1893
  %v1895 = vrot.slane %v1150, 4
  %v1896 = vsel %vm775, %v1893, %v1895
  %v1897 = vrot.slane %v1151, 4
  %v1898 = vsel %vm775, %v1895, %v1897
  %v1899 = vrot.slane %v1152, 4
  %v1900 = vsel %vm775, %v1897, %v1899
  %v1901 = vrot.slane %v1153, 4
  %v1902 = vsel %vm775, %v1899, %v1901
  %1915 = vmatprep.subr.mxu0 0.0
  %1916 = vmatpush1.msra.mxu0 %v1879
  %1917 = vmatprep.subr.mxu0 0.0
  %1918 = vmatpush1.msra.mxu0 %v1878
  %1919 = vmatprep.subr.mxu0 0.0
  %1920 = vmatpush1.msra.mxu0 %v1877
  %1921 = vmatprep.subr.mxu0 0.0
  %1922 = vmatpush1.msra.mxu0 %v1876
  %1923 = vmatprep.subr.mxu0 0.0
  %1924 = vmatpush1.msra.mxu0 %v1875
  %1925 = vmatprep.subr.mxu0 0.0
  %1926 = vmatpush1.msra.mxu0 %v1874
  %1927 = vmatprep.subr.mxu0 0.0
  %1928 = vmatpush1.msra.mxu0 %v1873
  %1929 = vmatprep.subr.mxu0 0.0
  %1930 = vmatpush1.msra.mxu0 %v1872
  %1931 = vmatprep.subr.mxu0 0.0
  %1932 = vmatpush1.msra.mxu0 %v1871
  %1933 = vmatprep.subr.mxu0 0.0
  %1934 = vmatpush1.msra.mxu0 %v1870
  %1935 = vmatprep.subr.mxu0 0.0
  %1936 = vmatpush1.msra.mxu0 %v1869
  %1937 = vmatprep.subr.mxu0 0.0
  %1938 = vmatpush1.msra.mxu0 %v1868
  %1939 = vmatprep.subr.mxu0 0.0
  %1940 = vmatpush1.msra.mxu0 %v1867
  %1941 = vmatprep.subr.mxu0 0.0
  %1942 = vmatpush1.msra.mxu0 %v1866
  %1943 = vmatprep.subr.mxu0 0.0
  %1944 = vmatpush1.msra.mxu0 %v1865
  %1945 = vmatprep.subr.mxu0 0.0
  %1946 = vmatpush1.msra.mxu0 %v1864
  %1947 = vmatprep.subr.mxu0 0.0
  %1948 = vmatpush2.msra.mxu0 0.0
  %1949 = vmatprep.subr.mxu0 0.0
  %1950 = vmatpush2.msra.mxu0 0.0
  %1951 = vmatprep.subr.mxu0 0.0
  %1952 = vmatpush2.msra.mxu0 0.0
  %1953 = vmatprep.subr.mxu0 0.0
  %1954 = vmatpush2.msra.mxu0 0.0
  %1955 = vmatprep.subr.mxu0 0.0
  %1956 = vmatpush2.msra.mxu0 0.0
  %1957 = vmatprep.subr.mxu0 0.0
  %1958 = vmatpush2.msra.mxu0 0.0
  %1959 = vmatprep.subr.mxu0 0.0
  %1960 = vmatpush2.msra.mxu0 0.0
  %1961 = vmatprep.subr.mxu0 0.0
  %1962 = vmatpush2.msra.mxu0 0.0
  %1963 = vmatprep.subr.mxu0 0.0
  %1964 = vmatpush2.msra.mxu0 0.0
  %1965 = vmatprep.subr.mxu0 0.0
  %1966 = vmatpush2.msra.mxu0 0.0
  %1967 = vmatprep.subr.mxu0 0.0
  %1968 = vmatpush2.msra.mxu0 0.0
  %1969 = vmatprep.subr.mxu0 0.0
  %1970 = vmatpush2.msra.mxu0 0.0
  %1971 = vmatprep.subr.mxu0 0.0
  %1972 = vmatpush2.msra.mxu0 0.0
  %1973 = vmatprep.subr.mxu0 0.0
  %1974 = vmatpush2.msra.mxu0 0.0
  %1975 = vmatprep.subr.mxu0 0.0
  %1976 = vmatpush2.msra.mxu0 0.0
  %1977 = vmatprep.subr.mxu0 0.0
  %1978 = vmatpush2.msra.mxu0 0.0
  %1979 = vmatprep.mubr.f32.mxu0 0.0
  %1980 = vmatmul.mubr.f32.gmra.mxu0 %v1882
  %v1981 = vpop.f32.mrf.mxu0
  %v1982 = vadd.f32 0.0, %v1981
  %v1983 = vpop.f32.mrf.mxu0
  %1984 = vmatprep.mubr.f32.mxu0 0.0
  %1985 = vmatmul.mubr.f32.gmra.mxu0 %v1884
  %v1986 = vpop.f32.mrf.mxu0
  %v1987 = vadd.f32 0.0, %v1986
  %v1988 = vpop.f32.mrf.mxu0
  %1989 = vmatprep.mubr.f32.mxu0 0.0
  %1990 = vmatmul.mubr.f32.gmra.mxu0 %v1886
  %v1991 = vpop.f32.mrf.mxu0
  %v1992 = vadd.f32 0.0, %v1991
  %v1993 = vpop.f32.mrf.mxu0
  %1994 = vmatprep.mubr.f32.mxu0 0.0
  %1995 = vmatmul.mubr.f32.gmra.mxu0 %v1888
  %v1996 = vpop.f32.mrf.mxu0
  %v1997 = vadd.f32 0.0, %v1996
  %v1998 = vpop.f32.mrf.mxu0
  %1999 = vmatprep.mubr.f32.mxu0 0.0
  %2000 = vmatmul.mubr.f32.gmra.mxu0 %v1890
  %v2001 = vpop.f32.mrf.mxu0
  %v2002 = vadd.f32 0.0, %v2001
  %v2003 = vpop.f32.mrf.mxu0
  %2004 = vmatprep.mubr.f32.mxu0 0.0
  %2005 = vmatmul.mubr.f32.gmra.mxu0 %v1892
  %v2006 = vpop.f32.mrf.mxu0
  %v2007 = vadd.f32 0.0, %v2006
  %v2008 = vpop.f32.mrf.mxu0
  %2009 = vmatprep.mubr.f32.mxu0 0.0
  %2010 = vmatmul.mubr.f32.gmra.mxu0 %v1894
  %v2011 = vpop.f32.mrf.mxu0
  %v2012 = vadd.f32 0.0, %v2011
  %v2013 = vpop.f32.mrf.mxu0
  %2014 = vmatprep.mubr.f32.mxu0 0.0
  %2015 = vmatmul.mubr.f32.gmra.mxu0 %v1896
  %v2016 = vpop.f32.mrf.mxu0
  %v2017 = vadd.f32 0.0, %v2016
  %v2018 = vpop.f32.mrf.mxu0
  %2019 = vmatprep.mubr.f32.mxu0 0.0
  %2020 = vmatmul.mubr.f32.gmra.mxu0 %v1898
  %v2021 = vpop.f32.mrf.mxu0
  %v2022 = vadd.f32 0.0, %v2021
  %v2023 = vpop.f32.mrf.mxu0
  %2024 = vmatprep.mubr.f32.mxu0 0.0
  %2025 = vmatmul.mubr.f32.gmra.mxu0 %v1900
  %v2026 = vpop.f32.mrf.mxu0
  %v2027 = vadd.f32 0.0, %v2026
  %v2028 = vpop.f32.mrf.mxu0
  %2029 = vmatprep.mubr.f32.mxu0 0.0
  %2030 = vmatmul.mubr.f32.gmra.mxu0 %v1902
  %v2031 = vpop.f32.mrf.mxu0
  %v2032 = vadd.f32 0.0, %v2031
  %v2033 = vpop.f32.mrf.mxu0
  %2034 = vmatprep.mubr.f32.mxu0 0.0
  %2035 = vmatmul.mubr.f32.gmra.mxu0 %v1901
  %v2036 = vpop.f32.mrf.mxu0
  %v2037 = vadd.f32 0.0, %v2036
  %v2038 = vpop.f32.mrf.mxu0
  %2039 = vdwg.mxu0
  %v2040 = vadd.f32 %v1851, %v1982
  %v2041 = vadd.f32 %v1852, %v1987
  %v2042 = vadd.f32 %v1853, %v1992
  %v2043 = vadd.f32 %v1854, %v1997
  %v2044 = vadd.f32 %v1855, %v2002
  %v2045 = vadd.f32 %v1856, %v2007
  %v2046 = vadd.f32 %v1857, %v2012
  %v2047 = vadd.f32 %v1858, %v2017
  %v2048 = vadd.f32 %v1859, %v2022
  %v2049 = vadd.f32 %v1860, %v2027
  %v2050 = vadd.f32 %v1861, %v2032
  %v2051 = vadd.f32 %v1862, %v2037
  %s2052 = scalar_lea.vmem %s1, 1408
  %v2053 = vld [vmem:[%s2052] sm:$0xff]
  %v2054 = vld [vmem:[%s2052 + $0x8] sm:$0xff]
  %v2055 = vld [vmem:[%s2052 + $0x10] sm:$0xff]
  %v2056 = vld [vmem:[%s2052 + $0x18] sm:$0xff]
  %v2057 = vld [vmem:[%s2052 + $0x20] sm:$0xff]
  %v2058 = vld [vmem:[%s2052 + $0x28] sm:$0xff]
  %v2059 = vld [vmem:[%s2052 + $0x30] sm:$0xff]
  %v2060 = vld [vmem:[%s2052 + $0x38] sm:$0xff]
  %v2061 = vld [vmem:[%s2052 + $0x40] sm:$0xff]
  %v2062 = vld [vmem:[%s2052 + $0x48] sm:$0xff]
  %v2063 = vld [vmem:[%s2052 + $0x50] sm:$0xff]
  %v2064 = vld [vmem:[%s2052 + $0x58] sm:$0xff]
  %v2065 = vld [vmem:[%s2052 + $0x60] sm:$0xff]
  %v2066 = vld [vmem:[%s2052 + $0x68] sm:$0xff]
  %v2067 = vld [vmem:[%s2052 + $0x70] sm:$0xff]
  %v2068 = vld [vmem:[%s2052 + $0x78] sm:$0xff]
  %v2069 = vrot.slane %v1142, 5
  %v2070 = vrot.slane %v1143, 5
  %v2071 = vsel %vm967, %v2069, %v2070
  %v2072 = vrot.slane %v1144, 5
  %v2073 = vsel %vm967, %v2070, %v2072
  %v2074 = vrot.slane %v1145, 5
  %v2075 = vsel %vm967, %v2072, %v2074
  %v2076 = vrot.slane %v1146, 5
  %v2077 = vsel %vm967, %v2074, %v2076
  %v2078 = vrot.slane %v1147, 5
  %v2079 = vsel %vm967, %v2076, %v2078
  %v2080 = vrot.slane %v1148, 5
  %v2081 = vsel %vm967, %v2078, %v2080
  %v2082 = vrot.slane %v1149, 5
  %v2083 = vsel %vm967, %v2080, %v2082
  %v2084 = vrot.slane %v1150, 5
  %v2085 = vsel %vm967, %v2082, %v2084
  %v2086 = vrot.slane %v1151, 5
  %v2087 = vsel %vm967, %v2084, %v2086
  %v2088 = vrot.slane %v1152, 5
  %v2089 = vsel %vm967, %v2086, %v2088
  %v2090 = vrot.slane %v1153, 5
  %v2091 = vsel %vm967, %v2088, %v2090
  %2104 = vmatprep.subr.mxu0 0.0
  %2105 = vmatpush1.msra.mxu0 %v2068
  %2106 = vmatprep.subr.mxu0 0.0
  %2107 = vmatpush1.msra.mxu0 %v2067
  %2108 = vmatprep.subr.mxu0 0.0
  %2109 = vmatpush1.msra.mxu0 %v2066
  %2110 = vmatprep.subr.mxu0 0.0
  %2111 = vmatpush1.msra.mxu0 %v2065
  %2112 = vmatprep.subr.mxu0 0.0
  %2113 = vmatpush1.msra.mxu0 %v2064
  %2114 = vmatprep.subr.mxu0 0.0
  %2115 = vmatpush1.msra.mxu0 %v2063
  %2116 = vmatprep.subr.mxu0 0.0
  %2117 = vmatpush1.msra.mxu0 %v2062
  %2118 = vmatprep.subr.mxu0 0.0
  %2119 = vmatpush1.msra.mxu0 %v2061
  %2120 = vmatprep.subr.mxu0 0.0
  %2121 = vmatpush1.msra.mxu0 %v2060
  %2122 = vmatprep.subr.mxu0 0.0
  %2123 = vmatpush1.msra.mxu0 %v2059
  %2124 = vmatprep.subr.mxu0 0.0
  %2125 = vmatpush1.msra.mxu0 %v2058
  %2126 = vmatprep.subr.mxu0 0.0
  %2127 = vmatpush1.msra.mxu0 %v2057
  %2128 = vmatprep.subr.mxu0 0.0
  %2129 = vmatpush1.msra.mxu0 %v2056
  %2130 = vmatprep.subr.mxu0 0.0
  %2131 = vmatpush1.msra.mxu0 %v2055
  %2132 = vmatprep.subr.mxu0 0.0
  %2133 = vmatpush1.msra.mxu0 %v2054
  %2134 = vmatprep.subr.mxu0 0.0
  %2135 = vmatpush1.msra.mxu0 %v2053
  %2136 = vmatprep.subr.mxu0 0.0
  %2137 = vmatpush2.msra.mxu0 0.0
  %2138 = vmatprep.subr.mxu0 0.0
  %2139 = vmatpush2.msra.mxu0 0.0
  %2140 = vmatprep.subr.mxu0 0.0
  %2141 = vmatpush2.msra.mxu0 0.0
  %2142 = vmatprep.subr.mxu0 0.0
  %2143 = vmatpush2.msra.mxu0 0.0
  %2144 = vmatprep.subr.mxu0 0.0
  %2145 = vmatpush2.msra.mxu0 0.0
  %2146 = vmatprep.subr.mxu0 0.0
  %2147 = vmatpush2.msra.mxu0 0.0
  %2148 = vmatprep.subr.mxu0 0.0
  %2149 = vmatpush2.msra.mxu0 0.0
  %2150 = vmatprep.subr.mxu0 0.0
  %2151 = vmatpush2.msra.mxu0 0.0
  %2152 = vmatprep.subr.mxu0 0.0
  %2153 = vmatpush2.msra.mxu0 0.0
  %2154 = vmatprep.subr.mxu0 0.0
  %2155 = vmatpush2.msra.mxu0 0.0
  %2156 = vmatprep.subr.mxu0 0.0
  %2157 = vmatpush2.msra.mxu0 0.0
  %2158 = vmatprep.subr.mxu0 0.0
  %2159 = vmatpush2.msra.mxu0 0.0
  %2160 = vmatprep.subr.mxu0 0.0
  %2161 = vmatpush2.msra.mxu0 0.0
  %2162 = vmatprep.subr.mxu0 0.0
  %2163 = vmatpush2.msra.mxu0 0.0
  %2164 = vmatprep.subr.mxu0 0.0
  %2165 = vmatpush2.msra.mxu0 0.0
  %2166 = vmatprep.subr.mxu0 0.0
  %2167 = vmatpush2.msra.mxu0 0.0
  %2168 = vmatprep.mubr.f32.mxu0 0.0
  %2169 = vmatmul.mubr.f32.gmra.mxu0 %v2071
  %v2170 = vpop.f32.mrf.mxu0
  %v2171 = vadd.f32 0.0, %v2170
  %v2172 = vpop.f32.mrf.mxu0
  %2173 = vmatprep.mubr.f32.mxu0 0.0
  %2174 = vmatmul.mubr.f32.gmra.mxu0 %v2073
  %v2175 = vpop.f32.mrf.mxu0
  %v2176 = vadd.f32 0.0, %v2175
  %v2177 = vpop.f32.mrf.mxu0
  %2178 = vmatprep.mubr.f32.mxu0 0.0
  %2179 = vmatmul.mubr.f32.gmra.mxu0 %v2075
  %v2180 = vpop.f32.mrf.mxu0
  %v2181 = vadd.f32 0.0, %v2180
  %v2182 = vpop.f32.mrf.mxu0
  %2183 = vmatprep.mubr.f32.mxu0 0.0
  %2184 = vmatmul.mubr.f32.gmra.mxu0 %v2077
  %v2185 = vpop.f32.mrf.mxu0
  %v2186 = vadd.f32 0.0, %v2185
  %v2187 = vpop.f32.mrf.mxu0
  %2188 = vmatprep.mubr.f32.mxu0 0.0
  %2189 = vmatmul.mubr.f32.gmra.mxu0 %v2079
  %v2190 = vpop.f32.mrf.mxu0
  %v2191 = vadd.f32 0.0, %v2190
  %v2192 = vpop.f32.mrf.mxu0
  %2193 = vmatprep.mubr.f32.mxu0 0.0
  %2194 = vmatmul.mubr.f32.gmra.mxu0 %v2081
  %v2195 = vpop.f32.mrf.mxu0
  %v2196 = vadd.f32 0.0, %v2195
  %v2197 = vpop.f32.mrf.mxu0
  %2198 = vmatprep.mubr.f32.mxu0 0.0
  %2199 = vmatmul.mubr.f32.gmra.mxu0 %v2083
  %v2200 = vpop.f32.mrf.mxu0
  %v2201 = vadd.f32 0.0, %v2200
  %v2202 = vpop.f32.mrf.mxu0
  %2203 = vmatprep.mubr.f32.mxu0 0.0
  %2204 = vmatmul.mubr.f32.gmra.mxu0 %v2085
  %v2205 = vpop.f32.mrf.mxu0
  %v2206 = vadd.f32 0.0, %v2205
  %v2207 = vpop.f32.mrf.mxu0
  %2208 = vmatprep.mubr.f32.mxu0 0.0
  %2209 = vmatmul.mubr.f32.gmra.mxu0 %v2087
  %v2210 = vpop.f32.mrf.mxu0
  %v2211 = vadd.f32 0.0, %v2210
  %v2212 = vpop.f32.mrf.mxu0
  %2213 = vmatprep.mubr.f32.mxu0 0.0
  %2214 = vmatmul.mubr.f32.gmra.mxu0 %v2089
  %v2215 = vpop.f32.mrf.mxu0
  %v2216 = vadd.f32 0.0, %v2215
  %v2217 = vpop.f32.mrf.mxu0
  %2218 = vmatprep.mubr.f32.mxu0 0.0
  %2219 = vmatmul.mubr.f32.gmra.mxu0 %v2091
  %v2220 = vpop.f32.mrf.mxu0
  %v2221 = vadd.f32 0.0, %v2220
  %v2222 = vpop.f32.mrf.mxu0
  %2223 = vmatprep.mubr.f32.mxu0 0.0
  %2224 = vmatmul.mubr.f32.gmra.mxu0 %v2090
  %v2225 = vpop.f32.mrf.mxu0
  %v2226 = vadd.f32 0.0, %v2225
  %v2227 = vpop.f32.mrf.mxu0
  %2228 = vdwg.mxu0
  %v2229 = vadd.f32 %v2040, %v2171
  %v2230 = vadd.f32 %v2041, %v2176
  %v2231 = vadd.f32 %v2042, %v2181
  %v2232 = vadd.f32 %v2043, %v2186
  %v2233 = vadd.f32 %v2044, %v2191
  %v2234 = vadd.f32 %v2045, %v2196
  %v2235 = vadd.f32 %v2046, %v2201
  %v2236 = vadd.f32 %v2047, %v2206
  %v2237 = vadd.f32 %v2048, %v2211
  %v2238 = vadd.f32 %v2049, %v2216
  %v2239 = vadd.f32 %v2050, %v2221
  %v2240 = vadd.f32 %v2051, %v2226
  %v2241 = vmax.f32 %v2229, 0.0
  %v2242 = vmax.f32 %v2230, 0.0
  %v2243 = vmax.f32 %v2231, 0.0
  %v2244 = vmax.f32 %v2232, 0.0
  %v2245 = vmax.f32 %v2233, 0.0
  %v2246 = vmax.f32 %v2234, 0.0
  %v2247 = vmax.f32 %v2235, 0.0
  %v2248 = vmax.f32 %v2236, 0.0
  %v2249 = vmax.f32 %v2237, 0.0
  %v2250 = vmax.f32 %v2238, 0.0
  %v2251 = vmax.f32 %v2239, 0.0
  %v2252 = vmax.f32 %v2240, 0.0
  %s2253 = scalar_lea.vmem %s1, 1536
  %v2254 = vld [vmem:[%s2253] sm:$0xff]
  %v2255 = vld [vmem:[%s2253 + $0x8] sm:$0xff]
  %v2256 = vld [vmem:[%s2253 + $0x10] sm:$0xff]
  %v2257 = vld [vmem:[%s2253 + $0x18] sm:$0xff]
  %v2258 = vld [vmem:[%s2253 + $0x20] sm:$0xff]
  %v2259 = vld [vmem:[%s2253 + $0x28] sm:$0xff]
  %v2260 = vld [vmem:[%s2253 + $0x30] sm:$0xff]
  %v2261 = vld [vmem:[%s2253 + $0x38] sm:$0xff]
  %v2262 = vld [vmem:[%s2253 + $0x40] sm:$0xff]
  %v2263 = vld [vmem:[%s2253 + $0x48] sm:$0xff]
  %v2264 = vld [vmem:[%s2253 + $0x50] sm:$0xff]
  %v2265 = vld [vmem:[%s2253 + $0x58] sm:$0xff]
  %v2266 = vld [vmem:[%s2253 + $0x60] sm:$0xff]
  %v2267 = vld [vmem:[%s2253 + $0x68] sm:$0xff]
  %v2268 = vld [vmem:[%s2253 + $0x70] sm:$0xff]
  %v2269 = vld [vmem:[%s2253 + $0x78] sm:$0xff]
  %s2270 = scalar_lea.vmem %s1, 1664
  %v2271 = vld [vmem:[%s2270] sm:$0xff]
  %v2272 = vld [vmem:[%s2270 + $0x8] sm:$0xff]
  %v2273 = vld [vmem:[%s2270 + $0x10] sm:$0xff]
  %v2274 = vld [vmem:[%s2270 + $0x18] sm:$0xff]
  %v2275 = vld [vmem:[%s2270 + $0x20] sm:$0xff]
  %v2276 = vld [vmem:[%s2270 + $0x28] sm:$0xff]
  %v2277 = vld [vmem:[%s2270 + $0x30] sm:$0xff]
  %v2278 = vld [vmem:[%s2270 + $0x38] sm:$0xff]
  %v2279 = vld [vmem:[%s2270 + $0x40] sm:$0xff]
  %v2280 = vld [vmem:[%s2270 + $0x48] sm:$0xff]
  %v2281 = vld [vmem:[%s2270 + $0x50] sm:$0xff]
  %v2282 = vld [vmem:[%s2270 + $0x58] sm:$0xff]
  %v2283 = vld [vmem:[%s2270 + $0x60] sm:$0xff]
  %v2284 = vld [vmem:[%s2270 + $0x68] sm:$0xff]
  %v2285 = vld [vmem:[%s2270 + $0x70] sm:$0xff]
  %v2286 = vld [vmem:[%s2270 + $0x78] sm:$0xff]
  %v2298 = vrot.slane %v2241, 1
  %v2299 = vrot.slane %v2242, 1
  %v2300 = vsel %vm87, %v2298, %v2299
  %v2301 = vrot.slane %v2243, 1
  %v2302 = vsel %vm87, %v2299, %v2301
  %v2303 = vrot.slane %v2244, 1
  %v2304 = vsel %vm87, %v2301, %v2303
  %v2305 = vrot.slane %v2245, 1
  %v2306 = vsel %vm87, %v2303, %v2305
  %v2307 = vrot.slane %v2246, 1
  %v2308 = vsel %vm87, %v2305, %v2307
  %v2309 = vrot.slane %v2247, 1
  %v2310 = vsel %vm87, %v2307, %v2309
  %v2311 = vrot.slane %v2248, 1
  %v2312 = vsel %vm87, %v2309, %v2311
  %v2313 = vrot.slane %v2249, 1
  %v2314 = vsel %vm87, %v2311, %v2313
  %v2315 = vrot.slane %v2250, 1
  %v2316 = vsel %vm87, %v2313, %v2315
  %v2317 = vrot.slane %v2251, 1
  %v2318 = vsel %vm87, %v2315, %v2317
  %2330 = vmatprep.subr.mxu0 0.0
  %2331 = vmatpush1.msra.mxu0 %v2286
  %2332 = vmatprep.subr.mxu0 0.0
  %2333 = vmatpush1.msra.mxu0 %v2285
  %2334 = vmatprep.subr.mxu0 0.0
  %2335 = vmatpush1.msra.mxu0 %v2284
  %2336 = vmatprep.subr.mxu0 0.0
  %2337 = vmatpush1.msra.mxu0 %v2283
  %2338 = vmatprep.subr.mxu0 0.0
  %2339 = vmatpush1.msra.mxu0 %v2282
  %2340 = vmatprep.subr.mxu0 0.0
  %2341 = vmatpush1.msra.mxu0 %v2281
  %2342 = vmatprep.subr.mxu0 0.0
  %2343 = vmatpush1.msra.mxu0 %v2280
  %2344 = vmatprep.subr.mxu0 0.0
  %2345 = vmatpush1.msra.mxu0 %v2279
  %2346 = vmatprep.subr.mxu0 0.0
  %2347 = vmatpush1.msra.mxu0 %v2278
  %2348 = vmatprep.subr.mxu0 0.0
  %2349 = vmatpush1.msra.mxu0 %v2277
  %2350 = vmatprep.subr.mxu0 0.0
  %2351 = vmatpush1.msra.mxu0 %v2276
  %2352 = vmatprep.subr.mxu0 0.0
  %2353 = vmatpush1.msra.mxu0 %v2275
  %2354 = vmatprep.subr.mxu0 0.0
  %2355 = vmatpush1.msra.mxu0 %v2274
  %2356 = vmatprep.subr.mxu0 0.0
  %2357 = vmatpush1.msra.mxu0 %v2273
  %2358 = vmatprep.subr.mxu0 0.0
  %2359 = vmatpush1.msra.mxu0 %v2272
  %2360 = vmatprep.subr.mxu0 0.0
  %2361 = vmatpush1.msra.mxu0 %v2271
  %2362 = vmatprep.subr.mxu0 0.0
  %2363 = vmatpush2.msra.mxu0 0.0
  %2364 = vmatprep.subr.mxu0 0.0
  %2365 = vmatpush2.msra.mxu0 0.0
  %2366 = vmatprep.subr.mxu0 0.0
  %2367 = vmatpush2.msra.mxu0 0.0
  %2368 = vmatprep.subr.mxu0 0.0
  %2369 = vmatpush2.msra.mxu0 0.0
  %2370 = vmatprep.subr.mxu0 0.0
  %2371 = vmatpush2.msra.mxu0 0.0
  %2372 = vmatprep.subr.mxu0 0.0
  %2373 = vmatpush2.msra.mxu0 0.0
  %2374 = vmatprep.subr.mxu0 0.0
  %2375 = vmatpush2.msra.mxu0 0.0
  %2376 = vmatprep.subr.mxu0 0.0
  %2377 = vmatpush2.msra.mxu0 0.0
  %2378 = vmatprep.subr.mxu0 0.0
  %2379 = vmatpush2.msra.mxu0 0.0
  %2380 = vmatprep.subr.mxu0 0.0
  %2381 = vmatpush2.msra.mxu0 0.0
  %2382 = vmatprep.subr.mxu0 0.0
  %2383 = vmatpush2.msra.mxu0 0.0
  %2384 = vmatprep.subr.mxu0 0.0
  %2385 = vmatpush2.msra.mxu0 0.0
  %2386 = vmatprep.subr.mxu0 0.0
  %2387 = vmatpush2.msra.mxu0 0.0
  %2388 = vmatprep.subr.mxu0 0.0
  %2389 = vmatpush2.msra.mxu0 0.0
  %2390 = vmatprep.subr.mxu0 0.0
  %2391 = vmatpush2.msra.mxu0 0.0
  %2392 = vmatprep.subr.mxu0 0.0
  %2393 = vmatpush2.msra.mxu0 0.0
  %2394 = vmatprep.mubr.f32.mxu0 0.0
  %2395 = vmatmul.mubr.f32.gmra.mxu0 %v2300
  %v2396 = vpop.f32.mrf.mxu0
  %v2397 = vadd.f32 0.0, %v2396
  %v2398 = vpop.f32.mrf.mxu0
  %2399 = vmatprep.mubr.f32.mxu0 0.0
  %2400 = vmatmul.mubr.f32.gmra.mxu0 %v2302
  %v2401 = vpop.f32.mrf.mxu0
  %v2402 = vadd.f32 0.0, %v2401
  %v2403 = vpop.f32.mrf.mxu0
  %2404 = vmatprep.mubr.f32.mxu0 0.0
  %2405 = vmatmul.mubr.f32.gmra.mxu0 %v2304
  %v2406 = vpop.f32.mrf.mxu0
  %v2407 = vadd.f32 0.0, %v2406
  %v2408 = vpop.f32.mrf.mxu0
  %2409 = vmatprep.mubr.f32.mxu0 0.0
  %2410 = vmatmul.mubr.f32.gmra.mxu0 %v2306
  %v2411 = vpop.f32.mrf.mxu0
  %v2412 = vadd.f32 0.0, %v2411
  %v2413 = vpop.f32.mrf.mxu0
  %2414 = vmatprep.mubr.f32.mxu0 0.0
  %2415 = vmatmul.mubr.f32.gmra.mxu0 %v2308
  %v2416 = vpop.f32.mrf.mxu0
  %v2417 = vadd.f32 0.0, %v2416
  %v2418 = vpop.f32.mrf.mxu0
  %2419 = vmatprep.mubr.f32.mxu0 0.0
  %2420 = vmatmul.mubr.f32.gmra.mxu0 %v2310
  %v2421 = vpop.f32.mrf.mxu0
  %v2422 = vadd.f32 0.0, %v2421
  %v2423 = vpop.f32.mrf.mxu0
  %2424 = vmatprep.mubr.f32.mxu0 0.0
  %2425 = vmatmul.mubr.f32.gmra.mxu0 %v2312
  %v2426 = vpop.f32.mrf.mxu0
  %v2427 = vadd.f32 0.0, %v2426
  %v2428 = vpop.f32.mrf.mxu0
  %2429 = vmatprep.mubr.f32.mxu0 0.0
  %2430 = vmatmul.mubr.f32.gmra.mxu0 %v2314
  %v2431 = vpop.f32.mrf.mxu0
  %v2432 = vadd.f32 0.0, %v2431
  %v2433 = vpop.f32.mrf.mxu0
  %2434 = vmatprep.mubr.f32.mxu0 0.0
  %2435 = vmatmul.mubr.f32.gmra.mxu0 %v2316
  %v2436 = vpop.f32.mrf.mxu0
  %v2437 = vadd.f32 0.0, %v2436
  %v2438 = vpop.f32.mrf.mxu0
  %2439 = vmatprep.mubr.f32.mxu0 0.0
  %2440 = vmatmul.mubr.f32.gmra.mxu0 %v2318
  %v2441 = vpop.f32.mrf.mxu0
  %v2442 = vadd.f32 0.0, %v2441
  %v2443 = vpop.f32.mrf.mxu0
  %2444 = vmatprep.mubr.f32.mxu0 0.0
  %2445 = vmatmul.mubr.f32.gmra.mxu0 %v2317
  %v2446 = vpop.f32.mrf.mxu0
  %v2447 = vadd.f32 0.0, %v2446
  %v2448 = vpop.f32.mrf.mxu0
  %2449 = vdwg.mxu0
  %2450 = vmatprep.subr.mxu0 0.0
  %2451 = vmatpush1.msra.mxu0 %v2269
  %2452 = vmatprep.subr.mxu0 0.0
  %2453 = vmatpush1.msra.mxu0 %v2268
  %2454 = vmatprep.subr.mxu0 0.0
  %2455 = vmatpush1.msra.mxu0 %v2267
  %2456 = vmatprep.subr.mxu0 0.0
  %2457 = vmatpush1.msra.mxu0 %v2266
  %2458 = vmatprep.subr.mxu0 0.0
  %2459 = vmatpush1.msra.mxu0 %v2265
  %2460 = vmatprep.subr.mxu0 0.0
  %2461 = vmatpush1.msra.mxu0 %v2264
  %2462 = vmatprep.subr.mxu0 0.0
  %2463 = vmatpush1.msra.mxu0 %v2263
  %2464 = vmatprep.subr.mxu0 0.0
  %2465 = vmatpush1.msra.mxu0 %v2262
  %2466 = vmatprep.subr.mxu0 0.0
  %2467 = vmatpush1.msra.mxu0 %v2261
  %2468 = vmatprep.subr.mxu0 0.0
  %2469 = vmatpush1.msra.mxu0 %v2260
  %2470 = vmatprep.subr.mxu0 0.0
  %2471 = vmatpush1.msra.mxu0 %v2259
  %2472 = vmatprep.subr.mxu0 0.0
  %2473 = vmatpush1.msra.mxu0 %v2258
  %2474 = vmatprep.subr.mxu0 0.0
  %2475 = vmatpush1.msra.mxu0 %v2257
  %2476 = vmatprep.subr.mxu0 0.0
  %2477 = vmatpush1.msra.mxu0 %v2256
  %2478 = vmatprep.subr.mxu0 0.0
  %2479 = vmatpush1.msra.mxu0 %v2255
  %2480 = vmatprep.subr.mxu0 0.0
  %2481 = vmatpush1.msra.mxu0 %v2254
  %2482 = vmatprep.subr.mxu0 0.0
  %2483 = vmatpush2.msra.mxu0 0.0
  %2484 = vmatprep.subr.mxu0 0.0
  %2485 = vmatpush2.msra.mxu0 0.0
  %2486 = vmatprep.subr.mxu0 0.0
  %2487 = vmatpush2.msra.mxu0 0.0
  %2488 = vmatprep.subr.mxu0 0.0
  %2489 = vmatpush2.msra.mxu0 0.0
  %2490 = vmatprep.subr.mxu0 0.0
  %2491 = vmatpush2.msra.mxu0 0.0
  %2492 = vmatprep.subr.mxu0 0.0
  %2493 = vmatpush2.msra.mxu0 0.0
  %2494 = vmatprep.subr.mxu0 0.0
  %2495 = vmatpush2.msra.mxu0 0.0
  %2496 = vmatprep.subr.mxu0 0.0
  %2497 = vmatpush2.msra.mxu0 0.0
  %2498 = vmatprep.subr.mxu0 0.0
  %2499 = vmatpush2.msra.mxu0 0.0
  %2500 = vmatprep.subr.mxu0 0.0
  %2501 = vmatpush2.msra.mxu0 0.0
  %2502 = vmatprep.subr.mxu0 0.0
  %2503 = vmatpush2.msra.mxu0 0.0
  %2504 = vmatprep.subr.mxu0 0.0
  %2505 = vmatpush2.msra.mxu0 0.0
  %2506 = vmatprep.subr.mxu0 0.0
  %2507 = vmatpush2.msra.mxu0 0.0
  %2508 = vmatprep.subr.mxu0 0.0
  %2509 = vmatpush2.msra.mxu0 0.0
  %2510 = vmatprep.subr.mxu0 0.0
  %2511 = vmatpush2.msra.mxu0 0.0
  %2512 = vmatprep.subr.mxu0 0.0
  %2513 = vmatpush2.msra.mxu0 0.0
  %2514 = vmatprep.mubr.f32.mxu0 0.0
  %2515 = vmatmul.mubr.f32.gmra.mxu0 %v2241
  %v2516 = vpop.f32.mrf.mxu0
  %v2517 = vadd.f32 %v2397, %v2516
  %v2518 = vpop.f32.mrf.mxu0
  %2519 = vmatprep.mubr.f32.mxu0 0.0
  %2520 = vmatmul.mubr.f32.gmra.mxu0 %v2242
  %v2521 = vpop.f32.mrf.mxu0
  %v2522 = vadd.f32 %v2402, %v2521
  %v2523 = vpop.f32.mrf.mxu0
  %2524 = vmatprep.mubr.f32.mxu0 0.0
  %2525 = vmatmul.mubr.f32.gmra.mxu0 %v2243
  %v2526 = vpop.f32.mrf.mxu0
  %v2527 = vadd.f32 %v2407, %v2526
  %v2528 = vpop.f32.mrf.mxu0
  %2529 = vmatprep.mubr.f32.mxu0 0.0
  %2530 = vmatmul.mubr.f32.gmra.mxu0 %v2244
  %v2531 = vpop.f32.mrf.mxu0
  %v2532 = vadd.f32 %v2412, %v2531
  %v2533 = vpop.f32.mrf.mxu0
  %2534 = vmatprep.mubr.f32.mxu0 0.0
  %2535 = vmatmul.mubr.f32.gmra.mxu0 %v2245
  %v2536 = vpop.f32.mrf.mxu0
  %v2537 = vadd.f32 %v2417, %v2536
  %v2538 = vpop.f32.mrf.mxu0
  %2539 = vmatprep.mubr.f32.mxu0 0.0
  %2540 = vmatmul.mubr.f32.gmra.mxu0 %v2246
  %v2541 = vpop.f32.mrf.mxu0
  %v2542 = vadd.f32 %v2422, %v2541
  %v2543 = vpop.f32.mrf.mxu0
  %2544 = vmatprep.mubr.f32.mxu0 0.0
  %2545 = vmatmul.mubr.f32.gmra.mxu0 %v2247
  %v2546 = vpop.f32.mrf.mxu0
  %v2547 = vadd.f32 %v2427, %v2546
  %v2548 = vpop.f32.mrf.mxu0
  %2549 = vmatprep.mubr.f32.mxu0 0.0
  %2550 = vmatmul.mubr.f32.gmra.mxu0 %v2248
  %v2551 = vpop.f32.mrf.mxu0
  %v2552 = vadd.f32 %v2432, %v2551
  %v2553 = vpop.f32.mrf.mxu0
  %2554 = vmatprep.mubr.f32.mxu0 0.0
  %2555 = vmatmul.mubr.f32.gmra.mxu0 %v2249
  %v2556 = vpop.f32.mrf.mxu0
  %v2557 = vadd.f32 %v2437, %v2556
  %v2558 = vpop.f32.mrf.mxu0
  %2559 = vmatprep.mubr.f32.mxu0 0.0
  %2560 = vmatmul.mubr.f32.gmra.mxu0 %v2250
  %v2561 = vpop.f32.mrf.mxu0
  %v2562 = vadd.f32 %v2442, %v2561
  %v2563 = vpop.f32.mrf.mxu0
  %2564 = vmatprep.mubr.f32.mxu0 0.0
  %2565 = vmatmul.mubr.f32.gmra.mxu0 %v2251
  %v2566 = vpop.f32.mrf.mxu0
  %v2567 = vadd.f32 %v2447, %v2566
  %v2568 = vpop.f32.mrf.mxu0
  %2569 = vdwg.mxu0
  %s2570 = scalar_lea.vmem %s1, 1792
  %v2571 = vld [vmem:[%s2570] sm:$0xff]
  %v2572 = vld [vmem:[%s2570 + $0x8] sm:$0xff]
  %v2573 = vld [vmem:[%s2570 + $0x10] sm:$0xff]
  %v2574 = vld [vmem:[%s2570 + $0x18] sm:$0xff]
  %v2575 = vld [vmem:[%s2570 + $0x20] sm:$0xff]
  %v2576 = vld [vmem:[%s2570 + $0x28] sm:$0xff]
  %v2577 = vld [vmem:[%s2570 + $0x30] sm:$0xff]
  %v2578 = vld [vmem:[%s2570 + $0x38] sm:$0xff]
  %v2579 = vld [vmem:[%s2570 + $0x40] sm:$0xff]
  %v2580 = vld [vmem:[%s2570 + $0x48] sm:$0xff]
  %v2581 = vld [vmem:[%s2570 + $0x50] sm:$0xff]
  %v2582 = vld [vmem:[%s2570 + $0x58] sm:$0xff]
  %v2583 = vld [vmem:[%s2570 + $0x60] sm:$0xff]
  %v2584 = vld [vmem:[%s2570 + $0x68] sm:$0xff]
  %v2585 = vld [vmem:[%s2570 + $0x70] sm:$0xff]
  %v2586 = vld [vmem:[%s2570 + $0x78] sm:$0xff]
  %v2587 = vrot.slane %v2241, 2
  %v2588 = vrot.slane %v2242, 2
  %v2589 = vsel %vm391, %v2587, %v2588
  %v2590 = vrot.slane %v2243, 2
  %v2591 = vsel %vm391, %v2588, %v2590
  %v2592 = vrot.slane %v2244, 2
  %v2593 = vsel %vm391, %v2590, %v2592
  %v2594 = vrot.slane %v2245, 2
  %v2595 = vsel %vm391, %v2592, %v2594
  %v2596 = vrot.slane %v2246, 2
  %v2597 = vsel %vm391, %v2594, %v2596
  %v2598 = vrot.slane %v2247, 2
  %v2599 = vsel %vm391, %v2596, %v2598
  %v2600 = vrot.slane %v2248, 2
  %v2601 = vsel %vm391, %v2598, %v2600
  %v2602 = vrot.slane %v2249, 2
  %v2603 = vsel %vm391, %v2600, %v2602
  %v2604 = vrot.slane %v2250, 2
  %v2605 = vsel %vm391, %v2602, %v2604
  %v2606 = vrot.slane %v2251, 2
  %v2607 = vsel %vm391, %v2604, %v2606
  %2619 = vmatprep.subr.mxu0 0.0
  %2620 = vmatpush1.msra.mxu0 %v2586
  %2621 = vmatprep.subr.mxu0 0.0
  %2622 = vmatpush1.msra.mxu0 %v2585
  %2623 = vmatprep.subr.mxu0 0.0
  %2624 = vmatpush1.msra.mxu0 %v2584
  %2625 = vmatprep.subr.mxu0 0.0
  %2626 = vmatpush1.msra.mxu0 %v2583
  %2627 = vmatprep.subr.mxu0 0.0
  %2628 = vmatpush1.msra.mxu0 %v2582
  %2629 = vmatprep.subr.mxu0 0.0
  %2630 = vmatpush1.msra.mxu0 %v2581
  %2631 = vmatprep.subr.mxu0 0.0
  %2632 = vmatpush1.msra.mxu0 %v2580
  %2633 = vmatprep.subr.mxu0 0.0
  %2634 = vmatpush1.msra.mxu0 %v2579
  %2635 = vmatprep.subr.mxu0 0.0
  %2636 = vmatpush1.msra.mxu0 %v2578
  %2637 = vmatprep.subr.mxu0 0.0
  %2638 = vmatpush1.msra.mxu0 %v2577
  %2639 = vmatprep.subr.mxu0 0.0
  %2640 = vmatpush1.msra.mxu0 %v2576
  %2641 = vmatprep.subr.mxu0 0.0
  %2642 = vmatpush1.msra.mxu0 %v2575
  %2643 = vmatprep.subr.mxu0 0.0
  %2644 = vmatpush1.msra.mxu0 %v2574
  %2645 = vmatprep.subr.mxu0 0.0
  %2646 = vmatpush1.msra.mxu0 %v2573
  %2647 = vmatprep.subr.mxu0 0.0
  %2648 = vmatpush1.msra.mxu0 %v2572
  %2649 = vmatprep.subr.mxu0 0.0
  %2650 = vmatpush1.msra.mxu0 %v2571
  %2651 = vmatprep.subr.mxu0 0.0
  %2652 = vmatpush2.msra.mxu0 0.0
  %2653 = vmatprep.subr.mxu0 0.0
  %2654 = vmatpush2.msra.mxu0 0.0
  %2655 = vmatprep.subr.mxu0 0.0
  %2656 = vmatpush2.msra.mxu0 0.0
  %2657 = vmatprep.subr.mxu0 0.0
  %2658 = vmatpush2.msra.mxu0 0.0
  %2659 = vmatprep.subr.mxu0 0.0
  %2660 = vmatpush2.msra.mxu0 0.0
  %2661 = vmatprep.subr.mxu0 0.0
  %2662 = vmatpush2.msra.mxu0 0.0
  %2663 = vmatprep.subr.mxu0 0.0
  %2664 = vmatpush2.msra.mxu0 0.0
  %2665 = vmatprep.subr.mxu0 0.0
  %2666 = vmatpush2.msra.mxu0 0.0
  %2667 = vmatprep.subr.mxu0 0.0
  %2668 = vmatpush2.msra.mxu0 0.0
  %2669 = vmatprep.subr.mxu0 0.0
  %2670 = vmatpush2.msra.mxu0 0.0
  %2671 = vmatprep.subr.mxu0 0.0
  %2672 = vmatpush2.msra.mxu0 0.0
  %2673 = vmatprep.subr.mxu0 0.0
  %2674 = vmatpush2.msra.mxu0 0.0
  %2675 = vmatprep.subr.mxu0 0.0
  %2676 = vmatpush2.msra.mxu0 0.0
  %2677 = vmatprep.subr.mxu0 0.0
  %2678 = vmatpush2.msra.mxu0 0.0
  %2679 = vmatprep.subr.mxu0 0.0
  %2680 = vmatpush2.msra.mxu0 0.0
  %2681 = vmatprep.subr.mxu0 0.0
  %2682 = vmatpush2.msra.mxu0 0.0
  %2683 = vmatprep.mubr.f32.mxu0 0.0
  %2684 = vmatmul.mubr.f32.gmra.mxu0 %v2589
  %v2685 = vpop.f32.mrf.mxu0
  %v2686 = vadd.f32 0.0, %v2685
  %v2687 = vpop.f32.mrf.mxu0
  %2688 = vmatprep.mubr.f32.mxu0 0.0
  %2689 = vmatmul.mubr.f32.gmra.mxu0 %v2591
  %v2690 = vpop.f32.mrf.mxu0
  %v2691 = vadd.f32 0.0, %v2690
  %v2692 = vpop.f32.mrf.mxu0
  %2693 = vmatprep.mubr.f32.mxu0 0.0
  %2694 = vmatmul.mubr.f32.gmra.mxu0 %v2593
  %v2695 = vpop.f32.mrf.mxu0
  %v2696 = vadd.f32 0.0, %v2695
  %v2697 = vpop.f32.mrf.mxu0
  %2698 = vmatprep.mubr.f32.mxu0 0.0
  %2699 = vmatmul.mubr.f32.gmra.mxu0 %v2595
  %v2700 = vpop.f32.mrf.mxu0
  %v2701 = vadd.f32 0.0, %v2700
  %v2702 = vpop.f32.mrf.mxu0
  %2703 = vmatprep.mubr.f32.mxu0 0.0
  %2704 = vmatmul.mubr.f32.gmra.mxu0 %v2597
  %v2705 = vpop.f32.mrf.mxu0
  %v2706 = vadd.f32 0.0, %v2705
  %v2707 = vpop.f32.mrf.mxu0
  %2708 = vmatprep.mubr.f32.mxu0 0.0
  %2709 = vmatmul.mubr.f32.gmra.mxu0 %v2599
  %v2710 = vpop.f32.mrf.mxu0
  %v2711 = vadd.f32 0.0, %v2710
  %v2712 = vpop.f32.mrf.mxu0
  %2713 = vmatprep.mubr.f32.mxu0 0.0
  %2714 = vmatmul.mubr.f32.gmra.mxu0 %v2601
  %v2715 = vpop.f32.mrf.mxu0
  %v2716 = vadd.f32 0.0, %v2715
  %v2717 = vpop.f32.mrf.mxu0
  %2718 = vmatprep.mubr.f32.mxu0 0.0
  %2719 = vmatmul.mubr.f32.gmra.mxu0 %v2603
  %v2720 = vpop.f32.mrf.mxu0
  %v2721 = vadd.f32 0.0, %v2720
  %v2722 = vpop.f32.mrf.mxu0
  %2723 = vmatprep.mubr.f32.mxu0 0.0
  %2724 = vmatmul.mubr.f32.gmra.mxu0 %v2605
  %v2725 = vpop.f32.mrf.mxu0
  %v2726 = vadd.f32 0.0, %v2725
  %v2727 = vpop.f32.mrf.mxu0
  %2728 = vmatprep.mubr.f32.mxu0 0.0
  %2729 = vmatmul.mubr.f32.gmra.mxu0 %v2607
  %v2730 = vpop.f32.mrf.mxu0
  %v2731 = vadd.f32 0.0, %v2730
  %v2732 = vpop.f32.mrf.mxu0
  %2733 = vmatprep.mubr.f32.mxu0 0.0
  %2734 = vmatmul.mubr.f32.gmra.mxu0 %v2606
  %v2735 = vpop.f32.mrf.mxu0
  %v2736 = vadd.f32 0.0, %v2735
  %v2737 = vpop.f32.mrf.mxu0
  %2738 = vdwg.mxu0
  %v2739 = vadd.f32 %v2517, %v2686
  %v2740 = vadd.f32 %v2522, %v2691
  %v2741 = vadd.f32 %v2527, %v2696
  %v2742 = vadd.f32 %v2532, %v2701
  %v2743 = vadd.f32 %v2537, %v2706
  %v2744 = vadd.f32 %v2542, %v2711
  %v2745 = vadd.f32 %v2547, %v2716
  %v2746 = vadd.f32 %v2552, %v2721
  %v2747 = vadd.f32 %v2557, %v2726
  %v2748 = vadd.f32 %v2562, %v2731
  %v2749 = vadd.f32 %v2567, %v2736
  %s2750 = scalar_lea.vmem %s1, 1920
  %v2751 = vld [vmem:[%s2750] sm:$0xff]
  %v2752 = vld [vmem:[%s2750 + $0x8] sm:$0xff]
  %v2753 = vld [vmem:[%s2750 + $0x10] sm:$0xff]
  %v2754 = vld [vmem:[%s2750 + $0x18] sm:$0xff]
  %v2755 = vld [vmem:[%s2750 + $0x20] sm:$0xff]
  %v2756 = vld [vmem:[%s2750 + $0x28] sm:$0xff]
  %v2757 = vld [vmem:[%s2750 + $0x30] sm:$0xff]
  %v2758 = vld [vmem:[%s2750 + $0x38] sm:$0xff]
  %v2759 = vld [vmem:[%s2750 + $0x40] sm:$0xff]
  %v2760 = vld [vmem:[%s2750 + $0x48] sm:$0xff]
  %v2761 = vld [vmem:[%s2750 + $0x50] sm:$0xff]
  %v2762 = vld [vmem:[%s2750 + $0x58] sm:$0xff]
  %v2763 = vld [vmem:[%s2750 + $0x60] sm:$0xff]
  %v2764 = vld [vmem:[%s2750 + $0x68] sm:$0xff]
  %v2765 = vld [vmem:[%s2750 + $0x70] sm:$0xff]
  %v2766 = vld [vmem:[%s2750 + $0x78] sm:$0xff]
  %v2767 = vrot.slane %v2241, 3
  %v2768 = vrot.slane %v2242, 3
  %v2769 = vsel %vm583, %v2767, %v2768
  %v2770 = vrot.slane %v2243, 3
  %v2771 = vsel %vm583, %v2768, %v2770
  %v2772 = vrot.slane %v2244, 3
  %v2773 = vsel %vm583, %v2770, %v2772
  %v2774 = vrot.slane %v2245, 3
  %v2775 = vsel %vm583, %v2772, %v2774
  %v2776 = vrot.slane %v2246, 3
  %v2777 = vsel %vm583, %v2774, %v2776
  %v2778 = vrot.slane %v2247, 3
  %v2779 = vsel %vm583, %v2776, %v2778
  %v2780 = vrot.slane %v2248, 3
  %v2781 = vsel %vm583, %v2778, %v2780
  %v2782 = vrot.slane %v2249, 3
  %v2783 = vsel %vm583, %v2780, %v2782
  %v2784 = vrot.slane %v2250, 3
  %v2785 = vsel %vm583, %v2782, %v2784
  %v2786 = vrot.slane %v2251, 3
  %v2787 = vsel %vm583, %v2784, %v2786
  %2799 = vmatprep.subr.mxu0 0.0
  %2800 = vmatpush1.msra.mxu0 %v2766
  %2801 = vmatprep.subr.mxu0 0.0
  %2802 = vmatpush1.msra.mxu0 %v2765
  %2803 = vmatprep.subr.mxu0 0.0
  %2804 = vmatpush1.msra.mxu0 %v2764
  %2805 = vmatprep.subr.mxu0 0.0
  %2806 = vmatpush1.msra.mxu0 %v2763
  %2807 = vmatprep.subr.mxu0 0.0
  %2808 = vmatpush1.msra.mxu0 %v2762
  %2809 = vmatprep.subr.mxu0 0.0
  %2810 = vmatpush1.msra.mxu0 %v2761
  %2811 = vmatprep.subr.mxu0 0.0
  %2812 = vmatpush1.msra.mxu0 %v2760
  %2813 = vmatprep.subr.mxu0 0.0
  %2814 = vmatpush1.msra.mxu0 %v2759
  %2815 = vmatprep.subr.mxu0 0.0
  %2816 = vmatpush1.msra.mxu0 %v2758
  %2817 = vmatprep.subr.mxu0 0.0
  %2818 = vmatpush1.msra.mxu0 %v2757
  %2819 = vmatprep.subr.mxu0 0.0
  %2820 = vmatpush1.msra.mxu0 %v2756
  %2821 = vmatprep.subr.mxu0 0.0
  %2822 = vmatpush1.msra.mxu0 %v2755
  %2823 = vmatprep.subr.mxu0 0.0
  %2824 = vmatpush1.msra.mxu0 %v2754
  %2825 = vmatprep.subr.mxu0 0.0
  %2826 = vmatpush1.msra.mxu0 %v2753
  %2827 = vmatprep.subr.mxu0 0.0
  %2828 = vmatpush1.msra.mxu0 %v2752
  %2829 = vmatprep.subr.mxu0 0.0
  %2830 = vmatpush1.msra.mxu0 %v2751
  %2831 = vmatprep.subr.mxu0 0.0
  %2832 = vmatpush2.msra.mxu0 0.0
  %2833 = vmatprep.subr.mxu0 0.0
  %2834 = vmatpush2.msra.mxu0 0.0
  %2835 = vmatprep.subr.mxu0 0.0
  %2836 = vmatpush2.msra.mxu0 0.0
  %2837 = vmatprep.subr.mxu0 0.0
  %2838 = vmatpush2.msra.mxu0 0.0
  %2839 = vmatprep.subr.mxu0 0.0
  %2840 = vmatpush2.msra.mxu0 0.0
  %2841 = vmatprep.subr.mxu0 0.0
  %2842 = vmatpush2.msra.mxu0 0.0
  %2843 = vmatprep.subr.mxu0 0.0
  %2844 = vmatpush2.msra.mxu0 0.0
  %2845 = vmatprep.subr.mxu0 0.0
  %2846 = vmatpush2.msra.mxu0 0.0
  %2847 = vmatprep.subr.mxu0 0.0
  %2848 = vmatpush2.msra.mxu0 0.0
  %2849 = vmatprep.subr.mxu0 0.0
  %2850 = vmatpush2.msra.mxu0 0.0
  %2851 = vmatprep.subr.mxu0 0.0
  %2852 = vmatpush2.msra.mxu0 0.0
  %2853 = vmatprep.subr.mxu0 0.0
  %2854 = vmatpush2.msra.mxu0 0.0
  %2855 = vmatprep.subr.mxu0 0.0
  %2856 = vmatpush2.msra.mxu0 0.0
  %2857 = vmatprep.subr.mxu0 0.0
  %2858 = vmatpush2.msra.mxu0 0.0
  %2859 = vmatprep.subr.mxu0 0.0
  %2860 = vmatpush2.msra.mxu0 0.0
  %2861 = vmatprep.subr.mxu0 0.0
  %2862 = vmatpush2.msra.mxu0 0.0
  %2863 = vmatprep.mubr.f32.mxu0 0.0
  %2864 = vmatmul.mubr.f32.gmra.mxu0 %v2769
  %v2865 = vpop.f32.mrf.mxu0
  %v2866 = vadd.f32 0.0, %v2865
  %v2867 = vpop.f32.mrf.mxu0
  %2868 = vmatprep.mubr.f32.mxu0 0.0
  %2869 = vmatmul.mubr.f32.gmra.mxu0 %v2771
  %v2870 = vpop.f32.mrf.mxu0
  %v2871 = vadd.f32 0.0, %v2870
  %v2872 = vpop.f32.mrf.mxu0
  %2873 = vmatprep.mubr.f32.mxu0 0.0
  %2874 = vmatmul.mubr.f32.gmra.mxu0 %v2773
  %v2875 = vpop.f32.mrf.mxu0
  %v2876 = vadd.f32 0.0, %v2875
  %v2877 = vpop.f32.mrf.mxu0
  %2878 = vmatprep.mubr.f32.mxu0 0.0
  %2879 = vmatmul.mubr.f32.gmra.mxu0 %v2775
  %v2880 = vpop.f32.mrf.mxu0
  %v2881 = vadd.f32 0.0, %v2880
  %v2882 = vpop.f32.mrf.mxu0
  %2883 = vmatprep.mubr.f32.mxu0 0.0
  %2884 = vmatmul.mubr.f32.gmra.mxu0 %v2777
  %v2885 = vpop.f32.mrf.mxu0
  %v2886 = vadd.f32 0.0, %v2885
  %v2887 = vpop.f32.mrf.mxu0
  %2888 = vmatprep.mubr.f32.mxu0 0.0
  %2889 = vmatmul.mubr.f32.gmra.mxu0 %v2779
  %v2890 = vpop.f32.mrf.mxu0
  %v2891 = vadd.f32 0.0, %v2890
  %v2892 = vpop.f32.mrf.mxu0
  %2893 = vmatprep.mubr.f32.mxu0 0.0
  %2894 = vmatmul.mubr.f32.gmra.mxu0 %v2781
  %v2895 = vpop.f32.mrf.mxu0
  %v2896 = vadd.f32 0.0, %v2895
  %v2897 = vpop.f32.mrf.mxu0
  %2898 = vmatprep.mubr.f32.mxu0 0.0
  %2899 = vmatmul.mubr.f32.gmra.mxu0 %v2783
  %v2900 = vpop.f32.mrf.mxu0
  %v2901 = vadd.f32 0.0, %v2900
  %v2902 = vpop.f32.mrf.mxu0
  %2903 = vmatprep.mubr.f32.mxu0 0.0
  %2904 = vmatmul.mubr.f32.gmra.mxu0 %v2785
  %v2905 = vpop.f32.mrf.mxu0
  %v2906 = vadd.f32 0.0, %v2905
  %v2907 = vpop.f32.mrf.mxu0
  %2908 = vmatprep.mubr.f32.mxu0 0.0
  %2909 = vmatmul.mubr.f32.gmra.mxu0 %v2787
  %v2910 = vpop.f32.mrf.mxu0
  %v2911 = vadd.f32 0.0, %v2910
  %v2912 = vpop.f32.mrf.mxu0
  %2913 = vmatprep.mubr.f32.mxu0 0.0
  %2914 = vmatmul.mubr.f32.gmra.mxu0 %v2786
  %v2915 = vpop.f32.mrf.mxu0
  %v2916 = vadd.f32 0.0, %v2915
  %v2917 = vpop.f32.mrf.mxu0
  %2918 = vdwg.mxu0
  %v2919 = vadd.f32 %v2739, %v2866
  %v2920 = vadd.f32 %v2740, %v2871
  %v2921 = vadd.f32 %v2741, %v2876
  %v2922 = vadd.f32 %v2742, %v2881
  %v2923 = vadd.f32 %v2743, %v2886
  %v2924 = vadd.f32 %v2744, %v2891
  %v2925 = vadd.f32 %v2745, %v2896
  %v2926 = vadd.f32 %v2746, %v2901
  %v2927 = vadd.f32 %v2747, %v2906
  %v2928 = vadd.f32 %v2748, %v2911
  %v2929 = vadd.f32 %v2749, %v2916
  %s2930 = scalar_lea.vmem %s1, 2048
  %v2931 = vld [vmem:[%s2930] sm:$0xff]
  %v2932 = vld [vmem:[%s2930 + $0x8] sm:$0xff]
  %v2933 = vld [vmem:[%s2930 + $0x10] sm:$0xff]
  %v2934 = vld [vmem:[%s2930 + $0x18] sm:$0xff]
  %v2935 = vld [vmem:[%s2930 + $0x20] sm:$0xff]
  %v2936 = vld [vmem:[%s2930 + $0x28] sm:$0xff]
  %v2937 = vld [vmem:[%s2930 + $0x30] sm:$0xff]
  %v2938 = vld [vmem:[%s2930 + $0x38] sm:$0xff]
  %v2939 = vld [vmem:[%s2930 + $0x40] sm:$0xff]
  %v2940 = vld [vmem:[%s2930 + $0x48] sm:$0xff]
  %v2941 = vld [vmem:[%s2930 + $0x50] sm:$0xff]
  %v2942 = vld [vmem:[%s2930 + $0x58] sm:$0xff]
  %v2943 = vld [vmem:[%s2930 + $0x60] sm:$0xff]
  %v2944 = vld [vmem:[%s2930 + $0x68] sm:$0xff]
  %v2945 = vld [vmem:[%s2930 + $0x70] sm:$0xff]
  %v2946 = vld [vmem:[%s2930 + $0x78] sm:$0xff]
  %v2948 = vrot.slane %v2241, 4
  %v2949 = vrot.slane %v2242, 4
  %v2950 = vsel %vm775, %v2948, %v2949
  %v2951 = vrot.slane %v2243, 4
  %v2952 = vsel %vm775, %v2949, %v2951
  %v2953 = vrot.slane %v2244, 4
  %v2954 = vsel %vm775, %v2951, %v2953
  %v2955 = vrot.slane %v2245, 4
  %v2956 = vsel %vm775, %v2953, %v2955
  %v2957 = vrot.slane %v2246, 4
  %v2958 = vsel %vm775, %v2955, %v2957
  %v2959 = vrot.slane %v2247, 4
  %v2960 = vsel %vm775, %v2957, %v2959
  %v2961 = vrot.slane %v2248, 4
  %v2962 = vsel %vm775, %v2959, %v2961
  %v2963 = vrot.slane %v2249, 4
  %v2964 = vsel %vm775, %v2961, %v2963
  %v2965 = vrot.slane %v2250, 4
  %v2966 = vsel %vm775, %v2963, %v2965
  %v2967 = vrot.slane %v2251, 4
  %v2968 = vsel %vm775, %v2965, %v2967
  %v2969 = vrot.slane %v2252, 4
  %v2970 = vsel %vm775, %v2967, %v2969
  %2982 = vmatprep.subr.mxu0 0.0
  %2983 = vmatpush1.msra.mxu0 %v2946
  %2984 = vmatprep.subr.mxu0 0.0
  %2985 = vmatpush1.msra.mxu0 %v2945
  %2986 = vmatprep.subr.mxu0 0.0
  %2987 = vmatpush1.msra.mxu0 %v2944
  %2988 = vmatprep.subr.mxu0 0.0
  %2989 = vmatpush1.msra.mxu0 %v2943
  %2990 = vmatprep.subr.mxu0 0.0
  %2991 = vmatpush1.msra.mxu0 %v2942
  %2992 = vmatprep.subr.mxu0 0.0
  %2993 = vmatpush1.msra.mxu0 %v2941
  %2994 = vmatprep.subr.mxu0 0.0
  %2995 = vmatpush1.msra.mxu0 %v2940
  %2996 = vmatprep.subr.mxu0 0.0
  %2997 = vmatpush1.msra.mxu0 %v2939
  %2998 = vmatprep.subr.mxu0 0.0
  %2999 = vmatpush1.msra.mxu0 %v2938
  %3000 = vmatprep.subr.mxu0 0.0
  %3001 = vmatpush1.msra.mxu0 %v2937
  %3002 = vmatprep.subr.mxu0 0.0
  %3003 = vmatpush1.msra.mxu0 %v2936
  %3004 = vmatprep.subr.mxu0 0.0
  %3005 = vmatpush1.msra.mxu0 %v2935
  %3006 = vmatprep.subr.mxu0 0.0
  %3007 = vmatpush1.msra.mxu0 %v2934
  %3008 = vmatprep.subr.mxu0 0.0
  %3009 = vmatpush1.msra.mxu0 %v2933
  %3010 = vmatprep.subr.mxu0 0.0
  %3011 = vmatpush1.msra.mxu0 %v2932
  %3012 = vmatprep.subr.mxu0 0.0
  %3013 = vmatpush1.msra.mxu0 %v2931
  %3014 = vmatprep.subr.mxu0 0.0
  %3015 = vmatpush2.msra.mxu0 0.0
  %3016 = vmatprep.subr.mxu0 0.0
  %3017 = vmatpush2.msra.mxu0 0.0
  %3018 = vmatprep.subr.mxu0 0.0
  %3019 = vmatpush2.msra.mxu0 0.0
  %3020 = vmatprep.subr.mxu0 0.0
  %3021 = vmatpush2.msra.mxu0 0.0
  %3022 = vmatprep.subr.mxu0 0.0
  %3023 = vmatpush2.msra.mxu0 0.0
  %3024 = vmatprep.subr.mxu0 0.0
  %3025 = vmatpush2.msra.mxu0 0.0
  %3026 = vmatprep.subr.mxu0 0.0
  %3027 = vmatpush2.msra.mxu0 0.0
  %3028 = vmatprep.subr.mxu0 0.0
  %3029 = vmatpush2.msra.mxu0 0.0
  %3030 = vmatprep.subr.mxu0 0.0
  %3031 = vmatpush2.msra.mxu0 0.0
  %3032 = vmatprep.subr.mxu0 0.0
  %3033 = vmatpush2.msra.mxu0 0.0
  %3034 = vmatprep.subr.mxu0 0.0
  %3035 = vmatpush2.msra.mxu0 0.0
  %3036 = vmatprep.subr.mxu0 0.0
  %3037 = vmatpush2.msra.mxu0 0.0
  %3038 = vmatprep.subr.mxu0 0.0
  %3039 = vmatpush2.msra.mxu0 0.0
  %3040 = vmatprep.subr.mxu0 0.0
  %3041 = vmatpush2.msra.mxu0 0.0
  %3042 = vmatprep.subr.mxu0 0.0
  %3043 = vmatpush2.msra.mxu0 0.0
  %3044 = vmatprep.subr.mxu0 0.0
  %3045 = vmatpush2.msra.mxu0 0.0
  %3046 = vmatprep.mubr.f32.mxu0 0.0
  %3047 = vmatmul.mubr.f32.gmra.mxu0 %v2950
  %v3048 = vpop.f32.mrf.mxu0
  %v3049 = vadd.f32 0.0, %v3048
  %v3050 = vpop.f32.mrf.mxu0
  %3051 = vmatprep.mubr.f32.mxu0 0.0
  %3052 = vmatmul.mubr.f32.gmra.mxu0 %v2952
  %v3053 = vpop.f32.mrf.mxu0
  %v3054 = vadd.f32 0.0, %v3053
  %v3055 = vpop.f32.mrf.mxu0
  %3056 = vmatprep.mubr.f32.mxu0 0.0
  %3057 = vmatmul.mubr.f32.gmra.mxu0 %v2954
  %v3058 = vpop.f32.mrf.mxu0
  %v3059 = vadd.f32 0.0, %v3058
  %v3060 = vpop.f32.mrf.mxu0
  %3061 = vmatprep.mubr.f32.mxu0 0.0
  %3062 = vmatmul.mubr.f32.gmra.mxu0 %v2956
  %v3063 = vpop.f32.mrf.mxu0
  %v3064 = vadd.f32 0.0, %v3063
  %v3065 = vpop.f32.mrf.mxu0
  %3066 = vmatprep.mubr.f32.mxu0 0.0
  %3067 = vmatmul.mubr.f32.gmra.mxu0 %v2958
  %v3068 = vpop.f32.mrf.mxu0
  %v3069 = vadd.f32 0.0, %v3068
  %v3070 = vpop.f32.mrf.mxu0
  %3071 = vmatprep.mubr.f32.mxu0 0.0
  %3072 = vmatmul.mubr.f32.gmra.mxu0 %v2960
  %v3073 = vpop.f32.mrf.mxu0
  %v3074 = vadd.f32 0.0, %v3073
  %v3075 = vpop.f32.mrf.mxu0
  %3076 = vmatprep.mubr.f32.mxu0 0.0
  %3077 = vmatmul.mubr.f32.gmra.mxu0 %v2962
  %v3078 = vpop.f32.mrf.mxu0
  %v3079 = vadd.f32 0.0, %v3078
  %v3080 = vpop.f32.mrf.mxu0
  %3081 = vmatprep.mubr.f32.mxu0 0.0
  %3082 = vmatmul.mubr.f32.gmra.mxu0 %v2964
  %v3083 = vpop.f32.mrf.mxu0
  %v3084 = vadd.f32 0.0, %v3083
  %v3085 = vpop.f32.mrf.mxu0
  %3086 = vmatprep.mubr.f32.mxu0 0.0
  %3087 = vmatmul.mubr.f32.gmra.mxu0 %v2966
  %v3088 = vpop.f32.mrf.mxu0
  %v3089 = vadd.f32 0.0, %v3088
  %v3090 = vpop.f32.mrf.mxu0
  %3091 = vmatprep.mubr.f32.mxu0 0.0
  %3092 = vmatmul.mubr.f32.gmra.mxu0 %v2968
  %v3093 = vpop.f32.mrf.mxu0
  %v3094 = vadd.f32 0.0, %v3093
  %v3095 = vpop.f32.mrf.mxu0
  %3096 = vmatprep.mubr.f32.mxu0 0.0
  %3097 = vmatmul.mubr.f32.gmra.mxu0 %v2970
  %v3098 = vpop.f32.mrf.mxu0
  %v3099 = vadd.f32 0.0, %v3098
  %v3100 = vpop.f32.mrf.mxu0
  %3101 = vdwg.mxu0
  %v3102 = vadd.f32 %v2919, %v3049
  %v3103 = vadd.f32 %v2920, %v3054
  %v3104 = vadd.f32 %v2921, %v3059
  %v3105 = vadd.f32 %v2922, %v3064
  %v3106 = vadd.f32 %v2923, %v3069
  %v3107 = vadd.f32 %v2924, %v3074
  %v3108 = vadd.f32 %v2925, %v3079
  %v3109 = vadd.f32 %v2926, %v3084
  %v3110 = vadd.f32 %v2927, %v3089
  %v3111 = vadd.f32 %v2928, %v3094
  %v3112 = vadd.f32 %v2929, %v3099
  %s3113 = scalar_lea.vmem %s1, 2176
  %v3114 = vld [vmem:[%s3113] sm:$0xff]
  %v3115 = vld [vmem:[%s3113 + $0x8] sm:$0xff]
  %v3116 = vld [vmem:[%s3113 + $0x10] sm:$0xff]
  %v3117 = vld [vmem:[%s3113 + $0x18] sm:$0xff]
  %v3118 = vld [vmem:[%s3113 + $0x20] sm:$0xff]
  %v3119 = vld [vmem:[%s3113 + $0x28] sm:$0xff]
  %v3120 = vld [vmem:[%s3113 + $0x30] sm:$0xff]
  %v3121 = vld [vmem:[%s3113 + $0x38] sm:$0xff]
  %v3122 = vld [vmem:[%s3113 + $0x40] sm:$0xff]
  %v3123 = vld [vmem:[%s3113 + $0x48] sm:$0xff]
  %v3124 = vld [vmem:[%s3113 + $0x50] sm:$0xff]
  %v3125 = vld [vmem:[%s3113 + $0x58] sm:$0xff]
  %v3126 = vld [vmem:[%s3113 + $0x60] sm:$0xff]
  %v3127 = vld [vmem:[%s3113 + $0x68] sm:$0xff]
  %v3128 = vld [vmem:[%s3113 + $0x70] sm:$0xff]
  %v3129 = vld [vmem:[%s3113 + $0x78] sm:$0xff]
  %v3130 = vrot.slane %v2241, 5
  %v3131 = vrot.slane %v2242, 5
  %v3132 = vsel %vm967, %v3130, %v3131
  %v3133 = vrot.slane %v2243, 5
  %v3134 = vsel %vm967, %v3131, %v3133
  %v3135 = vrot.slane %v2244, 5
  %v3136 = vsel %vm967, %v3133, %v3135
  %v3137 = vrot.slane %v2245, 5
  %v3138 = vsel %vm967, %v3135, %v3137
  %v3139 = vrot.slane %v2246, 5
  %v3140 = vsel %vm967, %v3137, %v3139
  %v3141 = vrot.slane %v2247, 5
  %v3142 = vsel %vm967, %v3139, %v3141
  %v3143 = vrot.slane %v2248, 5
  %v3144 = vsel %vm967, %v3141, %v3143
  %v3145 = vrot.slane %v2249, 5
  %v3146 = vsel %vm967, %v3143, %v3145
  %v3147 = vrot.slane %v2250, 5
  %v3148 = vsel %vm967, %v3145, %v3147
  %v3149 = vrot.slane %v2251, 5
  %v3150 = vsel %vm967, %v3147, %v3149
  %v3151 = vrot.slane %v2252, 5
  %v3152 = vsel %vm967, %v3149, %v3151
  %3164 = vmatprep.subr.mxu0 0.0
  %3165 = vmatpush1.msra.mxu0 %v3129
  %3166 = vmatprep.subr.mxu0 0.0
  %3167 = vmatpush1.msra.mxu0 %v3128
  %3168 = vmatprep.subr.mxu0 0.0
  %3169 = vmatpush1.msra.mxu0 %v3127
  %3170 = vmatprep.subr.mxu0 0.0
  %3171 = vmatpush1.msra.mxu0 %v3126
  %3172 = vmatprep.subr.mxu0 0.0
  %3173 = vmatpush1.msra.mxu0 %v3125
  %3174 = vmatprep.subr.mxu0 0.0
  %3175 = vmatpush1.msra.mxu0 %v3124
  %3176 = vmatprep.subr.mxu0 0.0
  %3177 = vmatpush1.msra.mxu0 %v3123
  %3178 = vmatprep.subr.mxu0 0.0
  %3179 = vmatpush1.msra.mxu0 %v3122
  %3180 = vmatprep.subr.mxu0 0.0
  %3181 = vmatpush1.msra.mxu0 %v3121
  %3182 = vmatprep.subr.mxu0 0.0
  %3183 = vmatpush1.msra.mxu0 %v3120
  %3184 = vmatprep.subr.mxu0 0.0
  %3185 = vmatpush1.msra.mxu0 %v3119
  %3186 = vmatprep.subr.mxu0 0.0
  %3187 = vmatpush1.msra.mxu0 %v3118
  %3188 = vmatprep.subr.mxu0 0.0
  %3189 = vmatpush1.msra.mxu0 %v3117
  %3190 = vmatprep.subr.mxu0 0.0
  %3191 = vmatpush1.msra.mxu0 %v3116
  %3192 = vmatprep.subr.mxu0 0.0
  %3193 = vmatpush1.msra.mxu0 %v3115
  %3194 = vmatprep.subr.mxu0 0.0
  %3195 = vmatpush1.msra.mxu0 %v3114
  %3196 = vmatprep.subr.mxu0 0.0
  %3197 = vmatpush2.msra.mxu0 0.0
  %3198 = vmatprep.subr.mxu0 0.0
  %3199 = vmatpush2.msra.mxu0 0.0
  %3200 = vmatprep.subr.mxu0 0.0
  %3201 = vmatpush2.msra.mxu0 0.0
  %3202 = vmatprep.subr.mxu0 0.0
  %3203 = vmatpush2.msra.mxu0 0.0
  %3204 = vmatprep.subr.mxu0 0.0
  %3205 = vmatpush2.msra.mxu0 0.0
  %3206 = vmatprep.subr.mxu0 0.0
  %3207 = vmatpush2.msra.mxu0 0.0
  %3208 = vmatprep.subr.mxu0 0.0
  %3209 = vmatpush2.msra.mxu0 0.0
  %3210 = vmatprep.subr.mxu0 0.0
  %3211 = vmatpush2.msra.mxu0 0.0
  %3212 = vmatprep.subr.mxu0 0.0
  %3213 = vmatpush2.msra.mxu0 0.0
  %3214 = vmatprep.subr.mxu0 0.0
  %3215 = vmatpush2.msra.mxu0 0.0
  %3216 = vmatprep.subr.mxu0 0.0
  %3217 = vmatpush2.msra.mxu0 0.0
  %3218 = vmatprep.subr.mxu0 0.0
  %3219 = vmatpush2.msra.mxu0 0.0
  %3220 = vmatprep.subr.mxu0 0.0
  %3221 = vmatpush2.msra.mxu0 0.0
  %3222 = vmatprep.subr.mxu0 0.0
  %3223 = vmatpush2.msra.mxu0 0.0
  %3224 = vmatprep.subr.mxu0 0.0
  %3225 = vmatpush2.msra.mxu0 0.0
  %3226 = vmatprep.subr.mxu0 0.0
  %3227 = vmatpush2.msra.mxu0 0.0
  %3228 = vmatprep.mubr.f32.mxu0 0.0
  %3229 = vmatmul.mubr.f32.gmra.mxu0 %v3132
  %v3230 = vpop.f32.mrf.mxu0
  %v3231 = vadd.f32 0.0, %v3230
  %v3232 = vpop.f32.mrf.mxu0
  %3233 = vmatprep.mubr.f32.mxu0 0.0
  %3234 = vmatmul.mubr.f32.gmra.mxu0 %v3134
  %v3235 = vpop.f32.mrf.mxu0
  %v3236 = vadd.f32 0.0, %v3235
  %v3237 = vpop.f32.mrf.mxu0
  %3238 = vmatprep.mubr.f32.mxu0 0.0
  %3239 = vmatmul.mubr.f32.gmra.mxu0 %v3136
  %v3240 = vpop.f32.mrf.mxu0
  %v3241 = vadd.f32 0.0, %v3240
  %v3242 = vpop.f32.mrf.mxu0
  %3243 = vmatprep.mubr.f32.mxu0 0.0
  %3244 = vmatmul.mubr.f32.gmra.mxu0 %v3138
  %v3245 = vpop.f32.mrf.mxu0
  %v3246 = vadd.f32 0.0, %v3245
  %v3247 = vpop.f32.mrf.mxu0
  %3248 = vmatprep.mubr.f32.mxu0 0.0
  %3249 = vmatmul.mubr.f32.gmra.mxu0 %v3140
  %v3250 = vpop.f32.mrf.mxu0
  %v3251 = vadd.f32 0.0, %v3250
  %v3252 = vpop.f32.mrf.mxu0
  %3253 = vmatprep.mubr.f32.mxu0 0.0
  %3254 = vmatmul.mubr.f32.gmra.mxu0 %v3142
  %v3255 = vpop.f32.mrf.mxu0
  %v3256 = vadd.f32 0.0, %v3255
  %v3257 = vpop.f32.mrf.mxu0
  %3258 = vmatprep.mubr.f32.mxu0 0.0
  %3259 = vmatmul.mubr.f32.gmra.mxu0 %v3144
  %v3260 = vpop.f32.mrf.mxu0
  %v3261 = vadd.f32 0.0, %v3260
  %v3262 = vpop.f32.mrf.mxu0
  %3263 = vmatprep.mubr.f32.mxu0 0.0
  %3264 = vmatmul.mubr.f32.gmra.mxu0 %v3146
  %v3265 = vpop.f32.mrf.mxu0
  %v3266 = vadd.f32 0.0, %v3265
  %v3267 = vpop.f32.mrf.mxu0
  %3268 = vmatprep.mubr.f32.mxu0 0.0
  %3269 = vmatmul.mubr.f32.gmra.mxu0 %v3148
  %v3270 = vpop.f32.mrf.mxu0
  %v3271 = vadd.f32 0.0, %v3270
  %v3272 = vpop.f32.mrf.mxu0
  %3273 = vmatprep.mubr.f32.mxu0 0.0
  %3274 = vmatmul.mubr.f32.gmra.mxu0 %v3150
  %v3275 = vpop.f32.mrf.mxu0
  %v3276 = vadd.f32 0.0, %v3275
  %v3277 = vpop.f32.mrf.mxu0
  %3278 = vmatprep.mubr.f32.mxu0 0.0
  %3279 = vmatmul.mubr.f32.gmra.mxu0 %v3152
  %v3280 = vpop.f32.mrf.mxu0
  %v3281 = vadd.f32 0.0, %v3280
  %v3282 = vpop.f32.mrf.mxu0
  %3283 = vdwg.mxu0
  %v3284 = vadd.f32 %v3102, %v3231
  %v3285 = vadd.f32 %v3103, %v3236
  %v3286 = vadd.f32 %v3104, %v3241
  %v3287 = vadd.f32 %v3105, %v3246
  %v3288 = vadd.f32 %v3106, %v3251
  %v3289 = vadd.f32 %v3107, %v3256
  %v3290 = vadd.f32 %v3108, %v3261
  %v3291 = vadd.f32 %v3109, %v3266
  %v3292 = vadd.f32 %v3110, %v3271
  %v3293 = vadd.f32 %v3111, %v3276
  %v3294 = vadd.f32 %v3112, %v3281
  %v3295 = vmax.f32 %v3284, 0.0
  %v3296 = vmax.f32 %v3285, 0.0
  %v3297 = vmax.f32 %v3286, 0.0
  %v3298 = vmax.f32 %v3287, 0.0
  %v3299 = vmax.f32 %v3288, 0.0
  %v3300 = vmax.f32 %v3289, 0.0
  %v3301 = vmax.f32 %v3290, 0.0
  %v3302 = vmax.f32 %v3291, 0.0
  %v3303 = vmax.f32 %v3292, 0.0
  %v3304 = vmax.f32 %v3293, 0.0
  %v3305 = vmax.f32 %v3294, 0.0
  %s3306 = scalar_lea.vmem %s1, 2304
  %v3307 = vld [vmem:[%s3306] sm:$0xff]
  %v3308 = vld [vmem:[%s3306 + $0x8] sm:$0xff]
  %v3309 = vld [vmem:[%s3306 + $0x10] sm:$0xff]
  %v3310 = vld [vmem:[%s3306 + $0x18] sm:$0xff]
  %v3311 = vld [vmem:[%s3306 + $0x20] sm:$0xff]
  %v3312 = vld [vmem:[%s3306 + $0x28] sm:$0xff]
  %v3313 = vld [vmem:[%s3306 + $0x30] sm:$0xff]
  %v3314 = vld [vmem:[%s3306 + $0x38] sm:$0xff]
  %v3315 = vld [vmem:[%s3306 + $0x40] sm:$0xff]
  %v3316 = vld [vmem:[%s3306 + $0x48] sm:$0xff]
  %v3317 = vld [vmem:[%s3306 + $0x50] sm:$0xff]
  %v3318 = vld [vmem:[%s3306 + $0x58] sm:$0xff]
  %v3319 = vld [vmem:[%s3306 + $0x60] sm:$0xff]
  %v3320 = vld [vmem:[%s3306 + $0x68] sm:$0xff]
  %v3321 = vld [vmem:[%s3306 + $0x70] sm:$0xff]
  %v3322 = vld [vmem:[%s3306 + $0x78] sm:$0xff]
  %s3323 = scalar_lea.vmem %s1, 2432
  %v3324 = vld [vmem:[%s3323] sm:$0xff]
  %v3325 = vld [vmem:[%s3323 + $0x8] sm:$0xff]
  %v3326 = vld [vmem:[%s3323 + $0x10] sm:$0xff]
  %v3327 = vld [vmem:[%s3323 + $0x18] sm:$0xff]
  %v3328 = vld [vmem:[%s3323 + $0x20] sm:$0xff]
  %v3329 = vld [vmem:[%s3323 + $0x28] sm:$0xff]
  %v3330 = vld [vmem:[%s3323 + $0x30] sm:$0xff]
  %v3331 = vld [vmem:[%s3323 + $0x38] sm:$0xff]
  %v3332 = vld [vmem:[%s3323 + $0x40] sm:$0xff]
  %v3333 = vld [vmem:[%s3323 + $0x48] sm:$0xff]
  %v3334 = vld [vmem:[%s3323 + $0x50] sm:$0xff]
  %v3335 = vld [vmem:[%s3323 + $0x58] sm:$0xff]
  %v3336 = vld [vmem:[%s3323 + $0x60] sm:$0xff]
  %v3337 = vld [vmem:[%s3323 + $0x68] sm:$0xff]
  %v3338 = vld [vmem:[%s3323 + $0x70] sm:$0xff]
  %v3339 = vld [vmem:[%s3323 + $0x78] sm:$0xff]
  %v3351 = vrot.slane %v3295, 1
  %v3352 = vrot.slane %v3296, 1
  %v3353 = vsel %vm87, %v3351, %v3352
  %v3354 = vrot.slane %v3297, 1
  %v3355 = vsel %vm87, %v3352, %v3354
  %v3356 = vrot.slane %v3298, 1
  %v3357 = vsel %vm87, %v3354, %v3356
  %v3358 = vrot.slane %v3299, 1
  %v3359 = vsel %vm87, %v3356, %v3358
  %v3360 = vrot.slane %v3300, 1
  %v3361 = vsel %vm87, %v3358, %v3360
  %v3362 = vrot.slane %v3301, 1
  %v3363 = vsel %vm87, %v3360, %v3362
  %v3364 = vrot.slane %v3302, 1
  %v3365 = vsel %vm87, %v3362, %v3364
  %v3366 = vrot.slane %v3303, 1
  %v3367 = vsel %vm87, %v3364, %v3366
  %v3368 = vrot.slane %v3304, 1
  %v3369 = vsel %vm87, %v3366, %v3368
  %v3370 = vrot.slane %v3305, 1
  %v3371 = vsel %vm87, %v3368, %v3370
  %3382 = vmatprep.subr.mxu0 0.0
  %3383 = vmatpush1.msra.mxu0 %v3339
  %3384 = vmatprep.subr.mxu0 0.0
  %3385 = vmatpush1.msra.mxu0 %v3338
  %3386 = vmatprep.subr.mxu0 0.0
  %3387 = vmatpush1.msra.mxu0 %v3337
  %3388 = vmatprep.subr.mxu0 0.0
  %3389 = vmatpush1.msra.mxu0 %v3336
  %3390 = vmatprep.subr.mxu0 0.0
  %3391 = vmatpush1.msra.mxu0 %v3335
  %3392 = vmatprep.subr.mxu0 0.0
  %3393 = vmatpush1.msra.mxu0 %v3334
  %3394 = vmatprep.subr.mxu0 0.0
  %3395 = vmatpush1.msra.mxu0 %v3333
  %3396 = vmatprep.subr.mxu0 0.0
  %3397 = vmatpush1.msra.mxu0 %v3332
  %3398 = vmatprep.subr.mxu0 0.0
  %3399 = vmatpush1.msra.mxu0 %v3331
  %3400 = vmatprep.subr.mxu0 0.0
  %3401 = vmatpush1.msra.mxu0 %v3330
  %3402 = vmatprep.subr.mxu0 0.0
  %3403 = vmatpush1.msra.mxu0 %v3329
  %3404 = vmatprep.subr.mxu0 0.0
  %3405 = vmatpush1.msra.mxu0 %v3328
  %3406 = vmatprep.subr.mxu0 0.0
  %3407 = vmatpush1.msra.mxu0 %v3327
  %3408 = vmatprep.subr.mxu0 0.0
  %3409 = vmatpush1.msra.mxu0 %v3326
  %3410 = vmatprep.subr.mxu0 0.0
  %3411 = vmatpush1.msra.mxu0 %v3325
  %3412 = vmatprep.subr.mxu0 0.0
  %3413 = vmatpush1.msra.mxu0 %v3324
  %3414 = vmatprep.subr.mxu0 0.0
  %3415 = vmatpush2.msra.mxu0 0.0
  %3416 = vmatprep.subr.mxu0 0.0
  %3417 = vmatpush2.msra.mxu0 0.0
  %3418 = vmatprep.subr.mxu0 0.0
  %3419 = vmatpush2.msra.mxu0 0.0
  %3420 = vmatprep.subr.mxu0 0.0
  %3421 = vmatpush2.msra.mxu0 0.0
  %3422 = vmatprep.subr.mxu0 0.0
  %3423 = vmatpush2.msra.mxu0 0.0
  %3424 = vmatprep.subr.mxu0 0.0
  %3425 = vmatpush2.msra.mxu0 0.0
  %3426 = vmatprep.subr.mxu0 0.0
  %3427 = vmatpush2.msra.mxu0 0.0
  %3428 = vmatprep.subr.mxu0 0.0
  %3429 = vmatpush2.msra.mxu0 0.0
  %3430 = vmatprep.subr.mxu0 0.0
  %3431 = vmatpush2.msra.mxu0 0.0
  %3432 = vmatprep.subr.mxu0 0.0
  %3433 = vmatpush2.msra.mxu0 0.0
  %3434 = vmatprep.subr.mxu0 0.0
  %3435 = vmatpush2.msra.mxu0 0.0
  %3436 = vmatprep.subr.mxu0 0.0
  %3437 = vmatpush2.msra.mxu0 0.0
  %3438 = vmatprep.subr.mxu0 0.0
  %3439 = vmatpush2.msra.mxu0 0.0
  %3440 = vmatprep.subr.mxu0 0.0
  %3441 = vmatpush2.msra.mxu0 0.0
  %3442 = vmatprep.subr.mxu0 0.0
  %3443 = vmatpush2.msra.mxu0 0.0
  %3444 = vmatprep.subr.mxu0 0.0
  %3445 = vmatpush2.msra.mxu0 0.0
  %3446 = vmatprep.mubr.f32.mxu0 0.0
  %3447 = vmatmul.mubr.f32.gmra.mxu0 %v3353
  %v3448 = vpop.f32.mrf.mxu0
  %v3449 = vadd.f32 0.0, %v3448
  %v3450 = vpop.f32.mrf.mxu0
  %3451 = vmatprep.mubr.f32.mxu0 0.0
  %3452 = vmatmul.mubr.f32.gmra.mxu0 %v3355
  %v3453 = vpop.f32.mrf.mxu0
  %v3454 = vadd.f32 0.0, %v3453
  %v3455 = vpop.f32.mrf.mxu0
  %3456 = vmatprep.mubr.f32.mxu0 0.0
  %3457 = vmatmul.mubr.f32.gmra.mxu0 %v3357
  %v3458 = vpop.f32.mrf.mxu0
  %v3459 = vadd.f32 0.0, %v3458
  %v3460 = vpop.f32.mrf.mxu0
  %3461 = vmatprep.mubr.f32.mxu0 0.0
  %3462 = vmatmul.mubr.f32.gmra.mxu0 %v3359
  %v3463 = vpop.f32.mrf.mxu0
  %v3464 = vadd.f32 0.0, %v3463
  %v3465 = vpop.f32.mrf.mxu0
  %3466 = vmatprep.mubr.f32.mxu0 0.0
  %3467 = vmatmul.mubr.f32.gmra.mxu0 %v3361
  %v3468 = vpop.f32.mrf.mxu0
  %v3469 = vadd.f32 0.0, %v3468
  %v3470 = vpop.f32.mrf.mxu0
  %3471 = vmatprep.mubr.f32.mxu0 0.0
  %3472 = vmatmul.mubr.f32.gmra.mxu0 %v3363
  %v3473 = vpop.f32.mrf.mxu0
  %v3474 = vadd.f32 0.0, %v3473
  %v3475 = vpop.f32.mrf.mxu0
  %3476 = vmatprep.mubr.f32.mxu0 0.0
  %3477 = vmatmul.mubr.f32.gmra.mxu0 %v3365
  %v3478 = vpop.f32.mrf.mxu0
  %v3479 = vadd.f32 0.0, %v3478
  %v3480 = vpop.f32.mrf.mxu0
  %3481 = vmatprep.mubr.f32.mxu0 0.0
  %3482 = vmatmul.mubr.f32.gmra.mxu0 %v3367
  %v3483 = vpop.f32.mrf.mxu0
  %v3484 = vadd.f32 0.0, %v3483
  %v3485 = vpop.f32.mrf.mxu0
  %3486 = vmatprep.mubr.f32.mxu0 0.0
  %3487 = vmatmul.mubr.f32.gmra.mxu0 %v3369
  %v3488 = vpop.f32.mrf.mxu0
  %v3489 = vadd.f32 0.0, %v3488
  %v3490 = vpop.f32.mrf.mxu0
  %3491 = vmatprep.mubr.f32.mxu0 0.0
  %3492 = vmatmul.mubr.f32.gmra.mxu0 %v3371
  %v3493 = vpop.f32.mrf.mxu0
  %v3494 = vadd.f32 0.0, %v3493
  %v3495 = vpop.f32.mrf.mxu0
  %3496 = vdwg.mxu0
  %3497 = vmatprep.subr.mxu0 0.0
  %3498 = vmatpush1.msra.mxu0 %v3322
  %3499 = vmatprep.subr.mxu0 0.0
  %3500 = vmatpush1.msra.mxu0 %v3321
  %3501 = vmatprep.subr.mxu0 0.0
  %3502 = vmatpush1.msra.mxu0 %v3320
  %3503 = vmatprep.subr.mxu0 0.0
  %3504 = vmatpush1.msra.mxu0 %v3319
  %3505 = vmatprep.subr.mxu0 0.0
  %3506 = vmatpush1.msra.mxu0 %v3318
  %3507 = vmatprep.subr.mxu0 0.0
  %3508 = vmatpush1.msra.mxu0 %v3317
  %3509 = vmatprep.subr.mxu0 0.0
  %3510 = vmatpush1.msra.mxu0 %v3316
  %3511 = vmatprep.subr.mxu0 0.0
  %3512 = vmatpush1.msra.mxu0 %v3315
  %3513 = vmatprep.subr.mxu0 0.0
  %3514 = vmatpush1.msra.mxu0 %v3314
  %3515 = vmatprep.subr.mxu0 0.0
  %3516 = vmatpush1.msra.mxu0 %v3313
  %3517 = vmatprep.subr.mxu0 0.0
  %3518 = vmatpush1.msra.mxu0 %v3312
  %3519 = vmatprep.subr.mxu0 0.0
  %3520 = vmatpush1.msra.mxu0 %v3311
  %3521 = vmatprep.subr.mxu0 0.0
  %3522 = vmatpush1.msra.mxu0 %v3310
  %3523 = vmatprep.subr.mxu0 0.0
  %3524 = vmatpush1.msra.mxu0 %v3309
  %3525 = vmatprep.subr.mxu0 0.0
  %3526 = vmatpush1.msra.mxu0 %v3308
  %3527 = vmatprep.subr.mxu0 0.0
  %3528 = vmatpush1.msra.mxu0 %v3307
  %3529 = vmatprep.subr.mxu0 0.0
  %3530 = vmatpush2.msra.mxu0 0.0
  %3531 = vmatprep.subr.mxu0 0.0
  %3532 = vmatpush2.msra.mxu0 0.0
  %3533 = vmatprep.subr.mxu0 0.0
  %3534 = vmatpush2.msra.mxu0 0.0
  %3535 = vmatprep.subr.mxu0 0.0
  %3536 = vmatpush2.msra.mxu0 0.0
  %3537 = vmatprep.subr.mxu0 0.0
  %3538 = vmatpush2.msra.mxu0 0.0
  %3539 = vmatprep.subr.mxu0 0.0
  %3540 = vmatpush2.msra.mxu0 0.0
  %3541 = vmatprep.subr.mxu0 0.0
  %3542 = vmatpush2.msra.mxu0 0.0
  %3543 = vmatprep.subr.mxu0 0.0
  %3544 = vmatpush2.msra.mxu0 0.0
  %3545 = vmatprep.subr.mxu0 0.0
  %3546 = vmatpush2.msra.mxu0 0.0
  %3547 = vmatprep.subr.mxu0 0.0
  %3548 = vmatpush2.msra.mxu0 0.0
  %3549 = vmatprep.subr.mxu0 0.0
  %3550 = vmatpush2.msra.mxu0 0.0
  %3551 = vmatprep.subr.mxu0 0.0
  %3552 = vmatpush2.msra.mxu0 0.0
  %3553 = vmatprep.subr.mxu0 0.0
  %3554 = vmatpush2.msra.mxu0 0.0
  %3555 = vmatprep.subr.mxu0 0.0
  %3556 = vmatpush2.msra.mxu0 0.0
  %3557 = vmatprep.subr.mxu0 0.0
  %3558 = vmatpush2.msra.mxu0 0.0
  %3559 = vmatprep.subr.mxu0 0.0
  %3560 = vmatpush2.msra.mxu0 0.0
  %3561 = vmatprep.mubr.f32.mxu0 0.0
  %3562 = vmatmul.mubr.f32.gmra.mxu0 %v3295
  %v3563 = vpop.f32.mrf.mxu0
  %v3564 = vadd.f32 %v3449, %v3563
  %v3565 = vpop.f32.mrf.mxu0
  %3566 = vmatprep.mubr.f32.mxu0 0.0
  %3567 = vmatmul.mubr.f32.gmra.mxu0 %v3296
  %v3568 = vpop.f32.mrf.mxu0
  %v3569 = vadd.f32 %v3454, %v3568
  %v3570 = vpop.f32.mrf.mxu0
  %3571 = vmatprep.mubr.f32.mxu0 0.0
  %3572 = vmatmul.mubr.f32.gmra.mxu0 %v3297
  %v3573 = vpop.f32.mrf.mxu0
  %v3574 = vadd.f32 %v3459, %v3573
  %v3575 = vpop.f32.mrf.mxu0
  %3576 = vmatprep.mubr.f32.mxu0 0.0
  %3577 = vmatmul.mubr.f32.gmra.mxu0 %v3298
  %v3578 = vpop.f32.mrf.mxu0
  %v3579 = vadd.f32 %v3464, %v3578
  %v3580 = vpop.f32.mrf.mxu0
  %3581 = vmatprep.mubr.f32.mxu0 0.0
  %3582 = vmatmul.mubr.f32.gmra.mxu0 %v3299
  %v3583 = vpop.f32.mrf.mxu0
  %v3584 = vadd.f32 %v3469, %v3583
  %v3585 = vpop.f32.mrf.mxu0
  %3586 = vmatprep.mubr.f32.mxu0 0.0
  %3587 = vmatmul.mubr.f32.gmra.mxu0 %v3300
  %v3588 = vpop.f32.mrf.mxu0
  %v3589 = vadd.f32 %v3474, %v3588
  %v3590 = vpop.f32.mrf.mxu0
  %3591 = vmatprep.mubr.f32.mxu0 0.0
  %3592 = vmatmul.mubr.f32.gmra.mxu0 %v3301
  %v3593 = vpop.f32.mrf.mxu0
  %v3594 = vadd.f32 %v3479, %v3593
  %v3595 = vpop.f32.mrf.mxu0
  %3596 = vmatprep.mubr.f32.mxu0 0.0
  %3597 = vmatmul.mubr.f32.gmra.mxu0 %v3302
  %v3598 = vpop.f32.mrf.mxu0
  %v3599 = vadd.f32 %v3484, %v3598
  %v3600 = vpop.f32.mrf.mxu0
  %3601 = vmatprep.mubr.f32.mxu0 0.0
  %3602 = vmatmul.mubr.f32.gmra.mxu0 %v3303
  %v3603 = vpop.f32.mrf.mxu0
  %v3604 = vadd.f32 %v3489, %v3603
  %v3605 = vpop.f32.mrf.mxu0
  %3606 = vmatprep.mubr.f32.mxu0 0.0
  %3607 = vmatmul.mubr.f32.gmra.mxu0 %v3304
  %v3608 = vpop.f32.mrf.mxu0
  %v3609 = vadd.f32 %v3494, %v3608
  %v3610 = vpop.f32.mrf.mxu0
  %3611 = vdwg.mxu0
  %s3612 = scalar_lea.vmem %s1, 2560
  %v3613 = vld [vmem:[%s3612] sm:$0xff]
  %v3614 = vld [vmem:[%s3612 + $0x8] sm:$0xff]
  %v3615 = vld [vmem:[%s3612 + $0x10] sm:$0xff]
  %v3616 = vld [vmem:[%s3612 + $0x18] sm:$0xff]
  %v3617 = vld [vmem:[%s3612 + $0x20] sm:$0xff]
  %v3618 = vld [vmem:[%s3612 + $0x28] sm:$0xff]
  %v3619 = vld [vmem:[%s3612 + $0x30] sm:$0xff]
  %v3620 = vld [vmem:[%s3612 + $0x38] sm:$0xff]
  %v3621 = vld [vmem:[%s3612 + $0x40] sm:$0xff]
  %v3622 = vld [vmem:[%s3612 + $0x48] sm:$0xff]
  %v3623 = vld [vmem:[%s3612 + $0x50] sm:$0xff]
  %v3624 = vld [vmem:[%s3612 + $0x58] sm:$0xff]
  %v3625 = vld [vmem:[%s3612 + $0x60] sm:$0xff]
  %v3626 = vld [vmem:[%s3612 + $0x68] sm:$0xff]
  %v3627 = vld [vmem:[%s3612 + $0x70] sm:$0xff]
  %v3628 = vld [vmem:[%s3612 + $0x78] sm:$0xff]
  %v3629 = vrot.slane %v3295, 2
  %v3630 = vrot.slane %v3296, 2
  %v3631 = vsel %vm391, %v3629, %v3630
  %v3632 = vrot.slane %v3297, 2
  %v3633 = vsel %vm391, %v3630, %v3632
  %v3634 = vrot.slane %v3298, 2
  %v3635 = vsel %vm391, %v3632, %v3634
  %v3636 = vrot.slane %v3299, 2
  %v3637 = vsel %vm391, %v3634, %v3636
  %v3638 = vrot.slane %v3300, 2
  %v3639 = vsel %vm391, %v3636, %v3638
  %v3640 = vrot.slane %v3301, 2
  %v3641 = vsel %vm391, %v3638, %v3640
  %v3642 = vrot.slane %v3302, 2
  %v3643 = vsel %vm391, %v3640, %v3642
  %v3644 = vrot.slane %v3303, 2
  %v3645 = vsel %vm391, %v3642, %v3644
  %v3646 = vrot.slane %v3304, 2
  %v3647 = vsel %vm391, %v3644, %v3646
  %v3648 = vrot.slane %v3305, 2
  %v3649 = vsel %vm391, %v3646, %v3648
  %3660 = vmatprep.subr.mxu0 0.0
  %3661 = vmatpush1.msra.mxu0 %v3628
  %3662 = vmatprep.subr.mxu0 0.0
  %3663 = vmatpush1.msra.mxu0 %v3627
  %3664 = vmatprep.subr.mxu0 0.0
  %3665 = vmatpush1.msra.mxu0 %v3626
  %3666 = vmatprep.subr.mxu0 0.0
  %3667 = vmatpush1.msra.mxu0 %v3625
  %3668 = vmatprep.subr.mxu0 0.0
  %3669 = vmatpush1.msra.mxu0 %v3624
  %3670 = vmatprep.subr.mxu0 0.0
  %3671 = vmatpush1.msra.mxu0 %v3623
  %3672 = vmatprep.subr.mxu0 0.0
  %3673 = vmatpush1.msra.mxu0 %v3622
  %3674 = vmatprep.subr.mxu0 0.0
  %3675 = vmatpush1.msra.mxu0 %v3621
  %3676 = vmatprep.subr.mxu0 0.0
  %3677 = vmatpush1.msra.mxu0 %v3620
  %3678 = vmatprep.subr.mxu0 0.0
  %3679 = vmatpush1.msra.mxu0 %v3619
  %3680 = vmatprep.subr.mxu0 0.0
  %3681 = vmatpush1.msra.mxu0 %v3618
  %3682 = vmatprep.subr.mxu0 0.0
  %3683 = vmatpush1.msra.mxu0 %v3617
  %3684 = vmatprep.subr.mxu0 0.0
  %3685 = vmatpush1.msra.mxu0 %v3616
  %3686 = vmatprep.subr.mxu0 0.0
  %3687 = vmatpush1.msra.mxu0 %v3615
  %3688 = vmatprep.subr.mxu0 0.0
  %3689 = vmatpush1.msra.mxu0 %v3614
  %3690 = vmatprep.subr.mxu0 0.0
  %3691 = vmatpush1.msra.mxu0 %v3613
  %3692 = vmatprep.subr.mxu0 0.0
  %3693 = vmatpush2.msra.mxu0 0.0
  %3694 = vmatprep.subr.mxu0 0.0
  %3695 = vmatpush2.msra.mxu0 0.0
  %3696 = vmatprep.subr.mxu0 0.0
  %3697 = vmatpush2.msra.mxu0 0.0
  %3698 = vmatprep.subr.mxu0 0.0
  %3699 = vmatpush2.msra.mxu0 0.0
  %3700 = vmatprep.subr.mxu0 0.0
  %3701 = vmatpush2.msra.mxu0 0.0
  %3702 = vmatprep.subr.mxu0 0.0
  %3703 = vmatpush2.msra.mxu0 0.0
  %3704 = vmatprep.subr.mxu0 0.0
  %3705 = vmatpush2.msra.mxu0 0.0
  %3706 = vmatprep.subr.mxu0 0.0
  %3707 = vmatpush2.msra.mxu0 0.0
  %3708 = vmatprep.subr.mxu0 0.0
  %3709 = vmatpush2.msra.mxu0 0.0
  %3710 = vmatprep.subr.mxu0 0.0
  %3711 = vmatpush2.msra.mxu0 0.0
  %3712 = vmatprep.subr.mxu0 0.0
  %3713 = vmatpush2.msra.mxu0 0.0
  %3714 = vmatprep.subr.mxu0 0.0
  %3715 = vmatpush2.msra.mxu0 0.0
  %3716 = vmatprep.subr.mxu0 0.0
  %3717 = vmatpush2.msra.mxu0 0.0
  %3718 = vmatprep.subr.mxu0 0.0
  %3719 = vmatpush2.msra.mxu0 0.0
  %3720 = vmatprep.subr.mxu0 0.0
  %3721 = vmatpush2.msra.mxu0 0.0
  %3722 = vmatprep.subr.mxu0 0.0
  %3723 = vmatpush2.msra.mxu0 0.0
  %3724 = vmatprep.mubr.f32.mxu0 0.0
  %3725 = vmatmul.mubr.f32.gmra.mxu0 %v3631
  %v3726 = vpop.f32.mrf.mxu0
  %v3727 = vadd.f32 0.0, %v3726
  %v3728 = vpop.f32.mrf.mxu0
  %3729 = vmatprep.mubr.f32.mxu0 0.0
  %3730 = vmatmul.mubr.f32.gmra.mxu0 %v3633
  %v3731 = vpop.f32.mrf.mxu0
  %v3732 = vadd.f32 0.0, %v3731
  %v3733 = vpop.f32.mrf.mxu0
  %3734 = vmatprep.mubr.f32.mxu0 0.0
  %3735 = vmatmul.mubr.f32.gmra.mxu0 %v3635
  %v3736 = vpop.f32.mrf.mxu0
  %v3737 = vadd.f32 0.0, %v3736
  %v3738 = vpop.f32.mrf.mxu0
  %3739 = vmatprep.mubr.f32.mxu0 0.0
  %3740 = vmatmul.mubr.f32.gmra.mxu0 %v3637
  %v3741 = vpop.f32.mrf.mxu0
  %v3742 = vadd.f32 0.0, %v3741
  %v3743 = vpop.f32.mrf.mxu0
  %3744 = vmatprep.mubr.f32.mxu0 0.0
  %3745 = vmatmul.mubr.f32.gmra.mxu0 %v3639
  %v3746 = vpop.f32.mrf.mxu0
  %v3747 = vadd.f32 0.0, %v3746
  %v3748 = vpop.f32.mrf.mxu0
  %3749 = vmatprep.mubr.f32.mxu0 0.0
  %3750 = vmatmul.mubr.f32.gmra.mxu0 %v3641
  %v3751 = vpop.f32.mrf.mxu0
  %v3752 = vadd.f32 0.0, %v3751
  %v3753 = vpop.f32.mrf.mxu0
  %3754 = vmatprep.mubr.f32.mxu0 0.0
  %3755 = vmatmul.mubr.f32.gmra.mxu0 %v3643
  %v3756 = vpop.f32.mrf.mxu0
  %v3757 = vadd.f32 0.0, %v3756
  %v3758 = vpop.f32.mrf.mxu0
  %3759 = vmatprep.mubr.f32.mxu0 0.0
  %3760 = vmatmul.mubr.f32.gmra.mxu0 %v3645
  %v3761 = vpop.f32.mrf.mxu0
  %v3762 = vadd.f32 0.0, %v3761
  %v3763 = vpop.f32.mrf.mxu0
  %3764 = vmatprep.mubr.f32.mxu0 0.0
  %3765 = vmatmul.mubr.f32.gmra.mxu0 %v3647
  %v3766 = vpop.f32.mrf.mxu0
  %v3767 = vadd.f32 0.0, %v3766
  %v3768 = vpop.f32.mrf.mxu0
  %3769 = vmatprep.mubr.f32.mxu0 0.0
  %3770 = vmatmul.mubr.f32.gmra.mxu0 %v3649
  %v3771 = vpop.f32.mrf.mxu0
  %v3772 = vadd.f32 0.0, %v3771
  %v3773 = vpop.f32.mrf.mxu0
  %3774 = vdwg.mxu0
  %v3775 = vadd.f32 %v3564, %v3727
  %v3776 = vadd.f32 %v3569, %v3732
  %v3777 = vadd.f32 %v3574, %v3737
  %v3778 = vadd.f32 %v3579, %v3742
  %v3779 = vadd.f32 %v3584, %v3747
  %v3780 = vadd.f32 %v3589, %v3752
  %v3781 = vadd.f32 %v3594, %v3757
  %v3782 = vadd.f32 %v3599, %v3762
  %v3783 = vadd.f32 %v3604, %v3767
  %v3784 = vadd.f32 %v3609, %v3772
  %s3785 = scalar_lea.vmem %s1, 2688
  %v3786 = vld [vmem:[%s3785] sm:$0xff]
  %v3787 = vld [vmem:[%s3785 + $0x8] sm:$0xff]
  %v3788 = vld [vmem:[%s3785 + $0x10] sm:$0xff]
  %v3789 = vld [vmem:[%s3785 + $0x18] sm:$0xff]
  %v3790 = vld [vmem:[%s3785 + $0x20] sm:$0xff]
  %v3791 = vld [vmem:[%s3785 + $0x28] sm:$0xff]
  %v3792 = vld [vmem:[%s3785 + $0x30] sm:$0xff]
  %v3793 = vld [vmem:[%s3785 + $0x38] sm:$0xff]
  %v3794 = vld [vmem:[%s3785 + $0x40] sm:$0xff]
  %v3795 = vld [vmem:[%s3785 + $0x48] sm:$0xff]
  %v3796 = vld [vmem:[%s3785 + $0x50] sm:$0xff]
  %v3797 = vld [vmem:[%s3785 + $0x58] sm:$0xff]
  %v3798 = vld [vmem:[%s3785 + $0x60] sm:$0xff]
  %v3799 = vld [vmem:[%s3785 + $0x68] sm:$0xff]
  %v3800 = vld [vmem:[%s3785 + $0x70] sm:$0xff]
  %v3801 = vld [vmem:[%s3785 + $0x78] sm:$0xff]
  %v3802 = vrot.slane %v3295, 3
  %v3803 = vrot.slane %v3296, 3
  %v3804 = vsel %vm583, %v3802, %v3803
  %v3805 = vrot.slane %v3297, 3
  %v3806 = vsel %vm583, %v3803, %v3805
  %v3807 = vrot.slane %v3298, 3
  %v3808 = vsel %vm583, %v3805, %v3807
  %v3809 = vrot.slane %v3299, 3
  %v3810 = vsel %vm583, %v3807, %v3809
  %v3811 = vrot.slane %v3300, 3
  %v3812 = vsel %vm583, %v3809, %v3811
  %v3813 = vrot.slane %v3301, 3
  %v3814 = vsel %vm583, %v3811, %v3813
  %v3815 = vrot.slane %v3302, 3
  %v3816 = vsel %vm583, %v3813, %v3815
  %v3817 = vrot.slane %v3303, 3
  %v3818 = vsel %vm583, %v3815, %v3817
  %v3819 = vrot.slane %v3304, 3
  %v3820 = vsel %vm583, %v3817, %v3819
  %v3821 = vrot.slane %v3305, 3
  %v3822 = vsel %vm583, %v3819, %v3821
  %3833 = vmatprep.subr.mxu0 0.0
  %3834 = vmatpush1.msra.mxu0 %v3801
  %3835 = vmatprep.subr.mxu0 0.0
  %3836 = vmatpush1.msra.mxu0 %v3800
  %3837 = vmatprep.subr.mxu0 0.0
  %3838 = vmatpush1.msra.mxu0 %v3799
  %3839 = vmatprep.subr.mxu0 0.0
  %3840 = vmatpush1.msra.mxu0 %v3798
  %3841 = vmatprep.subr.mxu0 0.0
  %3842 = vmatpush1.msra.mxu0 %v3797
  %3843 = vmatprep.subr.mxu0 0.0
  %3844 = vmatpush1.msra.mxu0 %v3796
  %3845 = vmatprep.subr.mxu0 0.0
  %3846 = vmatpush1.msra.mxu0 %v3795
  %3847 = vmatprep.subr.mxu0 0.0
  %3848 = vmatpush1.msra.mxu0 %v3794
  %3849 = vmatprep.subr.mxu0 0.0
  %3850 = vmatpush1.msra.mxu0 %v3793
  %3851 = vmatprep.subr.mxu0 0.0
  %3852 = vmatpush1.msra.mxu0 %v3792
  %3853 = vmatprep.subr.mxu0 0.0
  %3854 = vmatpush1.msra.mxu0 %v3791
  %3855 = vmatprep.subr.mxu0 0.0
  %3856 = vmatpush1.msra.mxu0 %v3790
  %3857 = vmatprep.subr.mxu0 0.0
  %3858 = vmatpush1.msra.mxu0 %v3789
  %3859 = vmatprep.subr.mxu0 0.0
  %3860 = vmatpush1.msra.mxu0 %v3788
  %3861 = vmatprep.subr.mxu0 0.0
  %3862 = vmatpush1.msra.mxu0 %v3787
  %3863 = vmatprep.subr.mxu0 0.0
  %3864 = vmatpush1.msra.mxu0 %v3786
  %3865 = vmatprep.subr.mxu0 0.0
  %3866 = vmatpush2.msra.mxu0 0.0
  %3867 = vmatprep.subr.mxu0 0.0
  %3868 = vmatpush2.msra.mxu0 0.0
  %3869 = vmatprep.subr.mxu0 0.0
  %3870 = vmatpush2.msra.mxu0 0.0
  %3871 = vmatprep.subr.mxu0 0.0
  %3872 = vmatpush2.msra.mxu0 0.0
  %3873 = vmatprep.subr.mxu0 0.0
  %3874 = vmatpush2.msra.mxu0 0.0
  %3875 = vmatprep.subr.mxu0 0.0
  %3876 = vmatpush2.msra.mxu0 0.0
  %3877 = vmatprep.subr.mxu0 0.0
  %3878 = vmatpush2.msra.mxu0 0.0
  %3879 = vmatprep.subr.mxu0 0.0
  %3880 = vmatpush2.msra.mxu0 0.0
  %3881 = vmatprep.subr.mxu0 0.0
  %3882 = vmatpush2.msra.mxu0 0.0
  %3883 = vmatprep.subr.mxu0 0.0
  %3884 = vmatpush2.msra.mxu0 0.0
  %3885 = vmatprep.subr.mxu0 0.0
  %3886 = vmatpush2.msra.mxu0 0.0
  %3887 = vmatprep.subr.mxu0 0.0
  %3888 = vmatpush2.msra.mxu0 0.0
  %3889 = vmatprep.subr.mxu0 0.0
  %3890 = vmatpush2.msra.mxu0 0.0
  %3891 = vmatprep.subr.mxu0 0.0
  %3892 = vmatpush2.msra.mxu0 0.0
  %3893 = vmatprep.subr.mxu0 0.0
  %3894 = vmatpush2.msra.mxu0 0.0
  %3895 = vmatprep.subr.mxu0 0.0
  %3896 = vmatpush2.msra.mxu0 0.0
  %3897 = vmatprep.mubr.f32.mxu0 0.0
  %3898 = vmatmul.mubr.f32.gmra.mxu0 %v3804
  %v3899 = vpop.f32.mrf.mxu0
  %v3900 = vadd.f32 0.0, %v3899
  %v3901 = vpop.f32.mrf.mxu0
  %3902 = vmatprep.mubr.f32.mxu0 0.0
  %3903 = vmatmul.mubr.f32.gmra.mxu0 %v3806
  %v3904 = vpop.f32.mrf.mxu0
  %v3905 = vadd.f32 0.0, %v3904
  %v3906 = vpop.f32.mrf.mxu0
  %3907 = vmatprep.mubr.f32.mxu0 0.0
  %3908 = vmatmul.mubr.f32.gmra.mxu0 %v3808
  %v3909 = vpop.f32.mrf.mxu0
  %v3910 = vadd.f32 0.0, %v3909
  %v3911 = vpop.f32.mrf.mxu0
  %3912 = vmatprep.mubr.f32.mxu0 0.0
  %3913 = vmatmul.mubr.f32.gmra.mxu0 %v3810
  %v3914 = vpop.f32.mrf.mxu0
  %v3915 = vadd.f32 0.0, %v3914
  %v3916 = vpop.f32.mrf.mxu0
  %3917 = vmatprep.mubr.f32.mxu0 0.0
  %3918 = vmatmul.mubr.f32.gmra.mxu0 %v3812
  %v3919 = vpop.f32.mrf.mxu0
  %v3920 = vadd.f32 0.0, %v3919
  %v3921 = vpop.f32.mrf.mxu0
  %3922 = vmatprep.mubr.f32.mxu0 0.0
  %3923 = vmatmul.mubr.f32.gmra.mxu0 %v3814
  %v3924 = vpop.f32.mrf.mxu0
  %v3925 = vadd.f32 0.0, %v3924
  %v3926 = vpop.f32.mrf.mxu0
  %3927 = vmatprep.mubr.f32.mxu0 0.0
  %3928 = vmatmul.mubr.f32.gmra.mxu0 %v3816
  %v3929 = vpop.f32.mrf.mxu0
  %v3930 = vadd.f32 0.0, %v3929
  %v3931 = vpop.f32.mrf.mxu0
  %3932 = vmatprep.mubr.f32.mxu0 0.0
  %3933 = vmatmul.mubr.f32.gmra.mxu0 %v3818
  %v3934 = vpop.f32.mrf.mxu0
  %v3935 = vadd.f32 0.0, %v3934
  %v3936 = vpop.f32.mrf.mxu0
  %3937 = vmatprep.mubr.f32.mxu0 0.0
  %3938 = vmatmul.mubr.f32.gmra.mxu0 %v3820
  %v3939 = vpop.f32.mrf.mxu0
  %v3940 = vadd.f32 0.0, %v3939
  %v3941 = vpop.f32.mrf.mxu0
  %3942 = vmatprep.mubr.f32.mxu0 0.0
  %3943 = vmatmul.mubr.f32.gmra.mxu0 %v3822
  %v3944 = vpop.f32.mrf.mxu0
  %v3945 = vadd.f32 0.0, %v3944
  %v3946 = vpop.f32.mrf.mxu0
  %3947 = vdwg.mxu0
  %v3948 = vadd.f32 %v3775, %v3900
  %v3949 = vadd.f32 %v3776, %v3905
  %v3950 = vadd.f32 %v3777, %v3910
  %v3951 = vadd.f32 %v3778, %v3915
  %v3952 = vadd.f32 %v3779, %v3920
  %v3953 = vadd.f32 %v3780, %v3925
  %v3954 = vadd.f32 %v3781, %v3930
  %v3955 = vadd.f32 %v3782, %v3935
  %v3956 = vadd.f32 %v3783, %v3940
  %v3957 = vadd.f32 %v3784, %v3945
  %s3958 = scalar_lea.vmem %s1, 2816
  %v3959 = vld [vmem:[%s3958] sm:$0xff]
  %v3960 = vld [vmem:[%s3958 + $0x8] sm:$0xff]
  %v3961 = vld [vmem:[%s3958 + $0x10] sm:$0xff]
  %v3962 = vld [vmem:[%s3958 + $0x18] sm:$0xff]
  %v3963 = vld [vmem:[%s3958 + $0x20] sm:$0xff]
  %v3964 = vld [vmem:[%s3958 + $0x28] sm:$0xff]
  %v3965 = vld [vmem:[%s3958 + $0x30] sm:$0xff]
  %v3966 = vld [vmem:[%s3958 + $0x38] sm:$0xff]
  %v3967 = vld [vmem:[%s3958 + $0x40] sm:$0xff]
  %v3968 = vld [vmem:[%s3958 + $0x48] sm:$0xff]
  %v3969 = vld [vmem:[%s3958 + $0x50] sm:$0xff]
  %v3970 = vld [vmem:[%s3958 + $0x58] sm:$0xff]
  %v3971 = vld [vmem:[%s3958 + $0x60] sm:$0xff]
  %v3972 = vld [vmem:[%s3958 + $0x68] sm:$0xff]
  %v3973 = vld [vmem:[%s3958 + $0x70] sm:$0xff]
  %v3974 = vld [vmem:[%s3958 + $0x78] sm:$0xff]
  %v3975 = vrot.slane %v3295, 4
  %v3976 = vrot.slane %v3296, 4
  %v3977 = vsel %vm775, %v3975, %v3976
  %v3978 = vrot.slane %v3297, 4
  %v3979 = vsel %vm775, %v3976, %v3978
  %v3980 = vrot.slane %v3298, 4
  %v3981 = vsel %vm775, %v3978, %v3980
  %v3982 = vrot.slane %v3299, 4
  %v3983 = vsel %vm775, %v3980, %v3982
  %v3984 = vrot.slane %v3300, 4
  %v3985 = vsel %vm775, %v3982, %v3984
  %v3986 = vrot.slane %v3301, 4
  %v3987 = vsel %vm775, %v3984, %v3986
  %v3988 = vrot.slane %v3302, 4
  %v3989 = vsel %vm775, %v3986, %v3988
  %v3990 = vrot.slane %v3303, 4
  %v3991 = vsel %vm775, %v3988, %v3990
  %v3992 = vrot.slane %v3304, 4
  %v3993 = vsel %vm775, %v3990, %v3992
  %v3994 = vrot.slane %v3305, 4
  %v3995 = vsel %vm775, %v3992, %v3994
  %4006 = vmatprep.subr.mxu0 0.0
  %4007 = vmatpush1.msra.mxu0 %v3974
  %4008 = vmatprep.subr.mxu0 0.0
  %4009 = vmatpush1.msra.mxu0 %v3973
  %4010 = vmatprep.subr.mxu0 0.0
  %4011 = vmatpush1.msra.mxu0 %v3972
  %4012 = vmatprep.subr.mxu0 0.0
  %4013 = vmatpush1.msra.mxu0 %v3971
  %4014 = vmatprep.subr.mxu0 0.0
  %4015 = vmatpush1.msra.mxu0 %v3970
  %4016 = vmatprep.subr.mxu0 0.0
  %4017 = vmatpush1.msra.mxu0 %v3969
  %4018 = vmatprep.subr.mxu0 0.0
  %4019 = vmatpush1.msra.mxu0 %v3968
  %4020 = vmatprep.subr.mxu0 0.0
  %4021 = vmatpush1.msra.mxu0 %v3967
  %4022 = vmatprep.subr.mxu0 0.0
  %4023 = vmatpush1.msra.mxu0 %v3966
  %4024 = vmatprep.subr.mxu0 0.0
  %4025 = vmatpush1.msra.mxu0 %v3965
  %4026 = vmatprep.subr.mxu0 0.0
  %4027 = vmatpush1.msra.mxu0 %v3964
  %4028 = vmatprep.subr.mxu0 0.0
  %4029 = vmatpush1.msra.mxu0 %v3963
  %4030 = vmatprep.subr.mxu0 0.0
  %4031 = vmatpush1.msra.mxu0 %v3962
  %4032 = vmatprep.subr.mxu0 0.0
  %4033 = vmatpush1.msra.mxu0 %v3961
  %4034 = vmatprep.subr.mxu0 0.0
  %4035 = vmatpush1.msra.mxu0 %v3960
  %4036 = vmatprep.subr.mxu0 0.0
  %4037 = vmatpush1.msra.mxu0 %v3959
  %4038 = vmatprep.subr.mxu0 0.0
  %4039 = vmatpush2.msra.mxu0 0.0
  %4040 = vmatprep.subr.mxu0 0.0
  %4041 = vmatpush2.msra.mxu0 0.0
  %4042 = vmatprep.subr.mxu0 0.0
  %4043 = vmatpush2.msra.mxu0 0.0
  %4044 = vmatprep.subr.mxu0 0.0
  %4045 = vmatpush2.msra.mxu0 0.0
  %4046 = vmatprep.subr.mxu0 0.0
  %4047 = vmatpush2.msra.mxu0 0.0
  %4048 = vmatprep.subr.mxu0 0.0
  %4049 = vmatpush2.msra.mxu0 0.0
  %4050 = vmatprep.subr.mxu0 0.0
  %4051 = vmatpush2.msra.mxu0 0.0
  %4052 = vmatprep.subr.mxu0 0.0
  %4053 = vmatpush2.msra.mxu0 0.0
  %4054 = vmatprep.subr.mxu0 0.0
  %4055 = vmatpush2.msra.mxu0 0.0
  %4056 = vmatprep.subr.mxu0 0.0
  %4057 = vmatpush2.msra.mxu0 0.0
  %4058 = vmatprep.subr.mxu0 0.0
  %4059 = vmatpush2.msra.mxu0 0.0
  %4060 = vmatprep.subr.mxu0 0.0
  %4061 = vmatpush2.msra.mxu0 0.0
  %4062 = vmatprep.subr.mxu0 0.0
  %4063 = vmatpush2.msra.mxu0 0.0
  %4064 = vmatprep.subr.mxu0 0.0
  %4065 = vmatpush2.msra.mxu0 0.0
  %4066 = vmatprep.subr.mxu0 0.0
  %4067 = vmatpush2.msra.mxu0 0.0
  %4068 = vmatprep.subr.mxu0 0.0
  %4069 = vmatpush2.msra.mxu0 0.0
  %4070 = vmatprep.mubr.f32.mxu0 0.0
  %4071 = vmatmul.mubr.f32.gmra.mxu0 %v3977
  %v4072 = vpop.f32.mrf.mxu0
  %v4073 = vadd.f32 0.0, %v4072
  %v4074 = vpop.f32.mrf.mxu0
  %4075 = vmatprep.mubr.f32.mxu0 0.0
  %4076 = vmatmul.mubr.f32.gmra.mxu0 %v3979
  %v4077 = vpop.f32.mrf.mxu0
  %v4078 = vadd.f32 0.0, %v4077
  %v4079 = vpop.f32.mrf.mxu0
  %4080 = vmatprep.mubr.f32.mxu0 0.0
  %4081 = vmatmul.mubr.f32.gmra.mxu0 %v3981
  %v4082 = vpop.f32.mrf.mxu0
  %v4083 = vadd.f32 0.0, %v4082
  %v4084 = vpop.f32.mrf.mxu0
  %4085 = vmatprep.mubr.f32.mxu0 0.0
  %4086 = vmatmul.mubr.f32.gmra.mxu0 %v3983
  %v4087 = vpop.f32.mrf.mxu0
  %v4088 = vadd.f32 0.0, %v4087
  %v4089 = vpop.f32.mrf.mxu0
  %4090 = vmatprep.mubr.f32.mxu0 0.0
  %4091 = vmatmul.mubr.f32.gmra.mxu0 %v3985
  %v4092 = vpop.f32.mrf.mxu0
  %v4093 = vadd.f32 0.0, %v4092
  %v4094 = vpop.f32.mrf.mxu0
  %4095 = vmatprep.mubr.f32.mxu0 0.0
  %4096 = vmatmul.mubr.f32.gmra.mxu0 %v3987
  %v4097 = vpop.f32.mrf.mxu0
  %v4098 = vadd.f32 0.0, %v4097
  %v4099 = vpop.f32.mrf.mxu0
  %4100 = vmatprep.mubr.f32.mxu0 0.0
  %4101 = vmatmul.mubr.f32.gmra.mxu0 %v3989
  %v4102 = vpop.f32.mrf.mxu0
  %v4103 = vadd.f32 0.0, %v4102
  %v4104 = vpop.f32.mrf.mxu0
  %4105 = vmatprep.mubr.f32.mxu0 0.0
  %4106 = vmatmul.mubr.f32.gmra.mxu0 %v3991
  %v4107 = vpop.f32.mrf.mxu0
  %v4108 = vadd.f32 0.0, %v4107
  %v4109 = vpop.f32.mrf.mxu0
  %4110 = vmatprep.mubr.f32.mxu0 0.0
  %4111 = vmatmul.mubr.f32.gmra.mxu0 %v3993
  %v4112 = vpop.f32.mrf.mxu0
  %v4113 = vadd.f32 0.0, %v4112
  %v4114 = vpop.f32.mrf.mxu0
  %4115 = vmatprep.mubr.f32.mxu0 0.0
  %4116 = vmatmul.mubr.f32.gmra.mxu0 %v3995
  %v4117 = vpop.f32.mrf.mxu0
  %v4118 = vadd.f32 0.0, %v4117
  %v4119 = vpop.f32.mrf.mxu0
  %4120 = vdwg.mxu0
  %v4121 = vadd.f32 %v3948, %v4073
  %v4122 = vadd.f32 %v3949, %v4078
  %v4123 = vadd.f32 %v3950, %v4083
  %v4124 = vadd.f32 %v3951, %v4088
  %v4125 = vadd.f32 %v3952, %v4093
  %v4126 = vadd.f32 %v3953, %v4098
  %v4127 = vadd.f32 %v3954, %v4103
  %v4128 = vadd.f32 %v3955, %v4108
  %v4129 = vadd.f32 %v3956, %v4113
  %v4130 = vadd.f32 %v3957, %v4118
  %s4131 = scalar_lea.vmem %s1, 2944
  %v4132 = vld [vmem:[%s4131] sm:$0xff]
  %v4133 = vld [vmem:[%s4131 + $0x8] sm:$0xff]
  %v4134 = vld [vmem:[%s4131 + $0x10] sm:$0xff]
  %v4135 = vld [vmem:[%s4131 + $0x18] sm:$0xff]
  %v4136 = vld [vmem:[%s4131 + $0x20] sm:$0xff]
  %v4137 = vld [vmem:[%s4131 + $0x28] sm:$0xff]
  %v4138 = vld [vmem:[%s4131 + $0x30] sm:$0xff]
  %v4139 = vld [vmem:[%s4131 + $0x38] sm:$0xff]
  %v4140 = vld [vmem:[%s4131 + $0x40] sm:$0xff]
  %v4141 = vld [vmem:[%s4131 + $0x48] sm:$0xff]
  %v4142 = vld [vmem:[%s4131 + $0x50] sm:$0xff]
  %v4143 = vld [vmem:[%s4131 + $0x58] sm:$0xff]
  %v4144 = vld [vmem:[%s4131 + $0x60] sm:$0xff]
  %v4145 = vld [vmem:[%s4131 + $0x68] sm:$0xff]
  %v4146 = vld [vmem:[%s4131 + $0x70] sm:$0xff]
  %v4147 = vld [vmem:[%s4131 + $0x78] sm:$0xff]
  %v4148 = vrot.slane %v3295, 5
  %v4149 = vrot.slane %v3296, 5
  %v4150 = vsel %vm967, %v4148, %v4149
  %v4151 = vrot.slane %v3297, 5
  %v4152 = vsel %vm967, %v4149, %v4151
  %v4153 = vrot.slane %v3298, 5
  %v4154 = vsel %vm967, %v4151, %v4153
  %v4155 = vrot.slane %v3299, 5
  %v4156 = vsel %vm967, %v4153, %v4155
  %v4157 = vrot.slane %v3300, 5
  %v4158 = vsel %vm967, %v4155, %v4157
  %v4159 = vrot.slane %v3301, 5
  %v4160 = vsel %vm967, %v4157, %v4159
  %v4161 = vrot.slane %v3302, 5
  %v4162 = vsel %vm967, %v4159, %v4161
  %v4163 = vrot.slane %v3303, 5
  %v4164 = vsel %vm967, %v4161, %v4163
  %v4165 = vrot.slane %v3304, 5
  %v4166 = vsel %vm967, %v4163, %v4165
  %v4167 = vrot.slane %v3305, 5
  %v4168 = vsel %vm967, %v4165, %v4167
  %4179 = vmatprep.subr.mxu0 0.0
  %4180 = vmatpush1.msra.mxu0 %v4147
  %4181 = vmatprep.subr.mxu0 0.0
  %4182 = vmatpush1.msra.mxu0 %v4146
  %4183 = vmatprep.subr.mxu0 0.0
  %4184 = vmatpush1.msra.mxu0 %v4145
  %4185 = vmatprep.subr.mxu0 0.0
  %4186 = vmatpush1.msra.mxu0 %v4144
  %4187 = vmatprep.subr.mxu0 0.0
  %4188 = vmatpush1.msra.mxu0 %v4143
  %4189 = vmatprep.subr.mxu0 0.0
  %4190 = vmatpush1.msra.mxu0 %v4142
  %4191 = vmatprep.subr.mxu0 0.0
  %4192 = vmatpush1.msra.mxu0 %v4141
  %4193 = vmatprep.subr.mxu0 0.0
  %4194 = vmatpush1.msra.mxu0 %v4140
  %4195 = vmatprep.subr.mxu0 0.0
  %4196 = vmatpush1.msra.mxu0 %v4139
  %4197 = vmatprep.subr.mxu0 0.0
  %4198 = vmatpush1.msra.mxu0 %v4138
  %4199 = vmatprep.subr.mxu0 0.0
  %4200 = vmatpush1.msra.mxu0 %v4137
  %4201 = vmatprep.subr.mxu0 0.0
  %4202 = vmatpush1.msra.mxu0 %v4136
  %4203 = vmatprep.subr.mxu0 0.0
  %4204 = vmatpush1.msra.mxu0 %v4135
  %4205 = vmatprep.subr.mxu0 0.0
  %4206 = vmatpush1.msra.mxu0 %v4134
  %4207 = vmatprep.subr.mxu0 0.0
  %4208 = vmatpush1.msra.mxu0 %v4133
  %4209 = vmatprep.subr.mxu0 0.0
  %4210 = vmatpush1.msra.mxu0 %v4132
  %4211 = vmatprep.subr.mxu0 0.0
  %4212 = vmatpush2.msra.mxu0 0.0
  %4213 = vmatprep.subr.mxu0 0.0
  %4214 = vmatpush2.msra.mxu0 0.0
  %4215 = vmatprep.subr.mxu0 0.0
  %4216 = vmatpush2.msra.mxu0 0.0
  %4217 = vmatprep.subr.mxu0 0.0
  %4218 = vmatpush2.msra.mxu0 0.0
  %4219 = vmatprep.subr.mxu0 0.0
  %4220 = vmatpush2.msra.mxu0 0.0
  %4221 = vmatprep.subr.mxu0 0.0
  %4222 = vmatpush2.msra.mxu0 0.0
  %4223 = vmatprep.subr.mxu0 0.0
  %4224 = vmatpush2.msra.mxu0 0.0
  %4225 = vmatprep.subr.mxu0 0.0
  %4226 = vmatpush2.msra.mxu0 0.0
  %4227 = vmatprep.subr.mxu0 0.0
  %4228 = vmatpush2.msra.mxu0 0.0
  %4229 = vmatprep.subr.mxu0 0.0
  %4230 = vmatpush2.msra.mxu0 0.0
  %4231 = vmatprep.subr.mxu0 0.0
  %4232 = vmatpush2.msra.mxu0 0.0
  %4233 = vmatprep.subr.mxu0 0.0
  %4234 = vmatpush2.msra.mxu0 0.0
  %4235 = vmatprep.subr.mxu0 0.0
  %4236 = vmatpush2.msra.mxu0 0.0
  %4237 = vmatprep.subr.mxu0 0.0
  %4238 = vmatpush2.msra.mxu0 0.0
  %4239 = vmatprep.subr.mxu0 0.0
  %4240 = vmatpush2.msra.mxu0 0.0
  %4241 = vmatprep.subr.mxu0 0.0
  %4242 = vmatpush2.msra.mxu0 0.0
  %4243 = vmatprep.mubr.f32.mxu0 0.0
  %4244 = vmatmul.mubr.f32.gmra.mxu0 %v4150
  %v4245 = vpop.f32.mrf.mxu0
  %v4246 = vadd.f32 0.0, %v4245
  %v4247 = vpop.f32.mrf.mxu0
  %4248 = vmatprep.mubr.f32.mxu0 0.0
  %4249 = vmatmul.mubr.f32.gmra.mxu0 %v4152
  %v4250 = vpop.f32.mrf.mxu0
  %v4251 = vadd.f32 0.0, %v4250
  %v4252 = vpop.f32.mrf.mxu0
  %4253 = vmatprep.mubr.f32.mxu0 0.0
  %4254 = vmatmul.mubr.f32.gmra.mxu0 %v4154
  %v4255 = vpop.f32.mrf.mxu0
  %v4256 = vadd.f32 0.0, %v4255
  %v4257 = vpop.f32.mrf.mxu0
  %4258 = vmatprep.mubr.f32.mxu0 0.0
  %4259 = vmatmul.mubr.f32.gmra.mxu0 %v4156
  %v4260 = vpop.f32.mrf.mxu0
  %v4261 = vadd.f32 0.0, %v4260
  %v4262 = vpop.f32.mrf.mxu0
  %4263 = vmatprep.mubr.f32.mxu0 0.0
  %4264 = vmatmul.mubr.f32.gmra.mxu0 %v4158
  %v4265 = vpop.f32.mrf.mxu0
  %v4266 = vadd.f32 0.0, %v4265
  %v4267 = vpop.f32.mrf.mxu0
  %4268 = vmatprep.mubr.f32.mxu0 0.0
  %4269 = vmatmul.mubr.f32.gmra.mxu0 %v4160
  %v4270 = vpop.f32.mrf.mxu0
  %v4271 = vadd.f32 0.0, %v4270
  %v4272 = vpop.f32.mrf.mxu0
  %4273 = vmatprep.mubr.f32.mxu0 0.0
  %4274 = vmatmul.mubr.f32.gmra.mxu0 %v4162
  %v4275 = vpop.f32.mrf.mxu0
  %v4276 = vadd.f32 0.0, %v4275
  %v4277 = vpop.f32.mrf.mxu0
  %4278 = vmatprep.mubr.f32.mxu0 0.0
  %4279 = vmatmul.mubr.f32.gmra.mxu0 %v4164
  %v4280 = vpop.f32.mrf.mxu0
  %v4281 = vadd.f32 0.0, %v4280
  %v4282 = vpop.f32.mrf.mxu0
  %4283 = vmatprep.mubr.f32.mxu0 0.0
  %4284 = vmatmul.mubr.f32.gmra.mxu0 %v4166
  %v4285 = vpop.f32.mrf.mxu0
  %v4286 = vadd.f32 0.0, %v4285
  %v4287 = vpop.f32.mrf.mxu0
  %4288 = vmatprep.mubr.f32.mxu0 0.0
  %4289 = vmatmul.mubr.f32.gmra.mxu0 %v4168
  %v4290 = vpop.f32.mrf.mxu0
  %v4291 = vadd.f32 0.0, %v4290
  %v4292 = vpop.f32.mrf.mxu0
  %4293 = vdwg.mxu0
  %v4294 = vadd.f32 %v4121, %v4246
  %v4295 = vadd.f32 %v4122, %v4251
  %v4296 = vadd.f32 %v4123, %v4256
  %v4297 = vadd.f32 %v4124, %v4261
  %v4298 = vadd.f32 %v4125, %v4266
  %v4299 = vadd.f32 %v4126, %v4271
  %v4300 = vadd.f32 %v4127, %v4276
  %v4301 = vadd.f32 %v4128, %v4281
  %v4302 = vadd.f32 %v4129, %v4286
  %v4303 = vadd.f32 %v4130, %v4291
  %v4304 = vmax.f32 %v4294, 0.0
  %v4305 = vmax.f32 %v4295, 0.0
  %v4306 = vmax.f32 %v4296, 0.0
  %v4307 = vmax.f32 %v4297, 0.0
  %v4308 = vmax.f32 %v4298, 0.0
  %v4309 = vmax.f32 %v4299, 0.0
  %v4310 = vmax.f32 %v4300, 0.0
  %v4311 = vmax.f32 %v4301, 0.0
  %v4312 = vmax.f32 %v4302, 0.0
  %v4313 = vmax.f32 %v4303, 0.0
  %v4314 = vld [vmem:[%s2] sm:$0xff]
  %v4315 = vld [vmem:[%s2 + $0x8] sm:$0xff]
  %v4316 = vld [vmem:[%s2 + $0x10] sm:$0xf]
  %vm4317 = vcmask 654336
  %v4319 = vsel %vm4317, %v4314, 0
  %v4322 = vsel %vm4317, %v4315, 0
  %v4325 = vsel %vm4317, %v4316, 0
  %4327 = vmatprep.subr.mxu0 0.0
  %4328 = vmatpush1.msra.mxu0 0.0
  %4329 = vmatprep.subr.mxu0 0.0
  %4330 = vmatpush1.msra.mxu0 0.0
  %4331 = vmatprep.subr.mxu0 0.0
  %4332 = vmatpush1.msra.mxu0 0.0
  %4333 = vmatprep.subr.mxu0 0.0
  %4334 = vmatpush1.msra.mxu0 0.0
  %4335 = vmatprep.subr.mxu0 0.0
  %4336 = vmatpush1.msra.mxu0 0.0
  %4337 = vmatprep.subr.mxu0 0.0
  %4338 = vmatpush1.msra.mxu0 0.0
  %4339 = vmatprep.subr.mxu0 0.0
  %4340 = vmatpush1.msra.mxu0 %v4313
  %4341 = vmatprep.subr.mxu0 0.0
  %4342 = vmatpush1.msra.mxu0 %v4312
  %4343 = vmatprep.subr.mxu0 0.0
  %4344 = vmatpush1.msra.mxu0 %v4311
  %4345 = vmatprep.subr.mxu0 0.0
  %4346 = vmatpush1.msra.mxu0 %v4310
  %4347 = vmatprep.subr.mxu0 0.0
  %4348 = vmatpush1.msra.mxu0 %v4309
  %4349 = vmatprep.subr.mxu0 0.0
  %4350 = vmatpush1.msra.mxu0 %v4308
  %4351 = vmatprep.subr.mxu0 0.0
  %4352 = vmatpush1.msra.mxu0 %v4307
  %4353 = vmatprep.subr.mxu0 0.0
  %4354 = vmatpush1.msra.mxu0 %v4306
  %4355 = vmatprep.subr.mxu0 0.0
  %4356 = vmatpush1.msra.mxu0 %v4305
  %4357 = vmatprep.subr.mxu0 0.0
  %4358 = vmatpush1.msra.mxu0 %v4304
  %4359 = vmatprep.subr.mxu0 0.0
  %4360 = vmatpush2.msra.mxu0 0.0
  %4361 = vmatprep.subr.mxu0 0.0
  %4362 = vmatpush2.msra.mxu0 0.0
  %4363 = vmatprep.subr.mxu0 0.0
  %4364 = vmatpush2.msra.mxu0 0.0
  %4365 = vmatprep.subr.mxu0 0.0
  %4366 = vmatpush2.msra.mxu0 0.0
  %4367 = vmatprep.subr.mxu0 0.0
  %4368 = vmatpush2.msra.mxu0 0.0
  %4369 = vmatprep.subr.mxu0 0.0
  %4370 = vmatpush2.msra.mxu0 0.0
  %4371 = vmatprep.subr.mxu0 0.0
  %4372 = vmatpush2.msra.mxu0 0.0
  %4373 = vmatprep.subr.mxu0 0.0
  %4374 = vmatpush2.msra.mxu0 0.0
  %4375 = vmatprep.subr.mxu0 0.0
  %4376 = vmatpush2.msra.mxu0 0.0
  %4377 = vmatprep.subr.mxu0 0.0
  %4378 = vmatpush2.msra.mxu0 0.0
  %4379 = vmatprep.subr.mxu0 0.0
  %4380 = vmatpush2.msra.mxu0 0.0
  %4381 = vmatprep.subr.mxu0 0.0
  %4382 = vmatpush2.msra.mxu0 0.0
  %4383 = vmatprep.subr.mxu0 0.0
  %4384 = vmatpush2.msra.mxu0 0.0
  %4385 = vmatprep.subr.mxu0 0.0
  %4386 = vmatpush2.msra.mxu0 0.0
  %4387 = vmatprep.subr.mxu0 0.0
  %4388 = vmatpush2.msra.mxu0 0.0
  %4389 = vmatprep.subr.mxu0 0.0
  %4390 = vmatpush2.msra.mxu0 0.0
  %4391 = vmatprep.mubr.f32.mxu0 0.0
  %4392 = vmatmul.mubr.f32.gmra.mxu0 %v4319
  %v4393 = vpop.f32.mrf.mxu0
  %v4394 = vadd.f32 0.0, %v4393
  %v4395 = vpop.f32.mrf.mxu0
  %4396 = vmatprep.mubr.f32.mxu0 0.0
  %4397 = vmatmul.mubr.f32.gmra.mxu0 %v4322
  %v4398 = vpop.f32.mrf.mxu0
  %v4399 = vadd.f32 0.0, %v4398
  %v4400 = vpop.f32.mrf.mxu0
  %4401 = vmatprep.mubr.f32.mxu0 0.0
  %4402 = vmatmul.mubr.f32.gmra.mxu0 %v4325
  %v4403 = vpop.f32.mrf.mxu0
  %v4404 = vadd.f32 0.0, %v4403
  %v4405 = vpop.f32.mrf.mxu0
  %4406 = vdwg.mxu0
  %s4407 = scalar_lea.vmem %s2, 24
  %v4408 = vld [vmem:[%s4407] sm:$0xff]
  %v4409 = vld [vmem:[%s4407 + $0x8] sm:$0xff]
  %v4410 = vld [vmem:[%s4407 + $0x10] sm:$0xf]
  %v4412 = vsel %vm4317, %v4408, 0
  %v4415 = vsel %vm4317, %v4409, 0
  %v4418 = vsel %vm4317, %v4410, 0
  %4420 = vmatprep.subr.mxu0 0.0
  %4421 = vmatpush1.msra.mxu0 0.0
  %4422 = vmatprep.subr.mxu0 0.0
  %4423 = vmatpush1.msra.mxu0 0.0
  %4424 = vmatprep.subr.mxu0 0.0
  %4425 = vmatpush1.msra.mxu0 0.0
  %4426 = vmatprep.subr.mxu0 0.0
  %4427 = vmatpush1.msra.mxu0 0.0
  %4428 = vmatprep.subr.mxu0 0.0
  %4429 = vmatpush1.msra.mxu0 0.0
  %4430 = vmatprep.subr.mxu0 0.0
  %4431 = vmatpush1.msra.mxu0 0.0
  %4432 = vmatprep.subr.mxu0 0.0
  %4433 = vmatpush1.msra.mxu0 %v4313
  %4434 = vmatprep.subr.mxu0 0.0
  %4435 = vmatpush1.msra.mxu0 %v4312
  %4436 = vmatprep.subr.mxu0 0.0
  %4437 = vmatpush1.msra.mxu0 %v4311
  %4438 = vmatprep.subr.mxu0 0.0
  %4439 = vmatpush1.msra.mxu0 %v4310
  %4440 = vmatprep.subr.mxu0 0.0
  %4441 = vmatpush1.msra.mxu0 %v4309
  %4442 = vmatprep.subr.mxu0 0.0
  %4443 = vmatpush1.msra.mxu0 %v4308
  %4444 = vmatprep.subr.mxu0 0.0
  %4445 = vmatpush1.msra.mxu0 %v4307
  %4446 = vmatprep.subr.mxu0 0.0
  %4447 = vmatpush1.msra.mxu0 %v4306
  %4448 = vmatprep.subr.mxu0 0.0
  %4449 = vmatpush1.msra.mxu0 %v4305
  %4450 = vmatprep.subr.mxu0 0.0
  %4451 = vmatpush1.msra.mxu0 %v4304
  %4452 = vmatprep.subr.mxu0 0.0
  %4453 = vmatpush2.msra.mxu0 0.0
  %4454 = vmatprep.subr.mxu0 0.0
  %4455 = vmatpush2.msra.mxu0 0.0
  %4456 = vmatprep.subr.mxu0 0.0
  %4457 = vmatpush2.msra.mxu0 0.0
  %4458 = vmatprep.subr.mxu0 0.0
  %4459 = vmatpush2.msra.mxu0 0.0
  %4460 = vmatprep.subr.mxu0 0.0
  %4461 = vmatpush2.msra.mxu0 0.0
  %4462 = vmatprep.subr.mxu0 0.0
  %4463 = vmatpush2.msra.mxu0 0.0
  %4464 = vmatprep.subr.mxu0 0.0
  %4465 = vmatpush2.msra.mxu0 0.0
  %4466 = vmatprep.subr.mxu0 0.0
  %4467 = vmatpush2.msra.mxu0 0.0
  %4468 = vmatprep.subr.mxu0 0.0
  %4469 = vmatpush2.msra.mxu0 0.0
  %4470 = vmatprep.subr.mxu0 0.0
  %4471 = vmatpush2.msra.mxu0 0.0
  %4472 = vmatprep.subr.mxu0 0.0
  %4473 = vmatpush2.msra.mxu0 0.0
  %4474 = vmatprep.subr.mxu0 0.0
  %4475 = vmatpush2.msra.mxu0 0.0
  %4476 = vmatprep.subr.mxu0 0.0
  %4477 = vmatpush2.msra.mxu0 0.0
  %4478 = vmatprep.subr.mxu0 0.0
  %4479 = vmatpush2.msra.mxu0 0.0
  %4480 = vmatprep.subr.mxu0 0.0
  %4481 = vmatpush2.msra.mxu0 0.0
  %4482 = vmatprep.subr.mxu0 0.0
  %4483 = vmatpush2.msra.mxu0 0.0
  %4484 = vmatprep.mubr.f32.mxu0 0.0
  %4485 = vmatmul.mubr.f32.gmra.mxu0 %v4412
  %v4486 = vpop.f32.mrf.mxu0
  %v4487 = vadd.f32 0.0, %v4486
  %v4488 = vpop.f32.mrf.mxu0
  %4489 = vmatprep.mubr.f32.mxu0 0.0
  %4490 = vmatmul.mubr.f32.gmra.mxu0 %v4415
  %v4491 = vpop.f32.mrf.mxu0
  %v4492 = vadd.f32 0.0, %v4491
  %v4493 = vpop.f32.mrf.mxu0
  %4494 = vmatprep.mubr.f32.mxu0 0.0
  %4495 = vmatmul.mubr.f32.gmra.mxu0 %v4418
  %v4496 = vpop.f32.mrf.mxu0
  %v4497 = vadd.f32 0.0, %v4496
  %v4498 = vpop.f32.mrf.mxu0
  %4499 = vdwg.mxu0
  %v4500 = vmax.f32 %v4394, %v4487
  %v4501 = vmax.f32 %v4399, %v4492
  %v4502 = vmax.f32 %v4404, %v4497
  %s4503 = scalar_lea.vmem %s2, 48
  %v4504 = vld [vmem:[%s4503] sm:$0xff]
  %v4505 = vld [vmem:[%s4503 + $0x8] sm:$0xff]
  %v4506 = vld [vmem:[%s4503 + $0x10] sm:$0xf]
  %v4508 = vsel %vm4317, %v4504, 0
  %v4511 = vsel %vm4317, %v4505, 0
  %v4514 = vsel %vm4317, %v4506, 0
  %4516 = vmatprep.subr.mxu0 0.0
  %4517 = vmatpush1.msra.mxu0 0.0
  %4518 = vmatprep.subr.mxu0 0.0
  %4519 = vmatpush1.msra.mxu0 0.0
  %4520 = vmatprep.subr.mxu0 0.0
  %4521 = vmatpush1.msra.mxu0 0.0
  %4522 = vmatprep.subr.mxu0 0.0
  %4523 = vmatpush1.msra.mxu0 0.0
  %4524 = vmatprep.subr.mxu0 0.0
  %4525 = vmatpush1.msra.mxu0 0.0
  %4526 = vmatprep.subr.mxu0 0.0
  %4527 = vmatpush1.msra.mxu0 0.0
  %4528 = vmatprep.subr.mxu0 0.0
  %4529 = vmatpush1.msra.mxu0 %v4313
  %4530 = vmatprep.subr.mxu0 0.0
  %4531 = vmatpush1.msra.mxu0 %v4312
  %4532 = vmatprep.subr.mxu0 0.0
  %4533 = vmatpush1.msra.mxu0 %v4311
  %4534 = vmatprep.subr.mxu0 0.0
  %4535 = vmatpush1.msra.mxu0 %v4310
  %4536 = vmatprep.subr.mxu0 0.0
  %4537 = vmatpush1.msra.mxu0 %v4309
  %4538 = vmatprep.subr.mxu0 0.0
  %4539 = vmatpush1.msra.mxu0 %v4308
  %4540 = vmatprep.subr.mxu0 0.0
  %4541 = vmatpush1.msra.mxu0 %v4307
  %4542 = vmatprep.subr.mxu0 0.0
  %4543 = vmatpush1.msra.mxu0 %v4306
  %4544 = vmatprep.subr.mxu0 0.0
  %4545 = vmatpush1.msra.mxu0 %v4305
  %4546 = vmatprep.subr.mxu0 0.0
  %4547 = vmatpush1.msra.mxu0 %v4304
  %4548 = vmatprep.subr.mxu0 0.0
  %4549 = vmatpush2.msra.mxu0 0.0
  %4550 = vmatprep.subr.mxu0 0.0
  %4551 = vmatpush2.msra.mxu0 0.0
  %4552 = vmatprep.subr.mxu0 0.0
  %4553 = vmatpush2.msra.mxu0 0.0
  %4554 = vmatprep.subr.mxu0 0.0
  %4555 = vmatpush2.msra.mxu0 0.0
  %4556 = vmatprep.subr.mxu0 0.0
  %4557 = vmatpush2.msra.mxu0 0.0
  %4558 = vmatprep.subr.mxu0 0.0
  %4559 = vmatpush2.msra.mxu0 0.0
  %4560 = vmatprep.subr.mxu0 0.0
  %4561 = vmatpush2.msra.mxu0 0.0
  %4562 = vmatprep.subr.mxu0 0.0
  %4563 = vmatpush2.msra.mxu0 0.0
  %4564 = vmatprep.subr.mxu0 0.0
  %4565 = vmatpush2.msra.mxu0 0.0
  %4566 = vmatprep.subr.mxu0 0.0
  %4567 = vmatpush2.msra.mxu0 0.0
  %4568 = vmatprep.subr.mxu0 0.0
  %4569 = vmatpush2.msra.mxu0 0.0
  %4570 = vmatprep.subr.mxu0 0.0
  %4571 = vmatpush2.msra.mxu0 0.0
  %4572 = vmatprep.subr.mxu0 0.0
  %4573 = vmatpush2.msra.mxu0 0.0
  %4574 = vmatprep.subr.mxu0 0.0
  %4575 = vmatpush2.msra.mxu0 0.0
  %4576 = vmatprep.subr.mxu0 0.0
  %4577 = vmatpush2.msra.mxu0 0.0
  %4578 = vmatprep.subr.mxu0 0.0
  %4579 = vmatpush2.msra.mxu0 0.0
  %4580 = vmatprep.mubr.f32.mxu0 0.0
  %4581 = vmatmul.mubr.f32.gmra.mxu0 %v4508
  %v4582 = vpop.f32.mrf.mxu0
  %v4583 = vadd.f32 0.0, %v4582
  %v4584 = vpop.f32.mrf.mxu0
  %4585 = vmatprep.mubr.f32.mxu0 0.0
  %4586 = vmatmul.mubr.f32.gmra.mxu0 %v4511
  %v4587 = vpop.f32.mrf.mxu0
  %v4588 = vadd.f32 0.0, %v4587
  %v4589 = vpop.f32.mrf.mxu0
  %4590 = vmatprep.mubr.f32.mxu0 0.0
  %4591 = vmatmul.mubr.f32.gmra.mxu0 %v4514
  %v4592 = vpop.f32.mrf.mxu0
  %v4593 = vadd.f32 0.0, %v4592
  %v4594 = vpop.f32.mrf.mxu0
  %4595 = vdwg.mxu0
  %v4596 = vmax.f32 %v4500, %v4583
  %v4597 = vmax.f32 %v4501, %v4588
  %v4598 = vmax.f32 %v4502, %v4593
  %s4599 = scalar_lea.vmem %s2, 72
  %v4600 = vld [vmem:[%s4599] sm:$0xff]
  %v4601 = vld [vmem:[%s4599 + $0x8] sm:$0xff]
  %v4602 = vld [vmem:[%s4599 + $0x10] sm:$0xf]
  %v4604 = vsel %vm4317, %v4600, 0
  %v4607 = vsel %vm4317, %v4601, 0
  %v4610 = vsel %vm4317, %v4602, 0
  %4612 = vmatprep.subr.mxu0 0.0
  %4613 = vmatpush1.msra.mxu0 0.0
  %4614 = vmatprep.subr.mxu0 0.0
  %4615 = vmatpush1.msra.mxu0 0.0
  %4616 = vmatprep.subr.mxu0 0.0
  %4617 = vmatpush1.msra.mxu0 0.0
  %4618 = vmatprep.subr.mxu0 0.0
  %4619 = vmatpush1.msra.mxu0 0.0
  %4620 = vmatprep.subr.mxu0 0.0
  %4621 = vmatpush1.msra.mxu0 0.0
  %4622 = vmatprep.subr.mxu0 0.0
  %4623 = vmatpush1.msra.mxu0 0.0
  %4624 = vmatprep.subr.mxu0 0.0
  %4625 = vmatpush1.msra.mxu0 %v4313
  %4626 = vmatprep.subr.mxu0 0.0
  %4627 = vmatpush1.msra.mxu0 %v4312
  %4628 = vmatprep.subr.mxu0 0.0
  %4629 = vmatpush1.msra.mxu0 %v4311
  %4630 = vmatprep.subr.mxu0 0.0
  %4631 = vmatpush1.msra.mxu0 %v4310
  %4632 = vmatprep.subr.mxu0 0.0
  %4633 = vmatpush1.msra.mxu0 %v4309
  %4634 = vmatprep.subr.mxu0 0.0
  %4635 = vmatpush1.msra.mxu0 %v4308
  %4636 = vmatprep.subr.mxu0 0.0
  %4637 = vmatpush1.msra.mxu0 %v4307
  %4638 = vmatprep.subr.mxu0 0.0
  %4639 = vmatpush1.msra.mxu0 %v4306
  %4640 = vmatprep.subr.mxu0 0.0
  %4641 = vmatpush1.msra.mxu0 %v4305
  %4642 = vmatprep.subr.mxu0 0.0
  %4643 = vmatpush1.msra.mxu0 %v4304
  %4644 = vmatprep.subr.mxu0 0.0
  %4645 = vmatpush2.msra.mxu0 0.0
  %4646 = vmatprep.subr.mxu0 0.0
  %4647 = vmatpush2.msra.mxu0 0.0
  %4648 = vmatprep.subr.mxu0 0.0
  %4649 = vmatpush2.msra.mxu0 0.0
  %4650 = vmatprep.subr.mxu0 0.0
  %4651 = vmatpush2.msra.mxu0 0.0
  %4652 = vmatprep.subr.mxu0 0.0
  %4653 = vmatpush2.msra.mxu0 0.0
  %4654 = vmatprep.subr.mxu0 0.0
  %4655 = vmatpush2.msra.mxu0 0.0
  %4656 = vmatprep.subr.mxu0 0.0
  %4657 = vmatpush2.msra.mxu0 0.0
  %4658 = vmatprep.subr.mxu0 0.0
  %4659 = vmatpush2.msra.mxu0 0.0
  %4660 = vmatprep.subr.mxu0 0.0
  %4661 = vmatpush2.msra.mxu0 0.0
  %4662 = vmatprep.subr.mxu0 0.0
  %4663 = vmatpush2.msra.mxu0 0.0
  %4664 = vmatprep.subr.mxu0 0.0
  %4665 = vmatpush2.msra.mxu0 0.0
  %4666 = vmatprep.subr.mxu0 0.0
  %4667 = vmatpush2.msra.mxu0 0.0
  %4668 = vmatprep.subr.mxu0 0.0
  %4669 = vmatpush2.msra.mxu0 0.0
  %4670 = vmatprep.subr.mxu0 0.0
  %4671 = vmatpush2.msra.mxu0 0.0
  %4672 = vmatprep.subr.mxu0 0.0
  %4673 = vmatpush2.msra.mxu0 0.0
  %4674 = vmatprep.subr.mxu0 0.0
  %4675 = vmatpush2.msra.mxu0 0.0
  %4676 = vmatprep.mubr.f32.mxu0 0.0
  %4677 = vmatmul.mubr.f32.gmra.mxu0 %v4604
  %v4678 = vpop.f32.mrf.mxu0
  %v4679 = vadd.f32 0.0, %v4678
  %v4680 = vpop.f32.mrf.mxu0
  %4681 = vmatprep.mubr.f32.mxu0 0.0
  %4682 = vmatmul.mubr.f32.gmra.mxu0 %v4607
  %v4683 = vpop.f32.mrf.mxu0
  %v4684 = vadd.f32 0.0, %v4683
  %v4685 = vpop.f32.mrf.mxu0
  %4686 = vmatprep.mubr.f32.mxu0 0.0
  %4687 = vmatmul.mubr.f32.gmra.mxu0 %v4610
  %v4688 = vpop.f32.mrf.mxu0
  %v4689 = vadd.f32 0.0, %v4688
  %v4690 = vpop.f32.mrf.mxu0
  %4691 = vdwg.mxu0
  %v4692 = vmax.f32 %v4596, %v4679
  %v4693 = vmax.f32 %v4597, %v4684
  %v4694 = vmax.f32 %v4598, %v4689
  %v4695 = vld [vmem:[%s3] sm:$0xff]
  %v4696 = vld [vmem:[%s3 + $0x8] sm:$0xff]
  %v4697 = vld [vmem:[%s3 + $0x10] sm:$0xff]
  %v4698 = vld [vmem:[%s3 + $0x18] sm:$0xff]
  %v4699 = vld [vmem:[%s3 + $0x20] sm:$0xff]
  %v4700 = vld [vmem:[%s3 + $0x28] sm:$0xff]
  %v4701 = vld [vmem:[%s3 + $0x30] sm:$0xff]
  %v4702 = vld [vmem:[%s3 + $0x38] sm:$0xff]
  %v4703 = vld [vmem:[%s3 + $0x40] sm:$0xff]
  %v4704 = vld [vmem:[%s3 + $0x48] sm:$0xff]
  %v4705 = vld [vmem:[%s3 + $0x50] sm:$0xff]
  %v4706 = vld [vmem:[%s3 + $0x58] sm:$0xff]
  %v4707 = vld [vmem:[%s3 + $0x60] sm:$0xff]
  %v4708 = vld [vmem:[%s3 + $0x68] sm:$0xff]
  %v4709 = vld [vmem:[%s3 + $0x70] sm:$0xff]
  %v4710 = vld [vmem:[%s3 + $0x78] sm:$0xff]
  %4711 = vmatprep.subr.mxu0 0.0
  %4712 = vmatpush1.msra.mxu0 %v4710
  %4713 = vmatprep.subr.mxu0 0.0
  %4714 = vmatpush1.msra.mxu0 %v4709
  %4715 = vmatprep.subr.mxu0 0.0
  %4716 = vmatpush1.msra.mxu0 %v4708
  %4717 = vmatprep.subr.mxu0 0.0
  %4718 = vmatpush1.msra.mxu0 %v4707
  %4719 = vmatprep.subr.mxu0 0.0
  %4720 = vmatpush1.msra.mxu0 %v4706
  %4721 = vmatprep.subr.mxu0 0.0
  %4722 = vmatpush1.msra.mxu0 %v4705
  %4723 = vmatprep.subr.mxu0 0.0
  %4724 = vmatpush1.msra.mxu0 %v4704
  %4725 = vmatprep.subr.mxu0 0.0
  %4726 = vmatpush1.msra.mxu0 %v4703
  %4727 = vmatprep.subr.mxu0 0.0
  %4728 = vmatpush1.msra.mxu0 %v4702
  %4729 = vmatprep.subr.mxu0 0.0
  %4730 = vmatpush1.msra.mxu0 %v4701
  %4731 = vmatprep.subr.mxu0 0.0
  %4732 = vmatpush1.msra.mxu0 %v4700
  %4733 = vmatprep.subr.mxu0 0.0
  %4734 = vmatpush1.msra.mxu0 %v4699
  %4735 = vmatprep.subr.mxu0 0.0
  %4736 = vmatpush1.msra.mxu0 %v4698
  %4737 = vmatprep.subr.mxu0 0.0
  %4738 = vmatpush1.msra.mxu0 %v4697
  %4739 = vmatprep.subr.mxu0 0.0
  %4740 = vmatpush1.msra.mxu0 %v4696
  %4741 = vmatprep.subr.mxu0 0.0
  %4742 = vmatpush1.msra.mxu0 %v4695
  %4743 = vmatprep.subr.mxu0 0.0
  %4744 = vmatpush2.msra.mxu0 0.0
  %4745 = vmatprep.subr.mxu0 0.0
  %4746 = vmatpush2.msra.mxu0 0.0
  %4747 = vmatprep.subr.mxu0 0.0
  %4748 = vmatpush2.msra.mxu0 0.0
  %4749 = vmatprep.subr.mxu0 0.0
  %4750 = vmatpush2.msra.mxu0 0.0
  %4751 = vmatprep.subr.mxu0 0.0
  %4752 = vmatpush2.msra.mxu0 0.0
  %4753 = vmatprep.subr.mxu0 0.0
  %4754 = vmatpush2.msra.mxu0 0.0
  %4755 = vmatprep.subr.mxu0 0.0
  %4756 = vmatpush2.msra.mxu0 0.0
  %4757 = vmatprep.subr.mxu0 0.0
  %4758 = vmatpush2.msra.mxu0 0.0
  %4759 = vmatprep.subr.mxu0 0.0
  %4760 = vmatpush2.msra.mxu0 0.0
  %4761 = vmatprep.subr.mxu0 0.0
  %4762 = vmatpush2.msra.mxu0 0.0
  %4763 = vmatprep.subr.mxu0 0.0
  %4764 = vmatpush2.msra.mxu0 0.0
  %4765 = vmatprep.subr.mxu0 0.0
  %4766 = vmatpush2.msra.mxu0 0.0
  %4767 = vmatprep.subr.mxu0 0.0
  %4768 = vmatpush2.msra.mxu0 0.0
  %4769 = vmatprep.subr.mxu0 0.0
  %4770 = vmatpush2.msra.mxu0 0.0
  %4771 = vmatprep.subr.mxu0 0.0
  %4772 = vmatpush2.msra.mxu0 0.0
  %4773 = vmatprep.subr.mxu0 0.0
  %4774 = vmatpush2.msra.mxu0 0.0
  %4775 = vmatprep.mubr.f32.mxu0 0.0
  %4776 = vmatmul.mubr.f32.gmra.mxu0 %v4692
  %v4777 = vpop.f32.mrf.mxu0
  %v4778 = vadd.f32 0.0, %v4777
  %v4779 = vpop.f32.mrf.mxu0
  %4780 = vmatprep.mubr.f32.mxu0 0.0
  %4781 = vmatmul.mubr.f32.gmra.mxu0 %v4693
  %v4782 = vpop.f32.mrf.mxu0
  %v4783 = vadd.f32 0.0, %v4782
  %v4784 = vpop.f32.mrf.mxu0
  %4785 = vmatprep.mubr.f32.mxu0 0.0
  %4786 = vmatmul.mubr.f32.gmra.mxu0 %v4694
  %v4787 = vpop.f32.mrf.mxu0
  %v4788 = vadd.f32 0.0, %v4787
  %v4789 = vpop.f32.mrf.mxu0
  %4790 = vdwg.mxu0
  %s4791 = scalar_lea.vmem %s3, 128
  %v4792 = vld [vmem:[%s4791] sm:$0xff]
  %v4793 = vld [vmem:[%s4791 + $0x8] sm:$0xff]
  %v4794 = vld [vmem:[%s4791 + $0x10] sm:$0xff]
  %v4795 = vld [vmem:[%s4791 + $0x18] sm:$0xff]
  %v4796 = vld [vmem:[%s4791 + $0x20] sm:$0xff]
  %v4797 = vld [vmem:[%s4791 + $0x28] sm:$0xff]
  %v4798 = vld [vmem:[%s4791 + $0x30] sm:$0xff]
  %v4799 = vld [vmem:[%s4791 + $0x38] sm:$0xff]
  %v4800 = vld [vmem:[%s4791 + $0x40] sm:$0xff]
  %v4801 = vld [vmem:[%s4791 + $0x48] sm:$0xff]
  %v4802 = vld [vmem:[%s4791 + $0x50] sm:$0xff]
  %v4803 = vld [vmem:[%s4791 + $0x58] sm:$0xff]
  %v4804 = vld [vmem:[%s4791 + $0x60] sm:$0xff]
  %v4805 = vld [vmem:[%s4791 + $0x68] sm:$0xff]
  %v4806 = vld [vmem:[%s4791 + $0x70] sm:$0xff]
  %v4807 = vld [vmem:[%s4791 + $0x78] sm:$0xff]
  %4808 = vmatprep.subr.mxu0 0.0
  %4809 = vmatpush1.msra.mxu0 %v4807
  %4810 = vmatprep.subr.mxu0 0.0
  %4811 = vmatpush1.msra.mxu0 %v4806
  %4812 = vmatprep.subr.mxu0 0.0
  %4813 = vmatpush1.msra.mxu0 %v4805
  %4814 = vmatprep.subr.mxu0 0.0
  %4815 = vmatpush1.msra.mxu0 %v4804
  %4816 = vmatprep.subr.mxu0 0.0
  %4817 = vmatpush1.msra.mxu0 %v4803
  %4818 = vmatprep.subr.mxu0 0.0
  %4819 = vmatpush1.msra.mxu0 %v4802
  %4820 = vmatprep.subr.mxu0 0.0
  %4821 = vmatpush1.msra.mxu0 %v4801
  %4822 = vmatprep.subr.mxu0 0.0
  %4823 = vmatpush1.msra.mxu0 %v4800
  %4824 = vmatprep.subr.mxu0 0.0
  %4825 = vmatpush1.msra.mxu0 %v4799
  %4826 = vmatprep.subr.mxu0 0.0
  %4827 = vmatpush1.msra.mxu0 %v4798
  %4828 = vmatprep.subr.mxu0 0.0
  %4829 = vmatpush1.msra.mxu0 %v4797
  %4830 = vmatprep.subr.mxu0 0.0
  %4831 = vmatpush1.msra.mxu0 %v4796
  %4832 = vmatprep.subr.mxu0 0.0
  %4833 = vmatpush1.msra.mxu0 %v4795
  %4834 = vmatprep.subr.mxu0 0.0
  %4835 = vmatpush1.msra.mxu0 %v4794
  %4836 = vmatprep.subr.mxu0 0.0
  %4837 = vmatpush1.msra.mxu0 %v4793
  %4838 = vmatprep.subr.mxu0 0.0
  %4839 = vmatpush1.msra.mxu0 %v4792
  %4840 = vmatprep.subr.mxu0 0.0
  %4841 = vmatpush2.msra.mxu0 0.0
  %4842 = vmatprep.subr.mxu0 0.0
  %4843 = vmatpush2.msra.mxu0 0.0
  %4844 = vmatprep.subr.mxu0 0.0
  %4845 = vmatpush2.msra.mxu0 0.0
  %4846 = vmatprep.subr.mxu0 0.0
  %4847 = vmatpush2.msra.mxu0 0.0
  %4848 = vmatprep.subr.mxu0 0.0
  %4849 = vmatpush2.msra.mxu0 0.0
  %4850 = vmatprep.subr.mxu0 0.0
  %4851 = vmatpush2.msra.mxu0 0.0
  %4852 = vmatprep.subr.mxu0 0.0
  %4853 = vmatpush2.msra.mxu0 0.0
  %4854 = vmatprep.subr.mxu0 0.0
  %4855 = vmatpush2.msra.mxu0 0.0
  %4856 = vmatprep.subr.mxu0 0.0
  %4857 = vmatpush2.msra.mxu0 0.0
  %4858 = vmatprep.subr.mxu0 0.0
  %4859 = vmatpush2.msra.mxu0 0.0
  %4860 = vmatprep.subr.mxu0 0.0
  %4861 = vmatpush2.msra.mxu0 0.0
  %4862 = vmatprep.subr.mxu0 0.0
  %4863 = vmatpush2.msra.mxu0 0.0
  %4864 = vmatprep.subr.mxu0 0.0
  %4865 = vmatpush2.msra.mxu0 0.0
  %4866 = vmatprep.subr.mxu0 0.0
  %4867 = vmatpush2.msra.mxu0 0.0
  %4868 = vmatprep.subr.mxu0 0.0
  %4869 = vmatpush2.msra.mxu0 0.0
  %4870 = vmatprep.subr.mxu0 0.0
  %4871 = vmatpush2.msra.mxu0 0.0
  %4872 = vmatprep.mubr.f32.mxu0 0.0
  %4873 = vmatmul.mubr.f32.gmra.mxu0 %v4692
  %v4874 = vpop.f32.mrf.mxu0
  %v4875 = vadd.f32 0.0, %v4874
  %v4876 = vpop.f32.mrf.mxu0
  %4877 = vmatprep.mubr.f32.mxu0 0.0
  %4878 = vmatmul.mubr.f32.gmra.mxu0 %v4693
  %v4879 = vpop.f32.mrf.mxu0
  %v4880 = vadd.f32 0.0, %v4879
  %v4881 = vpop.f32.mrf.mxu0
  %4882 = vmatprep.mubr.f32.mxu0 0.0
  %4883 = vmatmul.mubr.f32.gmra.mxu0 %v4694
  %v4884 = vpop.f32.mrf.mxu0
  %v4885 = vadd.f32 0.0, %v4884
  %v4886 = vpop.f32.mrf.mxu0
  %4887 = vdwg.mxu0
  %v4888 = vmax.f32 %v4778, %v4875
  %v4889 = vmax.f32 %v4783, %v4880
  %v4890 = vmax.f32 %v4788, %v4885
  %s4891 = scalar_lea.vmem %s3, 256
  %v4892 = vld [vmem:[%s4891] sm:$0xff]
  %v4893 = vld [vmem:[%s4891 + $0x8] sm:$0xff]
  %v4894 = vld [vmem:[%s4891 + $0x10] sm:$0xff]
  %v4895 = vld [vmem:[%s4891 + $0x18] sm:$0xff]
  %v4896 = vld [vmem:[%s4891 + $0x20] sm:$0xff]
  %v4897 = vld [vmem:[%s4891 + $0x28] sm:$0xff]
  %v4898 = vld [vmem:[%s4891 + $0x30] sm:$0xff]
  %v4899 = vld [vmem:[%s4891 + $0x38] sm:$0xff]
  %v4900 = vld [vmem:[%s4891 + $0x40] sm:$0xff]
  %v4901 = vld [vmem:[%s4891 + $0x48] sm:$0xff]
  %v4902 = vld [vmem:[%s4891 + $0x50] sm:$0xff]
  %v4903 = vld [vmem:[%s4891 + $0x58] sm:$0xff]
  %v4904 = vld [vmem:[%s4891 + $0x60] sm:$0xff]
  %v4905 = vld [vmem:[%s4891 + $0x68] sm:$0xff]
  %v4906 = vld [vmem:[%s4891 + $0x70] sm:$0xff]
  %v4907 = vld [vmem:[%s4891 + $0x78] sm:$0xff]
  %4908 = vmatprep.subr.mxu0 0.0
  %4909 = vmatpush1.msra.mxu0 %v4907
  %4910 = vmatprep.subr.mxu0 0.0
  %4911 = vmatpush1.msra.mxu0 %v4906
  %4912 = vmatprep.subr.mxu0 0.0
  %4913 = vmatpush1.msra.mxu0 %v4905
  %4914 = vmatprep.subr.mxu0 0.0
  %4915 = vmatpush1.msra.mxu0 %v4904
  %4916 = vmatprep.subr.mxu0 0.0
  %4917 = vmatpush1.msra.mxu0 %v4903
  %4918 = vmatprep.subr.mxu0 0.0
  %4919 = vmatpush1.msra.mxu0 %v4902
  %4920 = vmatprep.subr.mxu0 0.0
  %4921 = vmatpush1.msra.mxu0 %v4901
  %4922 = vmatprep.subr.mxu0 0.0
  %4923 = vmatpush1.msra.mxu0 %v4900
  %4924 = vmatprep.subr.mxu0 0.0
  %4925 = vmatpush1.msra.mxu0 %v4899
  %4926 = vmatprep.subr.mxu0 0.0
  %4927 = vmatpush1.msra.mxu0 %v4898
  %4928 = vmatprep.subr.mxu0 0.0
  %4929 = vmatpush1.msra.mxu0 %v4897
  %4930 = vmatprep.subr.mxu0 0.0
  %4931 = vmatpush1.msra.mxu0 %v4896
  %4932 = vmatprep.subr.mxu0 0.0
  %4933 = vmatpush1.msra.mxu0 %v4895
  %4934 = vmatprep.subr.mxu0 0.0
  %4935 = vmatpush1.msra.mxu0 %v4894
  %4936 = vmatprep.subr.mxu0 0.0
  %4937 = vmatpush1.msra.mxu0 %v4893
  %4938 = vmatprep.subr.mxu0 0.0
  %4939 = vmatpush1.msra.mxu0 %v4892
  %4940 = vmatprep.subr.mxu0 0.0
  %4941 = vmatpush2.msra.mxu0 0.0
  %4942 = vmatprep.subr.mxu0 0.0
  %4943 = vmatpush2.msra.mxu0 0.0
  %4944 = vmatprep.subr.mxu0 0.0
  %4945 = vmatpush2.msra.mxu0 0.0
  %4946 = vmatprep.subr.mxu0 0.0
  %4947 = vmatpush2.msra.mxu0 0.0
  %4948 = vmatprep.subr.mxu0 0.0
  %4949 = vmatpush2.msra.mxu0 0.0
  %4950 = vmatprep.subr.mxu0 0.0
  %4951 = vmatpush2.msra.mxu0 0.0
  %4952 = vmatprep.subr.mxu0 0.0
  %4953 = vmatpush2.msra.mxu0 0.0
  %4954 = vmatprep.subr.mxu0 0.0
  %4955 = vmatpush2.msra.mxu0 0.0
  %4956 = vmatprep.subr.mxu0 0.0
  %4957 = vmatpush2.msra.mxu0 0.0
  %4958 = vmatprep.subr.mxu0 0.0
  %4959 = vmatpush2.msra.mxu0 0.0
  %4960 = vmatprep.subr.mxu0 0.0
  %4961 = vmatpush2.msra.mxu0 0.0
  %4962 = vmatprep.subr.mxu0 0.0
  %4963 = vmatpush2.msra.mxu0 0.0
  %4964 = vmatprep.subr.mxu0 0.0
  %4965 = vmatpush2.msra.mxu0 0.0
  %4966 = vmatprep.subr.mxu0 0.0
  %4967 = vmatpush2.msra.mxu0 0.0
  %4968 = vmatprep.subr.mxu0 0.0
  %4969 = vmatpush2.msra.mxu0 0.0
  %4970 = vmatprep.subr.mxu0 0.0
  %4971 = vmatpush2.msra.mxu0 0.0
  %4972 = vmatprep.mubr.f32.mxu0 0.0
  %4973 = vmatmul.mubr.f32.gmra.mxu0 %v4692
  %v4974 = vpop.f32.mrf.mxu0
  %v4975 = vadd.f32 0.0, %v4974
  %v4976 = vpop.f32.mrf.mxu0
  %4977 = vmatprep.mubr.f32.mxu0 0.0
  %4978 = vmatmul.mubr.f32.gmra.mxu0 %v4693
  %v4979 = vpop.f32.mrf.mxu0
  %v4980 = vadd.f32 0.0, %v4979
  %v4981 = vpop.f32.mrf.mxu0
  %4982 = vmatprep.mubr.f32.mxu0 0.0
  %4983 = vmatmul.mubr.f32.gmra.mxu0 %v4694
  %v4984 = vpop.f32.mrf.mxu0
  %v4985 = vadd.f32 0.0, %v4984
  %v4986 = vpop.f32.mrf.mxu0
  %4987 = vdwg.mxu0
  %v4988 = vmax.f32 %v4888, %v4975
  %v4989 = vmax.f32 %v4889, %v4980
  %v4990 = vmax.f32 %v4890, %v4985
  %s4991 = scalar_lea.vmem %s3, 384
  %v4992 = vld [vmem:[%s4991] sm:$0xff]
  %v4993 = vld [vmem:[%s4991 + $0x8] sm:$0xff]
  %v4994 = vld [vmem:[%s4991 + $0x10] sm:$0xff]
  %v4995 = vld [vmem:[%s4991 + $0x18] sm:$0xff]
  %v4996 = vld [vmem:[%s4991 + $0x20] sm:$0xff]
  %v4997 = vld [vmem:[%s4991 + $0x28] sm:$0xff]
  %v4998 = vld [vmem:[%s4991 + $0x30] sm:$0xff]
  %v4999 = vld [vmem:[%s4991 + $0x38] sm:$0xff]
  %v5000 = vld [vmem:[%s4991 + $0x40] sm:$0xff]
  %v5001 = vld [vmem:[%s4991 + $0x48] sm:$0xff]
  %v5002 = vld [vmem:[%s4991 + $0x50] sm:$0xff]
  %v5003 = vld [vmem:[%s4991 + $0x58] sm:$0xff]
  %v5004 = vld [vmem:[%s4991 + $0x60] sm:$0xff]
  %v5005 = vld [vmem:[%s4991 + $0x68] sm:$0xff]
  %v5006 = vld [vmem:[%s4991 + $0x70] sm:$0xff]
  %v5007 = vld [vmem:[%s4991 + $0x78] sm:$0xff]
  %5008 = vmatprep.subr.mxu0 0.0
  %5009 = vmatpush1.msra.mxu0 %v5007
  %5010 = vmatprep.subr.mxu0 0.0
  %5011 = vmatpush1.msra.mxu0 %v5006
  %5012 = vmatprep.subr.mxu0 0.0
  %5013 = vmatpush1.msra.mxu0 %v5005
  %5014 = vmatprep.subr.mxu0 0.0
  %5015 = vmatpush1.msra.mxu0 %v5004
  %5016 = vmatprep.subr.mxu0 0.0
  %5017 = vmatpush1.msra.mxu0 %v5003
  %5018 = vmatprep.subr.mxu0 0.0
  %5019 = vmatpush1.msra.mxu0 %v5002
  %5020 = vmatprep.subr.mxu0 0.0
  %5021 = vmatpush1.msra.mxu0 %v5001
  %5022 = vmatprep.subr.mxu0 0.0
  %5023 = vmatpush1.msra.mxu0 %v5000
  %5024 = vmatprep.subr.mxu0 0.0
  %5025 = vmatpush1.msra.mxu0 %v4999
  %5026 = vmatprep.subr.mxu0 0.0
  %5027 = vmatpush1.msra.mxu0 %v4998
  %5028 = vmatprep.subr.mxu0 0.0
  %5029 = vmatpush1.msra.mxu0 %v4997
  %5030 = vmatprep.subr.mxu0 0.0
  %5031 = vmatpush1.msra.mxu0 %v4996
  %5032 = vmatprep.subr.mxu0 0.0
  %5033 = vmatpush1.msra.mxu0 %v4995
  %5034 = vmatprep.subr.mxu0 0.0
  %5035 = vmatpush1.msra.mxu0 %v4994
  %5036 = vmatprep.subr.mxu0 0.0
  %5037 = vmatpush1.msra.mxu0 %v4993
  %5038 = vmatprep.subr.mxu0 0.0
  %5039 = vmatpush1.msra.mxu0 %v4992
  %5040 = vmatprep.subr.mxu0 0.0
  %5041 = vmatpush2.msra.mxu0 0.0
  %5042 = vmatprep.subr.mxu0 0.0
  %5043 = vmatpush2.msra.mxu0 0.0
  %5044 = vmatprep.subr.mxu0 0.0
  %5045 = vmatpush2.msra.mxu0 0.0
  %5046 = vmatprep.subr.mxu0 0.0
  %5047 = vmatpush2.msra.mxu0 0.0
  %5048 = vmatprep.subr.mxu0 0.0
  %5049 = vmatpush2.msra.mxu0 0.0
  %5050 = vmatprep.subr.mxu0 0.0
  %5051 = vmatpush2.msra.mxu0 0.0
  %5052 = vmatprep.subr.mxu0 0.0
  %5053 = vmatpush2.msra.mxu0 0.0
  %5054 = vmatprep.subr.mxu0 0.0
  %5055 = vmatpush2.msra.mxu0 0.0
  %5056 = vmatprep.subr.mxu0 0.0
  %5057 = vmatpush2.msra.mxu0 0.0
  %5058 = vmatprep.subr.mxu0 0.0
  %5059 = vmatpush2.msra.mxu0 0.0
  %5060 = vmatprep.subr.mxu0 0.0
  %5061 = vmatpush2.msra.mxu0 0.0
  %5062 = vmatprep.subr.mxu0 0.0
  %5063 = vmatpush2.msra.mxu0 0.0
  %5064 = vmatprep.subr.mxu0 0.0
  %5065 = vmatpush2.msra.mxu0 0.0
  %5066 = vmatprep.subr.mxu0 0.0
  %5067 = vmatpush2.msra.mxu0 0.0
  %5068 = vmatprep.subr.mxu0 0.0
  %5069 = vmatpush2.msra.mxu0 0.0
  %5070 = vmatprep.subr.mxu0 0.0
  %5071 = vmatpush2.msra.mxu0 0.0
  %5072 = vmatprep.mubr.f32.mxu0 0.0
  %5073 = vmatmul.mubr.f32.gmra.mxu0 %v4692
  %v5074 = vpop.f32.mrf.mxu0
  %v5075 = vadd.f32 0.0, %v5074
  %v5076 = vpop.f32.mrf.mxu0
  %5077 = vmatprep.mubr.f32.mxu0 0.0
  %5078 = vmatmul.mubr.f32.gmra.mxu0 %v4693
  %v5079 = vpop.f32.mrf.mxu0
  %v5080 = vadd.f32 0.0, %v5079
  %v5081 = vpop.f32.mrf.mxu0
  %5082 = vmatprep.mubr.f32.mxu0 0.0
  %5083 = vmatmul.mubr.f32.gmra.mxu0 %v4694
  %v5084 = vpop.f32.mrf.mxu0
  %v5085 = vadd.f32 0.0, %v5084
  %v5086 = vpop.f32.mrf.mxu0
  %5087 = vdwg.mxu0
  %v5088 = vmax.f32 %v4988, %v5075
  %v5089 = vmax.f32 %v4989, %v5080
  %v5090 = vmax.f32 %v4990, %v5085
  %s5091 = scalar_lea.vmem %s1, 3072
  %v5092 = vld [vmem:[%s5091] sm:$0xff]
  %v5093 = vld [vmem:[%s5091 + $0x8] sm:$0xff]
  %v5094 = vld [vmem:[%s5091 + $0x10] sm:$0xff]
  %v5095 = vld [vmem:[%s5091 + $0x18] sm:$0xff]
  %v5096 = vld [vmem:[%s5091 + $0x20] sm:$0xff]
  %v5097 = vld [vmem:[%s5091 + $0x28] sm:$0xff]
  %v5098 = vld [vmem:[%s5091 + $0x30] sm:$0xff]
  %v5099 = vld [vmem:[%s5091 + $0x38] sm:$0xff]
  %v5100 = vld [vmem:[%s5091 + $0x40] sm:$0xff]
  %v5101 = vld [vmem:[%s5091 + $0x48] sm:$0xff]
  %v5102 = vld [vmem:[%s5091 + $0x50] sm:$0xff]
  %v5103 = vld [vmem:[%s5091 + $0x58] sm:$0xff]
  %v5104 = vld [vmem:[%s5091 + $0x60] sm:$0xff]
  %v5105 = vld [vmem:[%s5091 + $0x68] sm:$0xff]
  %v5106 = vld [vmem:[%s5091 + $0x70] sm:$0xff]
  %v5107 = vld [vmem:[%s5091 + $0x78] sm:$0xff]
  %s5108 = scalar_lea.vmem %s1, 3200
  %v5109 = vld [vmem:[%s5108] sm:$0xff]
  %v5110 = vld [vmem:[%s5108 + $0x8] sm:$0xff]
  %v5111 = vld [vmem:[%s5108 + $0x10] sm:$0xff]
  %v5112 = vld [vmem:[%s5108 + $0x18] sm:$0xff]
  %v5113 = vld [vmem:[%s5108 + $0x20] sm:$0xff]
  %v5114 = vld [vmem:[%s5108 + $0x28] sm:$0xff]
  %v5115 = vld [vmem:[%s5108 + $0x30] sm:$0xff]
  %v5116 = vld [vmem:[%s5108 + $0x38] sm:$0xff]
  %v5117 = vld [vmem:[%s5108 + $0x40] sm:$0xff]
  %v5118 = vld [vmem:[%s5108 + $0x48] sm:$0xff]
  %v5119 = vld [vmem:[%s5108 + $0x50] sm:$0xff]
  %v5120 = vld [vmem:[%s5108 + $0x58] sm:$0xff]
  %v5121 = vld [vmem:[%s5108 + $0x60] sm:$0xff]
  %v5122 = vld [vmem:[%s5108 + $0x68] sm:$0xff]
  %v5123 = vld [vmem:[%s5108 + $0x70] sm:$0xff]
  %v5124 = vld [vmem:[%s5108 + $0x78] sm:$0xff]
  %v5127 = vrot.slane %v5088, 1
  %v5128 = vrot.slane %v5089, 1
  %v5129 = vsel %vm87, %v5127, %v5128
  %5132 = vmatprep.subr.mxu0 0.0
  %5133 = vmatpush1.msra.mxu0 %v5124
  %5134 = vmatprep.subr.mxu0 0.0
  %5135 = vmatpush1.msra.mxu0 %v5123
  %5136 = vmatprep.subr.mxu0 0.0
  %5137 = vmatpush1.msra.mxu0 %v5122
  %5138 = vmatprep.subr.mxu0 0.0
  %5139 = vmatpush1.msra.mxu0 %v5121
  %5140 = vmatprep.subr.mxu0 0.0
  %5141 = vmatpush1.msra.mxu0 %v5120
  %5142 = vmatprep.subr.mxu0 0.0
  %5143 = vmatpush1.msra.mxu0 %v5119
  %5144 = vmatprep.subr.mxu0 0.0
  %5145 = vmatpush1.msra.mxu0 %v5118
  %5146 = vmatprep.subr.mxu0 0.0
  %5147 = vmatpush1.msra.mxu0 %v5117
  %5148 = vmatprep.subr.mxu0 0.0
  %5149 = vmatpush1.msra.mxu0 %v5116
  %5150 = vmatprep.subr.mxu0 0.0
  %5151 = vmatpush1.msra.mxu0 %v5115
  %5152 = vmatprep.subr.mxu0 0.0
  %5153 = vmatpush1.msra.mxu0 %v5114
  %5154 = vmatprep.subr.mxu0 0.0
  %5155 = vmatpush1.msra.mxu0 %v5113
  %5156 = vmatprep.subr.mxu0 0.0
  %5157 = vmatpush1.msra.mxu0 %v5112
  %5158 = vmatprep.subr.mxu0 0.0
  %5159 = vmatpush1.msra.mxu0 %v5111
  %5160 = vmatprep.subr.mxu0 0.0
  %5161 = vmatpush1.msra.mxu0 %v5110
  %5162 = vmatprep.subr.mxu0 0.0
  %5163 = vmatpush1.msra.mxu0 %v5109
  %5164 = vmatprep.subr.mxu0 0.0
  %5165 = vmatpush2.msra.mxu0 0.0
  %5166 = vmatprep.subr.mxu0 0.0
  %5167 = vmatpush2.msra.mxu0 0.0
  %5168 = vmatprep.subr.mxu0 0.0
  %5169 = vmatpush2.msra.mxu0 0.0
  %5170 = vmatprep.subr.mxu0 0.0
  %5171 = vmatpush2.msra.mxu0 0.0
  %5172 = vmatprep.subr.mxu0 0.0
  %5173 = vmatpush2.msra.mxu0 0.0
  %5174 = vmatprep.subr.mxu0 0.0
  %5175 = vmatpush2.msra.mxu0 0.0
  %5176 = vmatprep.subr.mxu0 0.0
  %5177 = vmatpush2.msra.mxu0 0.0
  %5178 = vmatprep.subr.mxu0 0.0
  %5179 = vmatpush2.msra.mxu0 0.0
  %5180 = vmatprep.subr.mxu0 0.0
  %5181 = vmatpush2.msra.mxu0 0.0
  %5182 = vmatprep.subr.mxu0 0.0
  %5183 = vmatpush2.msra.mxu0 0.0
  %5184 = vmatprep.subr.mxu0 0.0
  %5185 = vmatpush2.msra.mxu0 0.0
  %5186 = vmatprep.subr.mxu0 0.0
  %5187 = vmatpush2.msra.mxu0 0.0
  %5188 = vmatprep.subr.mxu0 0.0
  %5189 = vmatpush2.msra.mxu0 0.0
  %5190 = vmatprep.subr.mxu0 0.0
  %5191 = vmatpush2.msra.mxu0 0.0
  %5192 = vmatprep.subr.mxu0 0.0
  %5193 = vmatpush2.msra.mxu0 0.0
  %5194 = vmatprep.subr.mxu0 0.0
  %5195 = vmatpush2.msra.mxu0 0.0
  %5196 = vmatprep.mubr.f32.mxu0 0.0
  %5197 = vmatmul.mubr.f32.gmra.mxu0 %v5129
  %v5198 = vpop.f32.mrf.mxu0
  %v5199 = vadd.f32 0.0, %v5198
  %v5200 = vpop.f32.mrf.mxu0
  %5201 = vmatprep.mubr.f32.mxu0 0.0
  %5202 = vmatmul.mubr.f32.gmra.mxu0 %v5128
  %v5203 = vpop.f32.mrf.mxu0
  %v5204 = vadd.f32 0.0, %v5203
  %v5205 = vpop.f32.mrf.mxu0
  %5206 = vdwg.mxu0
  %5207 = vmatprep.subr.mxu0 0.0
  %5208 = vmatpush1.msra.mxu0 %v5107
  %5209 = vmatprep.subr.mxu0 0.0
  %5210 = vmatpush1.msra.mxu0 %v5106
  %5211 = vmatprep.subr.mxu0 0.0
  %5212 = vmatpush1.msra.mxu0 %v5105
  %5213 = vmatprep.subr.mxu0 0.0
  %5214 = vmatpush1.msra.mxu0 %v5104
  %5215 = vmatprep.subr.mxu0 0.0
  %5216 = vmatpush1.msra.mxu0 %v5103
  %5217 = vmatprep.subr.mxu0 0.0
  %5218 = vmatpush1.msra.mxu0 %v5102
  %5219 = vmatprep.subr.mxu0 0.0
  %5220 = vmatpush1.msra.mxu0 %v5101
  %5221 = vmatprep.subr.mxu0 0.0
  %5222 = vmatpush1.msra.mxu0 %v5100
  %5223 = vmatprep.subr.mxu0 0.0
  %5224 = vmatpush1.msra.mxu0 %v5099
  %5225 = vmatprep.subr.mxu0 0.0
  %5226 = vmatpush1.msra.mxu0 %v5098
  %5227 = vmatprep.subr.mxu0 0.0
  %5228 = vmatpush1.msra.mxu0 %v5097
  %5229 = vmatprep.subr.mxu0 0.0
  %5230 = vmatpush1.msra.mxu0 %v5096
  %5231 = vmatprep.subr.mxu0 0.0
  %5232 = vmatpush1.msra.mxu0 %v5095
  %5233 = vmatprep.subr.mxu0 0.0
  %5234 = vmatpush1.msra.mxu0 %v5094
  %5235 = vmatprep.subr.mxu0 0.0
  %5236 = vmatpush1.msra.mxu0 %v5093
  %5237 = vmatprep.subr.mxu0 0.0
  %5238 = vmatpush1.msra.mxu0 %v5092
  %5239 = vmatprep.subr.mxu0 0.0
  %5240 = vmatpush2.msra.mxu0 0.0
  %5241 = vmatprep.subr.mxu0 0.0
  %5242 = vmatpush2.msra.mxu0 0.0
  %5243 = vmatprep.subr.mxu0 0.0
  %5244 = vmatpush2.msra.mxu0 0.0
  %5245 = vmatprep.subr.mxu0 0.0
  %5246 = vmatpush2.msra.mxu0 0.0
  %5247 = vmatprep.subr.mxu0 0.0
  %5248 = vmatpush2.msra.mxu0 0.0
  %5249 = vmatprep.subr.mxu0 0.0
  %5250 = vmatpush2.msra.mxu0 0.0
  %5251 = vmatprep.subr.mxu0 0.0
  %5252 = vmatpush2.msra.mxu0 0.0
  %5253 = vmatprep.subr.mxu0 0.0
  %5254 = vmatpush2.msra.mxu0 0.0
  %5255 = vmatprep.subr.mxu0 0.0
  %5256 = vmatpush2.msra.mxu0 0.0
  %5257 = vmatprep.subr.mxu0 0.0
  %5258 = vmatpush2.msra.mxu0 0.0
  %5259 = vmatprep.subr.mxu0 0.0
  %5260 = vmatpush2.msra.mxu0 0.0
  %5261 = vmatprep.subr.mxu0 0.0
  %5262 = vmatpush2.msra.mxu0 0.0
  %5263 = vmatprep.subr.mxu0 0.0
  %5264 = vmatpush2.msra.mxu0 0.0
  %5265 = vmatprep.subr.mxu0 0.0
  %5266 = vmatpush2.msra.mxu0 0.0
  %5267 = vmatprep.subr.mxu0 0.0
  %5268 = vmatpush2.msra.mxu0 0.0
  %5269 = vmatprep.subr.mxu0 0.0
  %5270 = vmatpush2.msra.mxu0 0.0
  %5271 = vmatprep.mubr.f32.mxu0 0.0
  %5272 = vmatmul.mubr.f32.gmra.mxu0 %v5088
  %v5273 = vpop.f32.mrf.mxu0
  %v5274 = vadd.f32 %v5199, %v5273
  %v5275 = vpop.f32.mrf.mxu0
  %5276 = vmatprep.mubr.f32.mxu0 0.0
  %5277 = vmatmul.mubr.f32.gmra.mxu0 %v5089
  %v5278 = vpop.f32.mrf.mxu0
  %v5279 = vadd.f32 %v5204, %v5278
  %v5280 = vpop.f32.mrf.mxu0
  %5281 = vdwg.mxu0
  %s5282 = scalar_lea.vmem %s1, 3328
  %v5283 = vld [vmem:[%s5282] sm:$0xff]
  %v5284 = vld [vmem:[%s5282 + $0x8] sm:$0xff]
  %v5285 = vld [vmem:[%s5282 + $0x10] sm:$0xff]
  %v5286 = vld [vmem:[%s5282 + $0x18] sm:$0xff]
  %v5287 = vld [vmem:[%s5282 + $0x20] sm:$0xff]
  %v5288 = vld [vmem:[%s5282 + $0x28] sm:$0xff]
  %v5289 = vld [vmem:[%s5282 + $0x30] sm:$0xff]
  %v5290 = vld [vmem:[%s5282 + $0x38] sm:$0xff]
  %v5291 = vld [vmem:[%s5282 + $0x40] sm:$0xff]
  %v5292 = vld [vmem:[%s5282 + $0x48] sm:$0xff]
  %v5293 = vld [vmem:[%s5282 + $0x50] sm:$0xff]
  %v5294 = vld [vmem:[%s5282 + $0x58] sm:$0xff]
  %v5295 = vld [vmem:[%s5282 + $0x60] sm:$0xff]
  %v5296 = vld [vmem:[%s5282 + $0x68] sm:$0xff]
  %v5297 = vld [vmem:[%s5282 + $0x70] sm:$0xff]
  %v5298 = vld [vmem:[%s5282 + $0x78] sm:$0xff]
  %v5300 = vrot.slane %v5088, 2
  %v5301 = vrot.slane %v5089, 2
  %v5302 = vsel %vm391, %v5300, %v5301
  %v5303 = vrot.slane %v5090, 2
  %v5304 = vsel %vm391, %v5301, %v5303
  %5307 = vmatprep.subr.mxu0 0.0
  %5308 = vmatpush1.msra.mxu0 %v5298
  %5309 = vmatprep.subr.mxu0 0.0
  %5310 = vmatpush1.msra.mxu0 %v5297
  %5311 = vmatprep.subr.mxu0 0.0
  %5312 = vmatpush1.msra.mxu0 %v5296
  %5313 = vmatprep.subr.mxu0 0.0
  %5314 = vmatpush1.msra.mxu0 %v5295
  %5315 = vmatprep.subr.mxu0 0.0
  %5316 = vmatpush1.msra.mxu0 %v5294
  %5317 = vmatprep.subr.mxu0 0.0
  %5318 = vmatpush1.msra.mxu0 %v5293
  %5319 = vmatprep.subr.mxu0 0.0
  %5320 = vmatpush1.msra.mxu0 %v5292
  %5321 = vmatprep.subr.mxu0 0.0
  %5322 = vmatpush1.msra.mxu0 %v5291
  %5323 = vmatprep.subr.mxu0 0.0
  %5324 = vmatpush1.msra.mxu0 %v5290
  %5325 = vmatprep.subr.mxu0 0.0
  %5326 = vmatpush1.msra.mxu0 %v5289
  %5327 = vmatprep.subr.mxu0 0.0
  %5328 = vmatpush1.msra.mxu0 %v5288
  %5329 = vmatprep.subr.mxu0 0.0
  %5330 = vmatpush1.msra.mxu0 %v5287
  %5331 = vmatprep.subr.mxu0 0.0
  %5332 = vmatpush1.msra.mxu0 %v5286
  %5333 = vmatprep.subr.mxu0 0.0
  %5334 = vmatpush1.msra.mxu0 %v5285
  %5335 = vmatprep.subr.mxu0 0.0
  %5336 = vmatpush1.msra.mxu0 %v5284
  %5337 = vmatprep.subr.mxu0 0.0
  %5338 = vmatpush1.msra.mxu0 %v5283
  %5339 = vmatprep.subr.mxu0 0.0
  %5340 = vmatpush2.msra.mxu0 0.0
  %5341 = vmatprep.subr.mxu0 0.0
  %5342 = vmatpush2.msra.mxu0 0.0
  %5343 = vmatprep.subr.mxu0 0.0
  %5344 = vmatpush2.msra.mxu0 0.0
  %5345 = vmatprep.subr.mxu0 0.0
  %5346 = vmatpush2.msra.mxu0 0.0
  %5347 = vmatprep.subr.mxu0 0.0
  %5348 = vmatpush2.msra.mxu0 0.0
  %5349 = vmatprep.subr.mxu0 0.0
  %5350 = vmatpush2.msra.mxu0 0.0
  %5351 = vmatprep.subr.mxu0 0.0
  %5352 = vmatpush2.msra.mxu0 0.0
  %5353 = vmatprep.subr.mxu0 0.0
  %5354 = vmatpush2.msra.mxu0 0.0
  %5355 = vmatprep.subr.mxu0 0.0
  %5356 = vmatpush2.msra.mxu0 0.0
  %5357 = vmatprep.subr.mxu0 0.0
  %5358 = vmatpush2.msra.mxu0 0.0
  %5359 = vmatprep.subr.mxu0 0.0
  %5360 = vmatpush2.msra.mxu0 0.0
  %5361 = vmatprep.subr.mxu0 0.0
  %5362 = vmatpush2.msra.mxu0 0.0
  %5363 = vmatprep.subr.mxu0 0.0
  %5364 = vmatpush2.msra.mxu0 0.0
  %5365 = vmatprep.subr.mxu0 0.0
  %5366 = vmatpush2.msra.mxu0 0.0
  %5367 = vmatprep.subr.mxu0 0.0
  %5368 = vmatpush2.msra.mxu0 0.0
  %5369 = vmatprep.subr.mxu0 0.0
  %5370 = vmatpush2.msra.mxu0 0.0
  %5371 = vmatprep.mubr.f32.mxu0 0.0
  %5372 = vmatmul.mubr.f32.gmra.mxu0 %v5302
  %v5373 = vpop.f32.mrf.mxu0
  %v5374 = vadd.f32 0.0, %v5373
  %v5375 = vpop.f32.mrf.mxu0
  %5376 = vmatprep.mubr.f32.mxu0 0.0
  %5377 = vmatmul.mubr.f32.gmra.mxu0 %v5304
  %v5378 = vpop.f32.mrf.mxu0
  %v5379 = vadd.f32 0.0, %v5378
  %v5380 = vpop.f32.mrf.mxu0
  %5381 = vdwg.mxu0
  %v5382 = vadd.f32 %v5274, %v5374
  %v5383 = vadd.f32 %v5279, %v5379
  %s5384 = scalar_lea.vmem %s1, 3456
  %v5385 = vld [vmem:[%s5384] sm:$0xff]
  %v5386 = vld [vmem:[%s5384 + $0x8] sm:$0xff]
  %v5387 = vld [vmem:[%s5384 + $0x10] sm:$0xff]
  %v5388 = vld [vmem:[%s5384 + $0x18] sm:$0xff]
  %v5389 = vld [vmem:[%s5384 + $0x20] sm:$0xff]
  %v5390 = vld [vmem:[%s5384 + $0x28] sm:$0xff]
  %v5391 = vld [vmem:[%s5384 + $0x30] sm:$0xff]
  %v5392 = vld [vmem:[%s5384 + $0x38] sm:$0xff]
  %v5393 = vld [vmem:[%s5384 + $0x40] sm:$0xff]
  %v5394 = vld [vmem:[%s5384 + $0x48] sm:$0xff]
  %v5395 = vld [vmem:[%s5384 + $0x50] sm:$0xff]
  %v5396 = vld [vmem:[%s5384 + $0x58] sm:$0xff]
  %v5397 = vld [vmem:[%s5384 + $0x60] sm:$0xff]
  %v5398 = vld [vmem:[%s5384 + $0x68] sm:$0xff]
  %v5399 = vld [vmem:[%s5384 + $0x70] sm:$0xff]
  %v5400 = vld [vmem:[%s5384 + $0x78] sm:$0xff]
  %v5401 = vrot.slane %v5088, 3
  %v5402 = vrot.slane %v5089, 3
  %v5403 = vsel %vm583, %v5401, %v5402
  %v5404 = vrot.slane %v5090, 3
  %v5405 = vsel %vm583, %v5402, %v5404
  %5408 = vmatprep.subr.mxu0 0.0
  %5409 = vmatpush1.msra.mxu0 %v5400
  %5410 = vmatprep.subr.mxu0 0.0
  %5411 = vmatpush1.msra.mxu0 %v5399
  %5412 = vmatprep.subr.mxu0 0.0
  %5413 = vmatpush1.msra.mxu0 %v5398
  %5414 = vmatprep.subr.mxu0 0.0
  %5415 = vmatpush1.msra.mxu0 %v5397
  %5416 = vmatprep.subr.mxu0 0.0
  %5417 = vmatpush1.msra.mxu0 %v5396
  %5418 = vmatprep.subr.mxu0 0.0
  %5419 = vmatpush1.msra.mxu0 %v5395
  %5420 = vmatprep.subr.mxu0 0.0
  %5421 = vmatpush1.msra.mxu0 %v5394
  %5422 = vmatprep.subr.mxu0 0.0
  %5423 = vmatpush1.msra.mxu0 %v5393
  %5424 = vmatprep.subr.mxu0 0.0
  %5425 = vmatpush1.msra.mxu0 %v5392
  %5426 = vmatprep.subr.mxu0 0.0
  %5427 = vmatpush1.msra.mxu0 %v5391
  %5428 = vmatprep.subr.mxu0 0.0
  %5429 = vmatpush1.msra.mxu0 %v5390
  %5430 = vmatprep.subr.mxu0 0.0
  %5431 = vmatpush1.msra.mxu0 %v5389
  %5432 = vmatprep.subr.mxu0 0.0
  %5433 = vmatpush1.msra.mxu0 %v5388
  %5434 = vmatprep.subr.mxu0 0.0
  %5435 = vmatpush1.msra.mxu0 %v5387
  %5436 = vmatprep.subr.mxu0 0.0
  %5437 = vmatpush1.msra.mxu0 %v5386
  %5438 = vmatprep.subr.mxu0 0.0
  %5439 = vmatpush1.msra.mxu0 %v5385
  %5440 = vmatprep.subr.mxu0 0.0
  %5441 = vmatpush2.msra.mxu0 0.0
  %5442 = vmatprep.subr.mxu0 0.0
  %5443 = vmatpush2.msra.mxu0 0.0
  %5444 = vmatprep.subr.mxu0 0.0
  %5445 = vmatpush2.msra.mxu0 0.0
  %5446 = vmatprep.subr.mxu0 0.0
  %5447 = vmatpush2.msra.mxu0 0.0
  %5448 = vmatprep.subr.mxu0 0.0
  %5449 = vmatpush2.msra.mxu0 0.0
  %5450 = vmatprep.subr.mxu0 0.0
  %5451 = vmatpush2.msra.mxu0 0.0
  %5452 = vmatprep.subr.mxu0 0.0
  %5453 = vmatpush2.msra.mxu0 0.0
  %5454 = vmatprep.subr.mxu0 0.0
  %5455 = vmatpush2.msra.mxu0 0.0
  %5456 = vmatprep.subr.mxu0 0.0
  %5457 = vmatpush2.msra.mxu0 0.0
  %5458 = vmatprep.subr.mxu0 0.0
  %5459 = vmatpush2.msra.mxu0 0.0
  %5460 = vmatprep.subr.mxu0 0.0
  %5461 = vmatpush2.msra.mxu0 0.0
  %5462 = vmatprep.subr.mxu0 0.0
  %5463 = vmatpush2.msra.mxu0 0.0
  %5464 = vmatprep.subr.mxu0 0.0
  %5465 = vmatpush2.msra.mxu0 0.0
  %5466 = vmatprep.subr.mxu0 0.0
  %5467 = vmatpush2.msra.mxu0 0.0
  %5468 = vmatprep.subr.mxu0 0.0
  %5469 = vmatpush2.msra.mxu0 0.0
  %5470 = vmatprep.subr.mxu0 0.0
  %5471 = vmatpush2.msra.mxu0 0.0
  %5472 = vmatprep.mubr.f32.mxu0 0.0
  %5473 = vmatmul.mubr.f32.gmra.mxu0 %v5403
  %v5474 = vpop.f32.mrf.mxu0
  %v5475 = vadd.f32 0.0, %v5474
  %v5476 = vpop.f32.mrf.mxu0
  %5477 = vmatprep.mubr.f32.mxu0 0.0
  %5478 = vmatmul.mubr.f32.gmra.mxu0 %v5405
  %v5479 = vpop.f32.mrf.mxu0
  %v5480 = vadd.f32 0.0, %v5479
  %v5481 = vpop.f32.mrf.mxu0
  %5482 = vdwg.mxu0
  %v5483 = vadd.f32 %v5382, %v5475
  %v5484 = vadd.f32 %v5383, %v5480
  %s5485 = scalar_lea.vmem %s1, 3584
  %v5486 = vld [vmem:[%s5485] sm:$0xff]
  %v5487 = vld [vmem:[%s5485 + $0x8] sm:$0xff]
  %v5488 = vld [vmem:[%s5485 + $0x10] sm:$0xff]
  %v5489 = vld [vmem:[%s5485 + $0x18] sm:$0xff]
  %v5490 = vld [vmem:[%s5485 + $0x20] sm:$0xff]
  %v5491 = vld [vmem:[%s5485 + $0x28] sm:$0xff]
  %v5492 = vld [vmem:[%s5485 + $0x30] sm:$0xff]
  %v5493 = vld [vmem:[%s5485 + $0x38] sm:$0xff]
  %v5494 = vld [vmem:[%s5485 + $0x40] sm:$0xff]
  %v5495 = vld [vmem:[%s5485 + $0x48] sm:$0xff]
  %v5496 = vld [vmem:[%s5485 + $0x50] sm:$0xff]
  %v5497 = vld [vmem:[%s5485 + $0x58] sm:$0xff]
  %v5498 = vld [vmem:[%s5485 + $0x60] sm:$0xff]
  %v5499 = vld [vmem:[%s5485 + $0x68] sm:$0xff]
  %v5500 = vld [vmem:[%s5485 + $0x70] sm:$0xff]
  %v5501 = vld [vmem:[%s5485 + $0x78] sm:$0xff]
  %v5502 = vrot.slane %v5088, 4
  %v5503 = vrot.slane %v5089, 4
  %v5504 = vsel %vm775, %v5502, %v5503
  %v5505 = vrot.slane %v5090, 4
  %v5506 = vsel %vm775, %v5503, %v5505
  %5509 = vmatprep.subr.mxu0 0.0
  %5510 = vmatpush1.msra.mxu0 %v5501
  %5511 = vmatprep.subr.mxu0 0.0
  %5512 = vmatpush1.msra.mxu0 %v5500
  %5513 = vmatprep.subr.mxu0 0.0
  %5514 = vmatpush1.msra.mxu0 %v5499
  %5515 = vmatprep.subr.mxu0 0.0
  %5516 = vmatpush1.msra.mxu0 %v5498
  %5517 = vmatprep.subr.mxu0 0.0
  %5518 = vmatpush1.msra.mxu0 %v5497
  %5519 = vmatprep.subr.mxu0 0.0
  %5520 = vmatpush1.msra.mxu0 %v5496
  %5521 = vmatprep.subr.mxu0 0.0
  %5522 = vmatpush1.msra.mxu0 %v5495
  %5523 = vmatprep.subr.mxu0 0.0
  %5524 = vmatpush1.msra.mxu0 %v5494
  %5525 = vmatprep.subr.mxu0 0.0
  %5526 = vmatpush1.msra.mxu0 %v5493
  %5527 = vmatprep.subr.mxu0 0.0
  %5528 = vmatpush1.msra.mxu0 %v5492
  %5529 = vmatprep.subr.mxu0 0.0
  %5530 = vmatpush1.msra.mxu0 %v5491
  %5531 = vmatprep.subr.mxu0 0.0
  %5532 = vmatpush1.msra.mxu0 %v5490
  %5533 = vmatprep.subr.mxu0 0.0
  %5534 = vmatpush1.msra.mxu0 %v5489
  %5535 = vmatprep.subr.mxu0 0.0
  %5536 = vmatpush1.msra.mxu0 %v5488
  %5537 = vmatprep.subr.mxu0 0.0
  %5538 = vmatpush1.msra.mxu0 %v5487
  %5539 = vmatprep.subr.mxu0 0.0
  %5540 = vmatpush1.msra.mxu0 %v5486
  %5541 = vmatprep.subr.mxu0 0.0
  %5542 = vmatpush2.msra.mxu0 0.0
  %5543 = vmatprep.subr.mxu0 0.0
  %5544 = vmatpush2.msra.mxu0 0.0
  %5545 = vmatprep.subr.mxu0 0.0
  %5546 = vmatpush2.msra.mxu0 0.0
  %5547 = vmatprep.subr.mxu0 0.0
  %5548 = vmatpush2.msra.mxu0 0.0
  %5549 = vmatprep.subr.mxu0 0.0
  %5550 = vmatpush2.msra.mxu0 0.0
  %5551 = vmatprep.subr.mxu0 0.0
  %5552 = vmatpush2.msra.mxu0 0.0
  %5553 = vmatprep.subr.mxu0 0.0
  %5554 = vmatpush2.msra.mxu0 0.0
  %5555 = vmatprep.subr.mxu0 0.0
  %5556 = vmatpush2.msra.mxu0 0.0
  %5557 = vmatprep.subr.mxu0 0.0
  %5558 = vmatpush2.msra.mxu0 0.0
  %5559 = vmatprep.subr.mxu0 0.0
  %5560 = vmatpush2.msra.mxu0 0.0
  %5561 = vmatprep.subr.mxu0 0.0
  %5562 = vmatpush2.msra.mxu0 0.0
  %5563 = vmatprep.subr.mxu0 0.0
  %5564 = vmatpush2.msra.mxu0 0.0
  %5565 = vmatprep.subr.mxu0 0.0
  %5566 = vmatpush2.msra.mxu0 0.0
  %5567 = vmatprep.subr.mxu0 0.0
  %5568 = vmatpush2.msra.mxu0 0.0
  %5569 = vmatprep.subr.mxu0 0.0
  %5570 = vmatpush2.msra.mxu0 0.0
  %5571 = vmatprep.subr.mxu0 0.0
  %5572 = vmatpush2.msra.mxu0 0.0
  %5573 = vmatprep.mubr.f32.mxu0 0.0
  %5574 = vmatmul.mubr.f32.gmra.mxu0 %v5504
  %v5575 = vpop.f32.mrf.mxu0
  %v5576 = vadd.f32 0.0, %v5575
  %v5577 = vpop.f32.mrf.mxu0
  %5578 = vmatprep.mubr.f32.mxu0 0.0
  %5579 = vmatmul.mubr.f32.gmra.mxu0 %v5506
  %v5580 = vpop.f32.mrf.mxu0
  %v5581 = vadd.f32 0.0, %v5580
  %v5582 = vpop.f32.mrf.mxu0
  %5583 = vdwg.mxu0
  %v5584 = vadd.f32 %v5483, %v5576
  %v5585 = vadd.f32 %v5484, %v5581
  %s5586 = scalar_lea.vmem %s1, 3712
  %v5587 = vld [vmem:[%s5586] sm:$0xff]
  %v5588 = vld [vmem:[%s5586 + $0x8] sm:$0xff]
  %v5589 = vld [vmem:[%s5586 + $0x10] sm:$0xff]
  %v5590 = vld [vmem:[%s5586 + $0x18] sm:$0xff]
  %v5591 = vld [vmem:[%s5586 + $0x20] sm:$0xff]
  %v5592 = vld [vmem:[%s5586 + $0x28] sm:$0xff]
  %v5593 = vld [vmem:[%s5586 + $0x30] sm:$0xff]
  %v5594 = vld [vmem:[%s5586 + $0x38] sm:$0xff]
  %v5595 = vld [vmem:[%s5586 + $0x40] sm:$0xff]
  %v5596 = vld [vmem:[%s5586 + $0x48] sm:$0xff]
  %v5597 = vld [vmem:[%s5586 + $0x50] sm:$0xff]
  %v5598 = vld [vmem:[%s5586 + $0x58] sm:$0xff]
  %v5599 = vld [vmem:[%s5586 + $0x60] sm:$0xff]
  %v5600 = vld [vmem:[%s5586 + $0x68] sm:$0xff]
  %v5601 = vld [vmem:[%s5586 + $0x70] sm:$0xff]
  %v5602 = vld [vmem:[%s5586 + $0x78] sm:$0xff]
  %v5603 = vrot.slane %v5088, 5
  %v5604 = vrot.slane %v5089, 5
  %v5605 = vsel %vm967, %v5603, %v5604
  %v5606 = vrot.slane %v5090, 5
  %v5607 = vsel %vm967, %v5604, %v5606
  %5610 = vmatprep.subr.mxu0 0.0
  %5611 = vmatpush1.msra.mxu0 %v5602
  %5612 = vmatprep.subr.mxu0 0.0
  %5613 = vmatpush1.msra.mxu0 %v5601
  %5614 = vmatprep.subr.mxu0 0.0
  %5615 = vmatpush1.msra.mxu0 %v5600
  %5616 = vmatprep.subr.mxu0 0.0
  %5617 = vmatpush1.msra.mxu0 %v5599
  %5618 = vmatprep.subr.mxu0 0.0
  %5619 = vmatpush1.msra.mxu0 %v5598
  %5620 = vmatprep.subr.mxu0 0.0
  %5621 = vmatpush1.msra.mxu0 %v5597
  %5622 = vmatprep.subr.mxu0 0.0
  %5623 = vmatpush1.msra.mxu0 %v5596
  %5624 = vmatprep.subr.mxu0 0.0
  %5625 = vmatpush1.msra.mxu0 %v5595
  %5626 = vmatprep.subr.mxu0 0.0
  %5627 = vmatpush1.msra.mxu0 %v5594
  %5628 = vmatprep.subr.mxu0 0.0
  %5629 = vmatpush1.msra.mxu0 %v5593
  %5630 = vmatprep.subr.mxu0 0.0
  %5631 = vmatpush1.msra.mxu0 %v5592
  %5632 = vmatprep.subr.mxu0 0.0
  %5633 = vmatpush1.msra.mxu0 %v5591
  %5634 = vmatprep.subr.mxu0 0.0
  %5635 = vmatpush1.msra.mxu0 %v5590
  %5636 = vmatprep.subr.mxu0 0.0
  %5637 = vmatpush1.msra.mxu0 %v5589
  %5638 = vmatprep.subr.mxu0 0.0
  %5639 = vmatpush1.msra.mxu0 %v5588
  %5640 = vmatprep.subr.mxu0 0.0
  %5641 = vmatpush1.msra.mxu0 %v5587
  %5642 = vmatprep.subr.mxu0 0.0
  %5643 = vmatpush2.msra.mxu0 0.0
  %5644 = vmatprep.subr.mxu0 0.0
  %5645 = vmatpush2.msra.mxu0 0.0
  %5646 = vmatprep.subr.mxu0 0.0
  %5647 = vmatpush2.msra.mxu0 0.0
  %5648 = vmatprep.subr.mxu0 0.0
  %5649 = vmatpush2.msra.mxu0 0.0
  %5650 = vmatprep.subr.mxu0 0.0
  %5651 = vmatpush2.msra.mxu0 0.0
  %5652 = vmatprep.subr.mxu0 0.0
  %5653 = vmatpush2.msra.mxu0 0.0
  %5654 = vmatprep.subr.mxu0 0.0
  %5655 = vmatpush2.msra.mxu0 0.0
  %5656 = vmatprep.subr.mxu0 0.0
  %5657 = vmatpush2.msra.mxu0 0.0
  %5658 = vmatprep.subr.mxu0 0.0
  %5659 = vmatpush2.msra.mxu0 0.0
  %5660 = vmatprep.subr.mxu0 0.0
  %5661 = vmatpush2.msra.mxu0 0.0
  %5662 = vmatprep.subr.mxu0 0.0
  %5663 = vmatpush2.msra.mxu0 0.0
  %5664 = vmatprep.subr.mxu0 0.0
  %5665 = vmatpush2.msra.mxu0 0.0
  %5666 = vmatprep.subr.mxu0 0.0
  %5667 = vmatpush2.msra.mxu0 0.0
  %5668 = vmatprep.subr.mxu0 0.0
  %5669 = vmatpush2.msra.mxu0 0.0
  %5670 = vmatprep.subr.mxu0 0.0
  %5671 = vmatpush2.msra.mxu0 0.0
  %5672 = vmatprep.subr.mxu0 0.0
  %5673 = vmatpush2.msra.mxu0 0.0
  %5674 = vmatprep.mubr.f32.mxu0 0.0
  %5675 = vmatmul.mubr.f32.gmra.mxu0 %v5605
  %v5676 = vpop.f32.mrf.mxu0
  %v5677 = vadd.f32 0.0, %v5676
  %v5678 = vpop.f32.mrf.mxu0
  %5679 = vmatprep.mubr.f32.mxu0 0.0
  %5680 = vmatmul.mubr.f32.gmra.mxu0 %v5607
  %v5681 = vpop.f32.mrf.mxu0
  %v5682 = vadd.f32 0.0, %v5681
  %v5683 = vpop.f32.mrf.mxu0
  %5684 = vdwg.mxu0
  %v5685 = vadd.f32 %v5584, %v5677
  %v5686 = vadd.f32 %v5585, %v5682
  %v5687 = vmax.f32 %v5685, 0.0
  %v5688 = vmax.f32 %v5686, 0.0
  %s5689 = scalar_lea.vmem %s1, 3840
  %v5690 = vld [vmem:[%s5689] sm:$0xff]
  %v5691 = vld [vmem:[%s5689 + $0x8] sm:$0xff]
  %v5692 = vld [vmem:[%s5689 + $0x10] sm:$0xff]
  %v5693 = vld [vmem:[%s5689 + $0x18] sm:$0xff]
  %v5694 = vld [vmem:[%s5689 + $0x20] sm:$0xff]
  %v5695 = vld [vmem:[%s5689 + $0x28] sm:$0xff]
  %v5696 = vld [vmem:[%s5689 + $0x30] sm:$0xff]
  %v5697 = vld [vmem:[%s5689 + $0x38] sm:$0xff]
  %v5698 = vld [vmem:[%s5689 + $0x40] sm:$0xff]
  %v5699 = vld [vmem:[%s5689 + $0x48] sm:$0xff]
  %v5700 = vld [vmem:[%s5689 + $0x50] sm:$0xff]
  %v5701 = vld [vmem:[%s5689 + $0x58] sm:$0xff]
  %v5702 = vld [vmem:[%s5689 + $0x60] sm:$0xff]
  %v5703 = vld [vmem:[%s5689 + $0x68] sm:$0xff]
  %v5704 = vld [vmem:[%s5689 + $0x70] sm:$0xff]
  %v5705 = vld [vmem:[%s5689 + $0x78] sm:$0xff]
  %s5706 = scalar_lea.vmem %s1, 3968
  %v5707 = vld [vmem:[%s5706] sm:$0xff]
  %v5708 = vld [vmem:[%s5706 + $0x8] sm:$0xff]
  %v5709 = vld [vmem:[%s5706 + $0x10] sm:$0xff]
  %v5710 = vld [vmem:[%s5706 + $0x18] sm:$0xff]
  %v5711 = vld [vmem:[%s5706 + $0x20] sm:$0xff]
  %v5712 = vld [vmem:[%s5706 + $0x28] sm:$0xff]
  %v5713 = vld [vmem:[%s5706 + $0x30] sm:$0xff]
  %v5714 = vld [vmem:[%s5706 + $0x38] sm:$0xff]
  %v5715 = vld [vmem:[%s5706 + $0x40] sm:$0xff]
  %v5716 = vld [vmem:[%s5706 + $0x48] sm:$0xff]
  %v5717 = vld [vmem:[%s5706 + $0x50] sm:$0xff]
  %v5718 = vld [vmem:[%s5706 + $0x58] sm:$0xff]
  %v5719 = vld [vmem:[%s5706 + $0x60] sm:$0xff]
  %v5720 = vld [vmem:[%s5706 + $0x68] sm:$0xff]
  %v5721 = vld [vmem:[%s5706 + $0x70] sm:$0xff]
  %v5722 = vld [vmem:[%s5706 + $0x78] sm:$0xff]
  %v5725 = vrot.slane %v5687, 1
  %v5726 = vrot.slane %v5688, 1
  %v5727 = vsel %vm87, %v5725, %v5726
  %5730 = vmatprep.subr.mxu0 0.0
  %5731 = vmatpush1.msra.mxu0 %v5722
  %5732 = vmatprep.subr.mxu0 0.0
  %5733 = vmatpush1.msra.mxu0 %v5721
  %5734 = vmatprep.subr.mxu0 0.0
  %5735 = vmatpush1.msra.mxu0 %v5720
  %5736 = vmatprep.subr.mxu0 0.0
  %5737 = vmatpush1.msra.mxu0 %v5719
  %5738 = vmatprep.subr.mxu0 0.0
  %5739 = vmatpush1.msra.mxu0 %v5718
  %5740 = vmatprep.subr.mxu0 0.0
  %5741 = vmatpush1.msra.mxu0 %v5717
  %5742 = vmatprep.subr.mxu0 0.0
  %5743 = vmatpush1.msra.mxu0 %v5716
  %5744 = vmatprep.subr.mxu0 0.0
  %5745 = vmatpush1.msra.mxu0 %v5715
  %5746 = vmatprep.subr.mxu0 0.0
  %5747 = vmatpush1.msra.mxu0 %v5714
  %5748 = vmatprep.subr.mxu0 0.0
  %5749 = vmatpush1.msra.mxu0 %v5713
  %5750 = vmatprep.subr.mxu0 0.0
  %5751 = vmatpush1.msra.mxu0 %v5712
  %5752 = vmatprep.subr.mxu0 0.0
  %5753 = vmatpush1.msra.mxu0 %v5711
  %5754 = vmatprep.subr.mxu0 0.0
  %5755 = vmatpush1.msra.mxu0 %v5710
  %5756 = vmatprep.subr.mxu0 0.0
  %5757 = vmatpush1.msra.mxu0 %v5709
  %5758 = vmatprep.subr.mxu0 0.0
  %5759 = vmatpush1.msra.mxu0 %v5708
  %5760 = vmatprep.subr.mxu0 0.0
  %5761 = vmatpush1.msra.mxu0 %v5707
  %5762 = vmatprep.subr.mxu0 0.0
  %5763 = vmatpush2.msra.mxu0 0.0
  %5764 = vmatprep.subr.mxu0 0.0
  %5765 = vmatpush2.msra.mxu0 0.0
  %5766 = vmatprep.subr.mxu0 0.0
  %5767 = vmatpush2.msra.mxu0 0.0
  %5768 = vmatprep.subr.mxu0 0.0
  %5769 = vmatpush2.msra.mxu0 0.0
  %5770 = vmatprep.subr.mxu0 0.0
  %5771 = vmatpush2.msra.mxu0 0.0
  %5772 = vmatprep.subr.mxu0 0.0
  %5773 = vmatpush2.msra.mxu0 0.0
  %5774 = vmatprep.subr.mxu0 0.0
  %5775 = vmatpush2.msra.mxu0 0.0
  %5776 = vmatprep.subr.mxu0 0.0
  %5777 = vmatpush2.msra.mxu0 0.0
  %5778 = vmatprep.subr.mxu0 0.0
  %5779 = vmatpush2.msra.mxu0 0.0
  %5780 = vmatprep.subr.mxu0 0.0
  %5781 = vmatpush2.msra.mxu0 0.0
  %5782 = vmatprep.subr.mxu0 0.0
  %5783 = vmatpush2.msra.mxu0 0.0
  %5784 = vmatprep.subr.mxu0 0.0
  %5785 = vmatpush2.msra.mxu0 0.0
  %5786 = vmatprep.subr.mxu0 0.0
  %5787 = vmatpush2.msra.mxu0 0.0
  %5788 = vmatprep.subr.mxu0 0.0
  %5789 = vmatpush2.msra.mxu0 0.0
  %5790 = vmatprep.subr.mxu0 0.0
  %5791 = vmatpush2.msra.mxu0 0.0
  %5792 = vmatprep.subr.mxu0 0.0
  %5793 = vmatpush2.msra.mxu0 0.0
  %5794 = vmatprep.mubr.f32.mxu0 0.0
  %5795 = vmatmul.mubr.f32.gmra.mxu0 %v5727
  %v5796 = vpop.f32.mrf.mxu0
  %v5797 = vadd.f32 0.0, %v5796
  %v5798 = vpop.f32.mrf.mxu0
  %5799 = vmatprep.mubr.f32.mxu0 0.0
  %5800 = vmatmul.mubr.f32.gmra.mxu0 %v5726
  %v5801 = vpop.f32.mrf.mxu0
  %v5802 = vadd.f32 0.0, %v5801
  %v5803 = vpop.f32.mrf.mxu0
  %5804 = vdwg.mxu0
  %5805 = vmatprep.subr.mxu0 0.0
  %5806 = vmatpush1.msra.mxu0 %v5705
  %5807 = vmatprep.subr.mxu0 0.0
  %5808 = vmatpush1.msra.mxu0 %v5704
  %5809 = vmatprep.subr.mxu0 0.0
  %5810 = vmatpush1.msra.mxu0 %v5703
  %5811 = vmatprep.subr.mxu0 0.0
  %5812 = vmatpush1.msra.mxu0 %v5702
  %5813 = vmatprep.subr.mxu0 0.0
  %5814 = vmatpush1.msra.mxu0 %v5701
  %5815 = vmatprep.subr.mxu0 0.0
  %5816 = vmatpush1.msra.mxu0 %v5700
  %5817 = vmatprep.subr.mxu0 0.0
  %5818 = vmatpush1.msra.mxu0 %v5699
  %5819 = vmatprep.subr.mxu0 0.0
  %5820 = vmatpush1.msra.mxu0 %v5698
  %5821 = vmatprep.subr.mxu0 0.0
  %5822 = vmatpush1.msra.mxu0 %v5697
  %5823 = vmatprep.subr.mxu0 0.0
  %5824 = vmatpush1.msra.mxu0 %v5696
  %5825 = vmatprep.subr.mxu0 0.0
  %5826 = vmatpush1.msra.mxu0 %v5695
  %5827 = vmatprep.subr.mxu0 0.0
  %5828 = vmatpush1.msra.mxu0 %v5694
  %5829 = vmatprep.subr.mxu0 0.0
  %5830 = vmatpush1.msra.mxu0 %v5693
  %5831 = vmatprep.subr.mxu0 0.0
  %5832 = vmatpush1.msra.mxu0 %v5692
  %5833 = vmatprep.subr.mxu0 0.0
  %5834 = vmatpush1.msra.mxu0 %v5691
  %5835 = vmatprep.subr.mxu0 0.0
  %5836 = vmatpush1.msra.mxu0 %v5690
  %5837 = vmatprep.subr.mxu0 0.0
  %5838 = vmatpush2.msra.mxu0 0.0
  %5839 = vmatprep.subr.mxu0 0.0
  %5840 = vmatpush2.msra.mxu0 0.0
  %5841 = vmatprep.subr.mxu0 0.0
  %5842 = vmatpush2.msra.mxu0 0.0
  %5843 = vmatprep.subr.mxu0 0.0
  %5844 = vmatpush2.msra.mxu0 0.0
  %5845 = vmatprep.subr.mxu0 0.0
  %5846 = vmatpush2.msra.mxu0 0.0
  %5847 = vmatprep.subr.mxu0 0.0
  %5848 = vmatpush2.msra.mxu0 0.0
  %5849 = vmatprep.subr.mxu0 0.0
  %5850 = vmatpush2.msra.mxu0 0.0
  %5851 = vmatprep.subr.mxu0 0.0
  %5852 = vmatpush2.msra.mxu0 0.0
  %5853 = vmatprep.subr.mxu0 0.0
  %5854 = vmatpush2.msra.mxu0 0.0
  %5855 = vmatprep.subr.mxu0 0.0
  %5856 = vmatpush2.msra.mxu0 0.0
  %5857 = vmatprep.subr.mxu0 0.0
  %5858 = vmatpush2.msra.mxu0 0.0
  %5859 = vmatprep.subr.mxu0 0.0
  %5860 = vmatpush2.msra.mxu0 0.0
  %5861 = vmatprep.subr.mxu0 0.0
  %5862 = vmatpush2.msra.mxu0 0.0
  %5863 = vmatprep.subr.mxu0 0.0
  %5864 = vmatpush2.msra.mxu0 0.0
  %5865 = vmatprep.subr.mxu0 0.0
  %5866 = vmatpush2.msra.mxu0 0.0
  %5867 = vmatprep.subr.mxu0 0.0
  %5868 = vmatpush2.msra.mxu0 0.0
  %5869 = vmatprep.mubr.f32.mxu0 0.0
  %5870 = vmatmul.mubr.f32.gmra.mxu0 %v5687
  %v5871 = vpop.f32.mrf.mxu0
  %v5872 = vadd.f32 %v5797, %v5871
  %v5873 = vpop.f32.mrf.mxu0
  %5874 = vmatprep.mubr.f32.mxu0 0.0
  %5875 = vmatmul.mubr.f32.gmra.mxu0 %v5688
  %v5876 = vpop.f32.mrf.mxu0
  %v5877 = vadd.f32 %v5802, %v5876
  %v5878 = vpop.f32.mrf.mxu0
  %5879 = vdwg.mxu0
  %s5880 = scalar_lea.vmem %s1, 4096
  %v5881 = vld [vmem:[%s5880] sm:$0xff]
  %v5882 = vld [vmem:[%s5880 + $0x8] sm:$0xff]
  %v5883 = vld [vmem:[%s5880 + $0x10] sm:$0xff]
  %v5884 = vld [vmem:[%s5880 + $0x18] sm:$0xff]
  %v5885 = vld [vmem:[%s5880 + $0x20] sm:$0xff]
  %v5886 = vld [vmem:[%s5880 + $0x28] sm:$0xff]
  %v5887 = vld [vmem:[%s5880 + $0x30] sm:$0xff]
  %v5888 = vld [vmem:[%s5880 + $0x38] sm:$0xff]
  %v5889 = vld [vmem:[%s5880 + $0x40] sm:$0xff]
  %v5890 = vld [vmem:[%s5880 + $0x48] sm:$0xff]
  %v5891 = vld [vmem:[%s5880 + $0x50] sm:$0xff]
  %v5892 = vld [vmem:[%s5880 + $0x58] sm:$0xff]
  %v5893 = vld [vmem:[%s5880 + $0x60] sm:$0xff]
  %v5894 = vld [vmem:[%s5880 + $0x68] sm:$0xff]
  %v5895 = vld [vmem:[%s5880 + $0x70] sm:$0xff]
  %v5896 = vld [vmem:[%s5880 + $0x78] sm:$0xff]
  %v5897 = vrot.slane %v5687, 2
  %v5898 = vrot.slane %v5688, 2
  %v5899 = vsel %vm391, %v5897, %v5898
  %5902 = vmatprep.subr.mxu0 0.0
  %5903 = vmatpush1.msra.mxu0 %v5896
  %5904 = vmatprep.subr.mxu0 0.0
  %5905 = vmatpush1.msra.mxu0 %v5895
  %5906 = vmatprep.subr.mxu0 0.0
  %5907 = vmatpush1.msra.mxu0 %v5894
  %5908 = vmatprep.subr.mxu0 0.0
  %5909 = vmatpush1.msra.mxu0 %v5893
  %5910 = vmatprep.subr.mxu0 0.0
  %5911 = vmatpush1.msra.mxu0 %v5892
  %5912 = vmatprep.subr.mxu0 0.0
  %5913 = vmatpush1.msra.mxu0 %v5891
  %5914 = vmatprep.subr.mxu0 0.0
  %5915 = vmatpush1.msra.mxu0 %v5890
  %5916 = vmatprep.subr.mxu0 0.0
  %5917 = vmatpush1.msra.mxu0 %v5889
  %5918 = vmatprep.subr.mxu0 0.0
  %5919 = vmatpush1.msra.mxu0 %v5888
  %5920 = vmatprep.subr.mxu0 0.0
  %5921 = vmatpush1.msra.mxu0 %v5887
  %5922 = vmatprep.subr.mxu0 0.0
  %5923 = vmatpush1.msra.mxu0 %v5886
  %5924 = vmatprep.subr.mxu0 0.0
  %5925 = vmatpush1.msra.mxu0 %v5885
  %5926 = vmatprep.subr.mxu0 0.0
  %5927 = vmatpush1.msra.mxu0 %v5884
  %5928 = vmatprep.subr.mxu0 0.0
  %5929 = vmatpush1.msra.mxu0 %v5883
  %5930 = vmatprep.subr.mxu0 0.0
  %5931 = vmatpush1.msra.mxu0 %v5882
  %5932 = vmatprep.subr.mxu0 0.0
  %5933 = vmatpush1.msra.mxu0 %v5881
  %5934 = vmatprep.subr.mxu0 0.0
  %5935 = vmatpush2.msra.mxu0 0.0
  %5936 = vmatprep.subr.mxu0 0.0
  %5937 = vmatpush2.msra.mxu0 0.0
  %5938 = vmatprep.subr.mxu0 0.0
  %5939 = vmatpush2.msra.mxu0 0.0
  %5940 = vmatprep.subr.mxu0 0.0
  %5941 = vmatpush2.msra.mxu0 0.0
  %5942 = vmatprep.subr.mxu0 0.0
  %5943 = vmatpush2.msra.mxu0 0.0
  %5944 = vmatprep.subr.mxu0 0.0
  %5945 = vmatpush2.msra.mxu0 0.0
  %5946 = vmatprep.subr.mxu0 0.0
  %5947 = vmatpush2.msra.mxu0 0.0
  %5948 = vmatprep.subr.mxu0 0.0
  %5949 = vmatpush2.msra.mxu0 0.0
  %5950 = vmatprep.subr.mxu0 0.0
  %5951 = vmatpush2.msra.mxu0 0.0
  %5952 = vmatprep.subr.mxu0 0.0
  %5953 = vmatpush2.msra.mxu0 0.0
  %5954 = vmatprep.subr.mxu0 0.0
  %5955 = vmatpush2.msra.mxu0 0.0
  %5956 = vmatprep.subr.mxu0 0.0
  %5957 = vmatpush2.msra.mxu0 0.0
  %5958 = vmatprep.subr.mxu0 0.0
  %5959 = vmatpush2.msra.mxu0 0.0
  %5960 = vmatprep.subr.mxu0 0.0
  %5961 = vmatpush2.msra.mxu0 0.0
  %5962 = vmatprep.subr.mxu0 0.0
  %5963 = vmatpush2.msra.mxu0 0.0
  %5964 = vmatprep.subr.mxu0 0.0
  %5965 = vmatpush2.msra.mxu0 0.0
  %5966 = vmatprep.mubr.f32.mxu0 0.0
  %5967 = vmatmul.mubr.f32.gmra.mxu0 %v5899
  %v5968 = vpop.f32.mrf.mxu0
  %v5969 = vadd.f32 0.0, %v5968
  %v5970 = vpop.f32.mrf.mxu0
  %5971 = vmatprep.mubr.f32.mxu0 0.0
  %5972 = vmatmul.mubr.f32.gmra.mxu0 %v5898
  %v5973 = vpop.f32.mrf.mxu0
  %v5974 = vadd.f32 0.0, %v5973
  %v5975 = vpop.f32.mrf.mxu0
  %5976 = vdwg.mxu0
  %v5977 = vadd.f32 %v5872, %v5969
  %v5978 = vadd.f32 %v5877, %v5974
  %s5979 = scalar_lea.vmem %s1, 4224
  %v5980 = vld [vmem:[%s5979] sm:$0xff]
  %v5981 = vld [vmem:[%s5979 + $0x8] sm:$0xff]
  %v5982 = vld [vmem:[%s5979 + $0x10] sm:$0xff]
  %v5983 = vld [vmem:[%s5979 + $0x18] sm:$0xff]
  %v5984 = vld [vmem:[%s5979 + $0x20] sm:$0xff]
  %v5985 = vld [vmem:[%s5979 + $0x28] sm:$0xff]
  %v5986 = vld [vmem:[%s5979 + $0x30] sm:$0xff]
  %v5987 = vld [vmem:[%s5979 + $0x38] sm:$0xff]
  %v5988 = vld [vmem:[%s5979 + $0x40] sm:$0xff]
  %v5989 = vld [vmem:[%s5979 + $0x48] sm:$0xff]
  %v5990 = vld [vmem:[%s5979 + $0x50] sm:$0xff]
  %v5991 = vld [vmem:[%s5979 + $0x58] sm:$0xff]
  %v5992 = vld [vmem:[%s5979 + $0x60] sm:$0xff]
  %v5993 = vld [vmem:[%s5979 + $0x68] sm:$0xff]
  %v5994 = vld [vmem:[%s5979 + $0x70] sm:$0xff]
  %v5995 = vld [vmem:[%s5979 + $0x78] sm:$0xff]
  %v5996 = vrot.slane %v5687, 3
  %v5997 = vrot.slane %v5688, 3
  %v5998 = vsel %vm583, %v5996, %v5997
  %6001 = vmatprep.subr.mxu0 0.0
  %6002 = vmatpush1.msra.mxu0 %v5995
  %6003 = vmatprep.subr.mxu0 0.0
  %6004 = vmatpush1.msra.mxu0 %v5994
  %6005 = vmatprep.subr.mxu0 0.0
  %6006 = vmatpush1.msra.mxu0 %v5993
  %6007 = vmatprep.subr.mxu0 0.0
  %6008 = vmatpush1.msra.mxu0 %v5992
  %6009 = vmatprep.subr.mxu0 0.0
  %6010 = vmatpush1.msra.mxu0 %v5991
  %6011 = vmatprep.subr.mxu0 0.0
  %6012 = vmatpush1.msra.mxu0 %v5990
  %6013 = vmatprep.subr.mxu0 0.0
  %6014 = vmatpush1.msra.mxu0 %v5989
  %6015 = vmatprep.subr.mxu0 0.0
  %6016 = vmatpush1.msra.mxu0 %v5988
  %6017 = vmatprep.subr.mxu0 0.0
  %6018 = vmatpush1.msra.mxu0 %v5987
  %6019 = vmatprep.subr.mxu0 0.0
  %6020 = vmatpush1.msra.mxu0 %v5986
  %6021 = vmatprep.subr.mxu0 0.0
  %6022 = vmatpush1.msra.mxu0 %v5985
  %6023 = vmatprep.subr.mxu0 0.0
  %6024 = vmatpush1.msra.mxu0 %v5984
  %6025 = vmatprep.subr.mxu0 0.0
  %6026 = vmatpush1.msra.mxu0 %v5983
  %6027 = vmatprep.subr.mxu0 0.0
  %6028 = vmatpush1.msra.mxu0 %v5982
  %6029 = vmatprep.subr.mxu0 0.0
  %6030 = vmatpush1.msra.mxu0 %v5981
  %6031 = vmatprep.subr.mxu0 0.0
  %6032 = vmatpush1.msra.mxu0 %v5980
  %6033 = vmatprep.subr.mxu0 0.0
  %6034 = vmatpush2.msra.mxu0 0.0
  %6035 = vmatprep.subr.mxu0 0.0
  %6036 = vmatpush2.msra.mxu0 0.0
  %6037 = vmatprep.subr.mxu0 0.0
  %6038 = vmatpush2.msra.mxu0 0.0
  %6039 = vmatprep.subr.mxu0 0.0
  %6040 = vmatpush2.msra.mxu0 0.0
  %6041 = vmatprep.subr.mxu0 0.0
  %6042 = vmatpush2.msra.mxu0 0.0
  %6043 = vmatprep.subr.mxu0 0.0
  %6044 = vmatpush2.msra.mxu0 0.0
  %6045 = vmatprep.subr.mxu0 0.0
  %6046 = vmatpush2.msra.mxu0 0.0
  %6047 = vmatprep.subr.mxu0 0.0
  %6048 = vmatpush2.msra.mxu0 0.0
  %6049 = vmatprep.subr.mxu0 0.0
  %6050 = vmatpush2.msra.mxu0 0.0
  %6051 = vmatprep.subr.mxu0 0.0
  %6052 = vmatpush2.msra.mxu0 0.0
  %6053 = vmatprep.subr.mxu0 0.0
  %6054 = vmatpush2.msra.mxu0 0.0
  %6055 = vmatprep.subr.mxu0 0.0
  %6056 = vmatpush2.msra.mxu0 0.0
  %6057 = vmatprep.subr.mxu0 0.0
  %6058 = vmatpush2.msra.mxu0 0.0
  %6059 = vmatprep.subr.mxu0 0.0
  %6060 = vmatpush2.msra.mxu0 0.0
  %6061 = vmatprep.subr.mxu0 0.0
  %6062 = vmatpush2.msra.mxu0 0.0
  %6063 = vmatprep.subr.mxu0 0.0
  %6064 = vmatpush2.msra.mxu0 0.0
  %6065 = vmatprep.mubr.f32.mxu0 0.0
  %6066 = vmatmul.mubr.f32.gmra.mxu0 %v5998
  %v6067 = vpop.f32.mrf.mxu0
  %v6068 = vadd.f32 0.0, %v6067
  %v6069 = vpop.f32.mrf.mxu0
  %6070 = vmatprep.mubr.f32.mxu0 0.0
  %6071 = vmatmul.mubr.f32.gmra.mxu0 %v5997
  %v6072 = vpop.f32.mrf.mxu0
  %v6073 = vadd.f32 0.0, %v6072
  %v6074 = vpop.f32.mrf.mxu0
  %6075 = vdwg.mxu0
  %v6076 = vadd.f32 %v5977, %v6068
  %v6077 = vadd.f32 %v5978, %v6073
  %s6078 = scalar_lea.vmem %s1, 4352
  %v6079 = vld [vmem:[%s6078] sm:$0xff]
  %v6080 = vld [vmem:[%s6078 + $0x8] sm:$0xff]
  %v6081 = vld [vmem:[%s6078 + $0x10] sm:$0xff]
  %v6082 = vld [vmem:[%s6078 + $0x18] sm:$0xff]
  %v6083 = vld [vmem:[%s6078 + $0x20] sm:$0xff]
  %v6084 = vld [vmem:[%s6078 + $0x28] sm:$0xff]
  %v6085 = vld [vmem:[%s6078 + $0x30] sm:$0xff]
  %v6086 = vld [vmem:[%s6078 + $0x38] sm:$0xff]
  %v6087 = vld [vmem:[%s6078 + $0x40] sm:$0xff]
  %v6088 = vld [vmem:[%s6078 + $0x48] sm:$0xff]
  %v6089 = vld [vmem:[%s6078 + $0x50] sm:$0xff]
  %v6090 = vld [vmem:[%s6078 + $0x58] sm:$0xff]
  %v6091 = vld [vmem:[%s6078 + $0x60] sm:$0xff]
  %v6092 = vld [vmem:[%s6078 + $0x68] sm:$0xff]
  %v6093 = vld [vmem:[%s6078 + $0x70] sm:$0xff]
  %v6094 = vld [vmem:[%s6078 + $0x78] sm:$0xff]
  %v6095 = vrot.slane %v5687, 4
  %v6096 = vrot.slane %v5688, 4
  %v6097 = vsel %vm775, %v6095, %v6096
  %6100 = vmatprep.subr.mxu0 0.0
  %6101 = vmatpush1.msra.mxu0 %v6094
  %6102 = vmatprep.subr.mxu0 0.0
  %6103 = vmatpush1.msra.mxu0 %v6093
  %6104 = vmatprep.subr.mxu0 0.0
  %6105 = vmatpush1.msra.mxu0 %v6092
  %6106 = vmatprep.subr.mxu0 0.0
  %6107 = vmatpush1.msra.mxu0 %v6091
  %6108 = vmatprep.subr.mxu0 0.0
  %6109 = vmatpush1.msra.mxu0 %v6090
  %6110 = vmatprep.subr.mxu0 0.0
  %6111 = vmatpush1.msra.mxu0 %v6089
  %6112 = vmatprep.subr.mxu0 0.0
  %6113 = vmatpush1.msra.mxu0 %v6088
  %6114 = vmatprep.subr.mxu0 0.0
  %6115 = vmatpush1.msra.mxu0 %v6087
  %6116 = vmatprep.subr.mxu0 0.0
  %6117 = vmatpush1.msra.mxu0 %v6086
  %6118 = vmatprep.subr.mxu0 0.0
  %6119 = vmatpush1.msra.mxu0 %v6085
  %6120 = vmatprep.subr.mxu0 0.0
  %6121 = vmatpush1.msra.mxu0 %v6084
  %6122 = vmatprep.subr.mxu0 0.0
  %6123 = vmatpush1.msra.mxu0 %v6083
  %6124 = vmatprep.subr.mxu0 0.0
  %6125 = vmatpush1.msra.mxu0 %v6082
  %6126 = vmatprep.subr.mxu0 0.0
  %6127 = vmatpush1.msra.mxu0 %v6081
  %6128 = vmatprep.subr.mxu0 0.0
  %6129 = vmatpush1.msra.mxu0 %v6080
  %6130 = vmatprep.subr.mxu0 0.0
  %6131 = vmatpush1.msra.mxu0 %v6079
  %6132 = vmatprep.subr.mxu0 0.0
  %6133 = vmatpush2.msra.mxu0 0.0
  %6134 = vmatprep.subr.mxu0 0.0
  %6135 = vmatpush2.msra.mxu0 0.0
  %6136 = vmatprep.subr.mxu0 0.0
  %6137 = vmatpush2.msra.mxu0 0.0
  %6138 = vmatprep.subr.mxu0 0.0
  %6139 = vmatpush2.msra.mxu0 0.0
  %6140 = vmatprep.subr.mxu0 0.0
  %6141 = vmatpush2.msra.mxu0 0.0
  %6142 = vmatprep.subr.mxu0 0.0
  %6143 = vmatpush2.msra.mxu0 0.0
  %6144 = vmatprep.subr.mxu0 0.0
  %6145 = vmatpush2.msra.mxu0 0.0
  %6146 = vmatprep.subr.mxu0 0.0
  %6147 = vmatpush2.msra.mxu0 0.0
  %6148 = vmatprep.subr.mxu0 0.0
  %6149 = vmatpush2.msra.mxu0 0.0
  %6150 = vmatprep.subr.mxu0 0.0
  %6151 = vmatpush2.msra.mxu0 0.0
  %6152 = vmatprep.subr.mxu0 0.0
  %6153 = vmatpush2.msra.mxu0 0.0
  %6154 = vmatprep.subr.mxu0 0.0
  %6155 = vmatpush2.msra.mxu0 0.0
  %6156 = vmatprep.subr.mxu0 0.0
  %6157 = vmatpush2.msra.mxu0 0.0
  %6158 = vmatprep.subr.mxu0 0.0
  %6159 = vmatpush2.msra.mxu0 0.0
  %6160 = vmatprep.subr.mxu0 0.0
  %6161 = vmatpush2.msra.mxu0 0.0
  %6162 = vmatprep.subr.mxu0 0.0
  %6163 = vmatpush2.msra.mxu0 0.0
  %6164 = vmatprep.mubr.f32.mxu0 0.0
  %6165 = vmatmul.mubr.f32.gmra.mxu0 %v6097
  %v6166 = vpop.f32.mrf.mxu0
  %v6167 = vadd.f32 0.0, %v6166
  %v6168 = vpop.f32.mrf.mxu0
  %6169 = vmatprep.mubr.f32.mxu0 0.0
  %6170 = vmatmul.mubr.f32.gmra.mxu0 %v6096
  %v6171 = vpop.f32.mrf.mxu0
  %v6172 = vadd.f32 0.0, %v6171
  %v6173 = vpop.f32.mrf.mxu0
  %6174 = vdwg.mxu0
  %v6175 = vadd.f32 %v6076, %v6167
  %v6176 = vadd.f32 %v6077, %v6172
  %s6177 = scalar_lea.vmem %s1, 4480
  %v6178 = vld [vmem:[%s6177] sm:$0xff]
  %v6179 = vld [vmem:[%s6177 + $0x8] sm:$0xff]
  %v6180 = vld [vmem:[%s6177 + $0x10] sm:$0xff]
  %v6181 = vld [vmem:[%s6177 + $0x18] sm:$0xff]
  %v6182 = vld [vmem:[%s6177 + $0x20] sm:$0xff]
  %v6183 = vld [vmem:[%s6177 + $0x28] sm:$0xff]
  %v6184 = vld [vmem:[%s6177 + $0x30] sm:$0xff]
  %v6185 = vld [vmem:[%s6177 + $0x38] sm:$0xff]
  %v6186 = vld [vmem:[%s6177 + $0x40] sm:$0xff]
  %v6187 = vld [vmem:[%s6177 + $0x48] sm:$0xff]
  %v6188 = vld [vmem:[%s6177 + $0x50] sm:$0xff]
  %v6189 = vld [vmem:[%s6177 + $0x58] sm:$0xff]
  %v6190 = vld [vmem:[%s6177 + $0x60] sm:$0xff]
  %v6191 = vld [vmem:[%s6177 + $0x68] sm:$0xff]
  %v6192 = vld [vmem:[%s6177 + $0x70] sm:$0xff]
  %v6193 = vld [vmem:[%s6177 + $0x78] sm:$0xff]
  %v6194 = vrot.slane %v5687, 5
  %v6195 = vrot.slane %v5688, 5
  %v6196 = vsel %vm967, %v6194, %v6195
  %6199 = vmatprep.subr.mxu0 0.0
  %6200 = vmatpush1.msra.mxu0 %v6193
  %6201 = vmatprep.subr.mxu0 0.0
  %6202 = vmatpush1.msra.mxu0 %v6192
  %6203 = vmatprep.subr.mxu0 0.0
  %6204 = vmatpush1.msra.mxu0 %v6191
  %6205 = vmatprep.subr.mxu0 0.0
  %6206 = vmatpush1.msra.mxu0 %v6190
  %6207 = vmatprep.subr.mxu0 0.0
  %6208 = vmatpush1.msra.mxu0 %v6189
  %6209 = vmatprep.subr.mxu0 0.0
  %6210 = vmatpush1.msra.mxu0 %v6188
  %6211 = vmatprep.subr.mxu0 0.0
  %6212 = vmatpush1.msra.mxu0 %v6187
  %6213 = vmatprep.subr.mxu0 0.0
  %6214 = vmatpush1.msra.mxu0 %v6186
  %6215 = vmatprep.subr.mxu0 0.0
  %6216 = vmatpush1.msra.mxu0 %v6185
  %6217 = vmatprep.subr.mxu0 0.0
  %6218 = vmatpush1.msra.mxu0 %v6184
  %6219 = vmatprep.subr.mxu0 0.0
  %6220 = vmatpush1.msra.mxu0 %v6183
  %6221 = vmatprep.subr.mxu0 0.0
  %6222 = vmatpush1.msra.mxu0 %v6182
  %6223 = vmatprep.subr.mxu0 0.0
  %6224 = vmatpush1.msra.mxu0 %v6181
  %6225 = vmatprep.subr.mxu0 0.0
  %6226 = vmatpush1.msra.mxu0 %v6180
  %6227 = vmatprep.subr.mxu0 0.0
  %6228 = vmatpush1.msra.mxu0 %v6179
  %6229 = vmatprep.subr.mxu0 0.0
  %6230 = vmatpush1.msra.mxu0 %v6178
  %6231 = vmatprep.subr.mxu0 0.0
  %6232 = vmatpush2.msra.mxu0 0.0
  %6233 = vmatprep.subr.mxu0 0.0
  %6234 = vmatpush2.msra.mxu0 0.0
  %6235 = vmatprep.subr.mxu0 0.0
  %6236 = vmatpush2.msra.mxu0 0.0
  %6237 = vmatprep.subr.mxu0 0.0
  %6238 = vmatpush2.msra.mxu0 0.0
  %6239 = vmatprep.subr.mxu0 0.0
  %6240 = vmatpush2.msra.mxu0 0.0
  %6241 = vmatprep.subr.mxu0 0.0
  %6242 = vmatpush2.msra.mxu0 0.0
  %6243 = vmatprep.subr.mxu0 0.0
  %6244 = vmatpush2.msra.mxu0 0.0
  %6245 = vmatprep.subr.mxu0 0.0
  %6246 = vmatpush2.msra.mxu0 0.0
  %6247 = vmatprep.subr.mxu0 0.0
  %6248 = vmatpush2.msra.mxu0 0.0
  %6249 = vmatprep.subr.mxu0 0.0
  %6250 = vmatpush2.msra.mxu0 0.0
  %6251 = vmatprep.subr.mxu0 0.0
  %6252 = vmatpush2.msra.mxu0 0.0
  %6253 = vmatprep.subr.mxu0 0.0
  %6254 = vmatpush2.msra.mxu0 0.0
  %6255 = vmatprep.subr.mxu0 0.0
  %6256 = vmatpush2.msra.mxu0 0.0
  %6257 = vmatprep.subr.mxu0 0.0
  %6258 = vmatpush2.msra.mxu0 0.0
  %6259 = vmatprep.subr.mxu0 0.0
  %6260 = vmatpush2.msra.mxu0 0.0
  %6261 = vmatprep.subr.mxu0 0.0
  %6262 = vmatpush2.msra.mxu0 0.0
  %6263 = vmatprep.mubr.f32.mxu0 0.0
  %6264 = vmatmul.mubr.f32.gmra.mxu0 %v6196
  %v6265 = vpop.f32.mrf.mxu0
  %v6266 = vadd.f32 0.0, %v6265
  %v6267 = vpop.f32.mrf.mxu0
  %6268 = vmatprep.mubr.f32.mxu0 0.0
  %6269 = vmatmul.mubr.f32.gmra.mxu0 %v6195
  %v6270 = vpop.f32.mrf.mxu0
  %v6271 = vadd.f32 0.0, %v6270
  %v6272 = vpop.f32.mrf.mxu0
  %6273 = vdwg.mxu0
  %v6274 = vadd.f32 %v6175, %v6266
  %v6275 = vadd.f32 %v6176, %v6271
  %v6276 = vmax.f32 %v6274, 0.0
  %v6277 = vmax.f32 %v6275, 0.0
  %v6278 = vld [vmem:[%s4] sm:$0xff]
  %v6279 = vld [vmem:[%s4 + $0x8] sm:$0xff]
  %v6280 = vld [vmem:[%s4 + $0x10] sm:$0xff]
  %v6281 = vld [vmem:[%s4 + $0x18] sm:$0xff]
  %v6282 = vld [vmem:[%s4 + $0x20] sm:$0xff]
  %v6283 = vld [vmem:[%s4 + $0x28] sm:$0xff]
  %v6284 = vld [vmem:[%s4 + $0x30] sm:$0xff]
  %v6285 = vld [vmem:[%s4 + $0x38] sm:$0xff]
  %v6286 = vld [vmem:[%s4 + $0x40] sm:$0xff]
  %v6287 = vld [vmem:[%s4 + $0x48] sm:$0xff]
  %v6288 = vld [vmem:[%s4 + $0x50] sm:$0xff]
  %v6289 = vld [vmem:[%s4 + $0x58] sm:$0xff]
  %v6290 = vld [vmem:[%s4 + $0x60] sm:$0xff]
  %v6291 = vld [vmem:[%s4 + $0x68] sm:$0xff]
  %v6292 = vld [vmem:[%s4 + $0x70] sm:$0xff]
  %v6293 = vld [vmem:[%s4 + $0x78] sm:$0xff]
  %v6294 = vld [vmem:[%s4 + $0x80] sm:$0xff]
  %v6295 = vld [vmem:[%s4 + $0x88] sm:$0xff]
  %v6296 = vld [vmem:[%s4 + $0x90] sm:$0xff]
  %v6297 = vld [vmem:[%s4 + $0x98] sm:$0xff]
  %v6298 = vld [vmem:[%s4 + $0xa0] sm:$0xff]
  %v6299 = vld [vmem:[%s4 + $0xa8] sm:$0xff]
  %v6300 = vld [vmem:[%s4 + $0xb0] sm:$0xff]
  %v6301 = vld [vmem:[%s4 + $0xb8] sm:$0xff]
  %v6302 = vld [vmem:[%s4 + $0xc0] sm:$0xff]
  %v6303 = vld [vmem:[%s4 + $0xc8] sm:$0xff]
  %v6304 = vld [vmem:[%s4 + $0xd0] sm:$0xff]
  %v6305 = vld [vmem:[%s4 + $0xd8] sm:$0xff]
  %v6306 = vld [vmem:[%s4 + $0xe0] sm:$0xff]
  %v6307 = vld [vmem:[%s4 + $0xe8] sm:$0xff]
  %v6308 = vld [vmem:[%s4 + $0xf0] sm:$0xff]
  %v6309 = vld [vmem:[%s4 + $0xf8] sm:$0xff]
  %6310 = vmatprep.subr.mxu0 %v6309
  %6311 = vmatpush1.msra.mxu0 %v6308
  %6312 = vmatprep.subr.mxu0 %v6307
  %6313 = vmatpush1.msra.mxu0 %v6306
  %6314 = vmatprep.subr.mxu0 %v6305
  %6315 = vmatpush1.msra.mxu0 %v6304
  %6316 = vmatprep.subr.mxu0 %v6303
  %6317 = vmatpush1.msra.mxu0 %v6302
  %6318 = vmatprep.subr.mxu0 %v6301
  %6319 = vmatpush1.msra.mxu0 %v6300
  %6320 = vmatprep.subr.mxu0 %v6299
  %6321 = vmatpush1.msra.mxu0 %v6298
  %6322 = vmatprep.subr.mxu0 %v6297
  %6323 = vmatpush1.msra.mxu0 %v6296
  %6324 = vmatprep.subr.mxu0 %v6295
  %6325 = vmatpush1.msra.mxu0 %v6294
  %6326 = vmatprep.subr.mxu0 %v6293
  %6327 = vmatpush1.msra.mxu0 %v6292
  %6328 = vmatprep.subr.mxu0 %v6291
  %6329 = vmatpush1.msra.mxu0 %v6290
  %6330 = vmatprep.subr.mxu0 %v6289
  %6331 = vmatpush1.msra.mxu0 %v6288
  %6332 = vmatprep.subr.mxu0 %v6287
  %6333 = vmatpush1.msra.mxu0 %v6286
  %6334 = vmatprep.subr.mxu0 %v6285
  %6335 = vmatpush1.msra.mxu0 %v6284
  %6336 = vmatprep.subr.mxu0 %v6283
  %6337 = vmatpush1.msra.mxu0 %v6282
  %6338 = vmatprep.subr.mxu0 %v6281
  %6339 = vmatpush1.msra.mxu0 %v6280
  %6340 = vmatprep.subr.mxu0 %v6279
  %6341 = vmatpush1.msra.mxu0 %v6278
  %6342 = vmatprep.subr.mxu0 0.0
  %6343 = vmatpush2.msra.mxu0 0.0
  %6344 = vmatprep.subr.mxu0 0.0
  %6345 = vmatpush2.msra.mxu0 0.0
  %6346 = vmatprep.subr.mxu0 0.0
  %6347 = vmatpush2.msra.mxu0 0.0
  %6348 = vmatprep.subr.mxu0 0.0
  %6349 = vmatpush2.msra.mxu0 0.0
  %6350 = vmatprep.subr.mxu0 0.0
  %6351 = vmatpush2.msra.mxu0 0.0
  %6352 = vmatprep.subr.mxu0 0.0
  %6353 = vmatpush2.msra.mxu0 0.0
  %6354 = vmatprep.subr.mxu0 0.0
  %6355 = vmatpush2.msra.mxu0 0.0
  %6356 = vmatprep.subr.mxu0 0.0
  %6357 = vmatpush2.msra.mxu0 0.0
  %6358 = vmatprep.subr.mxu0 0.0
  %6359 = vmatpush2.msra.mxu0 0.0
  %6360 = vmatprep.subr.mxu0 0.0
  %6361 = vmatpush2.msra.mxu0 0.0
  %6362 = vmatprep.subr.mxu0 0.0
  %6363 = vmatpush2.msra.mxu0 0.0
  %6364 = vmatprep.subr.mxu0 0.0
  %6365 = vmatpush2.msra.mxu0 0.0
  %6366 = vmatprep.subr.mxu0 0.0
  %6367 = vmatpush2.msra.mxu0 0.0
  %6368 = vmatprep.subr.mxu0 0.0
  %6369 = vmatpush2.msra.mxu0 0.0
  %6370 = vmatprep.subr.mxu0 0.0
  %6371 = vmatpush2.msra.mxu0 0.0
  %6372 = vmatprep.subr.mxu0 0.0
  %6373 = vmatpush2.msra.mxu0 0.0
  %6374 = vmatprep.mubr.f32.mxu0 0.0
  %6375 = vmatmul.mubr.f32.gmra.mxu0 %v6276
  %v6376 = vpop.f32.mrf.mxu0
  %v6377 = vadd.f32 0.0, %v6376
  %v6378 = vpop.f32.mrf.mxu0
  %v6379 = vadd.f32 0.0, %v6378
  %6380 = vmatprep.mubr.f32.mxu0 0.0
  %6381 = vmatmul.mubr.f32.gmra.mxu0 %v6277
  %v6382 = vpop.f32.mrf.mxu0
  %v6383 = vadd.f32 0.0, %v6382
  %v6384 = vpop.f32.mrf.mxu0
  %v6385 = vadd.f32 0.0, %v6384
  %6386 = vdwg.mxu0
  %v6387 = vld [vmem:[%s5] sm:$0xff]
  %v6388 = vld [vmem:[%s5 + $0x8] sm:$0xff]
  %v6389 = vld [vmem:[%s5 + $0x10] sm:$0x3]
  %v6390 = vld [vmem:[%s5 + $0x18] sm:$0x3]
  %v6391 = vmul.f32 %v6377, %v6387
  %v6392 = vmul.f32 %v6379, %v6388
  %v6393 = vmul.f32 %v6383, %v6389
  %v6394 = vmul.f32 %v6385, %v6390
  %vm6395 = vcmask 1041408
  %v6396 = vsel %vm6395, %v6393, 0.0
  %v6397 = vadd.f32 %v6391, %v6396
  %v6398 = vrot.slane %v6397, 4
  %v6399 = vadd.f32 %v6397, %v6398
  %v6400 = vrot.slane %v6399, 2
  %v6401 = vadd.f32 %v6399, %v6400
  %v6402 = vrot.slane %v6401, 1
  %v6403 = vadd.f32 %v6401, %v6402
  %v6404 = vsel %vm6395, %v6394, 0.0
  %v6405 = vadd.f32 %v6392, %v6404
  %v6406 = vrot.slane %v6405, 4
  %v6407 = vadd.f32 %v6405, %v6406
  %v6408 = vrot.slane %v6407, 2
  %v6409 = vadd.f32 %v6407, %v6408
  %v6410 = vrot.slane %v6409, 1
  %v6411 = vadd.f32 %v6409, %v6410
  %v6412 = vld [vmem:[%s6] sm:$0xff]
  %v6413 = vld [vmem:[%s6 + $0x8] sm:$0xff]
  %v6414 = vld [vmem:[%s6 + $0x10] sm:$0xff]
  %v6415 = vld [vmem:[%s6 + $0x18] sm:$0xff]
  %v6416 = vld [vmem:[%s6 + $0x20] sm:$0xff]
  %v6417 = vld [vmem:[%s6 + $0x28] sm:$0xff]
  %v6418 = vld [vmem:[%s6 + $0x30] sm:$0xff]
  %v6419 = vld [vmem:[%s6 + $0x38] sm:$0xff]
  %v6420 = vld [vmem:[%s6 + $0x40] sm:$0xff]
  %v6421 = vld [vmem:[%s6 + $0x48] sm:$0xff]
  %v6422 = vld [vmem:[%s6 + $0x50] sm:$0xff]
  %v6423 = vld [vmem:[%s6 + $0x58] sm:$0xff]
  %v6424 = vld [vmem:[%s6 + $0x60] sm:$0xff]
  %v6425 = vld [vmem:[%s6 + $0x68] sm:$0xff]
  %v6426 = vld [vmem:[%s6 + $0x70] sm:$0xff]
  %v6427 = vld [vmem:[%s6 + $0x78] sm:$0xff]
  %v6428 = vld [vmem:[%s6 + $0x80] sm:$0xff]
  %v6429 = vld [vmem:[%s6 + $0x88] sm:$0xff]
  %v6430 = vld [vmem:[%s6 + $0x90] sm:$0xff]
  %v6431 = vld [vmem:[%s6 + $0x98] sm:$0xff]
  %v6432 = vld [vmem:[%s6 + $0xa0] sm:$0xff]
  %v6433 = vld [vmem:[%s6 + $0xa8] sm:$0xff]
  %v6434 = vld [vmem:[%s6 + $0xb0] sm:$0xff]
  %v6435 = vld [vmem:[%s6 + $0xb8] sm:$0xff]
  %v6436 = vld [vmem:[%s6 + $0xc0] sm:$0xff]
  %v6437 = vld [vmem:[%s6 + $0xc8] sm:$0xff]
  %v6438 = vld [vmem:[%s6 + $0xd0] sm:$0xff]
  %v6439 = vld [vmem:[%s6 + $0xd8] sm:$0xff]
  %v6440 = vld [vmem:[%s6 + $0xe0] sm:$0xff]
  %v6441 = vld [vmem:[%s6 + $0xe8] sm:$0xff]
  %v6442 = vld [vmem:[%s6 + $0xf0] sm:$0xff]
  %v6443 = vld [vmem:[%s6 + $0xf8] sm:$0xff]
  %6444 = vmatprep.subr.mxu0 0.0
  %6445 = vmatpush1.msra.mxu0 %v6427
  %6446 = vmatprep.subr.mxu0 0.0
  %6447 = vmatpush1.msra.mxu0 %v6426
  %6448 = vmatprep.subr.mxu0 0.0
  %6449 = vmatpush1.msra.mxu0 %v6425
  %6450 = vmatprep.subr.mxu0 0.0
  %6451 = vmatpush1.msra.mxu0 %v6424
  %6452 = vmatprep.subr.mxu0 0.0
  %6453 = vmatpush1.msra.mxu0 %v6423
  %6454 = vmatprep.subr.mxu0 0.0
  %6455 = vmatpush1.msra.mxu0 %v6422
  %6456 = vmatprep.subr.mxu0 0.0
  %6457 = vmatpush1.msra.mxu0 %v6421
  %6458 = vmatprep.subr.mxu0 0.0
  %6459 = vmatpush1.msra.mxu0 %v6420
  %6460 = vmatprep.subr.mxu0 0.0
  %6461 = vmatpush1.msra.mxu0 %v6419
  %6462 = vmatprep.subr.mxu0 0.0
  %6463 = vmatpush1.msra.mxu0 %v6418
  %6464 = vmatprep.subr.mxu0 0.0
  %6465 = vmatpush1.msra.mxu0 %v6417
  %6466 = vmatprep.subr.mxu0 0.0
  %6467 = vmatpush1.msra.mxu0 %v6416
  %6468 = vmatprep.subr.mxu0 0.0
  %6469 = vmatpush1.msra.mxu0 %v6415
  %6470 = vmatprep.subr.mxu0 0.0
  %6471 = vmatpush1.msra.mxu0 %v6414
  %6472 = vmatprep.subr.mxu0 0.0
  %6473 = vmatpush1.msra.mxu0 %v6413
  %6474 = vmatprep.subr.mxu0 0.0
  %6475 = vmatpush1.msra.mxu0 %v6412
  %6476 = vmatprep.subr.mxu0 0.0
  %6477 = vmatpush2.msra.mxu0 %v6443
  %6478 = vmatprep.subr.mxu0 0.0
  %6479 = vmatpush2.msra.mxu0 %v6442
  %6480 = vmatprep.subr.mxu0 0.0
  %6481 = vmatpush2.msra.mxu0 %v6441
  %6482 = vmatprep.subr.mxu0 0.0
  %6483 = vmatpush2.msra.mxu0 %v6440
  %6484 = vmatprep.subr.mxu0 0.0
  %6485 = vmatpush2.msra.mxu0 %v6439
  %6486 = vmatprep.subr.mxu0 0.0
  %6487 = vmatpush2.msra.mxu0 %v6438
  %6488 = vmatprep.subr.mxu0 0.0
  %6489 = vmatpush2.msra.mxu0 %v6437
  %6490 = vmatprep.subr.mxu0 0.0
  %6491 = vmatpush2.msra.mxu0 %v6436
  %6492 = vmatprep.subr.mxu0 0.0
  %6493 = vmatpush2.msra.mxu0 %v6435
  %6494 = vmatprep.subr.mxu0 0.0
  %6495 = vmatpush2.msra.mxu0 %v6434
  %6496 = vmatprep.subr.mxu0 0.0
  %6497 = vmatpush2.msra.mxu0 %v6433
  %6498 = vmatprep.subr.mxu0 0.0
  %6499 = vmatpush2.msra.mxu0 %v6432
  %6500 = vmatprep.subr.mxu0 0.0
  %6501 = vmatpush2.msra.mxu0 %v6431
  %6502 = vmatprep.subr.mxu0 0.0
  %6503 = vmatpush2.msra.mxu0 %v6430
  %6504 = vmatprep.subr.mxu0 0.0
  %6505 = vmatpush2.msra.mxu0 %v6429
  %6506 = vmatprep.subr.mxu0 0.0
  %6507 = vmatpush2.msra.mxu0 %v6428
  %6508 = vmatprep.mubr.f32.mxu0 %v6411
  %6509 = vmatmul.mubr.f32.gmra.mxu0 %v6403
  %v6510 = vpop.f32.mrf.mxu0
  %v6511 = vadd.f32 0.0, %v6510
  %v6512 = vpop.f32.mrf.mxu0
  %6513 = vdwg.mxu0
  %v6514 = vmax.f32 %v6511, 0.0
  %v6515 = vld [vmem:[%s7] sm:$0xff]
  %v6516 = vld [vmem:[%s7 + $0x8] sm:$0xff]
  %v6517 = vld [vmem:[%s7 + $0x10] sm:$0xff]
  %v6518 = vld [vmem:[%s7 + $0x18] sm:$0xff]
  %v6519 = vld [vmem:[%s7 + $0x20] sm:$0xff]
  %v6520 = vld [vmem:[%s7 + $0x28] sm:$0xff]
  %v6521 = vld [vmem:[%s7 + $0x30] sm:$0xff]
  %v6522 = vld [vmem:[%s7 + $0x38] sm:$0xff]
  %v6523 = vld [vmem:[%s7 + $0x40] sm:$0xff]
  %v6524 = vld [vmem:[%s7 + $0x48] sm:$0xff]
  %v6525 = vld [vmem:[%s7 + $0x50] sm:$0xff]
  %v6526 = vld [vmem:[%s7 + $0x58] sm:$0xff]
  %v6527 = vld [vmem:[%s7 + $0x60] sm:$0xff]
  %v6528 = vld [vmem:[%s7 + $0x68] sm:$0xff]
  %v6529 = vld [vmem:[%s7 + $0x70] sm:$0xff]
  %v6530 = vld [vmem:[%s7 + $0x78] sm:$0xff]
  %6531 = vmatprep.subr.mxu0 0.0
  %6532 = vmatpush1.msra.mxu0 %v6530
  %6533 = vmatprep.subr.mxu0 0.0
  %6534 = vmatpush1.msra.mxu0 %v6529
  %6535 = vmatprep.subr.mxu0 0.0
  %6536 = vmatpush1.msra.mxu0 %v6528
  %6537 = vmatprep.subr.mxu0 0.0
  %6538 = vmatpush1.msra.mxu0 %v6527
  %6539 = vmatprep.subr.mxu0 0.0
  %6540 = vmatpush1.msra.mxu0 %v6526
  %6541 = vmatprep.subr.mxu0 0.0
  %6542 = vmatpush1.msra.mxu0 %v6525
  %6543 = vmatprep.subr.mxu0 0.0
  %6544 = vmatpush1.msra.mxu0 %v6524
  %6545 = vmatprep.subr.mxu0 0.0
  %6546 = vmatpush1.msra.mxu0 %v6523
  %6547 = vmatprep.subr.mxu0 0.0
  %6548 = vmatpush1.msra.mxu0 %v6522
  %6549 = vmatprep.subr.mxu0 0.0
  %6550 = vmatpush1.msra.mxu0 %v6521
  %6551 = vmatprep.subr.mxu0 0.0
  %6552 = vmatpush1.msra.mxu0 %v6520
  %6553 = vmatprep.subr.mxu0 0.0
  %6554 = vmatpush1.msra.mxu0 %v6519
  %6555 = vmatprep.subr.mxu0 0.0
  %6556 = vmatpush1.msra.mxu0 %v6518
  %6557 = vmatprep.subr.mxu0 0.0
  %6558 = vmatpush1.msra.mxu0 %v6517
  %6559 = vmatprep.subr.mxu0 0.0
  %6560 = vmatpush1.msra.mxu0 %v6516
  %6561 = vmatprep.subr.mxu0 0.0
  %6562 = vmatpush1.msra.mxu0 %v6515
  %6563 = vmatprep.subr.mxu0 0.0
  %6564 = vmatpush2.msra.mxu0 0.0
  %6565 = vmatprep.subr.mxu0 0.0
  %6566 = vmatpush2.msra.mxu0 0.0
  %6567 = vmatprep.subr.mxu0 0.0
  %6568 = vmatpush2.msra.mxu0 0.0
  %6569 = vmatprep.subr.mxu0 0.0
  %6570 = vmatpush2.msra.mxu0 0.0
  %6571 = vmatprep.subr.mxu0 0.0
  %6572 = vmatpush2.msra.mxu0 0.0
  %6573 = vmatprep.subr.mxu0 0.0
  %6574 = vmatpush2.msra.mxu0 0.0
  %6575 = vmatprep.subr.mxu0 0.0
  %6576 = vmatpush2.msra.mxu0 0.0
  %6577 = vmatprep.subr.mxu0 0.0
  %6578 = vmatpush2.msra.mxu0 0.0
  %6579 = vmatprep.subr.mxu0 0.0
  %6580 = vmatpush2.msra.mxu0 0.0
  %6581 = vmatprep.subr.mxu0 0.0
  %6582 = vmatpush2.msra.mxu0 0.0
  %6583 = vmatprep.subr.mxu0 0.0
  %6584 = vmatpush2.msra.mxu0 0.0
  %6585 = vmatprep.subr.mxu0 0.0
  %6586 = vmatpush2.msra.mxu0 0.0
  %6587 = vmatprep.subr.mxu0 0.0
  %6588 = vmatpush2.msra.mxu0 0.0
  %6589 = vmatprep.subr.mxu0 0.0
  %6590 = vmatpush2.msra.mxu0 0.0
  %6591 = vmatprep.subr.mxu0 0.0
  %6592 = vmatpush2.msra.mxu0 0.0
  %6593 = vmatprep.subr.mxu0 0.0
  %6594 = vmatpush2.msra.mxu0 0.0
  %6595 = vmatprep.mubr.f32.mxu0 0.0
  %6596 = vmatmul.mubr.f32.gmra.mxu0 %v6514
  %v6597 = vpop.f32.mrf.mxu0
  %v6598 = vadd.f32 0.0, %v6597
  %v6599 = vpop.f32.mrf.mxu0
  %6600 = vdwg.mxu0
  %v6601 = vmax.f32 %v6598, 0.0
  %v6602 = vlaneseq
  %v6603 = vand.u32 %v6602, 127
  %vm6604 = vcmp.lt.s32.totalorder %v6603, 5
  %v6605 = vsel %vm6604, %v6601, -1e+30
  %vm6606 = vcmask 1040384
  %v6607 = vsel %vm6606, %v6605, -inf
  %6608 = vmax.xlane.f32.xlu0 %v6607
  %v6609 = vpop.xlane.xlu0 %6608
  %v6610 = vsub.f32 %v6605, %v6609
  %v6611 = vmul.f32 %v6610, 1.442695
  %v6612 = vpow.pop %v6611
  %v6613 = vsel %vm6606, %v6612, 0.0
  %6614 = vadd.xlane.f32.xlu0 %v6613
  %v6615 = vpop.xlane.xlu0 %6614
  %v6616 = vrcp.pop %v6615
  %v6617 = vmul.f32 %v6612, %v6616
  %6618 = vst [vmem:[%s8] sm:$0x1] %v6617
  // Predicated region
  $region34: #{p1_cnn_forward.1} parent=0 // pred_check
    _
  $region35: #{p1_cnn_forward.1} parent=0 // pred_check_branch
    %6620 = sbr.rel (0) target = $region37
  $region36: #{p1_cnn_forward.1} parent=0 // pred_region
    _
  $region37: #{p1_cnn_forward.1} parent=0 // pred_fallthru
    _
  // Predicated region
  $region38: #{p1_cnn_forward.1} parent=0 // pred_check
    _
  $region39: #{p1_cnn_forward.1} parent=0 // pred_check_branch
    %6622 = sbr.rel (0) target = $region41
  $region40: #{p1_cnn_forward.1} parent=0 // pred_region
    _
  $region41: #{p1_cnn_forward.1} parent=0 // pred_fallthru
    _

</llo_original>
